<compile_context>
chip_gen: v7x
topology: tpu7x:2x2x1
jax: 0.10.0
libtpu: 0.0.40
codegen_flags: <defaults>
</compile_context>

<pallas_src>
import functools
import math

import jax
import jax.numpy as jnp
from jax.experimental import pallas as pl
from jax.experimental.pallas import tpu as pltpu


def _fused_encoder_kernel(
    x_ref, wqkv_ref, bqkv_ref, wo_ref, bo_ref,
    g1_ref, bt1_ref, w1_ref, b1_ref, w2_ref, b2_ref, g2_ref, bt2_ref,
    out_ref, *, Sblk, L, D, H, nlayers, eps,
):
    hd = D // H
    R = Sblk * L

    def layer_norm(v, g, b):
        # Post-norm LayerNorm; keep all VPU math in f32 (no bf16 VPU on v5e).
        mu = jnp.mean(v, axis=-1, keepdims=True)
        vc = v - mu
        var = jnp.mean(vc * vc, axis=-1, keepdims=True)
        return vc * jax.lax.rsqrt(var + eps) * g + b

    def layer_body(l, x):
        # ---- fused QKV projection (1/sqrt(hd) pre-folded into Q columns) ----
        qkv = jnp.dot(x.astype(jnp.bfloat16), wqkv_ref[l],
                      preferred_element_type=jnp.float32) + bqkv_ref[l]

        # ---- self attention, batched over the Sblk sequences ----------------
        # Heads loop statically; per-head context is folded straight into the
        # output projection (no lane-offset concatenate of head slices).
        wo = wo_ref[l]                                     # (D, D) bf16
        attn = jnp.zeros((R, D), jnp.float32)
        for h in range(H):
            q = qkv[:, h * hd:(h + 1) * hd].reshape(Sblk, L, hd).astype(jnp.bfloat16)
            k = qkv[:, D + h * hd:D + (h + 1) * hd].reshape(Sblk, L, hd).astype(jnp.bfloat16)
            v = qkv[:, 2 * D + h * hd:2 * D + (h + 1) * hd].reshape(Sblk, L, hd).astype(jnp.bfloat16)
            s = jnp.einsum('bld,bmd->blm', q, k,
                           preferred_element_type=jnp.float32)        # (Sblk, L, L)
            s = s - jnp.max(s, axis=-1, keepdims=True)
            p = jnp.exp(s)
            p = p * pl.reciprocal(jnp.sum(p, axis=-1, keepdims=True), approx=True)
            ctx = jnp.einsum('blm,bmd->bld', p.astype(jnp.bfloat16), v,
                             preferred_element_type=jnp.float32)      # (Sblk, L, hd)
            attn = attn + jnp.dot(ctx.reshape(R, hd).astype(jnp.bfloat16),
                                  wo[h * hd:(h + 1) * hd, :],
                                  preferred_element_type=jnp.float32)
        attn = attn + bo_ref[l]

        # ---- residual + LayerNorm 1 ------------------------------------------
        x1 = layer_norm(x + attn, g1_ref[l], bt1_ref[l])

        # ---- feed-forward (ReLU, PyTorch default activation) ------------------
        ff = jnp.dot(x1.astype(jnp.bfloat16), w1_ref[l],
                     preferred_element_type=jnp.float32) + b1_ref[l]
        ff = jnp.maximum(ff, 0.0)
        ff2 = jnp.dot(ff.astype(jnp.bfloat16), w2_ref[l],
                      preferred_element_type=jnp.float32) + b2_ref[l]

        # ---- residual + LayerNorm 2 ------------------------------------------
        return layer_norm(x1 + ff2, g2_ref[l], bt2_ref[l])

    x = x_ref[...]                                         # (R, D) f32 residual stream
    if nlayers <= 4:
        for l in range(nlayers):                           # static unroll, weights resident
            x = layer_body(l, x)
    else:
        # Deep stacks: bound trace size / live ranges; dynamic first-axis
        # indexing of the stacked weight refs works inside fori_loop.
        x = jax.lax.fori_loop(0, nlayers, layer_body, x)
    out_ref[...] = x


def init_params(key, hidden_dim, nlayers, mlp_ratio, num_heads):
    """Deterministic synthetic parameters. Weights stored pre-transposed (in_dim, out_dim)."""
    D = hidden_dim
    M = hidden_dim * mlp_ratio
    layers = []
    for l in range(nlayers):
        keys = jax.random.split(jax.random.fold_in(key, l), 6)
        s = 0.05
        layers.append(dict(
            wqkv=(s * jax.random.normal(keys[0], (D, 3 * D))).astype(jnp.float32),
            bqkv=(s * jax.random.normal(keys[1], (1, 3 * D))).astype(jnp.float32),
            wo=(s * jax.random.normal(keys[2], (D, D))).astype(jnp.float32),
            bo=jnp.zeros((1, D), jnp.float32),
            g1=jnp.ones((1, D), jnp.float32),
            bt1=jnp.zeros((1, D), jnp.float32),
            w1=(s * jax.random.normal(keys[3], (D, M))).astype(jnp.float32),
            b1=(s * jax.random.normal(keys[4], (1, M))).astype(jnp.float32),
            w2=(s * jax.random.normal(keys[5], (M, D))).astype(jnp.float32),
            b2=jnp.zeros((1, D), jnp.float32),
            g2=jnp.ones((1, D), jnp.float32),
            bt2=jnp.zeros((1, D), jnp.float32),
        ))
    return layers


def transformer_layers_forward(src, params, *, num_heads, eps=1e-5):
    """src: (B, N, L, D). Mirrors TransformerLayers.forward (eval mode)."""
    B, N, L, D = src.shape
    S = B * N
    H = num_heads
    assert D % H == 0
    hd = D // H
    nlayers = len(params)

    x = (src.astype(jnp.float32) * math.sqrt(D)).reshape(S, L, D)

    # ---- stack per-layer params along a leading nlayers axis (layer fusion) ---
    order = ["wqkv", "bqkv", "wo", "bo", "g1", "bt1",
             "w1", "b1", "w2", "b2", "g2", "bt2"]
    stk = {k: jnp.stack([p[k] for p in params], axis=0) for k in order}
    # fold the 1/sqrt(hd) attention scale into the Q columns of Wqkv / bqkv
    scale = 1.0 / math.sqrt(hd)
    stk["wqkv"] = stk["wqkv"].at[:, :, :D].multiply(scale)
    stk["bqkv"] = stk["bqkv"].at[:, :, :D].multiply(scale)
    # bf16 matmul weights (bf16-native MXUs on v6e/v7x; halves weight DMA bytes).
    # Biases / LN params stay f32 (added to f32 accumulators / VPU math).
    for k in ("wqkv", "wo", "w1", "w2"):
        stk[k] = stk[k].astype(jnp.bfloat16)
    M = stk["w1"].shape[-1]

    # ---- VMEM budget -> sequence-slab size -------------------------------------
    try:
        vmem_cap = int(pltpu.get_tpu_info().vmem_capacity_bytes)
    except Exception:
        vmem_cap = 64 * 1024 * 1024            # conservative (v7x physical VMEM)
    vmem_limit = int(vmem_cap * 0.9)
    w_bytes = sum(int(v.size) * v.dtype.itemsize for v in stk.values())
    # rough per-row activation footprint: double-buffered f32 in/out x-blocks,
    # qkv / FFN intermediates (f32 + bf16 copies), one head's scores & probs.
    row_bytes = 4 * (12 * D + 2 * M) + 8 * L
    avail = max(vmem_limit - 3 * w_bytes, 1 << 20)
    target_rows = int(min(2048, max(256, avail // row_bytes)))

    def _aligned(sb):                          # block sublane dim must be 8-aligned
        return (sb * L) % 8 == 0

    Sblk = max(1, target_rows // L)
    while not _aligned(Sblk):
        Sblk += 1
    if Sblk >= S:
        # Small problem: still try to keep >= 2 grid steps so both v7x
        # TensorCores get work on the "parallel" grid axis.
        half = (S + 1) // 2
        while 0 < half < S and not _aligned(half):
            half += 1
        Sblk = half if 0 < half < S else S
    S_pad = ((S + Sblk - 1) // Sblk) * Sblk
    if S_pad != S:
        x = jnp.concatenate([x, jnp.zeros((S_pad - S, L, D), jnp.float32)], axis=0)
    x_flat = x.reshape(S_pad * L, D)
    grid = (S_pad // Sblk,)

    kern = functools.partial(
        _fused_encoder_kernel,
        Sblk=Sblk, L=L, D=D, H=H, nlayers=nlayers, eps=eps)
    weights = [stk[k] for k in order]
    x_spec = pl.BlockSpec((Sblk * L, D), lambda i: (i, 0))
    out_spec = pl.BlockSpec((Sblk * L, D), lambda i: (i, 0))
    out_shape = jax.ShapeDtypeStruct((S_pad * L, D), jnp.float32)

    def _run(single_buffer_weights):
        def w_spec(a):
            imap = lambda i, nd=a.ndim: (0,) * nd
            if single_buffer_weights:
                # Grid-invariant weights: one VMEM buffer instead of the default
                # double buffer (double-buffering invariant inputs wastes VMEM).
                return pl.BlockSpec(a.shape, imap, pipeline_mode=pl.Buffered(1))
            return pl.BlockSpec(a.shape, imap)

        return pl.pallas_call(
            kern,
            out_shape=out_shape,
            grid=grid,
            in_specs=[x_spec] + [w_spec(a) for a in weights],
            out_specs=out_spec,
            compiler_params=pltpu.CompilerParams(
                dimension_semantics=("parallel",),
                vmem_limit_bytes=vmem_limit),
        )(x_flat, *weights)

    try:
        out = _run(True)
    except Exception:
        # pl.Buffered(1) (single-buffered invariant inputs) may be unsupported
        # on this Pallas version; fall back to default buffering.
        out = _run(False)

    return out.reshape(S_pad, L, D)[:S].reshape(B, N, L, D)


if __name__ == "__main__":
    hidden_dim = 32
    nlayers = 2
    mlp_ratio = 4
    num_heads = 4
    B, N, L = 2, 3, 8

    key = jax.random.PRNGKey(0)
    kx, kp = jax.random.split(key)
    src = jax.random.normal(kx, (B, N, L, hidden_dim), dtype=jnp.float32)
    params = init_params(kp, hidden_dim, nlayers, mlp_ratio, num_heads)

    out = transformer_layers_forward(src, params, num_heads=num_heads)
    out = jax.block_until_ready(out)
    assert out.shape == (B, N, L, hidden_dim)
    assert bool(jnp.all(jnp.isfinite(out)))
    print("KERNEL_OK")
</pallas_src>

<mosaic_0001>
module attributes {stable_mosaic.version = 11 : i64} {
  func.func @_fused_encoder_kernel(%arg0: i32, %arg1: memref<24x32xf32, #tpu.memory_space<vmem>>, %arg2: memref<2x32x96xbf16, #tpu.memory_space<vmem>>, %arg3: memref<2x1x96xf32, #tpu.memory_space<vmem>>, %arg4: memref<2x32x32xbf16, #tpu.memory_space<vmem>>, %arg5: memref<2x1x32xf32, #tpu.memory_space<vmem>>, %arg6: memref<2x1x32xf32, #tpu.memory_space<vmem>>, %arg7: memref<2x1x32xf32, #tpu.memory_space<vmem>>, %arg8: memref<2x32x128xbf16, #tpu.memory_space<vmem>>, %arg9: memref<2x1x128xf32, #tpu.memory_space<vmem>>, %arg10: memref<2x128x32xbf16, #tpu.memory_space<vmem>>, %arg11: memref<2x1x32xf32, #tpu.memory_space<vmem>>, %arg12: memref<2x1x32xf32, #tpu.memory_space<vmem>>, %arg13: memref<2x1x32xf32, #tpu.memory_space<vmem>>, %arg14: memref<24x32xf32, #tpu.memory_space<vmem>>) attributes {dimension_semantics = [#tpu.dimension_semantics<parallel>], iteration_bounds = array<i64: 2>, scalar_prefetch = 0 : i64, scratch_operands = 0 : i64, tpu.core_type = #tpu.core_type<tc>, window_params = [{transform_indices = @transform_0, window_bounds = array<i64: 24, 32>}, {pipeline_mode = #tpu.pipeline_mode<synchronous>, transform_indices = @transform_1, window_bounds = array<i64: 2, 32, 96>}, {pipeline_mode = #tpu.pipeline_mode<synchronous>, transform_indices = @transform_2, window_bounds = array<i64: 2, 1, 96>}, {pipeline_mode = #tpu.pipeline_mode<synchronous>, transform_indices = @transform_3, window_bounds = array<i64: 2, 32, 32>}, {pipeline_mode = #tpu.pipeline_mode<synchronous>, transform_indices = @transform_4, window_bounds = array<i64: 2, 1, 32>}, {pipeline_mode = #tpu.pipeline_mode<synchronous>, transform_indices = @transform_5, window_bounds = array<i64: 2, 1, 32>}, {pipeline_mode = #tpu.pipeline_mode<synchronous>, transform_indices = @transform_6, window_bounds = array<i64: 2, 1, 32>}, {pipeline_mode = #tpu.pipeline_mode<synchronous>, transform_indices = @transform_7, window_bounds = array<i64: 2, 32, 128>}, {pipeline_mode = #tpu.pipeline_mode<synchronous>, transform_indices = @transform_8, window_bounds = array<i64: 2, 1, 128>}, {pipeline_mode = #tpu.pipeline_mode<synchronous>, transform_indices = @transform_9, window_bounds = array<i64: 2, 128, 32>}, {pipeline_mode = #tpu.pipeline_mode<synchronous>, transform_indices = @transform_10, window_bounds = array<i64: 2, 1, 32>}, {pipeline_mode = #tpu.pipeline_mode<synchronous>, transform_indices = @transform_11, window_bounds = array<i64: 2, 1, 32>}, {pipeline_mode = #tpu.pipeline_mode<synchronous>, transform_indices = @transform_12, window_bounds = array<i64: 2, 1, 32>}, {transform_indices = @transform_13, window_bounds = array<i64: 24, 32>}]} {
    %c0 = arith.constant 0 : index
    %c0_0 = arith.constant 0 : index
    %0 = vector.load %arg1[%c0, %c0_0] : memref<24x32xf32, #tpu.memory_space<vmem>>, vector<24x32xf32>
    %1 = arith.truncf %0 : vector<24x32xf32> to vector<24x32xbf16>
    %c0_1 = arith.constant 0 : index
    %c0_2 = arith.constant 0 : index
    %c0_3 = arith.constant 0 : index
    %2 = vector.load %arg2[%c0_1, %c0_2, %c0_3] : memref<2x32x96xbf16, #tpu.memory_space<vmem>>, vector<1x32x96xbf16>
    %3 = vector.shape_cast %2 : vector<1x32x96xbf16> to vector<32x96xbf16>
    %cst = arith.constant dense<0.000000e+00> : vector<24x96xf32>
    %4 = tpu.matmul %1, %3, %cst {dimension_numbers = #tpu.dot_dimension_numbers<[1], [0], [0], [1], [0, 0, 1, 1], [], []>} : vector<24x32xbf16>, vector<32x96xbf16>, vector<24x96xf32> -> vector<24x96xf32>
    %c0_4 = arith.constant 0 : index
    %c0_5 = arith.constant 0 : index
    %c0_6 = arith.constant 0 : index
    %5 = vector.load %arg3[%c0_4, %c0_5, %c0_6] : memref<2x1x96xf32, #tpu.memory_space<vmem>>, vector<1x1x96xf32>
    %6 = vector.shape_cast %5 : vector<1x1x96xf32> to vector<1x96xf32>
    %7 = vector.broadcast %6 : vector<1x96xf32> to vector<24x96xf32>
    %8 = arith.addf %4, %7 : vector<24x96xf32>
    %c0_7 = arith.constant 0 : index
    %c0_8 = arith.constant 0 : index
    %c0_9 = arith.constant 0 : index
    %9 = vector.load %arg4[%c0_7, %c0_8, %c0_9] : memref<2x32x32xbf16, #tpu.memory_space<vmem>>, vector<1x32x32xbf16>
    %10 = vector.shape_cast %9 : vector<1x32x32xbf16> to vector<32x32xbf16>
    %cst_10 = arith.constant 0.000000e+00 : f32
    %11 = vector.broadcast %cst_10 : f32 to vector<24x32xf32>
    %12 = vector.extract_strided_slice %8 {offsets = [0, 0], sizes = [24, 8], strides = [1, 1]} : vector<24x96xf32> to vector<24x8xf32>
    %13 = vector.shape_cast %12 : vector<24x8xf32> to vector<3x8x8xf32>
    %14 = arith.truncf %13 : vector<3x8x8xf32> to vector<3x8x8xbf16>
    %15 = vector.extract_strided_slice %8 {offsets = [0, 32], sizes = [24, 8], strides = [1, 1]} : vector<24x96xf32> to vector<24x8xf32>
    %16 = vector.shape_cast %15 : vector<24x8xf32> to vector<3x8x8xf32>
    %17 = arith.truncf %16 : vector<3x8x8xf32> to vector<3x8x8xbf16>
    %18 = vector.extract_strided_slice %8 {offsets = [0, 64], sizes = [24, 8], strides = [1, 1]} : vector<24x96xf32> to vector<24x8xf32>
    %19 = vector.shape_cast %18 : vector<24x8xf32> to vector<3x8x8xf32>
    %20 = arith.truncf %19 : vector<3x8x8xf32> to vector<3x8x8xbf16>
    "tpu.trace_start"() <{level = 10 : i32, message = "bld,bmd->blm"}> : () -> ()
    %cst_11 = arith.constant dense<0.000000e+00> : vector<3x8x8xf32>
    %21 = tpu.matmul %14, %17, %cst_11 {dimension_numbers = #tpu.dot_dimension_numbers<[2], [2], [1], [1], [0, 0, 0, 1, 1, 1], [0], [0]>} : vector<3x8x8xbf16>, vector<3x8x8xbf16>, vector<3x8x8xf32> -> vector<3x8x8xf32>
    "tpu.trace_stop"() : () -> ()
    %cst_12 = arith.constant dense<0xFF800000> : vector<3x8xf32>
    %22 = vector.multi_reduction <maximumf>, %21, %cst_12 [2] : vector<3x8x8xf32> to vector<3x8xf32>
    %23 = vector.shape_cast %22 : vector<3x8xf32> to vector<3x8x1xf32>
    %24 = vector.broadcast %23 : vector<3x8x1xf32> to vector<3x8x8xf32>
    %25 = arith.subf %21, %24 : vector<3x8x8xf32>
    %26 = math.exp %25 : vector<3x8x8xf32>
    %cst_13 = arith.constant dense<0.000000e+00> : vector<3x8xf32>
    %27 = vector.multi_reduction <add>, %26, %cst_13 [2] : vector<3x8x8xf32> to vector<3x8xf32>
    %28 = vector.shape_cast %27 : vector<3x8xf32> to vector<3x8x1xf32>
    %29 = tpu.reciprocal %28 {approx = true} : vector<3x8x1xf32> -> vector<3x8x1xf32>
    %30 = vector.broadcast %29 : vector<3x8x1xf32> to vector<3x8x8xf32>
    %31 = arith.mulf %26, %30 : vector<3x8x8xf32>
    %32 = arith.truncf %31 : vector<3x8x8xf32> to vector<3x8x8xbf16>
    "tpu.trace_start"() <{level = 10 : i32, message = "blm,bmd->bld"}> : () -> ()
    %cst_14 = arith.constant dense<0.000000e+00> : vector<3x8x8xf32>
    %33 = tpu.matmul %32, %20, %cst_14 {dimension_numbers = #tpu.dot_dimension_numbers<[2], [1], [1], [2], [0, 0, 0, 1, 1, 2], [0], [0]>} : vector<3x8x8xbf16>, vector<3x8x8xbf16>, vector<3x8x8xf32> -> vector<3x8x8xf32>
    "tpu.trace_stop"() : () -> ()
    %34 = vector.shape_cast %33 : vector<3x8x8xf32> to vector<24x8xf32>
    %35 = arith.truncf %34 : vector<24x8xf32> to vector<24x8xbf16>
    %36 = vector.extract_strided_slice %10 {offsets = [0, 0], sizes = [8, 32], strides = [1, 1]} : vector<32x32xbf16> to vector<8x32xbf16>
    %cst_15 = arith.constant dense<0.000000e+00> : vector<24x32xf32>
    %37 = tpu.matmul %35, %36, %cst_15 {dimension_numbers = #tpu.dot_dimension_numbers<[1], [0], [0], [1], [0, 0, 1, 1], [], []>} : vector<24x8xbf16>, vector<8x32xbf16>, vector<24x32xf32> -> vector<24x32xf32>
    %38 = arith.addf %11, %37 : vector<24x32xf32>
    %39 = vector.extract_strided_slice %8 {offsets = [0, 8], sizes = [24, 8], strides = [1, 1]} : vector<24x96xf32> to vector<24x8xf32>
    %40 = vector.shape_cast %39 : vector<24x8xf32> to vector<3x8x8xf32>
    %41 = arith.truncf %40 : vector<3x8x8xf32> to vector<3x8x8xbf16>
    %42 = vector.extract_strided_slice %8 {offsets = [0, 40], sizes = [24, 8], strides = [1, 1]} : vector<24x96xf32> to vector<24x8xf32>
    %43 = vector.shape_cast %42 : vector<24x8xf32> to vector<3x8x8xf32>
    %44 = arith.truncf %43 : vector<3x8x8xf32> to vector<3x8x8xbf16>
    %45 = vector.extract_strided_slice %8 {offsets = [0, 72], sizes = [24, 8], strides = [1, 1]} : vector<24x96xf32> to vector<24x8xf32>
    %46 = vector.shape_cast %45 : vector<24x8xf32> to vector<3x8x8xf32>
    %47 = arith.truncf %46 : vector<3x8x8xf32> to vector<3x8x8xbf16>
    "tpu.trace_start"() <{level = 10 : i32, message = "bld,bmd->blm"}> : () -> ()
    %cst_16 = arith.constant dense<0.000000e+00> : vector<3x8x8xf32>
    %48 = tpu.matmul %41, %44, %cst_16 {dimension_numbers = #tpu.dot_dimension_numbers<[2], [2], [1], [1], [0, 0, 0, 1, 1, 1], [0], [0]>} : vector<3x8x8xbf16>, vector<3x8x8xbf16>, vector<3x8x8xf32> -> vector<3x8x8xf32>
    "tpu.trace_stop"() : () -> ()
    %cst_17 = arith.constant dense<0xFF800000> : vector<3x8xf32>
    %49 = vector.multi_reduction <maximumf>, %48, %cst_17 [2] : vector<3x8x8xf32> to vector<3x8xf32>
    %50 = vector.shape_cast %49 : vector<3x8xf32> to vector<3x8x1xf32>
    %51 = vector.broadcast %50 : vector<3x8x1xf32> to vector<3x8x8xf32>
    %52 = arith.subf %48, %51 : vector<3x8x8xf32>
    %53 = math.exp %52 : vector<3x8x8xf32>
    %cst_18 = arith.constant dense<0.000000e+00> : vector<3x8xf32>
    %54 = vector.multi_reduction <add>, %53, %cst_18 [2] : vector<3x8x8xf32> to vector<3x8xf32>
    %55 = vector.shape_cast %54 : vector<3x8xf32> to vector<3x8x1xf32>
    %56 = tpu.reciprocal %55 {approx = true} : vector<3x8x1xf32> -> vector<3x8x1xf32>
    %57 = vector.broadcast %56 : vector<3x8x1xf32> to vector<3x8x8xf32>
    %58 = arith.mulf %53, %57 : vector<3x8x8xf32>
    %59 = arith.truncf %58 : vector<3x8x8xf32> to vector<3x8x8xbf16>
    "tpu.trace_start"() <{level = 10 : i32, message = "blm,bmd->bld"}> : () -> ()
    %cst_19 = arith.constant dense<0.000000e+00> : vector<3x8x8xf32>
    %60 = tpu.matmul %59, %47, %cst_19 {dimension_numbers = #tpu.dot_dimension_numbers<[2], [1], [1], [2], [0, 0, 0, 1, 1, 2], [0], [0]>} : vector<3x8x8xbf16>, vector<3x8x8xbf16>, vector<3x8x8xf32> -> vector<3x8x8xf32>
    "tpu.trace_stop"() : () -> ()
    %61 = vector.shape_cast %60 : vector<3x8x8xf32> to vector<24x8xf32>
    %62 = arith.truncf %61 : vector<24x8xf32> to vector<24x8xbf16>
    %63 = vector.extract_strided_slice %10 {offsets = [8, 0], sizes = [8, 32], strides = [1, 1]} : vector<32x32xbf16> to vector<8x32xbf16>
    %cst_20 = arith.constant dense<0.000000e+00> : vector<24x32xf32>
    %64 = tpu.matmul %62, %63, %cst_20 {dimension_numbers = #tpu.dot_dimension_numbers<[1], [0], [0], [1], [0, 0, 1, 1], [], []>} : vector<24x8xbf16>, vector<8x32xbf16>, vector<24x32xf32> -> vector<24x32xf32>
    %65 = arith.addf %38, %64 : vector<24x32xf32>
    %66 = vector.extract_strided_slice %8 {offsets = [0, 16], sizes = [24, 8], strides = [1, 1]} : vector<24x96xf32> to vector<24x8xf32>
    %67 = vector.shape_cast %66 : vector<24x8xf32> to vector<3x8x8xf32>
    %68 = arith.truncf %67 : vector<3x8x8xf32> to vector<3x8x8xbf16>
    %69 = vector.extract_strided_slice %8 {offsets = [0, 48], sizes = [24, 8], strides = [1, 1]} : vector<24x96xf32> to vector<24x8xf32>
    %70 = vector.shape_cast %69 : vector<24x8xf32> to vector<3x8x8xf32>
    %71 = arith.truncf %70 : vector<3x8x8xf32> to vector<3x8x8xbf16>
    %72 = vector.extract_strided_slice %8 {offsets = [0, 80], sizes = [24, 8], strides = [1, 1]} : vector<24x96xf32> to vector<24x8xf32>
    %73 = vector.shape_cast %72 : vector<24x8xf32> to vector<3x8x8xf32>
    %74 = arith.truncf %73 : vector<3x8x8xf32> to vector<3x8x8xbf16>
    "tpu.trace_start"() <{level = 10 : i32, message = "bld,bmd->blm"}> : () -> ()
    %cst_21 = arith.constant dense<0.000000e+00> : vector<3x8x8xf32>
    %75 = tpu.matmul %68, %71, %cst_21 {dimension_numbers = #tpu.dot_dimension_numbers<[2], [2], [1], [1], [0, 0, 0, 1, 1, 1], [0], [0]>} : vector<3x8x8xbf16>, vector<3x8x8xbf16>, vector<3x8x8xf32> -> vector<3x8x8xf32>
    "tpu.trace_stop"() : () -> ()
    %cst_22 = arith.constant dense<0xFF800000> : vector<3x8xf32>
    %76 = vector.multi_reduction <maximumf>, %75, %cst_22 [2] : vector<3x8x8xf32> to vector<3x8xf32>
    %77 = vector.shape_cast %76 : vector<3x8xf32> to vector<3x8x1xf32>
    %78 = vector.broadcast %77 : vector<3x8x1xf32> to vector<3x8x8xf32>
    %79 = arith.subf %75, %78 : vector<3x8x8xf32>
    %80 = math.exp %79 : vector<3x8x8xf32>
    %cst_23 = arith.constant dense<0.000000e+00> : vector<3x8xf32>
    %81 = vector.multi_reduction <add>, %80, %cst_23 [2] : vector<3x8x8xf32> to vector<3x8xf32>
    %82 = vector.shape_cast %81 : vector<3x8xf32> to vector<3x8x1xf32>
    %83 = tpu.reciprocal %82 {approx = true} : vector<3x8x1xf32> -> vector<3x8x1xf32>
    %84 = vector.broadcast %83 : vector<3x8x1xf32> to vector<3x8x8xf32>
    %85 = arith.mulf %80, %84 : vector<3x8x8xf32>
    %86 = arith.truncf %85 : vector<3x8x8xf32> to vector<3x8x8xbf16>
    "tpu.trace_start"() <{level = 10 : i32, message = "blm,bmd->bld"}> : () -> ()
    %cst_24 = arith.constant dense<0.000000e+00> : vector<3x8x8xf32>
    %87 = tpu.matmul %86, %74, %cst_24 {dimension_numbers = #tpu.dot_dimension_numbers<[2], [1], [1], [2], [0, 0, 0, 1, 1, 2], [0], [0]>} : vector<3x8x8xbf16>, vector<3x8x8xbf16>, vector<3x8x8xf32> -> vector<3x8x8xf32>
    "tpu.trace_stop"() : () -> ()
    %88 = vector.shape_cast %87 : vector<3x8x8xf32> to vector<24x8xf32>
    %89 = arith.truncf %88 : vector<24x8xf32> to vector<24x8xbf16>
    %90 = vector.extract_strided_slice %10 {offsets = [16, 0], sizes = [8, 32], strides = [1, 1]} : vector<32x32xbf16> to vector<8x32xbf16>
    %cst_25 = arith.constant dense<0.000000e+00> : vector<24x32xf32>
    %91 = tpu.matmul %89, %90, %cst_25 {dimension_numbers = #tpu.dot_dimension_numbers<[1], [0], [0], [1], [0, 0, 1, 1], [], []>} : vector<24x8xbf16>, vector<8x32xbf16>, vector<24x32xf32> -> vector<24x32xf32>
    %92 = arith.addf %65, %91 : vector<24x32xf32>
    %93 = vector.extract_strided_slice %8 {offsets = [0, 24], sizes = [24, 8], strides = [1, 1]} : vector<24x96xf32> to vector<24x8xf32>
    %94 = vector.shape_cast %93 : vector<24x8xf32> to vector<3x8x8xf32>
    %95 = arith.truncf %94 : vector<3x8x8xf32> to vector<3x8x8xbf16>
    %96 = vector.extract_strided_slice %8 {offsets = [0, 56], sizes = [24, 8], strides = [1, 1]} : vector<24x96xf32> to vector<24x8xf32>
    %97 = vector.shape_cast %96 : vector<24x8xf32> to vector<3x8x8xf32>
    %98 = arith.truncf %97 : vector<3x8x8xf32> to vector<3x8x8xbf16>
    %99 = vector.extract_strided_slice %8 {offsets = [0, 88], sizes = [24, 8], strides = [1, 1]} : vector<24x96xf32> to vector<24x8xf32>
    %100 = vector.shape_cast %99 : vector<24x8xf32> to vector<3x8x8xf32>
    %101 = arith.truncf %100 : vector<3x8x8xf32> to vector<3x8x8xbf16>
    "tpu.trace_start"() <{level = 10 : i32, message = "bld,bmd->blm"}> : () -> ()
    %cst_26 = arith.constant dense<0.000000e+00> : vector<3x8x8xf32>
    %102 = tpu.matmul %95, %98, %cst_26 {dimension_numbers = #tpu.dot_dimension_numbers<[2], [2], [1], [1], [0, 0, 0, 1, 1, 1], [0], [0]>} : vector<3x8x8xbf16>, vector<3x8x8xbf16>, vector<3x8x8xf32> -> vector<3x8x8xf32>
    "tpu.trace_stop"() : () -> ()
    %cst_27 = arith.constant dense<0xFF800000> : vector<3x8xf32>
    %103 = vector.multi_reduction <maximumf>, %102, %cst_27 [2] : vector<3x8x8xf32> to vector<3x8xf32>
    %104 = vector.shape_cast %103 : vector<3x8xf32> to vector<3x8x1xf32>
    %105 = vector.broadcast %104 : vector<3x8x1xf32> to vector<3x8x8xf32>
    %106 = arith.subf %102, %105 : vector<3x8x8xf32>
    %107 = math.exp %106 : vector<3x8x8xf32>
    %cst_28 = arith.constant dense<0.000000e+00> : vector<3x8xf32>
    %108 = vector.multi_reduction <add>, %107, %cst_28 [2] : vector<3x8x8xf32> to vector<3x8xf32>
    %109 = vector.shape_cast %108 : vector<3x8xf32> to vector<3x8x1xf32>
    %110 = tpu.reciprocal %109 {approx = true} : vector<3x8x1xf32> -> vector<3x8x1xf32>
    %111 = vector.broadcast %110 : vector<3x8x1xf32> to vector<3x8x8xf32>
    %112 = arith.mulf %107, %111 : vector<3x8x8xf32>
    %113 = arith.truncf %112 : vector<3x8x8xf32> to vector<3x8x8xbf16>
    "tpu.trace_start"() <{level = 10 : i32, message = "blm,bmd->bld"}> : () -> ()
    %cst_29 = arith.constant dense<0.000000e+00> : vector<3x8x8xf32>
    %114 = tpu.matmul %113, %101, %cst_29 {dimension_numbers = #tpu.dot_dimension_numbers<[2], [1], [1], [2], [0, 0, 0, 1, 1, 2], [0], [0]>} : vector<3x8x8xbf16>, vector<3x8x8xbf16>, vector<3x8x8xf32> -> vector<3x8x8xf32>
    "tpu.trace_stop"() : () -> ()
    %115 = vector.shape_cast %114 : vector<3x8x8xf32> to vector<24x8xf32>
    %116 = arith.truncf %115 : vector<24x8xf32> to vector<24x8xbf16>
    %117 = vector.extract_strided_slice %10 {offsets = [24, 0], sizes = [8, 32], strides = [1, 1]} : vector<32x32xbf16> to vector<8x32xbf16>
    %cst_30 = arith.constant dense<0.000000e+00> : vector<24x32xf32>
    %118 = tpu.matmul %116, %117, %cst_30 {dimension_numbers = #tpu.dot_dimension_numbers<[1], [0], [0], [1], [0, 0, 1, 1], [], []>} : vector<24x8xbf16>, vector<8x32xbf16>, vector<24x32xf32> -> vector<24x32xf32>
    %119 = arith.addf %92, %118 : vector<24x32xf32>
    %c0_31 = arith.constant 0 : index
    %c0_32 = arith.constant 0 : index
    %c0_33 = arith.constant 0 : index
    %120 = vector.load %arg5[%c0_31, %c0_32, %c0_33] : memref<2x1x32xf32, #tpu.memory_space<vmem>>, vector<1x1x32xf32>
    %121 = vector.shape_cast %120 : vector<1x1x32xf32> to vector<1x32xf32>
    %122 = vector.broadcast %121 : vector<1x32xf32> to vector<24x32xf32>
    %123 = arith.addf %119, %122 : vector<24x32xf32>
    %124 = arith.addf %0, %123 : vector<24x32xf32>
    %c0_34 = arith.constant 0 : index
    %c0_35 = arith.constant 0 : index
    %c0_36 = arith.constant 0 : index
    %125 = vector.load %arg6[%c0_34, %c0_35, %c0_36] : memref<2x1x32xf32, #tpu.memory_space<vmem>>, vector<1x1x32xf32>
    %126 = vector.shape_cast %125 : vector<1x1x32xf32> to vector<1x32xf32>
    %c0_37 = arith.constant 0 : index
    %c0_38 = arith.constant 0 : index
    %c0_39 = arith.constant 0 : index
    %127 = vector.load %arg7[%c0_37, %c0_38, %c0_39] : memref<2x1x32xf32, #tpu.memory_space<vmem>>, vector<1x1x32xf32>
    %128 = vector.shape_cast %127 : vector<1x1x32xf32> to vector<1x32xf32>
    %cst_40 = arith.constant dense<0.000000e+00> : vector<24xf32>
    %129 = vector.multi_reduction <add>, %124, %cst_40 [1] : vector<24x32xf32> to vector<24xf32>
    %130 = vector.shape_cast %129 : vector<24xf32> to vector<24x1xf32>
    %cst_41 = arith.constant 3.200000e+01 : f32
    %131 = vector.broadcast %cst_41 : f32 to vector<24x1xf32>
    %132 = arith.divf %130, %131 : vector<24x1xf32>
    %133 = vector.broadcast %132 : vector<24x1xf32> to vector<24x32xf32>
    %134 = arith.subf %124, %133 : vector<24x32xf32>
    %135 = arith.mulf %134, %134 : vector<24x32xf32>
    %cst_42 = arith.constant dense<0.000000e+00> : vector<24xf32>
    %136 = vector.multi_reduction <add>, %135, %cst_42 [1] : vector<24x32xf32> to vector<24xf32>
    %137 = vector.shape_cast %136 : vector<24xf32> to vector<24x1xf32>
    %cst_43 = arith.constant 3.200000e+01 : f32
    %138 = vector.broadcast %cst_43 : f32 to vector<24x1xf32>
    %139 = arith.divf %137, %138 : vector<24x1xf32>
    %cst_44 = arith.constant 9.99999974E-6 : f32
    %140 = vector.broadcast %cst_44 : f32 to vector<24x1xf32>
    %141 = arith.addf %139, %140 : vector<24x1xf32>
    %142 = math.rsqrt %141 : vector<24x1xf32>
    %143 = vector.broadcast %142 : vector<24x1xf32> to vector<24x32xf32>
    %144 = arith.mulf %134, %143 : vector<24x32xf32>
    %145 = vector.broadcast %126 : vector<1x32xf32> to vector<24x32xf32>
    %146 = arith.mulf %144, %145 : vector<24x32xf32>
    %147 = vector.broadcast %128 : vector<1x32xf32> to vector<24x32xf32>
    %148 = arith.addf %146, %147 : vector<24x32xf32>
    %149 = arith.truncf %148 : vector<24x32xf32> to vector<24x32xbf16>
    %c0_45 = arith.constant 0 : index
    %c0_46 = arith.constant 0 : index
    %c0_47 = arith.constant 0 : index
    %150 = vector.load %arg8[%c0_45, %c0_46, %c0_47] : memref<2x32x128xbf16, #tpu.memory_space<vmem>>, vector<1x32x128xbf16>
    %151 = vector.shape_cast %150 : vector<1x32x128xbf16> to vector<32x128xbf16>
    %cst_48 = arith.constant dense<0.000000e+00> : vector<24x128xf32>
    %152 = tpu.matmul %149, %151, %cst_48 {dimension_numbers = #tpu.dot_dimension_numbers<[1], [0], [0], [1], [0, 0, 1, 1], [], []>} : vector<24x32xbf16>, vector<32x128xbf16>, vector<24x128xf32> -> vector<24x128xf32>
    %c0_49 = arith.constant 0 : index
    %c0_50 = arith.constant 0 : index
    %c0_51 = arith.constant 0 : index
    %153 = vector.load %arg9[%c0_49, %c0_50, %c0_51] : memref<2x1x128xf32, #tpu.memory_space<vmem>>, vector<1x1x128xf32>
    %154 = vector.shape_cast %153 : vector<1x1x128xf32> to vector<1x128xf32>
    %155 = vector.broadcast %154 : vector<1x128xf32> to vector<24x128xf32>
    %156 = arith.addf %152, %155 : vector<24x128xf32>
    %cst_52 = arith.constant 0.000000e+00 : f32
    %157 = vector.broadcast %cst_52 : f32 to vector<24x128xf32>
    %158 = arith.maximumf %156, %157 : vector<24x128xf32>
    %159 = arith.truncf %158 : vector<24x128xf32> to vector<24x128xbf16>
    %c0_53 = arith.constant 0 : index
    %c0_54 = arith.constant 0 : index
    %c0_55 = arith.constant 0 : index
    %160 = vector.load %arg10[%c0_53, %c0_54, %c0_55] : memref<2x128x32xbf16, #tpu.memory_space<vmem>>, vector<1x128x32xbf16>
    %161 = vector.shape_cast %160 : vector<1x128x32xbf16> to vector<128x32xbf16>
    %cst_56 = arith.constant dense<0.000000e+00> : vector<24x32xf32>
    %162 = tpu.matmul %159, %161, %cst_56 {dimension_numbers = #tpu.dot_dimension_numbers<[1], [0], [0], [1], [0, 0, 1, 1], [], []>} : vector<24x128xbf16>, vector<128x32xbf16>, vector<24x32xf32> -> vector<24x32xf32>
    %c0_57 = arith.constant 0 : index
    %c0_58 = arith.constant 0 : index
    %c0_59 = arith.constant 0 : index
    %163 = vector.load %arg11[%c0_57, %c0_58, %c0_59] : memref<2x1x32xf32, #tpu.memory_space<vmem>>, vector<1x1x32xf32>
    %164 = vector.shape_cast %163 : vector<1x1x32xf32> to vector<1x32xf32>
    %165 = vector.broadcast %164 : vector<1x32xf32> to vector<24x32xf32>
    %166 = arith.addf %162, %165 : vector<24x32xf32>
    %167 = arith.addf %148, %166 : vector<24x32xf32>
    %c0_60 = arith.constant 0 : index
    %c0_61 = arith.constant 0 : index
    %c0_62 = arith.constant 0 : index
    %168 = vector.load %arg12[%c0_60, %c0_61, %c0_62] : memref<2x1x32xf32, #tpu.memory_space<vmem>>, vector<1x1x32xf32>
    %169 = vector.shape_cast %168 : vector<1x1x32xf32> to vector<1x32xf32>
    %c0_63 = arith.constant 0 : index
    %c0_64 = arith.constant 0 : index
    %c0_65 = arith.constant 0 : index
    %170 = vector.load %arg13[%c0_63, %c0_64, %c0_65] : memref<2x1x32xf32, #tpu.memory_space<vmem>>, vector<1x1x32xf32>
    %171 = vector.shape_cast %170 : vector<1x1x32xf32> to vector<1x32xf32>
    %cst_66 = arith.constant dense<0.000000e+00> : vector<24xf32>
    %172 = vector.multi_reduction <add>, %167, %cst_66 [1] : vector<24x32xf32> to vector<24xf32>
    %173 = vector.shape_cast %172 : vector<24xf32> to vector<24x1xf32>
    %cst_67 = arith.constant 3.200000e+01 : f32
    %174 = vector.broadcast %cst_67 : f32 to vector<24x1xf32>
    %175 = arith.divf %173, %174 : vector<24x1xf32>
    %176 = vector.broadcast %175 : vector<24x1xf32> to vector<24x32xf32>
    %177 = arith.subf %167, %176 : vector<24x32xf32>
    %178 = arith.mulf %177, %177 : vector<24x32xf32>
    %cst_68 = arith.constant dense<0.000000e+00> : vector<24xf32>
    %179 = vector.multi_reduction <add>, %178, %cst_68 [1] : vector<24x32xf32> to vector<24xf32>
    %180 = vector.shape_cast %179 : vector<24xf32> to vector<24x1xf32>
    %cst_69 = arith.constant 3.200000e+01 : f32
    %181 = vector.broadcast %cst_69 : f32 to vector<24x1xf32>
    %182 = arith.divf %180, %181 : vector<24x1xf32>
    %cst_70 = arith.constant 9.99999974E-6 : f32
    %183 = vector.broadcast %cst_70 : f32 to vector<24x1xf32>
    %184 = arith.addf %182, %183 : vector<24x1xf32>
    %185 = math.rsqrt %184 : vector<24x1xf32>
    %186 = vector.broadcast %185 : vector<24x1xf32> to vector<24x32xf32>
    %187 = arith.mulf %177, %186 : vector<24x32xf32>
    %188 = vector.broadcast %169 : vector<1x32xf32> to vector<24x32xf32>
    %189 = arith.mulf %187, %188 : vector<24x32xf32>
    %190 = vector.broadcast %171 : vector<1x32xf32> to vector<24x32xf32>
    %191 = arith.addf %189, %190 : vector<24x32xf32>
    %192 = arith.truncf %191 : vector<24x32xf32> to vector<24x32xbf16>
    %c1 = arith.constant 1 : index
    %c0_71 = arith.constant 0 : index
    %c0_72 = arith.constant 0 : index
    %193 = vector.load %arg2[%c1, %c0_71, %c0_72] : memref<2x32x96xbf16, #tpu.memory_space<vmem>>, vector<1x32x96xbf16>
    %194 = vector.shape_cast %193 : vector<1x32x96xbf16> to vector<32x96xbf16>
    %cst_73 = arith.constant dense<0.000000e+00> : vector<24x96xf32>
    %195 = tpu.matmul %192, %194, %cst_73 {dimension_numbers = #tpu.dot_dimension_numbers<[1], [0], [0], [1], [0, 0, 1, 1], [], []>} : vector<24x32xbf16>, vector<32x96xbf16>, vector<24x96xf32> -> vector<24x96xf32>
    %c1_74 = arith.constant 1 : index
    %c0_75 = arith.constant 0 : index
    %c0_76 = arith.constant 0 : index
    %196 = vector.load %arg3[%c1_74, %c0_75, %c0_76] : memref<2x1x96xf32, #tpu.memory_space<vmem>>, vector<1x1x96xf32>
    %197 = vector.shape_cast %196 : vector<1x1x96xf32> to vector<1x96xf32>
    %198 = vector.broadcast %197 : vector<1x96xf32> to vector<24x96xf32>
    %199 = arith.addf %195, %198 : vector<24x96xf32>
    %c1_77 = arith.constant 1 : index
    %c0_78 = arith.constant 0 : index
    %c0_79 = arith.constant 0 : index
    %200 = vector.load %arg4[%c1_77, %c0_78, %c0_79] : memref<2x32x32xbf16, #tpu.memory_space<vmem>>, vector<1x32x32xbf16>
    %201 = vector.shape_cast %200 : vector<1x32x32xbf16> to vector<32x32xbf16>
    %cst_80 = arith.constant 0.000000e+00 : f32
    %202 = vector.broadcast %cst_80 : f32 to vector<24x32xf32>
    %203 = vector.extract_strided_slice %199 {offsets = [0, 0], sizes = [24, 8], strides = [1, 1]} : vector<24x96xf32> to vector<24x8xf32>
    %204 = vector.shape_cast %203 : vector<24x8xf32> to vector<3x8x8xf32>
    %205 = arith.truncf %204 : vector<3x8x8xf32> to vector<3x8x8xbf16>
    %206 = vector.extract_strided_slice %199 {offsets = [0, 32], sizes = [24, 8], strides = [1, 1]} : vector<24x96xf32> to vector<24x8xf32>
    %207 = vector.shape_cast %206 : vector<24x8xf32> to vector<3x8x8xf32>
    %208 = arith.truncf %207 : vector<3x8x8xf32> to vector<3x8x8xbf16>
    %209 = vector.extract_strided_slice %199 {offsets = [0, 64], sizes = [24, 8], strides = [1, 1]} : vector<24x96xf32> to vector<24x8xf32>
    %210 = vector.shape_cast %209 : vector<24x8xf32> to vector<3x8x8xf32>
    %211 = arith.truncf %210 : vector<3x8x8xf32> to vector<3x8x8xbf16>
    "tpu.trace_start"() <{level = 10 : i32, message = "bld,bmd->blm"}> : () -> ()
    %cst_81 = arith.constant dense<0.000000e+00> : vector<3x8x8xf32>
    %212 = tpu.matmul %205, %208, %cst_81 {dimension_numbers = #tpu.dot_dimension_numbers<[2], [2], [1], [1], [0, 0, 0, 1, 1, 1], [0], [0]>} : vector<3x8x8xbf16>, vector<3x8x8xbf16>, vector<3x8x8xf32> -> vector<3x8x8xf32>
    "tpu.trace_stop"() : () -> ()
    %cst_82 = arith.constant dense<0xFF800000> : vector<3x8xf32>
    %213 = vector.multi_reduction <maximumf>, %212, %cst_82 [2] : vector<3x8x8xf32> to vector<3x8xf32>
    %214 = vector.shape_cast %213 : vector<3x8xf32> to vector<3x8x1xf32>
    %215 = vector.broadcast %214 : vector<3x8x1xf32> to vector<3x8x8xf32>
    %216 = arith.subf %212, %215 : vector<3x8x8xf32>
    %217 = math.exp %216 : vector<3x8x8xf32>
    %cst_83 = arith.constant dense<0.000000e+00> : vector<3x8xf32>
    %218 = vector.multi_reduction <add>, %217, %cst_83 [2] : vector<3x8x8xf32> to vector<3x8xf32>
    %219 = vector.shape_cast %218 : vector<3x8xf32> to vector<3x8x1xf32>
    %220 = tpu.reciprocal %219 {approx = true} : vector<3x8x1xf32> -> vector<3x8x1xf32>
    %221 = vector.broadcast %220 : vector<3x8x1xf32> to vector<3x8x8xf32>
    %222 = arith.mulf %217, %221 : vector<3x8x8xf32>
    %223 = arith.truncf %222 : vector<3x8x8xf32> to vector<3x8x8xbf16>
    "tpu.trace_start"() <{level = 10 : i32, message = "blm,bmd->bld"}> : () -> ()
    %cst_84 = arith.constant dense<0.000000e+00> : vector<3x8x8xf32>
    %224 = tpu.matmul %223, %211, %cst_84 {dimension_numbers = #tpu.dot_dimension_numbers<[2], [1], [1], [2], [0, 0, 0, 1, 1, 2], [0], [0]>} : vector<3x8x8xbf16>, vector<3x8x8xbf16>, vector<3x8x8xf32> -> vector<3x8x8xf32>
    "tpu.trace_stop"() : () -> ()
    %225 = vector.shape_cast %224 : vector<3x8x8xf32> to vector<24x8xf32>
    %226 = arith.truncf %225 : vector<24x8xf32> to vector<24x8xbf16>
    %227 = vector.extract_strided_slice %201 {offsets = [0, 0], sizes = [8, 32], strides = [1, 1]} : vector<32x32xbf16> to vector<8x32xbf16>
    %cst_85 = arith.constant dense<0.000000e+00> : vector<24x32xf32>
    %228 = tpu.matmul %226, %227, %cst_85 {dimension_numbers = #tpu.dot_dimension_numbers<[1], [0], [0], [1], [0, 0, 1, 1], [], []>} : vector<24x8xbf16>, vector<8x32xbf16>, vector<24x32xf32> -> vector<24x32xf32>
    %229 = arith.addf %202, %228 : vector<24x32xf32>
    %230 = vector.extract_strided_slice %199 {offsets = [0, 8], sizes = [24, 8], strides = [1, 1]} : vector<24x96xf32> to vector<24x8xf32>
    %231 = vector.shape_cast %230 : vector<24x8xf32> to vector<3x8x8xf32>
    %232 = arith.truncf %231 : vector<3x8x8xf32> to vector<3x8x8xbf16>
    %233 = vector.extract_strided_slice %199 {offsets = [0, 40], sizes = [24, 8], strides = [1, 1]} : vector<24x96xf32> to vector<24x8xf32>
    %234 = vector.shape_cast %233 : vector<24x8xf32> to vector<3x8x8xf32>
    %235 = arith.truncf %234 : vector<3x8x8xf32> to vector<3x8x8xbf16>
    %236 = vector.extract_strided_slice %199 {offsets = [0, 72], sizes = [24, 8], strides = [1, 1]} : vector<24x96xf32> to vector<24x8xf32>
    %237 = vector.shape_cast %236 : vector<24x8xf32> to vector<3x8x8xf32>
    %238 = arith.truncf %237 : vector<3x8x8xf32> to vector<3x8x8xbf16>
    "tpu.trace_start"() <{level = 10 : i32, message = "bld,bmd->blm"}> : () -> ()
    %cst_86 = arith.constant dense<0.000000e+00> : vector<3x8x8xf32>
    %239 = tpu.matmul %232, %235, %cst_86 {dimension_numbers = #tpu.dot_dimension_numbers<[2], [2], [1], [1], [0, 0, 0, 1, 1, 1], [0], [0]>} : vector<3x8x8xbf16>, vector<3x8x8xbf16>, vector<3x8x8xf32> -> vector<3x8x8xf32>
    "tpu.trace_stop"() : () -> ()
    %cst_87 = arith.constant dense<0xFF800000> : vector<3x8xf32>
    %240 = vector.multi_reduction <maximumf>, %239, %cst_87 [2] : vector<3x8x8xf32> to vector<3x8xf32>
    %241 = vector.shape_cast %240 : vector<3x8xf32> to vector<3x8x1xf32>
    %242 = vector.broadcast %241 : vector<3x8x1xf32> to vector<3x8x8xf32>
    %243 = arith.subf %239, %242 : vector<3x8x8xf32>
    %244 = math.exp %243 : vector<3x8x8xf32>
    %cst_88 = arith.constant dense<0.000000e+00> : vector<3x8xf32>
    %245 = vector.multi_reduction <add>, %244, %cst_88 [2] : vector<3x8x8xf32> to vector<3x8xf32>
    %246 = vector.shape_cast %245 : vector<3x8xf32> to vector<3x8x1xf32>
    %247 = tpu.reciprocal %246 {approx = true} : vector<3x8x1xf32> -> vector<3x8x1xf32>
    %248 = vector.broadcast %247 : vector<3x8x1xf32> to vector<3x8x8xf32>
    %249 = arith.mulf %244, %248 : vector<3x8x8xf32>
    %250 = arith.truncf %249 : vector<3x8x8xf32> to vector<3x8x8xbf16>
    "tpu.trace_start"() <{level = 10 : i32, message = "blm,bmd->bld"}> : () -> ()
    %cst_89 = arith.constant dense<0.000000e+00> : vector<3x8x8xf32>
    %251 = tpu.matmul %250, %238, %cst_89 {dimension_numbers = #tpu.dot_dimension_numbers<[2], [1], [1], [2], [0, 0, 0, 1, 1, 2], [0], [0]>} : vector<3x8x8xbf16>, vector<3x8x8xbf16>, vector<3x8x8xf32> -> vector<3x8x8xf32>
    "tpu.trace_stop"() : () -> ()
    %252 = vector.shape_cast %251 : vector<3x8x8xf32> to vector<24x8xf32>
    %253 = arith.truncf %252 : vector<24x8xf32> to vector<24x8xbf16>
    %254 = vector.extract_strided_slice %201 {offsets = [8, 0], sizes = [8, 32], strides = [1, 1]} : vector<32x32xbf16> to vector<8x32xbf16>
    %cst_90 = arith.constant dense<0.000000e+00> : vector<24x32xf32>
    %255 = tpu.matmul %253, %254, %cst_90 {dimension_numbers = #tpu.dot_dimension_numbers<[1], [0], [0], [1], [0, 0, 1, 1], [], []>} : vector<24x8xbf16>, vector<8x32xbf16>, vector<24x32xf32> -> vector<24x32xf32>
    %256 = arith.addf %229, %255 : vector<24x32xf32>
    %257 = vector.extract_strided_slice %199 {offsets = [0, 16], sizes = [24, 8], strides = [1, 1]} : vector<24x96xf32> to vector<24x8xf32>
    %258 = vector.shape_cast %257 : vector<24x8xf32> to vector<3x8x8xf32>
    %259 = arith.truncf %258 : vector<3x8x8xf32> to vector<3x8x8xbf16>
    %260 = vector.extract_strided_slice %199 {offsets = [0, 48], sizes = [24, 8], strides = [1, 1]} : vector<24x96xf32> to vector<24x8xf32>
    %261 = vector.shape_cast %260 : vector<24x8xf32> to vector<3x8x8xf32>
    %262 = arith.truncf %261 : vector<3x8x8xf32> to vector<3x8x8xbf16>
    %263 = vector.extract_strided_slice %199 {offsets = [0, 80], sizes = [24, 8], strides = [1, 1]} : vector<24x96xf32> to vector<24x8xf32>
    %264 = vector.shape_cast %263 : vector<24x8xf32> to vector<3x8x8xf32>
    %265 = arith.truncf %264 : vector<3x8x8xf32> to vector<3x8x8xbf16>
    "tpu.trace_start"() <{level = 10 : i32, message = "bld,bmd->blm"}> : () -> ()
    %cst_91 = arith.constant dense<0.000000e+00> : vector<3x8x8xf32>
    %266 = tpu.matmul %259, %262, %cst_91 {dimension_numbers = #tpu.dot_dimension_numbers<[2], [2], [1], [1], [0, 0, 0, 1, 1, 1], [0], [0]>} : vector<3x8x8xbf16>, vector<3x8x8xbf16>, vector<3x8x8xf32> -> vector<3x8x8xf32>
    "tpu.trace_stop"() : () -> ()
    %cst_92 = arith.constant dense<0xFF800000> : vector<3x8xf32>
    %267 = vector.multi_reduction <maximumf>, %266, %cst_92 [2] : vector<3x8x8xf32> to vector<3x8xf32>
    %268 = vector.shape_cast %267 : vector<3x8xf32> to vector<3x8x1xf32>
    %269 = vector.broadcast %268 : vector<3x8x1xf32> to vector<3x8x8xf32>
    %270 = arith.subf %266, %269 : vector<3x8x8xf32>
    %271 = math.exp %270 : vector<3x8x8xf32>
    %cst_93 = arith.constant dense<0.000000e+00> : vector<3x8xf32>
    %272 = vector.multi_reduction <add>, %271, %cst_93 [2] : vector<3x8x8xf32> to vector<3x8xf32>
    %273 = vector.shape_cast %272 : vector<3x8xf32> to vector<3x8x1xf32>
    %274 = tpu.reciprocal %273 {approx = true} : vector<3x8x1xf32> -> vector<3x8x1xf32>
    %275 = vector.broadcast %274 : vector<3x8x1xf32> to vector<3x8x8xf32>
    %276 = arith.mulf %271, %275 : vector<3x8x8xf32>
    %277 = arith.truncf %276 : vector<3x8x8xf32> to vector<3x8x8xbf16>
    "tpu.trace_start"() <{level = 10 : i32, message = "blm,bmd->bld"}> : () -> ()
    %cst_94 = arith.constant dense<0.000000e+00> : vector<3x8x8xf32>
    %278 = tpu.matmul %277, %265, %cst_94 {dimension_numbers = #tpu.dot_dimension_numbers<[2], [1], [1], [2], [0, 0, 0, 1, 1, 2], [0], [0]>} : vector<3x8x8xbf16>, vector<3x8x8xbf16>, vector<3x8x8xf32> -> vector<3x8x8xf32>
    "tpu.trace_stop"() : () -> ()
    %279 = vector.shape_cast %278 : vector<3x8x8xf32> to vector<24x8xf32>
    %280 = arith.truncf %279 : vector<24x8xf32> to vector<24x8xbf16>
    %281 = vector.extract_strided_slice %201 {offsets = [16, 0], sizes = [8, 32], strides = [1, 1]} : vector<32x32xbf16> to vector<8x32xbf16>
    %cst_95 = arith.constant dense<0.000000e+00> : vector<24x32xf32>
    %282 = tpu.matmul %280, %281, %cst_95 {dimension_numbers = #tpu.dot_dimension_numbers<[1], [0], [0], [1], [0, 0, 1, 1], [], []>} : vector<24x8xbf16>, vector<8x32xbf16>, vector<24x32xf32> -> vector<24x32xf32>
    %283 = arith.addf %256, %282 : vector<24x32xf32>
    %284 = vector.extract_strided_slice %199 {offsets = [0, 24], sizes = [24, 8], strides = [1, 1]} : vector<24x96xf32> to vector<24x8xf32>
    %285 = vector.shape_cast %284 : vector<24x8xf32> to vector<3x8x8xf32>
    %286 = arith.truncf %285 : vector<3x8x8xf32> to vector<3x8x8xbf16>
    %287 = vector.extract_strided_slice %199 {offsets = [0, 56], sizes = [24, 8], strides = [1, 1]} : vector<24x96xf32> to vector<24x8xf32>
    %288 = vector.shape_cast %287 : vector<24x8xf32> to vector<3x8x8xf32>
    %289 = arith.truncf %288 : vector<3x8x8xf32> to vector<3x8x8xbf16>
    %290 = vector.extract_strided_slice %199 {offsets = [0, 88], sizes = [24, 8], strides = [1, 1]} : vector<24x96xf32> to vector<24x8xf32>
    %291 = vector.shape_cast %290 : vector<24x8xf32> to vector<3x8x8xf32>
    %292 = arith.truncf %291 : vector<3x8x8xf32> to vector<3x8x8xbf16>
    "tpu.trace_start"() <{level = 10 : i32, message = "bld,bmd->blm"}> : () -> ()
    %cst_96 = arith.constant dense<0.000000e+00> : vector<3x8x8xf32>
    %293 = tpu.matmul %286, %289, %cst_96 {dimension_numbers = #tpu.dot_dimension_numbers<[2], [2], [1], [1], [0, 0, 0, 1, 1, 1], [0], [0]>} : vector<3x8x8xbf16>, vector<3x8x8xbf16>, vector<3x8x8xf32> -> vector<3x8x8xf32>
    "tpu.trace_stop"() : () -> ()
    %cst_97 = arith.constant dense<0xFF800000> : vector<3x8xf32>
    %294 = vector.multi_reduction <maximumf>, %293, %cst_97 [2] : vector<3x8x8xf32> to vector<3x8xf32>
    %295 = vector.shape_cast %294 : vector<3x8xf32> to vector<3x8x1xf32>
    %296 = vector.broadcast %295 : vector<3x8x1xf32> to vector<3x8x8xf32>
    %297 = arith.subf %293, %296 : vector<3x8x8xf32>
    %298 = math.exp %297 : vector<3x8x8xf32>
    %cst_98 = arith.constant dense<0.000000e+00> : vector<3x8xf32>
    %299 = vector.multi_reduction <add>, %298, %cst_98 [2] : vector<3x8x8xf32> to vector<3x8xf32>
    %300 = vector.shape_cast %299 : vector<3x8xf32> to vector<3x8x1xf32>
    %301 = tpu.reciprocal %300 {approx = true} : vector<3x8x1xf32> -> vector<3x8x1xf32>
    %302 = vector.broadcast %301 : vector<3x8x1xf32> to vector<3x8x8xf32>
    %303 = arith.mulf %298, %302 : vector<3x8x8xf32>
    %304 = arith.truncf %303 : vector<3x8x8xf32> to vector<3x8x8xbf16>
    "tpu.trace_start"() <{level = 10 : i32, message = "blm,bmd->bld"}> : () -> ()
    %cst_99 = arith.constant dense<0.000000e+00> : vector<3x8x8xf32>
    %305 = tpu.matmul %304, %292, %cst_99 {dimension_numbers = #tpu.dot_dimension_numbers<[2], [1], [1], [2], [0, 0, 0, 1, 1, 2], [0], [0]>} : vector<3x8x8xbf16>, vector<3x8x8xbf16>, vector<3x8x8xf32> -> vector<3x8x8xf32>
    "tpu.trace_stop"() : () -> ()
    %306 = vector.shape_cast %305 : vector<3x8x8xf32> to vector<24x8xf32>
    %307 = arith.truncf %306 : vector<24x8xf32> to vector<24x8xbf16>
    %308 = vector.extract_strided_slice %201 {offsets = [24, 0], sizes = [8, 32], strides = [1, 1]} : vector<32x32xbf16> to vector<8x32xbf16>
    %cst_100 = arith.constant dense<0.000000e+00> : vector<24x32xf32>
    %309 = tpu.matmul %307, %308, %cst_100 {dimension_numbers = #tpu.dot_dimension_numbers<[1], [0], [0], [1], [0, 0, 1, 1], [], []>} : vector<24x8xbf16>, vector<8x32xbf16>, vector<24x32xf32> -> vector<24x32xf32>
    %310 = arith.addf %283, %309 : vector<24x32xf32>
    %c1_101 = arith.constant 1 : index
    %c0_102 = arith.constant 0 : index
    %c0_103 = arith.constant 0 : index
    %311 = vector.load %arg5[%c1_101, %c0_102, %c0_103] : memref<2x1x32xf32, #tpu.memory_space<vmem>>, vector<1x1x32xf32>
    %312 = vector.shape_cast %311 : vector<1x1x32xf32> to vector<1x32xf32>
    %313 = vector.broadcast %312 : vector<1x32xf32> to vector<24x32xf32>
    %314 = arith.addf %310, %313 : vector<24x32xf32>
    %315 = arith.addf %191, %314 : vector<24x32xf32>
    %c1_104 = arith.constant 1 : index
    %c0_105 = arith.constant 0 : index
    %c0_106 = arith.constant 0 : index
    %316 = vector.load %arg6[%c1_104, %c0_105, %c0_106] : memref<2x1x32xf32, #tpu.memory_space<vmem>>, vector<1x1x32xf32>
    %317 = vector.shape_cast %316 : vector<1x1x32xf32> to vector<1x32xf32>
    %c1_107 = arith.constant 1 : index
    %c0_108 = arith.constant 0 : index
    %c0_109 = arith.constant 0 : index
    %318 = vector.load %arg7[%c1_107, %c0_108, %c0_109] : memref<2x1x32xf32, #tpu.memory_space<vmem>>, vector<1x1x32xf32>
    %319 = vector.shape_cast %318 : vector<1x1x32xf32> to vector<1x32xf32>
    %cst_110 = arith.constant dense<0.000000e+00> : vector<24xf32>
    %320 = vector.multi_reduction <add>, %315, %cst_110 [1] : vector<24x32xf32> to vector<24xf32>
    %321 = vector.shape_cast %320 : vector<24xf32> to vector<24x1xf32>
    %cst_111 = arith.constant 3.200000e+01 : f32
    %322 = vector.broadcast %cst_111 : f32 to vector<24x1xf32>
    %323 = arith.divf %321, %322 : vector<24x1xf32>
    %324 = vector.broadcast %323 : vector<24x1xf32> to vector<24x32xf32>
    %325 = arith.subf %315, %324 : vector<24x32xf32>
    %326 = arith.mulf %325, %325 : vector<24x32xf32>
    %cst_112 = arith.constant dense<0.000000e+00> : vector<24xf32>
    %327 = vector.multi_reduction <add>, %326, %cst_112 [1] : vector<24x32xf32> to vector<24xf32>
    %328 = vector.shape_cast %327 : vector<24xf32> to vector<24x1xf32>
    %cst_113 = arith.constant 3.200000e+01 : f32
    %329 = vector.broadcast %cst_113 : f32 to vector<24x1xf32>
    %330 = arith.divf %328, %329 : vector<24x1xf32>
    %cst_114 = arith.constant 9.99999974E-6 : f32
    %331 = vector.broadcast %cst_114 : f32 to vector<24x1xf32>
    %332 = arith.addf %330, %331 : vector<24x1xf32>
    %333 = math.rsqrt %332 : vector<24x1xf32>
    %334 = vector.broadcast %333 : vector<24x1xf32> to vector<24x32xf32>
    %335 = arith.mulf %325, %334 : vector<24x32xf32>
    %336 = vector.broadcast %317 : vector<1x32xf32> to vector<24x32xf32>
    %337 = arith.mulf %335, %336 : vector<24x32xf32>
    %338 = vector.broadcast %319 : vector<1x32xf32> to vector<24x32xf32>
    %339 = arith.addf %337, %338 : vector<24x32xf32>
    %340 = arith.truncf %339 : vector<24x32xf32> to vector<24x32xbf16>
    %c1_115 = arith.constant 1 : index
    %c0_116 = arith.constant 0 : index
    %c0_117 = arith.constant 0 : index
    %341 = vector.load %arg8[%c1_115, %c0_116, %c0_117] : memref<2x32x128xbf16, #tpu.memory_space<vmem>>, vector<1x32x128xbf16>
    %342 = vector.shape_cast %341 : vector<1x32x128xbf16> to vector<32x128xbf16>
    %cst_118 = arith.constant dense<0.000000e+00> : vector<24x128xf32>
    %343 = tpu.matmul %340, %342, %cst_118 {dimension_numbers = #tpu.dot_dimension_numbers<[1], [0], [0], [1], [0, 0, 1, 1], [], []>} : vector<24x32xbf16>, vector<32x128xbf16>, vector<24x128xf32> -> vector<24x128xf32>
    %c1_119 = arith.constant 1 : index
    %c0_120 = arith.constant 0 : index
    %c0_121 = arith.constant 0 : index
    %344 = vector.load %arg9[%c1_119, %c0_120, %c0_121] : memref<2x1x128xf32, #tpu.memory_space<vmem>>, vector<1x1x128xf32>
    %345 = vector.shape_cast %344 : vector<1x1x128xf32> to vector<1x128xf32>
    %346 = vector.broadcast %345 : vector<1x128xf32> to vector<24x128xf32>
    %347 = arith.addf %343, %346 : vector<24x128xf32>
    %cst_122 = arith.constant 0.000000e+00 : f32
    %348 = vector.broadcast %cst_122 : f32 to vector<24x128xf32>
    %349 = arith.maximumf %347, %348 : vector<24x128xf32>
    %350 = arith.truncf %349 : vector<24x128xf32> to vector<24x128xbf16>
    %c1_123 = arith.constant 1 : index
    %c0_124 = arith.constant 0 : index
    %c0_125 = arith.constant 0 : index
    %351 = vector.load %arg10[%c1_123, %c0_124, %c0_125] : memref<2x128x32xbf16, #tpu.memory_space<vmem>>, vector<1x128x32xbf16>
    %352 = vector.shape_cast %351 : vector<1x128x32xbf16> to vector<128x32xbf16>
    %cst_126 = arith.constant dense<0.000000e+00> : vector<24x32xf32>
    %353 = tpu.matmul %350, %352, %cst_126 {dimension_numbers = #tpu.dot_dimension_numbers<[1], [0], [0], [1], [0, 0, 1, 1], [], []>} : vector<24x128xbf16>, vector<128x32xbf16>, vector<24x32xf32> -> vector<24x32xf32>
    %c1_127 = arith.constant 1 : index
    %c0_128 = arith.constant 0 : index
    %c0_129 = arith.constant 0 : index
    %354 = vector.load %arg11[%c1_127, %c0_128, %c0_129] : memref<2x1x32xf32, #tpu.memory_space<vmem>>, vector<1x1x32xf32>
    %355 = vector.shape_cast %354 : vector<1x1x32xf32> to vector<1x32xf32>
    %356 = vector.broadcast %355 : vector<1x32xf32> to vector<24x32xf32>
    %357 = arith.addf %353, %356 : vector<24x32xf32>
    %358 = arith.addf %339, %357 : vector<24x32xf32>
    %c1_130 = arith.constant 1 : index
    %c0_131 = arith.constant 0 : index
    %c0_132 = arith.constant 0 : index
    %359 = vector.load %arg12[%c1_130, %c0_131, %c0_132] : memref<2x1x32xf32, #tpu.memory_space<vmem>>, vector<1x1x32xf32>
    %360 = vector.shape_cast %359 : vector<1x1x32xf32> to vector<1x32xf32>
    %c1_133 = arith.constant 1 : index
    %c0_134 = arith.constant 0 : index
    %c0_135 = arith.constant 0 : index
    %361 = vector.load %arg13[%c1_133, %c0_134, %c0_135] : memref<2x1x32xf32, #tpu.memory_space<vmem>>, vector<1x1x32xf32>
    %362 = vector.shape_cast %361 : vector<1x1x32xf32> to vector<1x32xf32>
    %cst_136 = arith.constant dense<0.000000e+00> : vector<24xf32>
    %363 = vector.multi_reduction <add>, %358, %cst_136 [1] : vector<24x32xf32> to vector<24xf32>
    %364 = vector.shape_cast %363 : vector<24xf32> to vector<24x1xf32>
    %cst_137 = arith.constant 3.200000e+01 : f32
    %365 = vector.broadcast %cst_137 : f32 to vector<24x1xf32>
    %366 = arith.divf %364, %365 : vector<24x1xf32>
    %367 = vector.broadcast %366 : vector<24x1xf32> to vector<24x32xf32>
    %368 = arith.subf %358, %367 : vector<24x32xf32>
    %369 = arith.mulf %368, %368 : vector<24x32xf32>
    %cst_138 = arith.constant dense<0.000000e+00> : vector<24xf32>
    %370 = vector.multi_reduction <add>, %369, %cst_138 [1] : vector<24x32xf32> to vector<24xf32>
    %371 = vector.shape_cast %370 : vector<24xf32> to vector<24x1xf32>
    %cst_139 = arith.constant 3.200000e+01 : f32
    %372 = vector.broadcast %cst_139 : f32 to vector<24x1xf32>
    %373 = arith.divf %371, %372 : vector<24x1xf32>
    %cst_140 = arith.constant 9.99999974E-6 : f32
    %374 = vector.broadcast %cst_140 : f32 to vector<24x1xf32>
    %375 = arith.addf %373, %374 : vector<24x1xf32>
    %376 = math.rsqrt %375 : vector<24x1xf32>
    %377 = vector.broadcast %376 : vector<24x1xf32> to vector<24x32xf32>
    %378 = arith.mulf %368, %377 : vector<24x32xf32>
    %379 = vector.broadcast %360 : vector<1x32xf32> to vector<24x32xf32>
    %380 = arith.mulf %378, %379 : vector<24x32xf32>
    %381 = vector.broadcast %362 : vector<1x32xf32> to vector<24x32xf32>
    %382 = arith.addf %380, %381 : vector<24x32xf32>
    %c0_141 = arith.constant 0 : index
    %c0_142 = arith.constant 0 : index
    %383 = vector.load %arg14[%c0_141, %c0_142] : memref<24x32xf32, #tpu.memory_space<vmem>>, vector<24x32xf32>
    tpu.vector_store %arg14[%c0_141, %c0_142], %382 {strides = array<i32>} : memref<24x32xf32, #tpu.memory_space<vmem>>, vector<24x32xf32>,
    return
  }
  func.func @transform_0(%arg0: i32) -> (i32, i32) {
    %c0_i32 = arith.constant 0 : i32
    %c0_i32_0 = arith.constant 0 : i32
    return %arg0, %c0_i32 : i32, i32
  }
  func.func @transform_1(%arg0: i32) -> (i32, i32, i32) {
    %c0_i32 = arith.constant 0 : i32
    %c0_i32_0 = arith.constant 0 : i32
    %c0_i32_1 = arith.constant 0 : i32
    %c0_i32_2 = arith.constant 0 : i32
    return %c0_i32, %c0_i32_0, %c0_i32_1 : i32, i32, i32
  }
  func.func @transform_2(%arg0: i32) -> (i32, i32, i32) {
    %c0_i32 = arith.constant 0 : i32
    %c0_i32_0 = arith.constant 0 : i32
    %c0_i32_1 = arith.constant 0 : i32
    %c0_i32_2 = arith.constant 0 : i32
    return %c0_i32, %c0_i32_0, %c0_i32_1 : i32, i32, i32
  }
  func.func @transform_3(%arg0: i32) -> (i32, i32, i32) {
    %c0_i32 = arith.constant 0 : i32
    %c0_i32_0 = arith.constant 0 : i32
    %c0_i32_1 = arith.constant 0 : i32
    %c0_i32_2 = arith.constant 0 : i32
    return %c0_i32, %c0_i32_0, %c0_i32_1 : i32, i32, i32
  }
  func.func @transform_4(%arg0: i32) -> (i32, i32, i32) {
    %c0_i32 = arith.constant 0 : i32
    %c0_i32_0 = arith.constant 0 : i32
    %c0_i32_1 = arith.constant 0 : i32
    %c0_i32_2 = arith.constant 0 : i32
    return %c0_i32, %c0_i32_0, %c0_i32_1 : i32, i32, i32
  }
  func.func @transform_5(%arg0: i32) -> (i32, i32, i32) {
    %c0_i32 = arith.constant 0 : i32
    %c0_i32_0 = arith.constant 0 : i32
    %c0_i32_1 = arith.constant 0 : i32
    %c0_i32_2 = arith.constant 0 : i32
    return %c0_i32, %c0_i32_0, %c0_i32_1 : i32, i32, i32
  }
  func.func @transform_6(%arg0: i32) -> (i32, i32, i32) {
    %c0_i32 = arith.constant 0 : i32
    %c0_i32_0 = arith.constant 0 : i32
    %c0_i32_1 = arith.constant 0 : i32
    %c0_i32_2 = arith.constant 0 : i32
    return %c0_i32, %c0_i32_0, %c0_i32_1 : i32, i32, i32
  }
  func.func @transform_7(%arg0: i32) -> (i32, i32, i32) {
    %c0_i32 = arith.constant 0 : i32
    %c0_i32_0 = arith.constant 0 : i32
    %c0_i32_1 = arith.constant 0 : i32
    %c0_i32_2 = arith.constant 0 : i32
    return %c0_i32, %c0_i32_0, %c0_i32_1 : i32, i32, i32
  }
  func.func @transform_8(%arg0: i32) -> (i32, i32, i32) {
    %c0_i32 = arith.constant 0 : i32
    %c0_i32_0 = arith.constant 0 : i32
    %c0_i32_1 = arith.constant 0 : i32
    %c0_i32_2 = arith.constant 0 : i32
    return %c0_i32, %c0_i32_0, %c0_i32_1 : i32, i32, i32
  }
  func.func @transform_9(%arg0: i32) -> (i32, i32, i32) {
    %c0_i32 = arith.constant 0 : i32
    %c0_i32_0 = arith.constant 0 : i32
    %c0_i32_1 = arith.constant 0 : i32
    %c0_i32_2 = arith.constant 0 : i32
    return %c0_i32, %c0_i32_0, %c0_i32_1 : i32, i32, i32
  }
  func.func @transform_10(%arg0: i32) -> (i32, i32, i32) {
    %c0_i32 = arith.constant 0 : i32
    %c0_i32_0 = arith.constant 0 : i32
    %c0_i32_1 = arith.constant 0 : i32
    %c0_i32_2 = arith.constant 0 : i32
    return %c0_i32, %c0_i32_0, %c0_i32_1 : i32, i32, i32
  }
  func.func @transform_11(%arg0: i32) -> (i32, i32, i32) {
    %c0_i32 = arith.constant 0 : i32
    %c0_i32_0 = arith.constant 0 : i32
    %c0_i32_1 = arith.constant 0 : i32
    %c0_i32_2 = arith.constant 0 : i32
    return %c0_i32, %c0_i32_0, %c0_i32_1 : i32, i32, i32
  }
  func.func @transform_12(%arg0: i32) -> (i32, i32, i32) {
    %c0_i32 = arith.constant 0 : i32
    %c0_i32_0 = arith.constant 0 : i32
    %c0_i32_1 = arith.constant 0 : i32
    %c0_i32_2 = arith.constant 0 : i32
    return %c0_i32, %c0_i32_0, %c0_i32_1 : i32, i32, i32
  }
  func.func @transform_13(%arg0: i32) -> (i32, i32) {
    %c0_i32 = arith.constant 0 : i32
    %c0_i32_0 = arith.constant 0 : i32
    return %arg0, %c0_i32 : i32, i32
  }
}

module attributes {stable_mosaic.version = 11 : i64} {
  func.func @_fused_encoder_kernel(%arg0: i32, %arg1: memref<24x32xf32, #tpu.memory_space<vmem>>, %arg2: memref<2x32x96xbf16, #tpu.memory_space<vmem>>, %arg3: memref<2x1x96xf32, #tpu.memory_space<vmem>>, %arg4: memref<2x32x32xbf16, #tpu.memory_space<vmem>>, %arg5: memref<2x1x32xf32, #tpu.memory_space<vmem>>, %arg6: memref<2x1x32xf32, #tpu.memory_space<vmem>>, %arg7: memref<2x1x32xf32, #tpu.memory_space<vmem>>, %arg8: memref<2x32x128xbf16, #tpu.memory_space<vmem>>, %arg9: memref<2x1x128xf32, #tpu.memory_space<vmem>>, %arg10: memref<2x128x32xbf16, #tpu.memory_space<vmem>>, %arg11: memref<2x1x32xf32, #tpu.memory_space<vmem>>, %arg12: memref<2x1x32xf32, #tpu.memory_space<vmem>>, %arg13: memref<2x1x32xf32, #tpu.memory_space<vmem>>, %arg14: memref<24x32xf32, #tpu.memory_space<vmem>>) attributes {dimension_semantics = [#tpu.dimension_semantics<parallel>], iteration_bounds = array<i64: 2>, scalar_prefetch = 0 : i64, scratch_operands = 0 : i64, tpu.core_type = #tpu.core_type<tc>, window_params = [{transform_indices = @transform_0, window_bounds = array<i64: 24, 32>}, {pipeline_mode = #tpu.pipeline_mode<synchronous>, transform_indices = @transform_1, window_bounds = array<i64: 2, 32, 96>}, {pipeline_mode = #tpu.pipeline_mode<synchronous>, transform_indices = @transform_2, window_bounds = array<i64: 2, 1, 96>}, {pipeline_mode = #tpu.pipeline_mode<synchronous>, transform_indices = @transform_3, window_bounds = array<i64: 2, 32, 32>}, {pipeline_mode = #tpu.pipeline_mode<synchronous>, transform_indices = @transform_4, window_bounds = array<i64: 2, 1, 32>}, {pipeline_mode = #tpu.pipeline_mode<synchronous>, transform_indices = @transform_5, window_bounds = array<i64: 2, 1, 32>}, {pipeline_mode = #tpu.pipeline_mode<synchronous>, transform_indices = @transform_6, window_bounds = array<i64: 2, 1, 32>}, {pipeline_mode = #tpu.pipeline_mode<synchronous>, transform_indices = @transform_7, window_bounds = array<i64: 2, 32, 128>}, {pipeline_mode = #tpu.pipeline_mode<synchronous>, transform_indices = @transform_8, window_bounds = array<i64: 2, 1, 128>}, {pipeline_mode = #tpu.pipeline_mode<synchronous>, transform_indices = @transform_9, window_bounds = array<i64: 2, 128, 32>}, {pipeline_mode = #tpu.pipeline_mode<synchronous>, transform_indices = @transform_10, window_bounds = array<i64: 2, 1, 32>}, {pipeline_mode = #tpu.pipeline_mode<synchronous>, transform_indices = @transform_11, window_bounds = array<i64: 2, 1, 32>}, {pipeline_mode = #tpu.pipeline_mode<synchronous>, transform_indices = @transform_12, window_bounds = array<i64: 2, 1, 32>}, {transform_indices = @transform_13, window_bounds = array<i64: 24, 32>}]} {
    %c0 = arith.constant 0 : index
    %c0_0 = arith.constant 0 : index
    %0 = vector.load %arg1[%c0, %c0_0] : memref<24x32xf32, #tpu.memory_space<vmem>>, vector<24x32xf32>
    %1 = arith.truncf %0 : vector<24x32xf32> to vector<24x32xbf16>
    %c0_1 = arith.constant 0 : index
    %c0_2 = arith.constant 0 : index
    %c0_3 = arith.constant 0 : index
    %2 = vector.load %arg2[%c0_1, %c0_2, %c0_3] : memref<2x32x96xbf16, #tpu.memory_space<vmem>>, vector<1x32x96xbf16>
    %3 = vector.shape_cast %2 : vector<1x32x96xbf16> to vector<32x96xbf16>
    %cst = arith.constant dense<0.000000e+00> : vector<24x96xf32>
    %4 = tpu.matmul %1, %3, %cst {dimension_numbers = #tpu.dot_dimension_numbers<[1], [0], [0], [1], [0, 0, 1, 1], [], []>} : vector<24x32xbf16>, vector<32x96xbf16>, vector<24x96xf32> -> vector<24x96xf32>
    %c0_4 = arith.constant 0 : index
    %c0_5 = arith.constant 0 : index
    %c0_6 = arith.constant 0 : index
    %5 = vector.load %arg3[%c0_4, %c0_5, %c0_6] : memref<2x1x96xf32, #tpu.memory_space<vmem>>, vector<1x1x96xf32>
    %6 = vector.shape_cast %5 : vector<1x1x96xf32> to vector<1x96xf32>
    %7 = vector.broadcast %6 : vector<1x96xf32> to vector<24x96xf32>
    %8 = arith.addf %4, %7 : vector<24x96xf32>
    %c0_7 = arith.constant 0 : index
    %c0_8 = arith.constant 0 : index
    %c0_9 = arith.constant 0 : index
    %9 = vector.load %arg4[%c0_7, %c0_8, %c0_9] : memref<2x32x32xbf16, #tpu.memory_space<vmem>>, vector<1x32x32xbf16>
    %10 = vector.shape_cast %9 : vector<1x32x32xbf16> to vector<32x32xbf16>
    %cst_10 = arith.constant 0.000000e+00 : f32
    %11 = vector.broadcast %cst_10 : f32 to vector<24x32xf32>
    %12 = vector.extract_strided_slice %8 {offsets = [0, 0], sizes = [24, 8], strides = [1, 1]} : vector<24x96xf32> to vector<24x8xf32>
    %13 = vector.shape_cast %12 : vector<24x8xf32> to vector<3x8x8xf32>
    %14 = arith.truncf %13 : vector<3x8x8xf32> to vector<3x8x8xbf16>
    %15 = vector.extract_strided_slice %8 {offsets = [0, 32], sizes = [24, 8], strides = [1, 1]} : vector<24x96xf32> to vector<24x8xf32>
    %16 = vector.shape_cast %15 : vector<24x8xf32> to vector<3x8x8xf32>
    %17 = arith.truncf %16 : vector<3x8x8xf32> to vector<3x8x8xbf16>
    %18 = vector.extract_strided_slice %8 {offsets = [0, 64], sizes = [24, 8], strides = [1, 1]} : vector<24x96xf32> to vector<24x8xf32>
    %19 = vector.shape_cast %18 : vector<24x8xf32> to vector<3x8x8xf32>
    %20 = arith.truncf %19 : vector<3x8x8xf32> to vector<3x8x8xbf16>
    "tpu.trace_start"() <{level = 10 : i32, message = "bld,bmd->blm"}> : () -> ()
    %cst_11 = arith.constant dense<0.000000e+00> : vector<3x8x8xf32>
    %21 = tpu.matmul %14, %17, %cst_11 {dimension_numbers = #tpu.dot_dimension_numbers<[2], [2], [1], [1], [0, 0, 0, 1, 1, 1], [0], [0]>} : vector<3x8x8xbf16>, vector<3x8x8xbf16>, vector<3x8x8xf32> -> vector<3x8x8xf32>
    "tpu.trace_stop"() : () -> ()
    %cst_12 = arith.constant dense<0xFF800000> : vector<3x8xf32>
    %22 = vector.multi_reduction <maximumf>, %21, %cst_12 [2] : vector<3x8x8xf32> to vector<3x8xf32>
    %23 = vector.shape_cast %22 : vector<3x8xf32> to vector<3x8x1xf32>
    %24 = vector.broadcast %23 : vector<3x8x1xf32> to vector<3x8x8xf32>
    %25 = arith.subf %21, %24 : vector<3x8x8xf32>
    %26 = math.exp %25 : vector<3x8x8xf32>
    %cst_13 = arith.constant dense<0.000000e+00> : vector<3x8xf32>
    %27 = vector.multi_reduction <add>, %26, %cst_13 [2] : vector<3x8x8xf32> to vector<3x8xf32>
    %28 = vector.shape_cast %27 : vector<3x8xf32> to vector<3x8x1xf32>
    %29 = tpu.reciprocal %28 {approx = true} : vector<3x8x1xf32> -> vector<3x8x1xf32>
    %30 = vector.broadcast %29 : vector<3x8x1xf32> to vector<3x8x8xf32>
    %31 = arith.mulf %26, %30 : vector<3x8x8xf32>
    %32 = arith.truncf %31 : vector<3x8x8xf32> to vector<3x8x8xbf16>
    "tpu.trace_start"() <{level = 10 : i32, message = "blm,bmd->bld"}> : () -> ()
    %cst_14 = arith.constant dense<0.000000e+00> : vector<3x8x8xf32>
    %33 = tpu.matmul %32, %20, %cst_14 {dimension_numbers = #tpu.dot_dimension_numbers<[2], [1], [1], [2], [0, 0, 0, 1, 1, 2], [0], [0]>} : vector<3x8x8xbf16>, vector<3x8x8xbf16>, vector<3x8x8xf32> -> vector<3x8x8xf32>
    "tpu.trace_stop"() : () -> ()
    %34 = vector.shape_cast %33 : vector<3x8x8xf32> to vector<24x8xf32>
    %35 = arith.truncf %34 : vector<24x8xf32> to vector<24x8xbf16>
    %36 = vector.extract_strided_slice %10 {offsets = [0, 0], sizes = [8, 32], strides = [1, 1]} : vector<32x32xbf16> to vector<8x32xbf16>
    %cst_15 = arith.constant dense<0.000000e+00> : vector<24x32xf32>
    %37 = tpu.matmul %35, %36, %cst_15 {dimension_numbers = #tpu.dot_dimension_numbers<[1], [0], [0], [1], [0, 0, 1, 1], [], []>} : vector<24x8xbf16>, vector<8x32xbf16>, vector<24x32xf32> -> vector<24x32xf32>
    %38 = arith.addf %11, %37 : vector<24x32xf32>
    %39 = vector.extract_strided_slice %8 {offsets = [0, 8], sizes = [24, 8], strides = [1, 1]} : vector<24x96xf32> to vector<24x8xf32>
    %40 = vector.shape_cast %39 : vector<24x8xf32> to vector<3x8x8xf32>
    %41 = arith.truncf %40 : vector<3x8x8xf32> to vector<3x8x8xbf16>
    %42 = vector.extract_strided_slice %8 {offsets = [0, 40], sizes = [24, 8], strides = [1, 1]} : vector<24x96xf32> to vector<24x8xf32>
    %43 = vector.shape_cast %42 : vector<24x8xf32> to vector<3x8x8xf32>
    %44 = arith.truncf %43 : vector<3x8x8xf32> to vector<3x8x8xbf16>
    %45 = vector.extract_strided_slice %8 {offsets = [0, 72], sizes = [24, 8], strides = [1, 1]} : vector<24x96xf32> to vector<24x8xf32>
    %46 = vector.shape_cast %45 : vector<24x8xf32> to vector<3x8x8xf32>
    %47 = arith.truncf %46 : vector<3x8x8xf32> to vector<3x8x8xbf16>
    "tpu.trace_start"() <{level = 10 : i32, message = "bld,bmd->blm"}> : () -> ()
    %cst_16 = arith.constant dense<0.000000e+00> : vector<3x8x8xf32>
    %48 = tpu.matmul %41, %44, %cst_16 {dimension_numbers = #tpu.dot_dimension_numbers<[2], [2], [1], [1], [0, 0, 0, 1, 1, 1], [0], [0]>} : vector<3x8x8xbf16>, vector<3x8x8xbf16>, vector<3x8x8xf32> -> vector<3x8x8xf32>
    "tpu.trace_stop"() : () -> ()
    %cst_17 = arith.constant dense<0xFF800000> : vector<3x8xf32>
    %49 = vector.multi_reduction <maximumf>, %48, %cst_17 [2] : vector<3x8x8xf32> to vector<3x8xf32>
    %50 = vector.shape_cast %49 : vector<3x8xf32> to vector<3x8x1xf32>
    %51 = vector.broadcast %50 : vector<3x8x1xf32> to vector<3x8x8xf32>
    %52 = arith.subf %48, %51 : vector<3x8x8xf32>
    %53 = math.exp %52 : vector<3x8x8xf32>
    %cst_18 = arith.constant dense<0.000000e+00> : vector<3x8xf32>
    %54 = vector.multi_reduction <add>, %53, %cst_18 [2] : vector<3x8x8xf32> to vector<3x8xf32>
    %55 = vector.shape_cast %54 : vector<3x8xf32> to vector<3x8x1xf32>
    %56 = tpu.reciprocal %55 {approx = true} : vector<3x8x1xf32> -> vector<3x8x1xf32>
    %57 = vector.broadcast %56 : vector<3x8x1xf32> to vector<3x8x8xf32>
    %58 = arith.mulf %53, %57 : vector<3x8x8xf32>
    %59 = arith.truncf %58 : vector<3x8x8xf32> to vector<3x8x8xbf16>
    "tpu.trace_start"() <{level = 10 : i32, message = "blm,bmd->bld"}> : () -> ()
    %cst_19 = arith.constant dense<0.000000e+00> : vector<3x8x8xf32>
    %60 = tpu.matmul %59, %47, %cst_19 {dimension_numbers = #tpu.dot_dimension_numbers<[2], [1], [1], [2], [0, 0, 0, 1, 1, 2], [0], [0]>} : vector<3x8x8xbf16>, vector<3x8x8xbf16>, vector<3x8x8xf32> -> vector<3x8x8xf32>
    "tpu.trace_stop"() : () -> ()
    %61 = vector.shape_cast %60 : vector<3x8x8xf32> to vector<24x8xf32>
    %62 = arith.truncf %61 : vector<24x8xf32> to vector<24x8xbf16>
    %63 = vector.extract_strided_slice %10 {offsets = [8, 0], sizes = [8, 32], strides = [1, 1]} : vector<32x32xbf16> to vector<8x32xbf16>
    %cst_20 = arith.constant dense<0.000000e+00> : vector<24x32xf32>
    %64 = tpu.matmul %62, %63, %cst_20 {dimension_numbers = #tpu.dot_dimension_numbers<[1], [0], [0], [1], [0, 0, 1, 1], [], []>} : vector<24x8xbf16>, vector<8x32xbf16>, vector<24x32xf32> -> vector<24x32xf32>
    %65 = arith.addf %38, %64 : vector<24x32xf32>
    %66 = vector.extract_strided_slice %8 {offsets = [0, 16], sizes = [24, 8], strides = [1, 1]} : vector<24x96xf32> to vector<24x8xf32>
    %67 = vector.shape_cast %66 : vector<24x8xf32> to vector<3x8x8xf32>
    %68 = arith.truncf %67 : vector<3x8x8xf32> to vector<3x8x8xbf16>
    %69 = vector.extract_strided_slice %8 {offsets = [0, 48], sizes = [24, 8], strides = [1, 1]} : vector<24x96xf32> to vector<24x8xf32>
    %70 = vector.shape_cast %69 : vector<24x8xf32> to vector<3x8x8xf32>
    %71 = arith.truncf %70 : vector<3x8x8xf32> to vector<3x8x8xbf16>
    %72 = vector.extract_strided_slice %8 {offsets = [0, 80], sizes = [24, 8], strides = [1, 1]} : vector<24x96xf32> to vector<24x8xf32>
    %73 = vector.shape_cast %72 : vector<24x8xf32> to vector<3x8x8xf32>
    %74 = arith.truncf %73 : vector<3x8x8xf32> to vector<3x8x8xbf16>
    "tpu.trace_start"() <{level = 10 : i32, message = "bld,bmd->blm"}> : () -> ()
    %cst_21 = arith.constant dense<0.000000e+00> : vector<3x8x8xf32>
    %75 = tpu.matmul %68, %71, %cst_21 {dimension_numbers = #tpu.dot_dimension_numbers<[2], [2], [1], [1], [0, 0, 0, 1, 1, 1], [0], [0]>} : vector<3x8x8xbf16>, vector<3x8x8xbf16>, vector<3x8x8xf32> -> vector<3x8x8xf32>
    "tpu.trace_stop"() : () -> ()
    %cst_22 = arith.constant dense<0xFF800000> : vector<3x8xf32>
    %76 = vector.multi_reduction <maximumf>, %75, %cst_22 [2] : vector<3x8x8xf32> to vector<3x8xf32>
    %77 = vector.shape_cast %76 : vector<3x8xf32> to vector<3x8x1xf32>
    %78 = vector.broadcast %77 : vector<3x8x1xf32> to vector<3x8x8xf32>
    %79 = arith.subf %75, %78 : vector<3x8x8xf32>
    %80 = math.exp %79 : vector<3x8x8xf32>
    %cst_23 = arith.constant dense<0.000000e+00> : vector<3x8xf32>
    %81 = vector.multi_reduction <add>, %80, %cst_23 [2] : vector<3x8x8xf32> to vector<3x8xf32>
    %82 = vector.shape_cast %81 : vector<3x8xf32> to vector<3x8x1xf32>
    %83 = tpu.reciprocal %82 {approx = true} : vector<3x8x1xf32> -> vector<3x8x1xf32>
    %84 = vector.broadcast %83 : vector<3x8x1xf32> to vector<3x8x8xf32>
    %85 = arith.mulf %80, %84 : vector<3x8x8xf32>
    %86 = arith.truncf %85 : vector<3x8x8xf32> to vector<3x8x8xbf16>
    "tpu.trace_start"() <{level = 10 : i32, message = "blm,bmd->bld"}> : () -> ()
    %cst_24 = arith.constant dense<0.000000e+00> : vector<3x8x8xf32>
    %87 = tpu.matmul %86, %74, %cst_24 {dimension_numbers = #tpu.dot_dimension_numbers<[2], [1], [1], [2], [0, 0, 0, 1, 1, 2], [0], [0]>} : vector<3x8x8xbf16>, vector<3x8x8xbf16>, vector<3x8x8xf32> -> vector<3x8x8xf32>
    "tpu.trace_stop"() : () -> ()
    %88 = vector.shape_cast %87 : vector<3x8x8xf32> to vector<24x8xf32>
    %89 = arith.truncf %88 : vector<24x8xf32> to vector<24x8xbf16>
    %90 = vector.extract_strided_slice %10 {offsets = [16, 0], sizes = [8, 32], strides = [1, 1]} : vector<32x32xbf16> to vector<8x32xbf16>
    %cst_25 = arith.constant dense<0.000000e+00> : vector<24x32xf32>
    %91 = tpu.matmul %89, %90, %cst_25 {dimension_numbers = #tpu.dot_dimension_numbers<[1], [0], [0], [1], [0, 0, 1, 1], [], []>} : vector<24x8xbf16>, vector<8x32xbf16>, vector<24x32xf32> -> vector<24x32xf32>
    %92 = arith.addf %65, %91 : vector<24x32xf32>
    %93 = vector.extract_strided_slice %8 {offsets = [0, 24], sizes = [24, 8], strides = [1, 1]} : vector<24x96xf32> to vector<24x8xf32>
    %94 = vector.shape_cast %93 : vector<24x8xf32> to vector<3x8x8xf32>
    %95 = arith.truncf %94 : vector<3x8x8xf32> to vector<3x8x8xbf16>
    %96 = vector.extract_strided_slice %8 {offsets = [0, 56], sizes = [24, 8], strides = [1, 1]} : vector<24x96xf32> to vector<24x8xf32>
    %97 = vector.shape_cast %96 : vector<24x8xf32> to vector<3x8x8xf32>
    %98 = arith.truncf %97 : vector<3x8x8xf32> to vector<3x8x8xbf16>
    %99 = vector.extract_strided_slice %8 {offsets = [0, 88], sizes = [24, 8], strides = [1, 1]} : vector<24x96xf32> to vector<24x8xf32>
    %100 = vector.shape_cast %99 : vector<24x8xf32> to vector<3x8x8xf32>
    %101 = arith.truncf %100 : vector<3x8x8xf32> to vector<3x8x8xbf16>
    "tpu.trace_start"() <{level = 10 : i32, message = "bld,bmd->blm"}> : () -> ()
    %cst_26 = arith.constant dense<0.000000e+00> : vector<3x8x8xf32>
    %102 = tpu.matmul %95, %98, %cst_26 {dimension_numbers = #tpu.dot_dimension_numbers<[2], [2], [1], [1], [0, 0, 0, 1, 1, 1], [0], [0]>} : vector<3x8x8xbf16>, vector<3x8x8xbf16>, vector<3x8x8xf32> -> vector<3x8x8xf32>
    "tpu.trace_stop"() : () -> ()
    %cst_27 = arith.constant dense<0xFF800000> : vector<3x8xf32>
    %103 = vector.multi_reduction <maximumf>, %102, %cst_27 [2] : vector<3x8x8xf32> to vector<3x8xf32>
    %104 = vector.shape_cast %103 : vector<3x8xf32> to vector<3x8x1xf32>
    %105 = vector.broadcast %104 : vector<3x8x1xf32> to vector<3x8x8xf32>
    %106 = arith.subf %102, %105 : vector<3x8x8xf32>
    %107 = math.exp %106 : vector<3x8x8xf32>
    %cst_28 = arith.constant dense<0.000000e+00> : vector<3x8xf32>
    %108 = vector.multi_reduction <add>, %107, %cst_28 [2] : vector<3x8x8xf32> to vector<3x8xf32>
    %109 = vector.shape_cast %108 : vector<3x8xf32> to vector<3x8x1xf32>
    %110 = tpu.reciprocal %109 {approx = true} : vector<3x8x1xf32> -> vector<3x8x1xf32>
    %111 = vector.broadcast %110 : vector<3x8x1xf32> to vector<3x8x8xf32>
    %112 = arith.mulf %107, %111 : vector<3x8x8xf32>
    %113 = arith.truncf %112 : vector<3x8x8xf32> to vector<3x8x8xbf16>
    "tpu.trace_start"() <{level = 10 : i32, message = "blm,bmd->bld"}> : () -> ()
    %cst_29 = arith.constant dense<0.000000e+00> : vector<3x8x8xf32>
    %114 = tpu.matmul %113, %101, %cst_29 {dimension_numbers = #tpu.dot_dimension_numbers<[2], [1], [1], [2], [0, 0, 0, 1, 1, 2], [0], [0]>} : vector<3x8x8xbf16>, vector<3x8x8xbf16>, vector<3x8x8xf32> -> vector<3x8x8xf32>
    "tpu.trace_stop"() : () -> ()
    %115 = vector.shape_cast %114 : vector<3x8x8xf32> to vector<24x8xf32>
    %116 = arith.truncf %115 : vector<24x8xf32> to vector<24x8xbf16>
    %117 = vector.extract_strided_slice %10 {offsets = [24, 0], sizes = [8, 32], strides = [1, 1]} : vector<32x32xbf16> to vector<8x32xbf16>
    %cst_30 = arith.constant dense<0.000000e+00> : vector<24x32xf32>
    %118 = tpu.matmul %116, %117, %cst_30 {dimension_numbers = #tpu.dot_dimension_numbers<[1], [0], [0], [1], [0, 0, 1, 1], [], []>} : vector<24x8xbf16>, vector<8x32xbf16>, vector<24x32xf32> -> vector<24x32xf32>
    %119 = arith.addf %92, %118 : vector<24x32xf32>
    %c0_31 = arith.constant 0 : index
    %c0_32 = arith.constant 0 : index
    %c0_33 = arith.constant 0 : index
    %120 = vector.load %arg5[%c0_31, %c0_32, %c0_33] : memref<2x1x32xf32, #tpu.memory_space<vmem>>, vector<1x1x32xf32>
    %121 = vector.shape_cast %120 : vector<1x1x32xf32> to vector<1x32xf32>
    %122 = vector.broadcast %121 : vector<1x32xf32> to vector<24x32xf32>
    %123 = arith.addf %119, %122 : vector<24x32xf32>
    %124 = arith.addf %0, %123 : vector<24x32xf32>
    %c0_34 = arith.constant 0 : index
    %c0_35 = arith.constant 0 : index
    %c0_36 = arith.constant 0 : index
    %125 = vector.load %arg6[%c0_34, %c0_35, %c0_36] : memref<2x1x32xf32, #tpu.memory_space<vmem>>, vector<1x1x32xf32>
    %126 = vector.shape_cast %125 : vector<1x1x32xf32> to vector<1x32xf32>
    %c0_37 = arith.constant 0 : index
    %c0_38 = arith.constant 0 : index
    %c0_39 = arith.constant 0 : index
    %127 = vector.load %arg7[%c0_37, %c0_38, %c0_39] : memref<2x1x32xf32, #tpu.memory_space<vmem>>, vector<1x1x32xf32>
    %128 = vector.shape_cast %127 : vector<1x1x32xf32> to vector<1x32xf32>
    %cst_40 = arith.constant dense<0.000000e+00> : vector<24xf32>
    %129 = vector.multi_reduction <add>, %124, %cst_40 [1] : vector<24x32xf32> to vector<24xf32>
    %130 = vector.shape_cast %129 : vector<24xf32> to vector<24x1xf32>
    %cst_41 = arith.constant 3.200000e+01 : f32
    %131 = vector.broadcast %cst_41 : f32 to vector<24x1xf32>
    %132 = arith.divf %130, %131 : vector<24x1xf32>
    %133 = vector.broadcast %132 : vector<24x1xf32> to vector<24x32xf32>
    %134 = arith.subf %124, %133 : vector<24x32xf32>
    %135 = arith.mulf %134, %134 : vector<24x32xf32>
    %cst_42 = arith.constant dense<0.000000e+00> : vector<24xf32>
    %136 = vector.multi_reduction <add>, %135, %cst_42 [1] : vector<24x32xf32> to vector<24xf32>
    %137 = vector.shape_cast %136 : vector<24xf32> to vector<24x1xf32>
    %cst_43 = arith.constant 3.200000e+01 : f32
    %138 = vector.broadcast %cst_43 : f32 to vector<24x1xf32>
    %139 = arith.divf %137, %138 : vector<24x1xf32>
    %cst_44 = arith.constant 9.99999974E-6 : f32
    %140 = vector.broadcast %cst_44 : f32 to vector<24x1xf32>
    %141 = arith.addf %139, %140 : vector<24x1xf32>
    %142 = math.rsqrt %141 : vector<24x1xf32>
    %143 = vector.broadcast %142 : vector<24x1xf32> to vector<24x32xf32>
    %144 = arith.mulf %134, %143 : vector<24x32xf32>
    %145 = vector.broadcast %126 : vector<1x32xf32> to vector<24x32xf32>
    %146 = arith.mulf %144, %145 : vector<24x32xf32>
    %147 = vector.broadcast %128 : vector<1x32xf32> to vector<24x32xf32>
    %148 = arith.addf %146, %147 : vector<24x32xf32>
    %149 = arith.truncf %148 : vector<24x32xf32> to vector<24x32xbf16>
    %c0_45 = arith.constant 0 : index
    %c0_46 = arith.constant 0 : index
    %c0_47 = arith.constant 0 : index
    %150 = vector.load %arg8[%c0_45, %c0_46, %c0_47] : memref<2x32x128xbf16, #tpu.memory_space<vmem>>, vector<1x32x128xbf16>
    %151 = vector.shape_cast %150 : vector<1x32x128xbf16> to vector<32x128xbf16>
    %cst_48 = arith.constant dense<0.000000e+00> : vector<24x128xf32>
    %152 = tpu.matmul %149, %151, %cst_48 {dimension_numbers = #tpu.dot_dimension_numbers<[1], [0], [0], [1], [0, 0, 1, 1], [], []>} : vector<24x32xbf16>, vector<32x128xbf16>, vector<24x128xf32> -> vector<24x128xf32>
    %c0_49 = arith.constant 0 : index
    %c0_50 = arith.constant 0 : index
    %c0_51 = arith.constant 0 : index
    %153 = vector.load %arg9[%c0_49, %c0_50, %c0_51] : memref<2x1x128xf32, #tpu.memory_space<vmem>>, vector<1x1x128xf32>
    %154 = vector.shape_cast %153 : vector<1x1x128xf32> to vector<1x128xf32>
    %155 = vector.broadcast %154 : vector<1x128xf32> to vector<24x128xf32>
    %156 = arith.addf %152, %155 : vector<24x128xf32>
    %cst_52 = arith.constant 0.000000e+00 : f32
    %157 = vector.broadcast %cst_52 : f32 to vector<24x128xf32>
    %158 = arith.maximumf %156, %157 : vector<24x128xf32>
    %159 = arith.truncf %158 : vector<24x128xf32> to vector<24x128xbf16>
    %c0_53 = arith.constant 0 : index
    %c0_54 = arith.constant 0 : index
    %c0_55 = arith.constant 0 : index
    %160 = vector.load %arg10[%c0_53, %c0_54, %c0_55] : memref<2x128x32xbf16, #tpu.memory_space<vmem>>, vector<1x128x32xbf16>
    %161 = vector.shape_cast %160 : vector<1x128x32xbf16> to vector<128x32xbf16>
    %cst_56 = arith.constant dense<0.000000e+00> : vector<24x32xf32>
    %162 = tpu.matmul %159, %161, %cst_56 {dimension_numbers = #tpu.dot_dimension_numbers<[1], [0], [0], [1], [0, 0, 1, 1], [], []>} : vector<24x128xbf16>, vector<128x32xbf16>, vector<24x32xf32> -> vector<24x32xf32>
    %c0_57 = arith.constant 0 : index
    %c0_58 = arith.constant 0 : index
    %c0_59 = arith.constant 0 : index
    %163 = vector.load %arg11[%c0_57, %c0_58, %c0_59] : memref<2x1x32xf32, #tpu.memory_space<vmem>>, vector<1x1x32xf32>
    %164 = vector.shape_cast %163 : vector<1x1x32xf32> to vector<1x32xf32>
    %165 = vector.broadcast %164 : vector<1x32xf32> to vector<24x32xf32>
    %166 = arith.addf %162, %165 : vector<24x32xf32>
    %167 = arith.addf %148, %166 : vector<24x32xf32>
    %c0_60 = arith.constant 0 : index
    %c0_61 = arith.constant 0 : index
    %c0_62 = arith.constant 0 : index
    %168 = vector.load %arg12[%c0_60, %c0_61, %c0_62] : memref<2x1x32xf32, #tpu.memory_space<vmem>>, vector<1x1x32xf32>
    %169 = vector.shape_cast %168 : vector<1x1x32xf32> to vector<1x32xf32>
    %c0_63 = arith.constant 0 : index
    %c0_64 = arith.constant 0 : index
    %c0_65 = arith.constant 0 : index
    %170 = vector.load %arg13[%c0_63, %c0_64, %c0_65] : memref<2x1x32xf32, #tpu.memory_space<vmem>>, vector<1x1x32xf32>
    %171 = vector.shape_cast %170 : vector<1x1x32xf32> to vector<1x32xf32>
    %cst_66 = arith.constant dense<0.000000e+00> : vector<24xf32>
    %172 = vector.multi_reduction <add>, %167, %cst_66 [1] : vector<24x32xf32> to vector<24xf32>
    %173 = vector.shape_cast %172 : vector<24xf32> to vector<24x1xf32>
    %cst_67 = arith.constant 3.200000e+01 : f32
    %174 = vector.broadcast %cst_67 : f32 to vector<24x1xf32>
    %175 = arith.divf %173, %174 : vector<24x1xf32>
    %176 = vector.broadcast %175 : vector<24x1xf32> to vector<24x32xf32>
    %177 = arith.subf %167, %176 : vector<24x32xf32>
    %178 = arith.mulf %177, %177 : vector<24x32xf32>
    %cst_68 = arith.constant dense<0.000000e+00> : vector<24xf32>
    %179 = vector.multi_reduction <add>, %178, %cst_68 [1] : vector<24x32xf32> to vector<24xf32>
    %180 = vector.shape_cast %179 : vector<24xf32> to vector<24x1xf32>
    %cst_69 = arith.constant 3.200000e+01 : f32
    %181 = vector.broadcast %cst_69 : f32 to vector<24x1xf32>
    %182 = arith.divf %180, %181 : vector<24x1xf32>
    %cst_70 = arith.constant 9.99999974E-6 : f32
    %183 = vector.broadcast %cst_70 : f32 to vector<24x1xf32>
    %184 = arith.addf %182, %183 : vector<24x1xf32>
    %185 = math.rsqrt %184 : vector<24x1xf32>
    %186 = vector.broadcast %185 : vector<24x1xf32> to vector<24x32xf32>
    %187 = arith.mulf %177, %186 : vector<24x32xf32>
    %188 = vector.broadcast %169 : vector<1x32xf32> to vector<24x32xf32>
    %189 = arith.mulf %187, %188 : vector<24x32xf32>
    %190 = vector.broadcast %171 : vector<1x32xf32> to vector<24x32xf32>
    %191 = arith.addf %189, %190 : vector<24x32xf32>
    %192 = arith.truncf %191 : vector<24x32xf32> to vector<24x32xbf16>
    %c1 = arith.constant 1 : index
    %c0_71 = arith.constant 0 : index
    %c0_72 = arith.constant 0 : index
    %193 = vector.load %arg2[%c1, %c0_71, %c0_72] : memref<2x32x96xbf16, #tpu.memory_space<vmem>>, vector<1x32x96xbf16>
    %194 = vector.shape_cast %193 : vector<1x32x96xbf16> to vector<32x96xbf16>
    %cst_73 = arith.constant dense<0.000000e+00> : vector<24x96xf32>
    %195 = tpu.matmul %192, %194, %cst_73 {dimension_numbers = #tpu.dot_dimension_numbers<[1], [0], [0], [1], [0, 0, 1, 1], [], []>} : vector<24x32xbf16>, vector<32x96xbf16>, vector<24x96xf32> -> vector<24x96xf32>
    %c1_74 = arith.constant 1 : index
    %c0_75 = arith.constant 0 : index
    %c0_76 = arith.constant 0 : index
    %196 = vector.load %arg3[%c1_74, %c0_75, %c0_76] : memref<2x1x96xf32, #tpu.memory_space<vmem>>, vector<1x1x96xf32>
    %197 = vector.shape_cast %196 : vector<1x1x96xf32> to vector<1x96xf32>
    %198 = vector.broadcast %197 : vector<1x96xf32> to vector<24x96xf32>
    %199 = arith.addf %195, %198 : vector<24x96xf32>
    %c1_77 = arith.constant 1 : index
    %c0_78 = arith.constant 0 : index
    %c0_79 = arith.constant 0 : index
    %200 = vector.load %arg4[%c1_77, %c0_78, %c0_79] : memref<2x32x32xbf16, #tpu.memory_space<vmem>>, vector<1x32x32xbf16>
    %201 = vector.shape_cast %200 : vector<1x32x32xbf16> to vector<32x32xbf16>
    %cst_80 = arith.constant 0.000000e+00 : f32
    %202 = vector.broadcast %cst_80 : f32 to vector<24x32xf32>
    %203 = vector.extract_strided_slice %199 {offsets = [0, 0], sizes = [24, 8], strides = [1, 1]} : vector<24x96xf32> to vector<24x8xf32>
    %204 = vector.shape_cast %203 : vector<24x8xf32> to vector<3x8x8xf32>
    %205 = arith.truncf %204 : vector<3x8x8xf32> to vector<3x8x8xbf16>
    %206 = vector.extract_strided_slice %199 {offsets = [0, 32], sizes = [24, 8], strides = [1, 1]} : vector<24x96xf32> to vector<24x8xf32>
    %207 = vector.shape_cast %206 : vector<24x8xf32> to vector<3x8x8xf32>
    %208 = arith.truncf %207 : vector<3x8x8xf32> to vector<3x8x8xbf16>
    %209 = vector.extract_strided_slice %199 {offsets = [0, 64], sizes = [24, 8], strides = [1, 1]} : vector<24x96xf32> to vector<24x8xf32>
    %210 = vector.shape_cast %209 : vector<24x8xf32> to vector<3x8x8xf32>
    %211 = arith.truncf %210 : vector<3x8x8xf32> to vector<3x8x8xbf16>
    "tpu.trace_start"() <{level = 10 : i32, message = "bld,bmd->blm"}> : () -> ()
    %cst_81 = arith.constant dense<0.000000e+00> : vector<3x8x8xf32>
    %212 = tpu.matmul %205, %208, %cst_81 {dimension_numbers = #tpu.dot_dimension_numbers<[2], [2], [1], [1], [0, 0, 0, 1, 1, 1], [0], [0]>} : vector<3x8x8xbf16>, vector<3x8x8xbf16>, vector<3x8x8xf32> -> vector<3x8x8xf32>
    "tpu.trace_stop"() : () -> ()
    %cst_82 = arith.constant dense<0xFF800000> : vector<3x8xf32>
    %213 = vector.multi_reduction <maximumf>, %212, %cst_82 [2] : vector<3x8x8xf32> to vector<3x8xf32>
    %214 = vector.shape_cast %213 : vector<3x8xf32> to vector<3x8x1xf32>
    %215 = vector.broadcast %214 : vector<3x8x1xf32> to vector<3x8x8xf32>
    %216 = arith.subf %212, %215 : vector<3x8x8xf32>
    %217 = math.exp %216 : vector<3x8x8xf32>
    %cst_83 = arith.constant dense<0.000000e+00> : vector<3x8xf32>
    %218 = vector.multi_reduction <add>, %217, %cst_83 [2] : vector<3x8x8xf32> to vector<3x8xf32>
    %219 = vector.shape_cast %218 : vector<3x8xf32> to vector<3x8x1xf32>
    %220 = tpu.reciprocal %219 {approx = true} : vector<3x8x1xf32> -> vector<3x8x1xf32>
    %221 = vector.broadcast %220 : vector<3x8x1xf32> to vector<3x8x8xf32>
    %222 = arith.mulf %217, %221 : vector<3x8x8xf32>
    %223 = arith.truncf %222 : vector<3x8x8xf32> to vector<3x8x8xbf16>
    "tpu.trace_start"() <{level = 10 : i32, message = "blm,bmd->bld"}> : () -> ()
    %cst_84 = arith.constant dense<0.000000e+00> : vector<3x8x8xf32>
    %224 = tpu.matmul %223, %211, %cst_84 {dimension_numbers = #tpu.dot_dimension_numbers<[2], [1], [1], [2], [0, 0, 0, 1, 1, 2], [0], [0]>} : vector<3x8x8xbf16>, vector<3x8x8xbf16>, vector<3x8x8xf32> -> vector<3x8x8xf32>
    "tpu.trace_stop"() : () -> ()
    %225 = vector.shape_cast %224 : vector<3x8x8xf32> to vector<24x8xf32>
    %226 = arith.truncf %225 : vector<24x8xf32> to vector<24x8xbf16>
    %227 = vector.extract_strided_slice %201 {offsets = [0, 0], sizes = [8, 32], strides = [1, 1]} : vector<32x32xbf16> to vector<8x32xbf16>
    %cst_85 = arith.constant dense<0.000000e+00> : vector<24x32xf32>
    %228 = tpu.matmul %226, %227, %cst_85 {dimension_numbers = #tpu.dot_dimension_numbers<[1], [0], [0], [1], [0, 0, 1, 1], [], []>} : vector<24x8xbf16>, vector<8x32xbf16>, vector<24x32xf32> -> vector<24x32xf32>
    %229 = arith.addf %202, %228 : vector<24x32xf32>
    %230 = vector.extract_strided_slice %199 {offsets = [0, 8], sizes = [24, 8], strides = [1, 1]} : vector<24x96xf32> to vector<24x8xf32>
    %231 = vector.shape_cast %230 : vector<24x8xf32> to vector<3x8x8xf32>
    %232 = arith.truncf %231 : vector<3x8x8xf32> to vector<3x8x8xbf16>
    %233 = vector.extract_strided_slice %199 {offsets = [0, 40], sizes = [24, 8], strides = [1, 1]} : vector<24x96xf32> to vector<24x8xf32>
    %234 = vector.shape_cast %233 : vector<24x8xf32> to vector<3x8x8xf32>
    %235 = arith.truncf %234 : vector<3x8x8xf32> to vector<3x8x8xbf16>
    %236 = vector.extract_strided_slice %199 {offsets = [0, 72], sizes = [24, 8], strides = [1, 1]} : vector<24x96xf32> to vector<24x8xf32>
    %237 = vector.shape_cast %236 : vector<24x8xf32> to vector<3x8x8xf32>
    %238 = arith.truncf %237 : vector<3x8x8xf32> to vector<3x8x8xbf16>
    "tpu.trace_start"() <{level = 10 : i32, message = "bld,bmd->blm"}> : () -> ()
    %cst_86 = arith.constant dense<0.000000e+00> : vector<3x8x8xf32>
    %239 = tpu.matmul %232, %235, %cst_86 {dimension_numbers = #tpu.dot_dimension_numbers<[2], [2], [1], [1], [0, 0, 0, 1, 1, 1], [0], [0]>} : vector<3x8x8xbf16>, vector<3x8x8xbf16>, vector<3x8x8xf32> -> vector<3x8x8xf32>
    "tpu.trace_stop"() : () -> ()
    %cst_87 = arith.constant dense<0xFF800000> : vector<3x8xf32>
    %240 = vector.multi_reduction <maximumf>, %239, %cst_87 [2] : vector<3x8x8xf32> to vector<3x8xf32>
    %241 = vector.shape_cast %240 : vector<3x8xf32> to vector<3x8x1xf32>
    %242 = vector.broadcast %241 : vector<3x8x1xf32> to vector<3x8x8xf32>
    %243 = arith.subf %239, %242 : vector<3x8x8xf32>
    %244 = math.exp %243 : vector<3x8x8xf32>
    %cst_88 = arith.constant dense<0.000000e+00> : vector<3x8xf32>
    %245 = vector.multi_reduction <add>, %244, %cst_88 [2] : vector<3x8x8xf32> to vector<3x8xf32>
    %246 = vector.shape_cast %245 : vector<3x8xf32> to vector<3x8x1xf32>
    %247 = tpu.reciprocal %246 {approx = true} : vector<3x8x1xf32> -> vector<3x8x1xf32>
    %248 = vector.broadcast %247 : vector<3x8x1xf32> to vector<3x8x8xf32>
    %249 = arith.mulf %244, %248 : vector<3x8x8xf32>
    %250 = arith.truncf %249 : vector<3x8x8xf32> to vector<3x8x8xbf16>
    "tpu.trace_start"() <{level = 10 : i32, message = "blm,bmd->bld"}> : () -> ()
    %cst_89 = arith.constant dense<0.000000e+00> : vector<3x8x8xf32>
    %251 = tpu.matmul %250, %238, %cst_89 {dimension_numbers = #tpu.dot_dimension_numbers<[2], [1], [1], [2], [0, 0, 0, 1, 1, 2], [0], [0]>} : vector<3x8x8xbf16>, vector<3x8x8xbf16>, vector<3x8x8xf32> -> vector<3x8x8xf32>
    "tpu.trace_stop"() : () -> ()
    %252 = vector.shape_cast %251 : vector<3x8x8xf32> to vector<24x8xf32>
    %253 = arith.truncf %252 : vector<24x8xf32> to vector<24x8xbf16>
    %254 = vector.extract_strided_slice %201 {offsets = [8, 0], sizes = [8, 32], strides = [1, 1]} : vector<32x32xbf16> to vector<8x32xbf16>
    %cst_90 = arith.constant dense<0.000000e+00> : vector<24x32xf32>
    %255 = tpu.matmul %253, %254, %cst_90 {dimension_numbers = #tpu.dot_dimension_numbers<[1], [0], [0], [1], [0, 0, 1, 1], [], []>} : vector<24x8xbf16>, vector<8x32xbf16>, vector<24x32xf32> -> vector<24x32xf32>
    %256 = arith.addf %229, %255 : vector<24x32xf32>
    %257 = vector.extract_strided_slice %199 {offsets = [0, 16], sizes = [24, 8], strides = [1, 1]} : vector<24x96xf32> to vector<24x8xf32>
    %258 = vector.shape_cast %257 : vector<24x8xf32> to vector<3x8x8xf32>
    %259 = arith.truncf %258 : vector<3x8x8xf32> to vector<3x8x8xbf16>
    %260 = vector.extract_strided_slice %199 {offsets = [0, 48], sizes = [24, 8], strides = [1, 1]} : vector<24x96xf32> to vector<24x8xf32>
    %261 = vector.shape_cast %260 : vector<24x8xf32> to vector<3x8x8xf32>
    %262 = arith.truncf %261 : vector<3x8x8xf32> to vector<3x8x8xbf16>
    %263 = vector.extract_strided_slice %199 {offsets = [0, 80], sizes = [24, 8], strides = [1, 1]} : vector<24x96xf32> to vector<24x8xf32>
    %264 = vector.shape_cast %263 : vector<24x8xf32> to vector<3x8x8xf32>
    %265 = arith.truncf %264 : vector<3x8x8xf32> to vector<3x8x8xbf16>
    "tpu.trace_start"() <{level = 10 : i32, message = "bld,bmd->blm"}> : () -> ()
    %cst_91 = arith.constant dense<0.000000e+00> : vector<3x8x8xf32>
    %266 = tpu.matmul %259, %262, %cst_91 {dimension_numbers = #tpu.dot_dimension_numbers<[2], [2], [1], [1], [0, 0, 0, 1, 1, 1], [0], [0]>} : vector<3x8x8xbf16>, vector<3x8x8xbf16>, vector<3x8x8xf32> -> vector<3x8x8xf32>
    "tpu.trace_stop"() : () -> ()
    %cst_92 = arith.constant dense<0xFF800000> : vector<3x8xf32>
    %267 = vector.multi_reduction <maximumf>, %266, %cst_92 [2] : vector<3x8x8xf32> to vector<3x8xf32>
    %268 = vector.shape_cast %267 : vector<3x8xf32> to vector<3x8x1xf32>
    %269 = vector.broadcast %268 : vector<3x8x1xf32> to vector<3x8x8xf32>
    %270 = arith.subf %266, %269 : vector<3x8x8xf32>
    %271 = math.exp %270 : vector<3x8x8xf32>
    %cst_93 = arith.constant dense<0.000000e+00> : vector<3x8xf32>
    %272 = vector.multi_reduction <add>, %271, %cst_93 [2] : vector<3x8x8xf32> to vector<3x8xf32>
    %273 = vector.shape_cast %272 : vector<3x8xf32> to vector<3x8x1xf32>
    %274 = tpu.reciprocal %273 {approx = true} : vector<3x8x1xf32> -> vector<3x8x1xf32>
    %275 = vector.broadcast %274 : vector<3x8x1xf32> to vector<3x8x8xf32>
    %276 = arith.mulf %271, %275 : vector<3x8x8xf32>
    %277 = arith.truncf %276 : vector<3x8x8xf32> to vector<3x8x8xbf16>
    "tpu.trace_start"() <{level = 10 : i32, message = "blm,bmd->bld"}> : () -> ()
    %cst_94 = arith.constant dense<0.000000e+00> : vector<3x8x8xf32>
    %278 = tpu.matmul %277, %265, %cst_94 {dimension_numbers = #tpu.dot_dimension_numbers<[2], [1], [1], [2], [0, 0, 0, 1, 1, 2], [0], [0]>} : vector<3x8x8xbf16>, vector<3x8x8xbf16>, vector<3x8x8xf32> -> vector<3x8x8xf32>
    "tpu.trace_stop"() : () -> ()
    %279 = vector.shape_cast %278 : vector<3x8x8xf32> to vector<24x8xf32>
    %280 = arith.truncf %279 : vector<24x8xf32> to vector<24x8xbf16>
    %281 = vector.extract_strided_slice %201 {offsets = [16, 0], sizes = [8, 32], strides = [1, 1]} : vector<32x32xbf16> to vector<8x32xbf16>
    %cst_95 = arith.constant dense<0.000000e+00> : vector<24x32xf32>
    %282 = tpu.matmul %280, %281, %cst_95 {dimension_numbers = #tpu.dot_dimension_numbers<[1], [0], [0], [1], [0, 0, 1, 1], [], []>} : vector<24x8xbf16>, vector<8x32xbf16>, vector<24x32xf32> -> vector<24x32xf32>
    %283 = arith.addf %256, %282 : vector<24x32xf32>
    %284 = vector.extract_strided_slice %199 {offsets = [0, 24], sizes = [24, 8], strides = [1, 1]} : vector<24x96xf32> to vector<24x8xf32>
    %285 = vector.shape_cast %284 : vector<24x8xf32> to vector<3x8x8xf32>
    %286 = arith.truncf %285 : vector<3x8x8xf32> to vector<3x8x8xbf16>
    %287 = vector.extract_strided_slice %199 {offsets = [0, 56], sizes = [24, 8], strides = [1, 1]} : vector<24x96xf32> to vector<24x8xf32>
    %288 = vector.shape_cast %287 : vector<24x8xf32> to vector<3x8x8xf32>
    %289 = arith.truncf %288 : vector<3x8x8xf32> to vector<3x8x8xbf16>
    %290 = vector.extract_strided_slice %199 {offsets = [0, 88], sizes = [24, 8], strides = [1, 1]} : vector<24x96xf32> to vector<24x8xf32>
    %291 = vector.shape_cast %290 : vector<24x8xf32> to vector<3x8x8xf32>
    %292 = arith.truncf %291 : vector<3x8x8xf32> to vector<3x8x8xbf16>
    "tpu.trace_start"() <{level = 10 : i32, message = "bld,bmd->blm"}> : () -> ()
    %cst_96 = arith.constant dense<0.000000e+00> : vector<3x8x8xf32>
    %293 = tpu.matmul %286, %289, %cst_96 {dimension_numbers = #tpu.dot_dimension_numbers<[2], [2], [1], [1], [0, 0, 0, 1, 1, 1], [0], [0]>} : vector<3x8x8xbf16>, vector<3x8x8xbf16>, vector<3x8x8xf32> -> vector<3x8x8xf32>
    "tpu.trace_stop"() : () -> ()
    %cst_97 = arith.constant dense<0xFF800000> : vector<3x8xf32>
    %294 = vector.multi_reduction <maximumf>, %293, %cst_97 [2] : vector<3x8x8xf32> to vector<3x8xf32>
    %295 = vector.shape_cast %294 : vector<3x8xf32> to vector<3x8x1xf32>
    %296 = vector.broadcast %295 : vector<3x8x1xf32> to vector<3x8x8xf32>
    %297 = arith.subf %293, %296 : vector<3x8x8xf32>
    %298 = math.exp %297 : vector<3x8x8xf32>
    %cst_98 = arith.constant dense<0.000000e+00> : vector<3x8xf32>
    %299 = vector.multi_reduction <add>, %298, %cst_98 [2] : vector<3x8x8xf32> to vector<3x8xf32>
    %300 = vector.shape_cast %299 : vector<3x8xf32> to vector<3x8x1xf32>
    %301 = tpu.reciprocal %300 {approx = true} : vector<3x8x1xf32> -> vector<3x8x1xf32>
    %302 = vector.broadcast %301 : vector<3x8x1xf32> to vector<3x8x8xf32>
    %303 = arith.mulf %298, %302 : vector<3x8x8xf32>
    %304 = arith.truncf %303 : vector<3x8x8xf32> to vector<3x8x8xbf16>
    "tpu.trace_start"() <{level = 10 : i32, message = "blm,bmd->bld"}> : () -> ()
    %cst_99 = arith.constant dense<0.000000e+00> : vector<3x8x8xf32>
    %305 = tpu.matmul %304, %292, %cst_99 {dimension_numbers = #tpu.dot_dimension_numbers<[2], [1], [1], [2], [0, 0, 0, 1, 1, 2], [0], [0]>} : vector<3x8x8xbf16>, vector<3x8x8xbf16>, vector<3x8x8xf32> -> vector<3x8x8xf32>
    "tpu.trace_stop"() : () -> ()
    %306 = vector.shape_cast %305 : vector<3x8x8xf32> to vector<24x8xf32>
    %307 = arith.truncf %306 : vector<24x8xf32> to vector<24x8xbf16>
    %308 = vector.extract_strided_slice %201 {offsets = [24, 0], sizes = [8, 32], strides = [1, 1]} : vector<32x32xbf16> to vector<8x32xbf16>
    %cst_100 = arith.constant dense<0.000000e+00> : vector<24x32xf32>
    %309 = tpu.matmul %307, %308, %cst_100 {dimension_numbers = #tpu.dot_dimension_numbers<[1], [0], [0], [1], [0, 0, 1, 1], [], []>} : vector<24x8xbf16>, vector<8x32xbf16>, vector<24x32xf32> -> vector<24x32xf32>
    %310 = arith.addf %283, %309 : vector<24x32xf32>
    %c1_101 = arith.constant 1 : index
    %c0_102 = arith.constant 0 : index
    %c0_103 = arith.constant 0 : index
    %311 = vector.load %arg5[%c1_101, %c0_102, %c0_103] : memref<2x1x32xf32, #tpu.memory_space<vmem>>, vector<1x1x32xf32>
    %312 = vector.shape_cast %311 : vector<1x1x32xf32> to vector<1x32xf32>
    %313 = vector.broadcast %312 : vector<1x32xf32> to vector<24x32xf32>
    %314 = arith.addf %310, %313 : vector<24x32xf32>
    %315 = arith.addf %191, %314 : vector<24x32xf32>
    %c1_104 = arith.constant 1 : index
    %c0_105 = arith.constant 0 : index
    %c0_106 = arith.constant 0 : index
    %316 = vector.load %arg6[%c1_104, %c0_105, %c0_106] : memref<2x1x32xf32, #tpu.memory_space<vmem>>, vector<1x1x32xf32>
    %317 = vector.shape_cast %316 : vector<1x1x32xf32> to vector<1x32xf32>
    %c1_107 = arith.constant 1 : index
    %c0_108 = arith.constant 0 : index
    %c0_109 = arith.constant 0 : index
    %318 = vector.load %arg7[%c1_107, %c0_108, %c0_109] : memref<2x1x32xf32, #tpu.memory_space<vmem>>, vector<1x1x32xf32>
    %319 = vector.shape_cast %318 : vector<1x1x32xf32> to vector<1x32xf32>
    %cst_110 = arith.constant dense<0.000000e+00> : vector<24xf32>
    %320 = vector.multi_reduction <add>, %315, %cst_110 [1] : vector<24x32xf32> to vector<24xf32>
    %321 = vector.shape_cast %320 : vector<24xf32> to vector<24x1xf32>
    %cst_111 = arith.constant 3.200000e+01 : f32
    %322 = vector.broadcast %cst_111 : f32 to vector<24x1xf32>
    %323 = arith.divf %321, %322 : vector<24x1xf32>
    %324 = vector.broadcast %323 : vector<24x1xf32> to vector<24x32xf32>
    %325 = arith.subf %315, %324 : vector<24x32xf32>
    %326 = arith.mulf %325, %325 : vector<24x32xf32>
    %cst_112 = arith.constant dense<0.000000e+00> : vector<24xf32>
    %327 = vector.multi_reduction <add>, %326, %cst_112 [1] : vector<24x32xf32> to vector<24xf32>
    %328 = vector.shape_cast %327 : vector<24xf32> to vector<24x1xf32>
    %cst_113 = arith.constant 3.200000e+01 : f32
    %329 = vector.broadcast %cst_113 : f32 to vector<24x1xf32>
    %330 = arith.divf %328, %329 : vector<24x1xf32>
    %cst_114 = arith.constant 9.99999974E-6 : f32
    %331 = vector.broadcast %cst_114 : f32 to vector<24x1xf32>
    %332 = arith.addf %330, %331 : vector<24x1xf32>
    %333 = math.rsqrt %332 : vector<24x1xf32>
    %334 = vector.broadcast %333 : vector<24x1xf32> to vector<24x32xf32>
    %335 = arith.mulf %325, %334 : vector<24x32xf32>
    %336 = vector.broadcast %317 : vector<1x32xf32> to vector<24x32xf32>
    %337 = arith.mulf %335, %336 : vector<24x32xf32>
    %338 = vector.broadcast %319 : vector<1x32xf32> to vector<24x32xf32>
    %339 = arith.addf %337, %338 : vector<24x32xf32>
    %340 = arith.truncf %339 : vector<24x32xf32> to vector<24x32xbf16>
    %c1_115 = arith.constant 1 : index
    %c0_116 = arith.constant 0 : index
    %c0_117 = arith.constant 0 : index
    %341 = vector.load %arg8[%c1_115, %c0_116, %c0_117] : memref<2x32x128xbf16, #tpu.memory_space<vmem>>, vector<1x32x128xbf16>
    %342 = vector.shape_cast %341 : vector<1x32x128xbf16> to vector<32x128xbf16>
    %cst_118 = arith.constant dense<0.000000e+00> : vector<24x128xf32>
    %343 = tpu.matmul %340, %342, %cst_118 {dimension_numbers = #tpu.dot_dimension_numbers<[1], [0], [0], [1], [0, 0, 1, 1], [], []>} : vector<24x32xbf16>, vector<32x128xbf16>, vector<24x128xf32> -> vector<24x128xf32>
    %c1_119 = arith.constant 1 : index
    %c0_120 = arith.constant 0 : index
    %c0_121 = arith.constant 0 : index
    %344 = vector.load %arg9[%c1_119, %c0_120, %c0_121] : memref<2x1x128xf32, #tpu.memory_space<vmem>>, vector<1x1x128xf32>
    %345 = vector.shape_cast %344 : vector<1x1x128xf32> to vector<1x128xf32>
    %346 = vector.broadcast %345 : vector<1x128xf32> to vector<24x128xf32>
    %347 = arith.addf %343, %346 : vector<24x128xf32>
    %cst_122 = arith.constant 0.000000e+00 : f32
    %348 = vector.broadcast %cst_122 : f32 to vector<24x128xf32>
    %349 = arith.maximumf %347, %348 : vector<24x128xf32>
    %350 = arith.truncf %349 : vector<24x128xf32> to vector<24x128xbf16>
    %c1_123 = arith.constant 1 : index
    %c0_124 = arith.constant 0 : index
    %c0_125 = arith.constant 0 : index
    %351 = vector.load %arg10[%c1_123, %c0_124, %c0_125] : memref<2x128x32xbf16, #tpu.memory_space<vmem>>, vector<1x128x32xbf16>
    %352 = vector.shape_cast %351 : vector<1x128x32xbf16> to vector<128x32xbf16>
    %cst_126 = arith.constant dense<0.000000e+00> : vector<24x32xf32>
    %353 = tpu.matmul %350, %352, %cst_126 {dimension_numbers = #tpu.dot_dimension_numbers<[1], [0], [0], [1], [0, 0, 1, 1], [], []>} : vector<24x128xbf16>, vector<128x32xbf16>, vector<24x32xf32> -> vector<24x32xf32>
    %c1_127 = arith.constant 1 : index
    %c0_128 = arith.constant 0 : index
    %c0_129 = arith.constant 0 : index
    %354 = vector.load %arg11[%c1_127, %c0_128, %c0_129] : memref<2x1x32xf32, #tpu.memory_space<vmem>>, vector<1x1x32xf32>
    %355 = vector.shape_cast %354 : vector<1x1x32xf32> to vector<1x32xf32>
    %356 = vector.broadcast %355 : vector<1x32xf32> to vector<24x32xf32>
    %357 = arith.addf %353, %356 : vector<24x32xf32>
    %358 = arith.addf %339, %357 : vector<24x32xf32>
    %c1_130 = arith.constant 1 : index
    %c0_131 = arith.constant 0 : index
    %c0_132 = arith.constant 0 : index
    %359 = vector.load %arg12[%c1_130, %c0_131, %c0_132] : memref<2x1x32xf32, #tpu.memory_space<vmem>>, vector<1x1x32xf32>
    %360 = vector.shape_cast %359 : vector<1x1x32xf32> to vector<1x32xf32>
    %c1_133 = arith.constant 1 : index
    %c0_134 = arith.constant 0 : index
    %c0_135 = arith.constant 0 : index
    %361 = vector.load %arg13[%c1_133, %c0_134, %c0_135] : memref<2x1x32xf32, #tpu.memory_space<vmem>>, vector<1x1x32xf32>
    %362 = vector.shape_cast %361 : vector<1x1x32xf32> to vector<1x32xf32>
    %cst_136 = arith.constant dense<0.000000e+00> : vector<24xf32>
    %363 = vector.multi_reduction <add>, %358, %cst_136 [1] : vector<24x32xf32> to vector<24xf32>
    %364 = vector.shape_cast %363 : vector<24xf32> to vector<24x1xf32>
    %cst_137 = arith.constant 3.200000e+01 : f32
    %365 = vector.broadcast %cst_137 : f32 to vector<24x1xf32>
    %366 = arith.divf %364, %365 : vector<24x1xf32>
    %367 = vector.broadcast %366 : vector<24x1xf32> to vector<24x32xf32>
    %368 = arith.subf %358, %367 : vector<24x32xf32>
    %369 = arith.mulf %368, %368 : vector<24x32xf32>
    %cst_138 = arith.constant dense<0.000000e+00> : vector<24xf32>
    %370 = vector.multi_reduction <add>, %369, %cst_138 [1] : vector<24x32xf32> to vector<24xf32>
    %371 = vector.shape_cast %370 : vector<24xf32> to vector<24x1xf32>
    %cst_139 = arith.constant 3.200000e+01 : f32
    %372 = vector.broadcast %cst_139 : f32 to vector<24x1xf32>
    %373 = arith.divf %371, %372 : vector<24x1xf32>
    %cst_140 = arith.constant 9.99999974E-6 : f32
    %374 = vector.broadcast %cst_140 : f32 to vector<24x1xf32>
    %375 = arith.addf %373, %374 : vector<24x1xf32>
    %376 = math.rsqrt %375 : vector<24x1xf32>
    %377 = vector.broadcast %376 : vector<24x1xf32> to vector<24x32xf32>
    %378 = arith.mulf %368, %377 : vector<24x32xf32>
    %379 = vector.broadcast %360 : vector<1x32xf32> to vector<24x32xf32>
    %380 = arith.mulf %378, %379 : vector<24x32xf32>
    %381 = vector.broadcast %362 : vector<1x32xf32> to vector<24x32xf32>
    %382 = arith.addf %380, %381 : vector<24x32xf32>
    %c0_141 = arith.constant 0 : index
    %c0_142 = arith.constant 0 : index
    %383 = vector.load %arg14[%c0_141, %c0_142] : memref<24x32xf32, #tpu.memory_space<vmem>>, vector<24x32xf32>
    tpu.vector_store %arg14[%c0_141, %c0_142], %382 {strides = array<i32>} : memref<24x32xf32, #tpu.memory_space<vmem>>, vector<24x32xf32>,
    return
  }
  func.func @transform_0(%arg0: i32) -> (i32, i32) {
    %c0_i32 = arith.constant 0 : i32
    %c0_i32_0 = arith.constant 0 : i32
    return %arg0, %c0_i32 : i32, i32
  }
  func.func @transform_1(%arg0: i32) -> (i32, i32, i32) {
    %c0_i32 = arith.constant 0 : i32
    %c0_i32_0 = arith.constant 0 : i32
    %c0_i32_1 = arith.constant 0 : i32
    %c0_i32_2 = arith.constant 0 : i32
    return %c0_i32, %c0_i32_0, %c0_i32_1 : i32, i32, i32
  }
  func.func @transform_2(%arg0: i32) -> (i32, i32, i32) {
    %c0_i32 = arith.constant 0 : i32
    %c0_i32_0 = arith.constant 0 : i32
    %c0_i32_1 = arith.constant 0 : i32
    %c0_i32_2 = arith.constant 0 : i32
    return %c0_i32, %c0_i32_0, %c0_i32_1 : i32, i32, i32
  }
  func.func @transform_3(%arg0: i32) -> (i32, i32, i32) {
    %c0_i32 = arith.constant 0 : i32
    %c0_i32_0 = arith.constant 0 : i32
    %c0_i32_1 = arith.constant 0 : i32
    %c0_i32_2 = arith.constant 0 : i32
    return %c0_i32, %c0_i32_0, %c0_i32_1 : i32, i32, i32
  }
  func.func @transform_4(%arg0: i32) -> (i32, i32, i32) {
    %c0_i32 = arith.constant 0 : i32
    %c0_i32_0 = arith.constant 0 : i32
    %c0_i32_1 = arith.constant 0 : i32
    %c0_i32_2 = arith.constant 0 : i32
    return %c0_i32, %c0_i32_0, %c0_i32_1 : i32, i32, i32
  }
  func.func @transform_5(%arg0: i32) -> (i32, i32, i32) {
    %c0_i32 = arith.constant 0 : i32
    %c0_i32_0 = arith.constant 0 : i32
    %c0_i32_1 = arith.constant 0 : i32
    %c0_i32_2 = arith.constant 0 : i32
    return %c0_i32, %c0_i32_0, %c0_i32_1 : i32, i32, i32
  }
  func.func @transform_6(%arg0: i32) -> (i32, i32, i32) {
    %c0_i32 = arith.constant 0 : i32
    %c0_i32_0 = arith.constant 0 : i32
    %c0_i32_1 = arith.constant 0 : i32
    %c0_i32_2 = arith.constant 0 : i32
    return %c0_i32, %c0_i32_0, %c0_i32_1 : i32, i32, i32
  }
  func.func @transform_7(%arg0: i32) -> (i32, i32, i32) {
    %c0_i32 = arith.constant 0 : i32
    %c0_i32_0 = arith.constant 0 : i32
    %c0_i32_1 = arith.constant 0 : i32
    %c0_i32_2 = arith.constant 0 : i32
    return %c0_i32, %c0_i32_0, %c0_i32_1 : i32, i32, i32
  }
  func.func @transform_8(%arg0: i32) -> (i32, i32, i32) {
    %c0_i32 = arith.constant 0 : i32
    %c0_i32_0 = arith.constant 0 : i32
    %c0_i32_1 = arith.constant 0 : i32
    %c0_i32_2 = arith.constant 0 : i32
    return %c0_i32, %c0_i32_0, %c0_i32_1 : i32, i32, i32
  }
  func.func @transform_9(%arg0: i32) -> (i32, i32, i32) {
    %c0_i32 = arith.constant 0 : i32
    %c0_i32_0 = arith.constant 0 : i32
    %c0_i32_1 = arith.constant 0 : i32
    %c0_i32_2 = arith.constant 0 : i32
    return %c0_i32, %c0_i32_0, %c0_i32_1 : i32, i32, i32
  }
  func.func @transform_10(%arg0: i32) -> (i32, i32, i32) {
    %c0_i32 = arith.constant 0 : i32
    %c0_i32_0 = arith.constant 0 : i32
    %c0_i32_1 = arith.constant 0 : i32
    %c0_i32_2 = arith.constant 0 : i32
    return %c0_i32, %c0_i32_0, %c0_i32_1 : i32, i32, i32
  }
  func.func @transform_11(%arg0: i32) -> (i32, i32, i32) {
    %c0_i32 = arith.constant 0 : i32
    %c0_i32_0 = arith.constant 0 : i32
    %c0_i32_1 = arith.constant 0 : i32
    %c0_i32_2 = arith.constant 0 : i32
    return %c0_i32, %c0_i32_0, %c0_i32_1 : i32, i32, i32
  }
  func.func @transform_12(%arg0: i32) -> (i32, i32, i32) {
    %c0_i32 = arith.constant 0 : i32
    %c0_i32_0 = arith.constant 0 : i32
    %c0_i32_1 = arith.constant 0 : i32
    %c0_i32_2 = arith.constant 0 : i32
    return %c0_i32, %c0_i32_0, %c0_i32_1 : i32, i32, i32
  }
  func.func @transform_13(%arg0: i32) -> (i32, i32) {
    %c0_i32 = arith.constant 0 : i32
    %c0_i32_0 = arith.constant 0 : i32
    return %arg0, %c0_i32 : i32, i32
  }
}

</mosaic_0001>

<llo_original>
// kernel: tpu_custom_call.1
$region0: #{tpu_custom_call.1}
  #allocation0 [shape = 'u32[]', space=smem, size = 0x4, offset = 0x4, fixed_abs, tag = 'smem constant byte address 0x4 - core index']
  #allocation1 [shape = 'u32[144,128]{1,0:T(1,128)}', space=vmem, size = 0x12000, scoped, tag = 'internal scratch']
  %s0 = inlined_call_operand.vmem [shape: f32[48,32], index: 0, kind: input, shape index: {}]
  %s1 = inlined_call_operand.vmem [shape: bf16[2,32,96], index: 1, kind: input, shape index: {}]
  %s2 = inlined_call_operand.vmem [shape: f32[2,1,96], index: 2, kind: input, shape index: {}]
  %s3 = inlined_call_operand.vmem [shape: bf16[2,32,32], index: 3, kind: input, shape index: {}]
  %s4 = inlined_call_operand.vmem [shape: f32[2,1,32], index: 4, kind: input, shape index: {}]
  %s5 = inlined_call_operand.vmem [shape: f32[2,1,32], index: 5, kind: input, shape index: {}]
  %s6 = inlined_call_operand.vmem [shape: f32[2,1,32], index: 6, kind: input, shape index: {}]
  %s7 = inlined_call_operand.vmem [shape: bf16[2,32,128], index: 7, kind: input, shape index: {}]
  %s8 = inlined_call_operand.vmem [shape: f32[2,1,128], index: 8, kind: input, shape index: {}]
  %s9 = inlined_call_operand.vmem [shape: bf16[2,128,32], index: 9, kind: input, shape index: {}]
  %s10 = inlined_call_operand.vmem [shape: f32[2,1,32], index: 10, kind: input, shape index: {}]
  %s11 = inlined_call_operand.vmem [shape: f32[2,1,32], index: 11, kind: input, shape index: {}]
  %s12 = inlined_call_operand.vmem [shape: f32[2,1,32], index: 12, kind: input, shape index: {}]
  %s13 = inlined_call_operand.vmem [shape: f32[48,32], index: 13, kind: output, shape index: {}]
  %s14 = sld [smem:[#allocation0]]
  $region85: #{tpu_custom_call.1} parent=0
    _
  %s16 = ssub.s32 1, %s14
  %s17 = scalar_select 0, %s16, %s14
  loop: start=0, step=1, limit=4
  $region2: #{tpu_custom_call.1} parent=0 // loop_pre_header
    _
  $region3: #{tpu_custom_call.1} parent=0 // loop_header
    %s19 = sphi 0, %s23
    %p20 = scmp.ge.s32.totalorder %s19, 4
    %s29 = sphi 0, %s31
    %s32 = sphi 0, %s29
    %s33 = sphi 0, %s32
    %s49 = sphi 0, %s33
    %s53 = sphi 0, %s53
    %s55 = sphi 0, %s53
    %s56 = sphi 0, %s55
    %s70 = sphi 0, %s56
    %s74 = sphi 0, %s74
    %s76 = sphi 0, %s74
    %s77 = sphi 0, %s76
    %s91 = sphi 0, %s77
    %s95 = sphi 0, %s95
    %s97 = sphi 0, %s95
    %s98 = sphi 0, %s97
    %s112 = sphi 0, %s98
    %s116 = sphi 0, %s116
    %s118 = sphi 0, %s116
    %s119 = sphi 0, %s118
    %s133 = sphi 0, %s119
    %s137 = sphi 0, %s137
    %s139 = sphi 0, %s137
    %s140 = sphi 0, %s139
    %s154 = sphi 0, %s140
    %s158 = sphi 0, %s158
    %s160 = sphi 0, %s158
    %s161 = sphi 0, %s160
    %s175 = sphi 0, %s161
    %s179 = sphi 0, %s179
    %s181 = sphi 0, %s179
    %s182 = sphi 0, %s181
    %s196 = sphi 0, %s182
    %s200 = sphi 0, %s200
    %s202 = sphi 0, %s200
    %s203 = sphi 0, %s202
    %s217 = sphi 0, %s203
    %s221 = sphi 0, %s221
    %s223 = sphi 0, %s221
    %s224 = sphi 0, %s223
    %s238 = sphi 0, %s224
    %s242 = sphi 0, %s242
    %s244 = sphi 0, %s242
    %s245 = sphi 0, %s244
    %s259 = sphi 0, %s245
    %s263 = sphi 0, %s263
    %s265 = sphi 0, %s263
    %s266 = sphi 0, %s265
    %s280 = sphi 0, %s266
    %s284 = sphi 0, %s284
    %s286 = sphi 0, %s284
    %s287 = sphi 0, %s286
    %s301 = sphi 0, %s287
    %s307 = sphi 0, %s309
    %s310 = sphi 0, %s307
    %s311 = sphi 0, %s310
    %s327 = sphi 0, %s311
  $region4: #{tpu_custom_call.1} parent=0 // loop_header_branch
    %22 = sbr.rel (%p20) target = $region8
  $region5: #{tpu_custom_call.1} parent=0 // loop_body
    %s24 = ssub.s32 %s19, 1
    %s25 = ssub.s32 %s19, 2
    %s26 = sadd.s32 %s19, 1
    %s27 = ssub.s32 %s19, %s26
    %p28 = scmp.eq.s32.totalorder %s27, 0
    %s30 = sadd.s32 %s29, 1
    %s31 = scalar_select %p28, %s29, %s30
    %p34 = pneg %p28
    %p35 = scmp.eq.s32.totalorder %s19, 1
    %p36 = por %p34, %p35
    %p37 = scmp.ne.s32.totalorder %s29, %s32
    %p38 = scmp.eq.s32.totalorder %s19, 0
    %p39 = por %p37, %p38
    %p40 = scmp.ne.s32.totalorder %s29, %s32
    %p41 = scmp.eq.s32.totalorder %s24, 1
    %p42 = por %p40, %p41
    %p43 = scmp.ne.s32.totalorder %s32, %s33
    %p44 = scmp.eq.s32.totalorder %s24, 0
    %p45 = por %p43, %p44
    %p46 = scmp.ne.s32.totalorder %s32, %s33
    %p47 = scmp.eq.s32.totalorder %s25, 1
    %p48 = por %p46, %p47
    %p50 = scmp.ne.s32.totalorder %s33, %s49
    %p51 = scmp.eq.s32.totalorder %s25, 0
    %p52 = por %p50, %p51
    %s54 = sadd.s32 %s53, 1
    %p57 = scmp.eq.s32.totalorder %s19, 1
    %p58 = scmp.ne.s32.totalorder %s53, %s55
    %p59 = scmp.eq.s32.totalorder %s19, 0
    %p60 = por %p58, %p59
    %p61 = scmp.ne.s32.totalorder %s53, %s55
    %p62 = scmp.eq.s32.totalorder %s24, 1
    %p63 = por %p61, %p62
    %p64 = scmp.ne.s32.totalorder %s55, %s56
    %p65 = scmp.eq.s32.totalorder %s24, 0
    %p66 = por %p64, %p65
    %p67 = scmp.ne.s32.totalorder %s55, %s56
    %p68 = scmp.eq.s32.totalorder %s25, 1
    %p69 = por %p67, %p68
    %p71 = scmp.ne.s32.totalorder %s56, %s70
    %p72 = scmp.eq.s32.totalorder %s25, 0
    %p73 = por %p71, %p72
    %s75 = sadd.s32 %s74, 1
    %p78 = scmp.eq.s32.totalorder %s19, 1
    %p79 = scmp.ne.s32.totalorder %s74, %s76
    %p80 = scmp.eq.s32.totalorder %s19, 0
    %p81 = por %p79, %p80
    %p82 = scmp.ne.s32.totalorder %s74, %s76
    %p83 = scmp.eq.s32.totalorder %s24, 1
    %p84 = por %p82, %p83
    %p85 = scmp.ne.s32.totalorder %s76, %s77
    %p86 = scmp.eq.s32.totalorder %s24, 0
    %p87 = por %p85, %p86
    %p88 = scmp.ne.s32.totalorder %s76, %s77
    %p89 = scmp.eq.s32.totalorder %s25, 1
    %p90 = por %p88, %p89
    %p92 = scmp.ne.s32.totalorder %s77, %s91
    %p93 = scmp.eq.s32.totalorder %s25, 0
    %p94 = por %p92, %p93
    %s96 = sadd.s32 %s95, 1
    %p99 = scmp.eq.s32.totalorder %s19, 1
    %p100 = scmp.ne.s32.totalorder %s95, %s97
    %p101 = scmp.eq.s32.totalorder %s19, 0
    %p102 = por %p100, %p101
    %p103 = scmp.ne.s32.totalorder %s95, %s97
    %p104 = scmp.eq.s32.totalorder %s24, 1
    %p105 = por %p103, %p104
    %p106 = scmp.ne.s32.totalorder %s97, %s98
    %p107 = scmp.eq.s32.totalorder %s24, 0
    %p108 = por %p106, %p107
    %p109 = scmp.ne.s32.totalorder %s97, %s98
    %p110 = scmp.eq.s32.totalorder %s25, 1
    %p111 = por %p109, %p110
    %p113 = scmp.ne.s32.totalorder %s98, %s112
    %p114 = scmp.eq.s32.totalorder %s25, 0
    %p115 = por %p113, %p114
    %s117 = sadd.s32 %s116, 1
    %p120 = scmp.eq.s32.totalorder %s19, 1
    %p121 = scmp.ne.s32.totalorder %s116, %s118
    %p122 = scmp.eq.s32.totalorder %s19, 0
    %p123 = por %p121, %p122
    %p124 = scmp.ne.s32.totalorder %s116, %s118
    %p125 = scmp.eq.s32.totalorder %s24, 1
    %p126 = por %p124, %p125
    %p127 = scmp.ne.s32.totalorder %s118, %s119
    %p128 = scmp.eq.s32.totalorder %s24, 0
    %p129 = por %p127, %p128
    %p130 = scmp.ne.s32.totalorder %s118, %s119
    %p131 = scmp.eq.s32.totalorder %s25, 1
    %p132 = por %p130, %p131
    %p134 = scmp.ne.s32.totalorder %s119, %s133
    %p135 = scmp.eq.s32.totalorder %s25, 0
    %p136 = por %p134, %p135
    %s138 = sadd.s32 %s137, 1
    %p141 = scmp.eq.s32.totalorder %s19, 1
    %p142 = scmp.ne.s32.totalorder %s137, %s139
    %p143 = scmp.eq.s32.totalorder %s19, 0
    %p144 = por %p142, %p143
    %p145 = scmp.ne.s32.totalorder %s137, %s139
    %p146 = scmp.eq.s32.totalorder %s24, 1
    %p147 = por %p145, %p146
    %p148 = scmp.ne.s32.totalorder %s139, %s140
    %p149 = scmp.eq.s32.totalorder %s24, 0
    %p150 = por %p148, %p149
    %p151 = scmp.ne.s32.totalorder %s139, %s140
    %p152 = scmp.eq.s32.totalorder %s25, 1
    %p153 = por %p151, %p152
    %p155 = scmp.ne.s32.totalorder %s140, %s154
    %p156 = scmp.eq.s32.totalorder %s25, 0
    %p157 = por %p155, %p156
    %s159 = sadd.s32 %s158, 1
    %p162 = scmp.eq.s32.totalorder %s19, 1
    %p163 = scmp.ne.s32.totalorder %s158, %s160
    %p164 = scmp.eq.s32.totalorder %s19, 0
    %p165 = por %p163, %p164
    %p166 = scmp.ne.s32.totalorder %s158, %s160
    %p167 = scmp.eq.s32.totalorder %s24, 1
    %p168 = por %p166, %p167
    %p169 = scmp.ne.s32.totalorder %s160, %s161
    %p170 = scmp.eq.s32.totalorder %s24, 0
    %p171 = por %p169, %p170
    %p172 = scmp.ne.s32.totalorder %s160, %s161
    %p173 = scmp.eq.s32.totalorder %s25, 1
    %p174 = por %p172, %p173
    %p176 = scmp.ne.s32.totalorder %s161, %s175
    %p177 = scmp.eq.s32.totalorder %s25, 0
    %p178 = por %p176, %p177
    %s180 = sadd.s32 %s179, 1
    %p183 = scmp.eq.s32.totalorder %s19, 1
    %p184 = scmp.ne.s32.totalorder %s179, %s181
    %p185 = scmp.eq.s32.totalorder %s19, 0
    %p186 = por %p184, %p185
    %p187 = scmp.ne.s32.totalorder %s179, %s181
    %p188 = scmp.eq.s32.totalorder %s24, 1
    %p189 = por %p187, %p188
    %p190 = scmp.ne.s32.totalorder %s181, %s182
    %p191 = scmp.eq.s32.totalorder %s24, 0
    %p192 = por %p190, %p191
    %p193 = scmp.ne.s32.totalorder %s181, %s182
    %p194 = scmp.eq.s32.totalorder %s25, 1
    %p195 = por %p193, %p194
    %p197 = scmp.ne.s32.totalorder %s182, %s196
    %p198 = scmp.eq.s32.totalorder %s25, 0
    %p199 = por %p197, %p198
    %s201 = sadd.s32 %s200, 1
    %p204 = scmp.eq.s32.totalorder %s19, 1
    %p205 = scmp.ne.s32.totalorder %s200, %s202
    %p206 = scmp.eq.s32.totalorder %s19, 0
    %p207 = por %p205, %p206
    %p208 = scmp.ne.s32.totalorder %s200, %s202
    %p209 = scmp.eq.s32.totalorder %s24, 1
    %p210 = por %p208, %p209
    %p211 = scmp.ne.s32.totalorder %s202, %s203
    %p212 = scmp.eq.s32.totalorder %s24, 0
    %p213 = por %p211, %p212
    %p214 = scmp.ne.s32.totalorder %s202, %s203
    %p215 = scmp.eq.s32.totalorder %s25, 1
    %p216 = por %p214, %p215
    %p218 = scmp.ne.s32.totalorder %s203, %s217
    %p219 = scmp.eq.s32.totalorder %s25, 0
    %p220 = por %p218, %p219
    %s222 = sadd.s32 %s221, 1
    %p225 = scmp.eq.s32.totalorder %s19, 1
    %p226 = scmp.ne.s32.totalorder %s221, %s223
    %p227 = scmp.eq.s32.totalorder %s19, 0
    %p228 = por %p226, %p227
    %p229 = scmp.ne.s32.totalorder %s221, %s223
    %p230 = scmp.eq.s32.totalorder %s24, 1
    %p231 = por %p229, %p230
    %p232 = scmp.ne.s32.totalorder %s223, %s224
    %p233 = scmp.eq.s32.totalorder %s24, 0
    %p234 = por %p232, %p233
    %p235 = scmp.ne.s32.totalorder %s223, %s224
    %p236 = scmp.eq.s32.totalorder %s25, 1
    %p237 = por %p235, %p236
    %p239 = scmp.ne.s32.totalorder %s224, %s238
    %p240 = scmp.eq.s32.totalorder %s25, 0
    %p241 = por %p239, %p240
    %s243 = sadd.s32 %s242, 1
    %p246 = scmp.eq.s32.totalorder %s19, 1
    %p247 = scmp.ne.s32.totalorder %s242, %s244
    %p248 = scmp.eq.s32.totalorder %s19, 0
    %p249 = por %p247, %p248
    %p250 = scmp.ne.s32.totalorder %s242, %s244
    %p251 = scmp.eq.s32.totalorder %s24, 1
    %p252 = por %p250, %p251
    %p253 = scmp.ne.s32.totalorder %s244, %s245
    %p254 = scmp.eq.s32.totalorder %s24, 0
    %p255 = por %p253, %p254
    %p256 = scmp.ne.s32.totalorder %s244, %s245
    %p257 = scmp.eq.s32.totalorder %s25, 1
    %p258 = por %p256, %p257
    %p260 = scmp.ne.s32.totalorder %s245, %s259
    %p261 = scmp.eq.s32.totalorder %s25, 0
    %p262 = por %p260, %p261
    %s264 = sadd.s32 %s263, 1
    %p267 = scmp.eq.s32.totalorder %s19, 1
    %p268 = scmp.ne.s32.totalorder %s263, %s265
    %p269 = scmp.eq.s32.totalorder %s19, 0
    %p270 = por %p268, %p269
    %p271 = scmp.ne.s32.totalorder %s263, %s265
    %p272 = scmp.eq.s32.totalorder %s24, 1
    %p273 = por %p271, %p272
    %p274 = scmp.ne.s32.totalorder %s265, %s266
    %p275 = scmp.eq.s32.totalorder %s24, 0
    %p276 = por %p274, %p275
    %p277 = scmp.ne.s32.totalorder %s265, %s266
    %p278 = scmp.eq.s32.totalorder %s25, 1
    %p279 = por %p277, %p278
    %p281 = scmp.ne.s32.totalorder %s266, %s280
    %p282 = scmp.eq.s32.totalorder %s25, 0
    %p283 = por %p281, %p282
    %s285 = sadd.s32 %s284, 1
    %p288 = scmp.eq.s32.totalorder %s19, 1
    %p289 = scmp.ne.s32.totalorder %s284, %s286
    %p290 = scmp.eq.s32.totalorder %s19, 0
    %p291 = por %p289, %p290
    %p292 = scmp.ne.s32.totalorder %s284, %s286
    %p293 = scmp.eq.s32.totalorder %s24, 1
    %p294 = por %p292, %p293
    %p295 = scmp.ne.s32.totalorder %s286, %s287
    %p296 = scmp.eq.s32.totalorder %s24, 0
    %p297 = por %p295, %p296
    %p298 = scmp.ne.s32.totalorder %s286, %s287
    %p299 = scmp.eq.s32.totalorder %s25, 1
    %p300 = por %p298, %p299
    %p302 = scmp.ne.s32.totalorder %s287, %s301
    %p303 = scmp.eq.s32.totalorder %s25, 0
    %p304 = por %p302, %p303
    %s305 = ssub.s32 %s19, %s26
    %p306 = scmp.eq.s32.totalorder %s305, 0
    %s308 = sadd.s32 %s307, 1
    %s309 = scalar_select %p306, %s307, %s308
    %p312 = pneg %p306
    %p313 = scmp.eq.s32.totalorder %s19, 1
    %p314 = por %p312, %p313
    %p315 = scmp.ne.s32.totalorder %s307, %s310
    %p316 = scmp.eq.s32.totalorder %s19, 0
    %p317 = por %p315, %p316
    %p318 = scmp.ne.s32.totalorder %s307, %s310
    %p319 = scmp.eq.s32.totalorder %s24, 1
    %p320 = por %p318, %p319
    %p321 = scmp.ne.s32.totalorder %s310, %s311
    %p322 = scmp.eq.s32.totalorder %s24, 0
    %p323 = por %p321, %p322
    %p324 = scmp.ne.s32.totalorder %s310, %s311
    %p325 = scmp.eq.s32.totalorder %s25, 1
    %p326 = por %p324, %p325
    %p328 = scmp.ne.s32.totalorder %s311, %s327
    %p329 = scmp.eq.s32.totalorder %s25, 0
    %p330 = por %p328, %p329
    %p331 = scmp.le.s32.totalorder 1, %s19
    %p332 = scmp.lt.s32.totalorder %s19, 3
    %p333 = pnand %p331, %p332
    %p334 = pneg %p333
    // Predicated region
    $region9: #{tpu_custom_call.1} parent=5 // pred_check
      _
    $region10: #{tpu_custom_call.1} parent=5 // pred_check_branch
      %336 = sbr.rel (%p333) target = $region12
    $region11: #{tpu_custom_call.1} parent=5 // pred_region
      %s337 = ssub.s32 %s19, 1
      // Predicated region
      $region13: #{tpu_custom_call.1} parent=11 // pred_check
        %p338 = pneg %p66
      $region14: #{tpu_custom_call.1} parent=11 // pred_check_branch
        %340 = sbr.rel (%p338) target = $region16
      $region15: #{tpu_custom_call.1} parent=11 // pred_region
        _
      $region16: #{tpu_custom_call.1} parent=11 // pred_fallthru
        _
      // Predicated region
      $region17: #{tpu_custom_call.1} parent=11 // pred_check
        %p341 = pneg %p87
      $region18: #{tpu_custom_call.1} parent=11 // pred_check_branch
        %343 = sbr.rel (%p341) target = $region20
      $region19: #{tpu_custom_call.1} parent=11 // pred_region
        _
      $region20: #{tpu_custom_call.1} parent=11 // pred_fallthru
        _
      // Predicated region
      $region21: #{tpu_custom_call.1} parent=11 // pred_check
        %p344 = pneg %p108
      $region22: #{tpu_custom_call.1} parent=11 // pred_check_branch
        %346 = sbr.rel (%p344) target = $region24
      $region23: #{tpu_custom_call.1} parent=11 // pred_region
        _
      $region24: #{tpu_custom_call.1} parent=11 // pred_fallthru
        _
      // Predicated region
      $region25: #{tpu_custom_call.1} parent=11 // pred_check
        %p347 = pneg %p129
      $region26: #{tpu_custom_call.1} parent=11 // pred_check_branch
        %349 = sbr.rel (%p347) target = $region28
      $region27: #{tpu_custom_call.1} parent=11 // pred_region
        _
      $region28: #{tpu_custom_call.1} parent=11 // pred_fallthru
        _
      // Predicated region
      $region29: #{tpu_custom_call.1} parent=11 // pred_check
        %p350 = pneg %p150
      $region30: #{tpu_custom_call.1} parent=11 // pred_check_branch
        %352 = sbr.rel (%p350) target = $region32
      $region31: #{tpu_custom_call.1} parent=11 // pred_region
        _
      $region32: #{tpu_custom_call.1} parent=11 // pred_fallthru
        _
      // Predicated region
      $region33: #{tpu_custom_call.1} parent=11 // pred_check
        %p353 = pneg %p171
      $region34: #{tpu_custom_call.1} parent=11 // pred_check_branch
        %355 = sbr.rel (%p353) target = $region36
      $region35: #{tpu_custom_call.1} parent=11 // pred_region
        _
      $region36: #{tpu_custom_call.1} parent=11 // pred_fallthru
        _
      // Predicated region
      $region37: #{tpu_custom_call.1} parent=11 // pred_check
        %p356 = pneg %p192
      $region38: #{tpu_custom_call.1} parent=11 // pred_check_branch
        %358 = sbr.rel (%p356) target = $region40
      $region39: #{tpu_custom_call.1} parent=11 // pred_region
        _
      $region40: #{tpu_custom_call.1} parent=11 // pred_fallthru
        _
      // Predicated region
      $region41: #{tpu_custom_call.1} parent=11 // pred_check
        %p359 = pneg %p213
      $region42: #{tpu_custom_call.1} parent=11 // pred_check_branch
        %361 = sbr.rel (%p359) target = $region44
      $region43: #{tpu_custom_call.1} parent=11 // pred_region
        _
      $region44: #{tpu_custom_call.1} parent=11 // pred_fallthru
        _
      // Predicated region
      $region45: #{tpu_custom_call.1} parent=11 // pred_check
        %p362 = pneg %p234
      $region46: #{tpu_custom_call.1} parent=11 // pred_check_branch
        %364 = sbr.rel (%p362) target = $region48
      $region47: #{tpu_custom_call.1} parent=11 // pred_region
        _
      $region48: #{tpu_custom_call.1} parent=11 // pred_fallthru
        _
      // Predicated region
      $region49: #{tpu_custom_call.1} parent=11 // pred_check
        %p365 = pneg %p255
      $region50: #{tpu_custom_call.1} parent=11 // pred_check_branch
        %367 = sbr.rel (%p365) target = $region52
      $region51: #{tpu_custom_call.1} parent=11 // pred_region
        _
      $region52: #{tpu_custom_call.1} parent=11 // pred_fallthru
        _
      // Predicated region
      $region53: #{tpu_custom_call.1} parent=11 // pred_check
        %p368 = pneg %p276
      $region54: #{tpu_custom_call.1} parent=11 // pred_check_branch
        %370 = sbr.rel (%p368) target = $region56
      $region55: #{tpu_custom_call.1} parent=11 // pred_region
        _
      $region56: #{tpu_custom_call.1} parent=11 // pred_fallthru
        _
      // Predicated region
      $region57: #{tpu_custom_call.1} parent=11 // pred_check
        %p371 = pneg %p297
      $region58: #{tpu_custom_call.1} parent=11 // pred_check_branch
        %373 = sbr.rel (%p371) target = $region60
      $region59: #{tpu_custom_call.1} parent=11 // pred_region
        _
      $region60: #{tpu_custom_call.1} parent=11 // pred_fallthru
        _
    $region12: #{tpu_custom_call.1} parent=5 // pred_fallthru
      _
    %p374 = scmp.lt.s32.totalorder %s19, 2
    // Predicated region
    $region61: #{tpu_custom_call.1} parent=5 // pred_check
      %p375 = pneg %p374
    $region62: #{tpu_custom_call.1} parent=5 // pred_check_branch
      %377 = sbr.rel (%p375) target = $region64
    $region63: #{tpu_custom_call.1} parent=5 // pred_region
      // Predicated region
      $region65: #{tpu_custom_call.1} parent=63 // pred_check
        %p378 = pneg %p39
      $region66: #{tpu_custom_call.1} parent=63 // pred_check_branch
        %380 = sbr.rel (%p378) target = $region68
      $region67: #{tpu_custom_call.1} parent=63 // pred_region
        %s381 = smul.u32 3, %s19
        %p382 = scmp.lt.s32.totalorder %s381, 5
        %s383 = scalar_select %p382, %s381, 5
        %s384 = smul.addr %s383, 8
        %s385 = scalar_lea.vmem %s0, %s384
        %s386 = smul.u32 3, %s19
      $region68: #{tpu_custom_call.1} parent=63 // pred_fallthru
        _
    $region64: #{tpu_custom_call.1} parent=5 // pred_fallthru
      _
    %p387 = scmp.le.s32.totalorder 1, %s19
    %p388 = scmp.lt.s32.totalorder %s19, 3
    %p389 = pnand %p387, %p388
    %p390 = pneg %p389
    // Predicated region
    $region69: #{tpu_custom_call.1} parent=5 // pred_check
      _
    $region70: #{tpu_custom_call.1} parent=5 // pred_check_branch
      %392 = sbr.rel (%p389) target = $region72
    $region71: #{tpu_custom_call.1} parent=5 // pred_region
      %s393 = ssub.s32 %s19, 1
      %s394 = smul.u32 3, %s24
      %p395 = scmp.lt.s32.totalorder %s394, 5
      %s396 = scalar_select %p395, %s394, 5
      %s397 = smul.addr %s396, 8
      %s398 = scalar_lea.vmem %s0, %s397
      %p399 = pneg %p45
      %p400 = pneg %p42
      %p401 = pneg %p66
      %p402 = pneg %p63
      %p403 = pneg %p87
      %p404 = pneg %p84
      %p405 = pneg %p108
      %p406 = pneg %p105
      %p407 = pneg %p129
      %p408 = pneg %p126
      %p409 = pneg %p150
      %p410 = pneg %p147
      %p411 = pneg %p171
      %p412 = pneg %p168
      %p413 = pneg %p192
      %p414 = pneg %p189
      %p415 = pneg %p213
      %p416 = pneg %p210
      %p417 = pneg %p234
      %p418 = pneg %p231
      %p419 = pneg %p255
      %p420 = pneg %p252
      %p421 = pneg %p276
      %p422 = pneg %p273
      %p423 = pneg %p297
      %p424 = pneg %p294
      %p425 = pneg %p323
      %p426 = pneg %p320
      %s427 = smul.u32 3, %s24
      %p428 = scmp.lt.s32.totalorder %s427, 5
      %s429 = scalar_select %p428, %s427, 5
      %s430 = smul.addr %s429, 8
      %s431 = scalar_lea.vmem %s13, %s430
      %s432 = smul.u32 3, %s24
      %p433 = scmp.lt.s32.totalorder %s432, 5
      %s434 = scalar_select %p433, %s432, 5
      %s435 = smul.addr %s434, 8
      %s436 = scalar_lea.vmem %s0, %s435
      %s437 = smul.u32 3, %s24
      %s438 = smul.u32 3, %s24
      %p439 = scmp.lt.s32.totalorder %s438, 5
      %s440 = scalar_select %p439, %s438, 5
      %s441 = smul.addr %s440, 8
      %s442 = scalar_lea.vmem %s13, %s441
      %s443 = smul.u32 3, %s24
      %v445 = vld [vmem:[%s436] sm:$0xff]
      %v446 = vld [vmem:[%s436 + $0x8] sm:$0xff]
      %v447 = vld [vmem:[%s436 + $0x10] sm:$0xff]
      %v448 = vpack.c.bf16 %v446, %v445
      %v449 = vpack.c.bf16 %v447, %v447
      %v450 = vld [vmem:[%s1] sm:$0xf]
      %v451 = vld [vmem:[%s1 + $0x4] sm:$0xf]
      %v452 = vld [vmem:[%s1 + $0x8] sm:$0xf]
      %v453 = vld [vmem:[%s1 + $0xc] sm:$0xf]
      %v454 = vld [vmem:[%s2] sm:$0x1]
      %v456 = vlaneseq
      %v457 = vshrl.u32 %v456, 7
      %v458 = vsub.s32 0, %v457
      %v459 = vrot.slane %v454, %v458
      %v465 = vunpack.c.l.b16 %v450
      %v466 = vunpack.c.l.b16 %v451
      %v467 = vunpack.c.l.b16 %v452
      %v468 = vunpack.c.l.b16 %v453
      %v469 = vpack.c.b16 %v466, %v465
      %v470 = vpack.c.b16 %v468, %v467
      %vm473 = vcmask 261120
      %v475 = vsel %vm473, %v448, 0
      %v478 = vsel %vm473, %v449, 0
      %480 = vmatprep.subr.bf16.mxu0 0
      %481 = vmatpush1.bf16.msra.mxu0 %v469
      %482 = vmatprep.subr.bf16.mxu0 0
      %483 = vmatpush1.bf16.msra.mxu0 %v470
      %484 = vmatprep.subr.bf16.mxu0 0
      %485 = vmatpush1.bf16.msra.mxu0 0
      %486 = vmatprep.subr.bf16.mxu0 0
      %487 = vmatpush1.bf16.msra.mxu0 0
      %488 = vmatprep.subr.bf16.mxu0 0
      %489 = vmatpush1.bf16.msra.mxu0 0
      %490 = vmatprep.subr.bf16.mxu0 0
      %491 = vmatpush1.bf16.msra.mxu0 0
      %492 = vmatprep.subr.bf16.mxu0 0
      %493 = vmatpush1.bf16.msra.mxu0 0
      %494 = vmatprep.subr.bf16.mxu0 0
      %495 = vmatpush1.bf16.msra.mxu0 0
      %496 = vmatprep.subr.bf16.mxu0 0
      %497 = vmatpush1.bf16.msra.mxu0 0
      %498 = vmatprep.subr.bf16.mxu0 0
      %499 = vmatpush1.bf16.msra.mxu0 0
      %500 = vmatprep.subr.bf16.mxu0 0
      %501 = vmatpush1.bf16.msra.mxu0 0
      %502 = vmatprep.subr.bf16.mxu0 0
      %503 = vmatpush1.bf16.msra.mxu0 0
      %504 = vmatprep.subr.bf16.mxu0 0
      %505 = vmatpush1.bf16.msra.mxu0 0
      %506 = vmatprep.subr.bf16.mxu0 0
      %507 = vmatpush1.bf16.msra.mxu0 0
      %508 = vmatprep.subr.bf16.mxu0 0
      %509 = vmatpush1.bf16.msra.mxu0 0
      %510 = vmatprep.subr.bf16.mxu0 0
      %511 = vmatpush1.bf16.msra.mxu0 0
      %512 = vmatprep.mubr.bf16.mxu0 0
      %513 = vmatmul.mubr.bf16.gmra.mrb[0].mxu0 %v475
      %v514 = vpop.f32.mrb[0].mxu0
      %v515 = vadd.f32 %v459, %v514
      %v516 = vpop.f32.mrb[0].mxu0
      %v517 = vpop.f32.mrb[0].mxu0
      %v518 = vadd.f32 %v459, %v517
      %v519 = vpop.f32.mrb[0].mxu0
      %520 = vmatprep.mubr.bf16.mxu0 0
      %521 = vmatmul.mubr.bf16.gmra.mrb[0].mxu0 %v478
      %v522 = vpop.f32.mrb[0].mxu0
      %v523 = vadd.f32 %v459, %v522
      %v524 = vpop.f32.mrb[0].mxu0
      %v525 = vpop.f32.mrb[0].mxu0
      %v526 = vpop.f32.mrb[0].mxu0
      %527 = vdwg.mxu0
      %v528 = vld [vmem:[%s3] sm:$0xf]
      %v529 = vld [vmem:[%s3 + $0x4] sm:$0xf]
      %v530 = vld [vmem:[%s3 + $0x8] sm:$0xf]
      %v531 = vld [vmem:[%s3 + $0xc] sm:$0xf]
      %v532 = vpack.c.bf16 %v515, %v515
      %v533 = vpack.c.bf16 %v518, %v518
      %v534 = vpack.c.bf16 %v523, %v523
      %536 = vrot.lane.b32.xlu0 %v532, 96
      %v537 = vpop.permute.xlu0 %536
      %vm538 = vcmask 64512
      %v540 = vsel %vm538, %v532, 0
      %v543 = vsel %vm538, %v537, 0
      %545 = vmatprep.subr.bf16.mxu0 0
      %546 = vmatpush1.bf16.xpose.msra.mxu0 %v543
      %547 = vmatprep.subr.bf16.mxu0 0
      %548 = vmatpush1.bf16.xpose.msra.mxu0 0
      %549 = vmatprep.subr.bf16.mxu0 0
      %550 = vmatpush1.bf16.xpose.msra.mxu0 0
      %551 = vmatprep.subr.bf16.mxu0 0
      %552 = vmatpush1.bf16.xpose.msra.mxu0 0
      %553 = vmatprep.subr.bf16.mxu0 0
      %554 = vmatpush1.bf16.xpose.msra.mxu0 0
      %555 = vmatprep.subr.bf16.mxu0 0
      %556 = vmatpush1.bf16.xpose.msra.mxu0 0
      %557 = vmatprep.subr.bf16.mxu0 0
      %558 = vmatpush1.bf16.xpose.msra.mxu0 0
      %559 = vmatprep.subr.bf16.mxu0 0
      %560 = vmatpush1.bf16.xpose.msra.mxu0 0
      %561 = vmatprep.subr.bf16.mxu0 0
      %562 = vmatpush1.bf16.xpose.msra.mxu0 0
      %563 = vmatprep.subr.bf16.mxu0 0
      %564 = vmatpush1.bf16.xpose.msra.mxu0 0
      %565 = vmatprep.subr.bf16.mxu0 0
      %566 = vmatpush1.bf16.xpose.msra.mxu0 0
      %567 = vmatprep.subr.bf16.mxu0 0
      %568 = vmatpush1.bf16.xpose.msra.mxu0 0
      %569 = vmatprep.subr.bf16.mxu0 0
      %570 = vmatpush1.bf16.xpose.msra.mxu0 0
      %571 = vmatprep.subr.bf16.mxu0 0
      %572 = vmatpush1.bf16.xpose.msra.mxu0 0
      %573 = vmatprep.subr.bf16.mxu0 0
      %574 = vmatpush1.bf16.xpose.msra.mxu0 0
      %575 = vmatprep.subr.bf16.mxu0 0
      %576 = vmatpush1.bf16.xpose.msra.mxu0 0
      %577 = vmatprep.mubr.bf16.mxu0 0
      %578 = vmatmul.mubr.bf16.gmra.mrb[0].mxu0 %v540
      %v579 = vpop.f32.mrb[0].mxu0
      %v580 = vadd.f32 0.0, %v579
      %v581 = vpop.f32.mrb[0].mxu0
      %v582 = vpop.f32.mrb[0].mxu0
      %v583 = vpop.f32.mrb[0].mxu0
      %584 = vdwg.mxu0
      %586 = vrot.lane.b32.xlu0 %v533, 96
      %v587 = vpop.permute.xlu0 %586
      %v589 = vsel %vm538, %v533, 0
      %v592 = vsel %vm538, %v587, 0
      %594 = vmatprep.subr.bf16.mxu0 0
      %595 = vmatpush1.bf16.xpose.msra.mxu0 %v592
      %596 = vmatprep.subr.bf16.mxu0 0
      %597 = vmatpush1.bf16.xpose.msra.mxu0 0
      %598 = vmatprep.subr.bf16.mxu0 0
      %599 = vmatpush1.bf16.xpose.msra.mxu0 0
      %600 = vmatprep.subr.bf16.mxu0 0
      %601 = vmatpush1.bf16.xpose.msra.mxu0 0
      %602 = vmatprep.subr.bf16.mxu0 0
      %603 = vmatpush1.bf16.xpose.msra.mxu0 0
      %604 = vmatprep.subr.bf16.mxu0 0
      %605 = vmatpush1.bf16.xpose.msra.mxu0 0
      %606 = vmatprep.subr.bf16.mxu0 0
      %607 = vmatpush1.bf16.xpose.msra.mxu0 0
      %608 = vmatprep.subr.bf16.mxu0 0
      %609 = vmatpush1.bf16.xpose.msra.mxu0 0
      %610 = vmatprep.subr.bf16.mxu0 0
      %611 = vmatpush1.bf16.xpose.msra.mxu0 0
      %612 = vmatprep.subr.bf16.mxu0 0
      %613 = vmatpush1.bf16.xpose.msra.mxu0 0
      %614 = vmatprep.subr.bf16.mxu0 0
      %615 = vmatpush1.bf16.xpose.msra.mxu0 0
      %616 = vmatprep.subr.bf16.mxu0 0
      %617 = vmatpush1.bf16.xpose.msra.mxu0 0
      %618 = vmatprep.subr.bf16.mxu0 0
      %619 = vmatpush1.bf16.xpose.msra.mxu0 0
      %620 = vmatprep.subr.bf16.mxu0 0
      %621 = vmatpush1.bf16.xpose.msra.mxu0 0
      %622 = vmatprep.subr.bf16.mxu0 0
      %623 = vmatpush1.bf16.xpose.msra.mxu0 0
      %624 = vmatprep.subr.bf16.mxu0 0
      %625 = vmatpush1.bf16.xpose.msra.mxu0 0
      %626 = vmatprep.mubr.bf16.mxu0 0
      %627 = vmatmul.mubr.bf16.gmra.mrb[0].mxu0 %v589
      %v628 = vpop.f32.mrb[0].mxu0
      %v629 = vadd.f32 0.0, %v628
      %v630 = vpop.f32.mrb[0].mxu0
      %v631 = vpop.f32.mrb[0].mxu0
      %v632 = vpop.f32.mrb[0].mxu0
      %633 = vdwg.mxu0
      %635 = vrot.lane.b32.xlu0 %v534, 96
      %v636 = vpop.permute.xlu0 %635
      %v638 = vsel %vm538, %v534, 0
      %v641 = vsel %vm538, %v636, 0
      %643 = vmatprep.subr.bf16.mxu0 0
      %644 = vmatpush1.bf16.xpose.msra.mxu0 %v641
      %645 = vmatprep.subr.bf16.mxu0 0
      %646 = vmatpush1.bf16.xpose.msra.mxu0 0
      %647 = vmatprep.subr.bf16.mxu0 0
      %648 = vmatpush1.bf16.xpose.msra.mxu0 0
      %649 = vmatprep.subr.bf16.mxu0 0
      %650 = vmatpush1.bf16.xpose.msra.mxu0 0
      %651 = vmatprep.subr.bf16.mxu0 0
      %652 = vmatpush1.bf16.xpose.msra.mxu0 0
      %653 = vmatprep.subr.bf16.mxu0 0
      %654 = vmatpush1.bf16.xpose.msra.mxu0 0
      %655 = vmatprep.subr.bf16.mxu0 0
      %656 = vmatpush1.bf16.xpose.msra.mxu0 0
      %657 = vmatprep.subr.bf16.mxu0 0
      %658 = vmatpush1.bf16.xpose.msra.mxu0 0
      %659 = vmatprep.subr.bf16.mxu0 0
      %660 = vmatpush1.bf16.xpose.msra.mxu0 0
      %661 = vmatprep.subr.bf16.mxu0 0
      %662 = vmatpush1.bf16.xpose.msra.mxu0 0
      %663 = vmatprep.subr.bf16.mxu0 0
      %664 = vmatpush1.bf16.xpose.msra.mxu0 0
      %665 = vmatprep.subr.bf16.mxu0 0
      %666 = vmatpush1.bf16.xpose.msra.mxu0 0
      %667 = vmatprep.subr.bf16.mxu0 0
      %668 = vmatpush1.bf16.xpose.msra.mxu0 0
      %669 = vmatprep.subr.bf16.mxu0 0
      %670 = vmatpush1.bf16.xpose.msra.mxu0 0
      %671 = vmatprep.subr.bf16.mxu0 0
      %672 = vmatpush1.bf16.xpose.msra.mxu0 0
      %673 = vmatprep.subr.bf16.mxu0 0
      %674 = vmatpush1.bf16.xpose.msra.mxu0 0
      %675 = vmatprep.mubr.bf16.mxu0 0
      %676 = vmatmul.mubr.bf16.gmra.mrb[0].mxu0 %v638
      %v677 = vpop.f32.mrb[0].mxu0
      %v678 = vadd.f32 0.0, %v677
      %v679 = vpop.f32.mrb[0].mxu0
      %v680 = vpop.f32.mrb[0].mxu0
      %v681 = vpop.f32.mrb[0].mxu0
      %682 = vdwg.mxu0
      %v683 = vsel %vm538, %v580, -inf
      %684 = vmax.xlane.f32.xlu0 %v683
      %v685 = vpop.xlane.xlu0 %684
      %v686 = vsel %vm538, %v629, -inf
      %687 = vmax.xlane.f32.xlu0 %v686
      %v688 = vpop.xlane.xlu0 %687
      %v689 = vsel %vm538, %v678, -inf
      %690 = vmax.xlane.f32.xlu0 %v689
      %v691 = vpop.xlane.xlu0 %690
      %v692 = vsub.f32 %v580, %v685
      %v693 = vsub.f32 %v629, %v688
      %v694 = vsub.f32 %v678, %v691
      %v695 = vmul.f32 %v692, 1.442695
      %v696 = vpow.pop %v695
      %v697 = vmul.f32 %v693, 1.442695
      %v698 = vpow.pop %v697
      %v699 = vmul.f32 %v694, 1.442695
      %v700 = vpow.pop %v699
      %v701 = vsel %vm538, %v696, 0.0
      %702 = vadd.xlane.f32.xlu0 %v701
      %v703 = vpop.xlane.xlu0 %702
      %v704 = vsel %vm538, %v698, 0.0
      %705 = vadd.xlane.f32.xlu0 %v704
      %v706 = vpop.xlane.xlu0 %705
      %v707 = vsel %vm538, %v700, 0.0
      %708 = vadd.xlane.f32.xlu0 %v707
      %v709 = vpop.xlane.xlu0 %708
      %v710 = vrcp.pop %v703
      %v711 = vrcp.pop %v706
      %v712 = vrcp.pop %v709
      %v713 = vmul.f32 %v696, %v710
      %v714 = vmul.f32 %v698, %v711
      %v715 = vmul.f32 %v700, %v712
      %v716 = vpack.c.bf16 %v713, %v713
      %v717 = vpack.c.bf16 %v714, %v714
      %v718 = vpack.c.bf16 %v715, %v715
      %719 = vrot.lane.b32.xlu0 %v532, 64
      %v720 = vpop.permute.xlu0 %719
      %v722 = vsel %vm538, %v716, 0
      %vm724 = vcmask 1043456
      %v726 = vsel %vm724, %v720, 0
      %728 = vmatprep.subr.bf16.mxu0 0
      %729 = vmatpush1.bf16.msra.mxu0 %v726
      %730 = vmatprep.subr.bf16.mxu0 0
      %731 = vmatpush1.bf16.msra.mxu0 0
      %732 = vmatprep.subr.bf16.mxu0 0
      %733 = vmatpush1.bf16.msra.mxu0 0
      %734 = vmatprep.subr.bf16.mxu0 0
      %735 = vmatpush1.bf16.msra.mxu0 0
      %736 = vmatprep.subr.bf16.mxu0 0
      %737 = vmatpush1.bf16.msra.mxu0 0
      %738 = vmatprep.subr.bf16.mxu0 0
      %739 = vmatpush1.bf16.msra.mxu0 0
      %740 = vmatprep.subr.bf16.mxu0 0
      %741 = vmatpush1.bf16.msra.mxu0 0
      %742 = vmatprep.subr.bf16.mxu0 0
      %743 = vmatpush1.bf16.msra.mxu0 0
      %744 = vmatprep.subr.bf16.mxu0 0
      %745 = vmatpush1.bf16.msra.mxu0 0
      %746 = vmatprep.subr.bf16.mxu0 0
      %747 = vmatpush1.bf16.msra.mxu0 0
      %748 = vmatprep.subr.bf16.mxu0 0
      %749 = vmatpush1.bf16.msra.mxu0 0
      %750 = vmatprep.subr.bf16.mxu0 0
      %751 = vmatpush1.bf16.msra.mxu0 0
      %752 = vmatprep.subr.bf16.mxu0 0
      %753 = vmatpush1.bf16.msra.mxu0 0
      %754 = vmatprep.subr.bf16.mxu0 0
      %755 = vmatpush1.bf16.msra.mxu0 0
      %756 = vmatprep.subr.bf16.mxu0 0
      %757 = vmatpush1.bf16.msra.mxu0 0
      %758 = vmatprep.subr.bf16.mxu0 0
      %759 = vmatpush1.bf16.msra.mxu0 0
      %760 = vmatprep.mubr.bf16.mxu0 0
      %761 = vmatmul.mubr.bf16.gmra.mrb[0].mxu0 %v722
      %v762 = vpop.f32.mrb[0].mxu0
      %v763 = vadd.f32 0.0, %v762
      %v764 = vpop.f32.mrb[0].mxu0
      %v765 = vpop.f32.mrb[0].mxu0
      %v766 = vpop.f32.mrb[0].mxu0
      %767 = vdwg.mxu0
      %768 = vrot.lane.b32.xlu0 %v533, 64
      %v769 = vpop.permute.xlu0 %768
      %v771 = vsel %vm538, %v717, 0
      %v774 = vsel %vm724, %v769, 0
      %776 = vmatprep.subr.bf16.mxu0 0
      %777 = vmatpush1.bf16.msra.mxu0 %v774
      %778 = vmatprep.subr.bf16.mxu0 0
      %779 = vmatpush1.bf16.msra.mxu0 0
      %780 = vmatprep.subr.bf16.mxu0 0
      %781 = vmatpush1.bf16.msra.mxu0 0
      %782 = vmatprep.subr.bf16.mxu0 0
      %783 = vmatpush1.bf16.msra.mxu0 0
      %784 = vmatprep.subr.bf16.mxu0 0
      %785 = vmatpush1.bf16.msra.mxu0 0
      %786 = vmatprep.subr.bf16.mxu0 0
      %787 = vmatpush1.bf16.msra.mxu0 0
      %788 = vmatprep.subr.bf16.mxu0 0
      %789 = vmatpush1.bf16.msra.mxu0 0
      %790 = vmatprep.subr.bf16.mxu0 0
      %791 = vmatpush1.bf16.msra.mxu0 0
      %792 = vmatprep.subr.bf16.mxu0 0
      %793 = vmatpush1.bf16.msra.mxu0 0
      %794 = vmatprep.subr.bf16.mxu0 0
      %795 = vmatpush1.bf16.msra.mxu0 0
      %796 = vmatprep.subr.bf16.mxu0 0
      %797 = vmatpush1.bf16.msra.mxu0 0
      %798 = vmatprep.subr.bf16.mxu0 0
      %799 = vmatpush1.bf16.msra.mxu0 0
      %800 = vmatprep.subr.bf16.mxu0 0
      %801 = vmatpush1.bf16.msra.mxu0 0
      %802 = vmatprep.subr.bf16.mxu0 0
      %803 = vmatpush1.bf16.msra.mxu0 0
      %804 = vmatprep.subr.bf16.mxu0 0
      %805 = vmatpush1.bf16.msra.mxu0 0
      %806 = vmatprep.subr.bf16.mxu0 0
      %807 = vmatpush1.bf16.msra.mxu0 0
      %808 = vmatprep.mubr.bf16.mxu0 0
      %809 = vmatmul.mubr.bf16.gmra.mrb[0].mxu0 %v771
      %v810 = vpop.f32.mrb[0].mxu0
      %v811 = vadd.f32 0.0, %v810
      %v812 = vpop.f32.mrb[0].mxu0
      %v813 = vpop.f32.mrb[0].mxu0
      %v814 = vpop.f32.mrb[0].mxu0
      %815 = vdwg.mxu0
      %816 = vrot.lane.b32.xlu0 %v534, 64
      %v817 = vpop.permute.xlu0 %816
      %v819 = vsel %vm538, %v718, 0
      %v822 = vsel %vm724, %v817, 0
      %824 = vmatprep.subr.bf16.mxu0 0
      %825 = vmatpush1.bf16.msra.mxu0 %v822
      %826 = vmatprep.subr.bf16.mxu0 0
      %827 = vmatpush1.bf16.msra.mxu0 0
      %828 = vmatprep.subr.bf16.mxu0 0
      %829 = vmatpush1.bf16.msra.mxu0 0
      %830 = vmatprep.subr.bf16.mxu0 0
      %831 = vmatpush1.bf16.msra.mxu0 0
      %832 = vmatprep.subr.bf16.mxu0 0
      %833 = vmatpush1.bf16.msra.mxu0 0
      %834 = vmatprep.subr.bf16.mxu0 0
      %835 = vmatpush1.bf16.msra.mxu0 0
      %836 = vmatprep.subr.bf16.mxu0 0
      %837 = vmatpush1.bf16.msra.mxu0 0
      %838 = vmatprep.subr.bf16.mxu0 0
      %839 = vmatpush1.bf16.msra.mxu0 0
      %840 = vmatprep.subr.bf16.mxu0 0
      %841 = vmatpush1.bf16.msra.mxu0 0
      %842 = vmatprep.subr.bf16.mxu0 0
      %843 = vmatpush1.bf16.msra.mxu0 0
      %844 = vmatprep.subr.bf16.mxu0 0
      %845 = vmatpush1.bf16.msra.mxu0 0
      %846 = vmatprep.subr.bf16.mxu0 0
      %847 = vmatpush1.bf16.msra.mxu0 0
      %848 = vmatprep.subr.bf16.mxu0 0
      %849 = vmatpush1.bf16.msra.mxu0 0
      %850 = vmatprep.subr.bf16.mxu0 0
      %851 = vmatpush1.bf16.msra.mxu0 0
      %852 = vmatprep.subr.bf16.mxu0 0
      %853 = vmatpush1.bf16.msra.mxu0 0
      %854 = vmatprep.subr.bf16.mxu0 0
      %855 = vmatpush1.bf16.msra.mxu0 0
      %856 = vmatprep.mubr.bf16.mxu0 0
      %857 = vmatmul.mubr.bf16.gmra.mrb[0].mxu0 %v819
      %v858 = vpop.f32.mrb[0].mxu0
      %v859 = vadd.f32 0.0, %v858
      %v860 = vpop.f32.mrb[0].mxu0
      %v861 = vpop.f32.mrb[0].mxu0
      %v862 = vpop.f32.mrb[0].mxu0
      %863 = vdwg.mxu0
      %v864 = vpack.c.bf16 %v811, %v763
      %v865 = vpack.c.bf16 %v859, %v859
      %866 = vrot.lane.b32.xlu0 %v532, 120
      %v867 = vpop.permute.xlu0 %866
      %868 = vrot.lane.b32.xlu0 %v532, 88
      %v869 = vpop.permute.xlu0 %868
      %v871 = vsel %vm538, %v867, 0
      %v874 = vsel %vm538, %v869, 0
      %876 = vmatprep.subr.bf16.mxu0 0
      %877 = vmatpush1.bf16.xpose.msra.mxu0 %v874
      %878 = vmatprep.subr.bf16.mxu0 0
      %879 = vmatpush1.bf16.xpose.msra.mxu0 0
      %880 = vmatprep.subr.bf16.mxu0 0
      %881 = vmatpush1.bf16.xpose.msra.mxu0 0
      %882 = vmatprep.subr.bf16.mxu0 0
      %883 = vmatpush1.bf16.xpose.msra.mxu0 0
      %884 = vmatprep.subr.bf16.mxu0 0
      %885 = vmatpush1.bf16.xpose.msra.mxu0 0
      %886 = vmatprep.subr.bf16.mxu0 0
      %887 = vmatpush1.bf16.xpose.msra.mxu0 0
      %888 = vmatprep.subr.bf16.mxu0 0
      %889 = vmatpush1.bf16.xpose.msra.mxu0 0
      %890 = vmatprep.subr.bf16.mxu0 0
      %891 = vmatpush1.bf16.xpose.msra.mxu0 0
      %892 = vmatprep.subr.bf16.mxu0 0
      %893 = vmatpush1.bf16.xpose.msra.mxu0 0
      %894 = vmatprep.subr.bf16.mxu0 0
      %895 = vmatpush1.bf16.xpose.msra.mxu0 0
      %896 = vmatprep.subr.bf16.mxu0 0
      %897 = vmatpush1.bf16.xpose.msra.mxu0 0
      %898 = vmatprep.subr.bf16.mxu0 0
      %899 = vmatpush1.bf16.xpose.msra.mxu0 0
      %900 = vmatprep.subr.bf16.mxu0 0
      %901 = vmatpush1.bf16.xpose.msra.mxu0 0
      %902 = vmatprep.subr.bf16.mxu0 0
      %903 = vmatpush1.bf16.xpose.msra.mxu0 0
      %904 = vmatprep.subr.bf16.mxu0 0
      %905 = vmatpush1.bf16.xpose.msra.mxu0 0
      %906 = vmatprep.subr.bf16.mxu0 0
      %907 = vmatpush1.bf16.xpose.msra.mxu0 0
      %908 = vmatprep.mubr.bf16.mxu0 0
      %909 = vmatmul.mubr.bf16.gmra.mrb[0].mxu0 %v871
      %v910 = vpop.f32.mrb[0].mxu0
      %v911 = vadd.f32 0.0, %v910
      %v912 = vpop.f32.mrb[0].mxu0
      %v913 = vpop.f32.mrb[0].mxu0
      %v914 = vpop.f32.mrb[0].mxu0
      %915 = vdwg.mxu0
      %916 = vrot.lane.b32.xlu0 %v533, 120
      %v917 = vpop.permute.xlu0 %916
      %918 = vrot.lane.b32.xlu0 %v533, 88
      %v919 = vpop.permute.xlu0 %918
      %v921 = vsel %vm538, %v917, 0
      %v924 = vsel %vm538, %v919, 0
      %926 = vmatprep.subr.bf16.mxu0 0
      %927 = vmatpush1.bf16.xpose.msra.mxu0 %v924
      %928 = vmatprep.subr.bf16.mxu0 0
      %929 = vmatpush1.bf16.xpose.msra.mxu0 0
      %930 = vmatprep.subr.bf16.mxu0 0
      %931 = vmatpush1.bf16.xpose.msra.mxu0 0
      %932 = vmatprep.subr.bf16.mxu0 0
      %933 = vmatpush1.bf16.xpose.msra.mxu0 0
      %934 = vmatprep.subr.bf16.mxu0 0
      %935 = vmatpush1.bf16.xpose.msra.mxu0 0
      %936 = vmatprep.subr.bf16.mxu0 0
      %937 = vmatpush1.bf16.xpose.msra.mxu0 0
      %938 = vmatprep.subr.bf16.mxu0 0
      %939 = vmatpush1.bf16.xpose.msra.mxu0 0
      %940 = vmatprep.subr.bf16.mxu0 0
      %941 = vmatpush1.bf16.xpose.msra.mxu0 0
      %942 = vmatprep.subr.bf16.mxu0 0
      %943 = vmatpush1.bf16.xpose.msra.mxu0 0
      %944 = vmatprep.subr.bf16.mxu0 0
      %945 = vmatpush1.bf16.xpose.msra.mxu0 0
      %946 = vmatprep.subr.bf16.mxu0 0
      %947 = vmatpush1.bf16.xpose.msra.mxu0 0
      %948 = vmatprep.subr.bf16.mxu0 0
      %949 = vmatpush1.bf16.xpose.msra.mxu0 0
      %950 = vmatprep.subr.bf16.mxu0 0
      %951 = vmatpush1.bf16.xpose.msra.mxu0 0
      %952 = vmatprep.subr.bf16.mxu0 0
      %953 = vmatpush1.bf16.xpose.msra.mxu0 0
      %954 = vmatprep.subr.bf16.mxu0 0
      %955 = vmatpush1.bf16.xpose.msra.mxu0 0
      %956 = vmatprep.subr.bf16.mxu0 0
      %957 = vmatpush1.bf16.xpose.msra.mxu0 0
      %958 = vmatprep.mubr.bf16.mxu0 0
      %959 = vmatmul.mubr.bf16.gmra.mrb[0].mxu0 %v921
      %v960 = vpop.f32.mrb[0].mxu0
      %v961 = vadd.f32 0.0, %v960
      %v962 = vpop.f32.mrb[0].mxu0
      %v963 = vpop.f32.mrb[0].mxu0
      %v964 = vpop.f32.mrb[0].mxu0
      %965 = vdwg.mxu0
      %966 = vrot.lane.b32.xlu0 %v534, 120
      %v967 = vpop.permute.xlu0 %966
      %968 = vrot.lane.b32.xlu0 %v534, 88
      %v969 = vpop.permute.xlu0 %968
      %v971 = vsel %vm538, %v967, 0
      %v974 = vsel %vm538, %v969, 0
      %976 = vmatprep.subr.bf16.mxu0 0
      %977 = vmatpush1.bf16.xpose.msra.mxu0 %v974
      %978 = vmatprep.subr.bf16.mxu0 0
      %979 = vmatpush1.bf16.xpose.msra.mxu0 0
      %980 = vmatprep.subr.bf16.mxu0 0
      %981 = vmatpush1.bf16.xpose.msra.mxu0 0
      %982 = vmatprep.subr.bf16.mxu0 0
      %983 = vmatpush1.bf16.xpose.msra.mxu0 0
      %984 = vmatprep.subr.bf16.mxu0 0
      %985 = vmatpush1.bf16.xpose.msra.mxu0 0
      %986 = vmatprep.subr.bf16.mxu0 0
      %987 = vmatpush1.bf16.xpose.msra.mxu0 0
      %988 = vmatprep.subr.bf16.mxu0 0
      %989 = vmatpush1.bf16.xpose.msra.mxu0 0
      %990 = vmatprep.subr.bf16.mxu0 0
      %991 = vmatpush1.bf16.xpose.msra.mxu0 0
      %992 = vmatprep.subr.bf16.mxu0 0
      %993 = vmatpush1.bf16.xpose.msra.mxu0 0
      %994 = vmatprep.subr.bf16.mxu0 0
      %995 = vmatpush1.bf16.xpose.msra.mxu0 0
      %996 = vmatprep.subr.bf16.mxu0 0
      %997 = vmatpush1.bf16.xpose.msra.mxu0 0
      %998 = vmatprep.subr.bf16.mxu0 0
      %999 = vmatpush1.bf16.xpose.msra.mxu0 0
      %1000 = vmatprep.subr.bf16.mxu0 0
      %1001 = vmatpush1.bf16.xpose.msra.mxu0 0
      %1002 = vmatprep.subr.bf16.mxu0 0
      %1003 = vmatpush1.bf16.xpose.msra.mxu0 0
      %1004 = vmatprep.subr.bf16.mxu0 0
      %1005 = vmatpush1.bf16.xpose.msra.mxu0 0
      %1006 = vmatprep.subr.bf16.mxu0 0
      %1007 = vmatpush1.bf16.xpose.msra.mxu0 0
      %1008 = vmatprep.mubr.bf16.mxu0 0
      %1009 = vmatmul.mubr.bf16.gmra.mrb[0].mxu0 %v971
      %v1010 = vpop.f32.mrb[0].mxu0
      %v1011 = vadd.f32 0.0, %v1010
      %v1012 = vpop.f32.mrb[0].mxu0
      %v1013 = vpop.f32.mrb[0].mxu0
      %v1014 = vpop.f32.mrb[0].mxu0
      %1015 = vdwg.mxu0
      %v1016 = vsel %vm538, %v911, -inf
      %1017 = vmax.xlane.f32.xlu0 %v1016
      %v1018 = vpop.xlane.xlu0 %1017
      %v1019 = vsel %vm538, %v961, -inf
      %1020 = vmax.xlane.f32.xlu0 %v1019
      %v1021 = vpop.xlane.xlu0 %1020
      %v1022 = vsel %vm538, %v1011, -inf
      %1023 = vmax.xlane.f32.xlu0 %v1022
      %v1024 = vpop.xlane.xlu0 %1023
      %v1025 = vsub.f32 %v911, %v1018
      %v1026 = vsub.f32 %v961, %v1021
      %v1027 = vsub.f32 %v1011, %v1024
      %v1028 = vmul.f32 %v1025, 1.442695
      %v1029 = vpow.pop %v1028
      %v1030 = vmul.f32 %v1026, 1.442695
      %v1031 = vpow.pop %v1030
      %v1032 = vmul.f32 %v1027, 1.442695
      %v1033 = vpow.pop %v1032
      %v1034 = vsel %vm538, %v1029, 0.0
      %1035 = vadd.xlane.f32.xlu0 %v1034
      %v1036 = vpop.xlane.xlu0 %1035
      %v1037 = vsel %vm538, %v1031, 0.0
      %1038 = vadd.xlane.f32.xlu0 %v1037
      %v1039 = vpop.xlane.xlu0 %1038
      %v1040 = vsel %vm538, %v1033, 0.0
      %1041 = vadd.xlane.f32.xlu0 %v1040
      %v1042 = vpop.xlane.xlu0 %1041
      %v1043 = vrcp.pop %v1036
      %v1044 = vrcp.pop %v1039
      %v1045 = vrcp.pop %v1042
      %v1046 = vmul.f32 %v1029, %v1043
      %v1047 = vmul.f32 %v1031, %v1044
      %v1048 = vmul.f32 %v1033, %v1045
      %v1049 = vpack.c.bf16 %v1046, %v1046
      %v1050 = vpack.c.bf16 %v1047, %v1047
      %v1051 = vpack.c.bf16 %v1048, %v1048
      %1052 = vrot.lane.b32.xlu0 %v532, 56
      %v1053 = vpop.permute.xlu0 %1052
      %v1055 = vsel %vm538, %v1049, 0
      %v1058 = vsel %vm724, %v1053, 0
      %1060 = vmatprep.subr.bf16.mxu0 0
      %1061 = vmatpush1.bf16.msra.mxu0 %v1058
      %1062 = vmatprep.subr.bf16.mxu0 0
      %1063 = vmatpush1.bf16.msra.mxu0 0
      %1064 = vmatprep.subr.bf16.mxu0 0
      %1065 = vmatpush1.bf16.msra.mxu0 0
      %1066 = vmatprep.subr.bf16.mxu0 0
      %1067 = vmatpush1.bf16.msra.mxu0 0
      %1068 = vmatprep.subr.bf16.mxu0 0
      %1069 = vmatpush1.bf16.msra.mxu0 0
      %1070 = vmatprep.subr.bf16.mxu0 0
      %1071 = vmatpush1.bf16.msra.mxu0 0
      %1072 = vmatprep.subr.bf16.mxu0 0
      %1073 = vmatpush1.bf16.msra.mxu0 0
      %1074 = vmatprep.subr.bf16.mxu0 0
      %1075 = vmatpush1.bf16.msra.mxu0 0
      %1076 = vmatprep.subr.bf16.mxu0 0
      %1077 = vmatpush1.bf16.msra.mxu0 0
      %1078 = vmatprep.subr.bf16.mxu0 0
      %1079 = vmatpush1.bf16.msra.mxu0 0
      %1080 = vmatprep.subr.bf16.mxu0 0
      %1081 = vmatpush1.bf16.msra.mxu0 0
      %1082 = vmatprep.subr.bf16.mxu0 0
      %1083 = vmatpush1.bf16.msra.mxu0 0
      %1084 = vmatprep.subr.bf16.mxu0 0
      %1085 = vmatpush1.bf16.msra.mxu0 0
      %1086 = vmatprep.subr.bf16.mxu0 0
      %1087 = vmatpush1.bf16.msra.mxu0 0
      %1088 = vmatprep.subr.bf16.mxu0 0
      %1089 = vmatpush1.bf16.msra.mxu0 0
      %1090 = vmatprep.subr.bf16.mxu0 0
      %1091 = vmatpush1.bf16.msra.mxu0 0
      %1092 = vmatprep.mubr.bf16.mxu0 0
      %1093 = vmatmul.mubr.bf16.gmra.mrb[0].mxu0 %v1055
      %v1094 = vpop.f32.mrb[0].mxu0
      %v1095 = vadd.f32 0.0, %v1094
      %v1096 = vpop.f32.mrb[0].mxu0
      %v1097 = vpop.f32.mrb[0].mxu0
      %v1098 = vpop.f32.mrb[0].mxu0
      %1099 = vdwg.mxu0
      %1100 = vrot.lane.b32.xlu0 %v533, 56
      %v1101 = vpop.permute.xlu0 %1100
      %v1103 = vsel %vm538, %v1050, 0
      %v1106 = vsel %vm724, %v1101, 0
      %1108 = vmatprep.subr.bf16.mxu0 0
      %1109 = vmatpush1.bf16.msra.mxu0 %v1106
      %1110 = vmatprep.subr.bf16.mxu0 0
      %1111 = vmatpush1.bf16.msra.mxu0 0
      %1112 = vmatprep.subr.bf16.mxu0 0
      %1113 = vmatpush1.bf16.msra.mxu0 0
      %1114 = vmatprep.subr.bf16.mxu0 0
      %1115 = vmatpush1.bf16.msra.mxu0 0
      %1116 = vmatprep.subr.bf16.mxu0 0
      %1117 = vmatpush1.bf16.msra.mxu0 0
      %1118 = vmatprep.subr.bf16.mxu0 0
      %1119 = vmatpush1.bf16.msra.mxu0 0
      %1120 = vmatprep.subr.bf16.mxu0 0
      %1121 = vmatpush1.bf16.msra.mxu0 0
      %1122 = vmatprep.subr.bf16.mxu0 0
      %1123 = vmatpush1.bf16.msra.mxu0 0
      %1124 = vmatprep.subr.bf16.mxu0 0
      %1125 = vmatpush1.bf16.msra.mxu0 0
      %1126 = vmatprep.subr.bf16.mxu0 0
      %1127 = vmatpush1.bf16.msra.mxu0 0
      %1128 = vmatprep.subr.bf16.mxu0 0
      %1129 = vmatpush1.bf16.msra.mxu0 0
      %1130 = vmatprep.subr.bf16.mxu0 0
      %1131 = vmatpush1.bf16.msra.mxu0 0
      %1132 = vmatprep.subr.bf16.mxu0 0
      %1133 = vmatpush1.bf16.msra.mxu0 0
      %1134 = vmatprep.subr.bf16.mxu0 0
      %1135 = vmatpush1.bf16.msra.mxu0 0
      %1136 = vmatprep.subr.bf16.mxu0 0
      %1137 = vmatpush1.bf16.msra.mxu0 0
      %1138 = vmatprep.subr.bf16.mxu0 0
      %1139 = vmatpush1.bf16.msra.mxu0 0
      %1140 = vmatprep.mubr.bf16.mxu0 0
      %1141 = vmatmul.mubr.bf16.gmra.mrb[0].mxu0 %v1103
      %v1142 = vpop.f32.mrb[0].mxu0
      %v1143 = vadd.f32 0.0, %v1142
      %v1144 = vpop.f32.mrb[0].mxu0
      %v1145 = vpop.f32.mrb[0].mxu0
      %v1146 = vpop.f32.mrb[0].mxu0
      %1147 = vdwg.mxu0
      %1148 = vrot.lane.b32.xlu0 %v534, 56
      %v1149 = vpop.permute.xlu0 %1148
      %v1151 = vsel %vm538, %v1051, 0
      %v1154 = vsel %vm724, %v1149, 0
      %1156 = vmatprep.subr.bf16.mxu0 0
      %1157 = vmatpush1.bf16.msra.mxu0 %v1154
      %1158 = vmatprep.subr.bf16.mxu0 0
      %1159 = vmatpush1.bf16.msra.mxu0 0
      %1160 = vmatprep.subr.bf16.mxu0 0
      %1161 = vmatpush1.bf16.msra.mxu0 0
      %1162 = vmatprep.subr.bf16.mxu0 0
      %1163 = vmatpush1.bf16.msra.mxu0 0
      %1164 = vmatprep.subr.bf16.mxu0 0
      %1165 = vmatpush1.bf16.msra.mxu0 0
      %1166 = vmatprep.subr.bf16.mxu0 0
      %1167 = vmatpush1.bf16.msra.mxu0 0
      %1168 = vmatprep.subr.bf16.mxu0 0
      %1169 = vmatpush1.bf16.msra.mxu0 0
      %1170 = vmatprep.subr.bf16.mxu0 0
      %1171 = vmatpush1.bf16.msra.mxu0 0
      %1172 = vmatprep.subr.bf16.mxu0 0
      %1173 = vmatpush1.bf16.msra.mxu0 0
      %1174 = vmatprep.subr.bf16.mxu0 0
      %1175 = vmatpush1.bf16.msra.mxu0 0
      %1176 = vmatprep.subr.bf16.mxu0 0
      %1177 = vmatpush1.bf16.msra.mxu0 0
      %1178 = vmatprep.subr.bf16.mxu0 0
      %1179 = vmatpush1.bf16.msra.mxu0 0
      %1180 = vmatprep.subr.bf16.mxu0 0
      %1181 = vmatpush1.bf16.msra.mxu0 0
      %1182 = vmatprep.subr.bf16.mxu0 0
      %1183 = vmatpush1.bf16.msra.mxu0 0
      %1184 = vmatprep.subr.bf16.mxu0 0
      %1185 = vmatpush1.bf16.msra.mxu0 0
      %1186 = vmatprep.subr.bf16.mxu0 0
      %1187 = vmatpush1.bf16.msra.mxu0 0
      %1188 = vmatprep.mubr.bf16.mxu0 0
      %1189 = vmatmul.mubr.bf16.gmra.mrb[0].mxu0 %v1151
      %v1190 = vpop.f32.mrb[0].mxu0
      %v1191 = vadd.f32 0.0, %v1190
      %v1192 = vpop.f32.mrb[0].mxu0
      %v1193 = vpop.f32.mrb[0].mxu0
      %v1194 = vpop.f32.mrb[0].mxu0
      %1195 = vdwg.mxu0
      %v1196 = vpack.c.bf16 %v1143, %v1095
      %v1197 = vpack.c.bf16 %v1191, %v1191
      %v1199 = vsel %vm538, %v1196, 0
      %v1202 = vsel %vm538, %v1197, 0
      %v1205 = vsel %vm724, %v529, 0
      %1207 = vmatprep.subr.bf16.mxu0 0
      %1208 = vmatpush1.bf16.msra.mxu0 %v1205
      %1209 = vmatprep.subr.bf16.mxu0 0
      %1210 = vmatpush1.bf16.msra.mxu0 0
      %1211 = vmatprep.subr.bf16.mxu0 0
      %1212 = vmatpush1.bf16.msra.mxu0 0
      %1213 = vmatprep.subr.bf16.mxu0 0
      %1214 = vmatpush1.bf16.msra.mxu0 0
      %1215 = vmatprep.subr.bf16.mxu0 0
      %1216 = vmatpush1.bf16.msra.mxu0 0
      %1217 = vmatprep.subr.bf16.mxu0 0
      %1218 = vmatpush1.bf16.msra.mxu0 0
      %1219 = vmatprep.subr.bf16.mxu0 0
      %1220 = vmatpush1.bf16.msra.mxu0 0
      %1221 = vmatprep.subr.bf16.mxu0 0
      %1222 = vmatpush1.bf16.msra.mxu0 0
      %1223 = vmatprep.subr.bf16.mxu0 0
      %1224 = vmatpush1.bf16.msra.mxu0 0
      %1225 = vmatprep.subr.bf16.mxu0 0
      %1226 = vmatpush1.bf16.msra.mxu0 0
      %1227 = vmatprep.subr.bf16.mxu0 0
      %1228 = vmatpush1.bf16.msra.mxu0 0
      %1229 = vmatprep.subr.bf16.mxu0 0
      %1230 = vmatpush1.bf16.msra.mxu0 0
      %1231 = vmatprep.subr.bf16.mxu0 0
      %1232 = vmatpush1.bf16.msra.mxu0 0
      %1233 = vmatprep.subr.bf16.mxu0 0
      %1234 = vmatpush1.bf16.msra.mxu0 0
      %1235 = vmatprep.subr.bf16.mxu0 0
      %1236 = vmatpush1.bf16.msra.mxu0 0
      %1237 = vmatprep.subr.bf16.mxu0 0
      %1238 = vmatpush1.bf16.msra.mxu0 0
      %1239 = vmatprep.mubr.bf16.mxu0 0
      %1240 = vmatmul.mubr.bf16.gmra.mrb[0].mxu0 %v1199
      %v1241 = vpop.f32.mrb[0].mxu0
      %v1242 = vadd.f32 0.0, %v1241
      %v1243 = vpop.f32.mrb[0].mxu0
      %v1244 = vpop.f32.mrb[0].mxu0
      %v1245 = vadd.f32 0.0, %v1244
      %v1246 = vpop.f32.mrb[0].mxu0
      %1247 = vmatprep.mubr.bf16.mxu0 0
      %1248 = vmatmul.mubr.bf16.gmra.mrb[0].mxu0 %v1202
      %v1249 = vpop.f32.mrb[0].mxu0
      %v1250 = vadd.f32 0.0, %v1249
      %v1251 = vpop.f32.mrb[0].mxu0
      %v1252 = vpop.f32.mrb[0].mxu0
      %v1253 = vpop.f32.mrb[0].mxu0
      %1254 = vdwg.mxu0
      %v1256 = vsel %vm538, %v864, 0
      %v1259 = vsel %vm538, %v865, 0
      %v1262 = vsel %vm724, %v528, 0
      %1264 = vmatprep.subr.bf16.mxu0 0
      %1265 = vmatpush1.bf16.msra.mxu0 %v1262
      %1266 = vmatprep.subr.bf16.mxu0 0
      %1267 = vmatpush1.bf16.msra.mxu0 0
      %1268 = vmatprep.subr.bf16.mxu0 0
      %1269 = vmatpush1.bf16.msra.mxu0 0
      %1270 = vmatprep.subr.bf16.mxu0 0
      %1271 = vmatpush1.bf16.msra.mxu0 0
      %1272 = vmatprep.subr.bf16.mxu0 0
      %1273 = vmatpush1.bf16.msra.mxu0 0
      %1274 = vmatprep.subr.bf16.mxu0 0
      %1275 = vmatpush1.bf16.msra.mxu0 0
      %1276 = vmatprep.subr.bf16.mxu0 0
      %1277 = vmatpush1.bf16.msra.mxu0 0
      %1278 = vmatprep.subr.bf16.mxu0 0
      %1279 = vmatpush1.bf16.msra.mxu0 0
      %1280 = vmatprep.subr.bf16.mxu0 0
      %1281 = vmatpush1.bf16.msra.mxu0 0
      %1282 = vmatprep.subr.bf16.mxu0 0
      %1283 = vmatpush1.bf16.msra.mxu0 0
      %1284 = vmatprep.subr.bf16.mxu0 0
      %1285 = vmatpush1.bf16.msra.mxu0 0
      %1286 = vmatprep.subr.bf16.mxu0 0
      %1287 = vmatpush1.bf16.msra.mxu0 0
      %1288 = vmatprep.subr.bf16.mxu0 0
      %1289 = vmatpush1.bf16.msra.mxu0 0
      %1290 = vmatprep.subr.bf16.mxu0 0
      %1291 = vmatpush1.bf16.msra.mxu0 0
      %1292 = vmatprep.subr.bf16.mxu0 0
      %1293 = vmatpush1.bf16.msra.mxu0 0
      %1294 = vmatprep.subr.bf16.mxu0 0
      %1295 = vmatpush1.bf16.msra.mxu0 0
      %1296 = vmatprep.mubr.bf16.mxu0 0
      %1297 = vmatmul.mubr.bf16.gmra.mrb[0].mxu0 %v1256
      %v1298 = vpop.f32.mrb[0].mxu0
      %v1299 = vadd.f32 %v1242, %v1298
      %v1300 = vpop.f32.mrb[0].mxu0
      %v1301 = vpop.f32.mrb[0].mxu0
      %v1302 = vadd.f32 %v1245, %v1301
      %v1303 = vpop.f32.mrb[0].mxu0
      %1304 = vmatprep.mubr.bf16.mxu0 0
      %1305 = vmatmul.mubr.bf16.gmra.mrb[0].mxu0 %v1259
      %v1306 = vpop.f32.mrb[0].mxu0
      %v1307 = vadd.f32 %v1250, %v1306
      %v1308 = vpop.f32.mrb[0].mxu0
      %v1309 = vpop.f32.mrb[0].mxu0
      %v1310 = vpop.f32.mrb[0].mxu0
      %1311 = vdwg.mxu0
      %1312 = vrot.lane.b32.xlu0 %v532, 112
      %v1313 = vpop.permute.xlu0 %1312
      %1314 = vrot.lane.b32.xlu0 %v532, 80
      %v1315 = vpop.permute.xlu0 %1314
      %v1317 = vsel %vm538, %v1313, 0
      %v1320 = vsel %vm538, %v1315, 0
      %1322 = vmatprep.subr.bf16.mxu0 0
      %1323 = vmatpush1.bf16.xpose.msra.mxu0 %v1320
      %1324 = vmatprep.subr.bf16.mxu0 0
      %1325 = vmatpush1.bf16.xpose.msra.mxu0 0
      %1326 = vmatprep.subr.bf16.mxu0 0
      %1327 = vmatpush1.bf16.xpose.msra.mxu0 0
      %1328 = vmatprep.subr.bf16.mxu0 0
      %1329 = vmatpush1.bf16.xpose.msra.mxu0 0
      %1330 = vmatprep.subr.bf16.mxu0 0
      %1331 = vmatpush1.bf16.xpose.msra.mxu0 0
      %1332 = vmatprep.subr.bf16.mxu0 0
      %1333 = vmatpush1.bf16.xpose.msra.mxu0 0
      %1334 = vmatprep.subr.bf16.mxu0 0
      %1335 = vmatpush1.bf16.xpose.msra.mxu0 0
      %1336 = vmatprep.subr.bf16.mxu0 0
      %1337 = vmatpush1.bf16.xpose.msra.mxu0 0
      %1338 = vmatprep.subr.bf16.mxu0 0
      %1339 = vmatpush1.bf16.xpose.msra.mxu0 0
      %1340 = vmatprep.subr.bf16.mxu0 0
      %1341 = vmatpush1.bf16.xpose.msra.mxu0 0
      %1342 = vmatprep.subr.bf16.mxu0 0
      %1343 = vmatpush1.bf16.xpose.msra.mxu0 0
      %1344 = vmatprep.subr.bf16.mxu0 0
      %1345 = vmatpush1.bf16.xpose.msra.mxu0 0
      %1346 = vmatprep.subr.bf16.mxu0 0
      %1347 = vmatpush1.bf16.xpose.msra.mxu0 0
      %1348 = vmatprep.subr.bf16.mxu0 0
      %1349 = vmatpush1.bf16.xpose.msra.mxu0 0
      %1350 = vmatprep.subr.bf16.mxu0 0
      %1351 = vmatpush1.bf16.xpose.msra.mxu0 0
      %1352 = vmatprep.subr.bf16.mxu0 0
      %1353 = vmatpush1.bf16.xpose.msra.mxu0 0
      %1354 = vmatprep.mubr.bf16.mxu0 0
      %1355 = vmatmul.mubr.bf16.gmra.mrb[0].mxu0 %v1317
      %v1356 = vpop.f32.mrb[0].mxu0
      %v1357 = vadd.f32 0.0, %v1356
      %v1358 = vpop.f32.mrb[0].mxu0
      %v1359 = vpop.f32.mrb[0].mxu0
      %v1360 = vpop.f32.mrb[0].mxu0
      %1361 = vdwg.mxu0
      %1362 = vrot.lane.b32.xlu0 %v533, 112
      %v1363 = vpop.permute.xlu0 %1362
      %1364 = vrot.lane.b32.xlu0 %v533, 80
      %v1365 = vpop.permute.xlu0 %1364
      %v1367 = vsel %vm538, %v1363, 0
      %v1370 = vsel %vm538, %v1365, 0
      %1372 = vmatprep.subr.bf16.mxu0 0
      %1373 = vmatpush1.bf16.xpose.msra.mxu0 %v1370
      %1374 = vmatprep.subr.bf16.mxu0 0
      %1375 = vmatpush1.bf16.xpose.msra.mxu0 0
      %1376 = vmatprep.subr.bf16.mxu0 0
      %1377 = vmatpush1.bf16.xpose.msra.mxu0 0
      %1378 = vmatprep.subr.bf16.mxu0 0
      %1379 = vmatpush1.bf16.xpose.msra.mxu0 0
      %1380 = vmatprep.subr.bf16.mxu0 0
      %1381 = vmatpush1.bf16.xpose.msra.mxu0 0
      %1382 = vmatprep.subr.bf16.mxu0 0
      %1383 = vmatpush1.bf16.xpose.msra.mxu0 0
      %1384 = vmatprep.subr.bf16.mxu0 0
      %1385 = vmatpush1.bf16.xpose.msra.mxu0 0
      %1386 = vmatprep.subr.bf16.mxu0 0
      %1387 = vmatpush1.bf16.xpose.msra.mxu0 0
      %1388 = vmatprep.subr.bf16.mxu0 0
      %1389 = vmatpush1.bf16.xpose.msra.mxu0 0
      %1390 = vmatprep.subr.bf16.mxu0 0
      %1391 = vmatpush1.bf16.xpose.msra.mxu0 0
      %1392 = vmatprep.subr.bf16.mxu0 0
      %1393 = vmatpush1.bf16.xpose.msra.mxu0 0
      %1394 = vmatprep.subr.bf16.mxu0 0
      %1395 = vmatpush1.bf16.xpose.msra.mxu0 0
      %1396 = vmatprep.subr.bf16.mxu0 0
      %1397 = vmatpush1.bf16.xpose.msra.mxu0 0
      %1398 = vmatprep.subr.bf16.mxu0 0
      %1399 = vmatpush1.bf16.xpose.msra.mxu0 0
      %1400 = vmatprep.subr.bf16.mxu0 0
      %1401 = vmatpush1.bf16.xpose.msra.mxu0 0
      %1402 = vmatprep.subr.bf16.mxu0 0
      %1403 = vmatpush1.bf16.xpose.msra.mxu0 0
      %1404 = vmatprep.mubr.bf16.mxu0 0
      %1405 = vmatmul.mubr.bf16.gmra.mrb[0].mxu0 %v1367
      %v1406 = vpop.f32.mrb[0].mxu0
      %v1407 = vadd.f32 0.0, %v1406
      %v1408 = vpop.f32.mrb[0].mxu0
      %v1409 = vpop.f32.mrb[0].mxu0
      %v1410 = vpop.f32.mrb[0].mxu0
      %1411 = vdwg.mxu0
      %1412 = vrot.lane.b32.xlu0 %v534, 112
      %v1413 = vpop.permute.xlu0 %1412
      %1414 = vrot.lane.b32.xlu0 %v534, 80
      %v1415 = vpop.permute.xlu0 %1414
      %v1417 = vsel %vm538, %v1413, 0
      %v1420 = vsel %vm538, %v1415, 0
      %1422 = vmatprep.subr.bf16.mxu0 0
      %1423 = vmatpush1.bf16.xpose.msra.mxu0 %v1420
      %1424 = vmatprep.subr.bf16.mxu0 0
      %1425 = vmatpush1.bf16.xpose.msra.mxu0 0
      %1426 = vmatprep.subr.bf16.mxu0 0
      %1427 = vmatpush1.bf16.xpose.msra.mxu0 0
      %1428 = vmatprep.subr.bf16.mxu0 0
      %1429 = vmatpush1.bf16.xpose.msra.mxu0 0
      %1430 = vmatprep.subr.bf16.mxu0 0
      %1431 = vmatpush1.bf16.xpose.msra.mxu0 0
      %1432 = vmatprep.subr.bf16.mxu0 0
      %1433 = vmatpush1.bf16.xpose.msra.mxu0 0
      %1434 = vmatprep.subr.bf16.mxu0 0
      %1435 = vmatpush1.bf16.xpose.msra.mxu0 0
      %1436 = vmatprep.subr.bf16.mxu0 0
      %1437 = vmatpush1.bf16.xpose.msra.mxu0 0
      %1438 = vmatprep.subr.bf16.mxu0 0
      %1439 = vmatpush1.bf16.xpose.msra.mxu0 0
      %1440 = vmatprep.subr.bf16.mxu0 0
      %1441 = vmatpush1.bf16.xpose.msra.mxu0 0
      %1442 = vmatprep.subr.bf16.mxu0 0
      %1443 = vmatpush1.bf16.xpose.msra.mxu0 0
      %1444 = vmatprep.subr.bf16.mxu0 0
      %1445 = vmatpush1.bf16.xpose.msra.mxu0 0
      %1446 = vmatprep.subr.bf16.mxu0 0
      %1447 = vmatpush1.bf16.xpose.msra.mxu0 0
      %1448 = vmatprep.subr.bf16.mxu0 0
      %1449 = vmatpush1.bf16.xpose.msra.mxu0 0
      %1450 = vmatprep.subr.bf16.mxu0 0
      %1451 = vmatpush1.bf16.xpose.msra.mxu0 0
      %1452 = vmatprep.subr.bf16.mxu0 0
      %1453 = vmatpush1.bf16.xpose.msra.mxu0 0
      %1454 = vmatprep.mubr.bf16.mxu0 0
      %1455 = vmatmul.mubr.bf16.gmra.mrb[0].mxu0 %v1417
      %v1456 = vpop.f32.mrb[0].mxu0
      %v1457 = vadd.f32 0.0, %v1456
      %v1458 = vpop.f32.mrb[0].mxu0
      %v1459 = vpop.f32.mrb[0].mxu0
      %v1460 = vpop.f32.mrb[0].mxu0
      %1461 = vdwg.mxu0
      %v1462 = vsel %vm538, %v1357, -inf
      %1463 = vmax.xlane.f32.xlu0 %v1462
      %v1464 = vpop.xlane.xlu0 %1463
      %v1465 = vsel %vm538, %v1407, -inf
      %1466 = vmax.xlane.f32.xlu0 %v1465
      %v1467 = vpop.xlane.xlu0 %1466
      %v1468 = vsel %vm538, %v1457, -inf
      %1469 = vmax.xlane.f32.xlu0 %v1468
      %v1470 = vpop.xlane.xlu0 %1469
      %v1471 = vsub.f32 %v1357, %v1464
      %v1472 = vsub.f32 %v1407, %v1467
      %v1473 = vsub.f32 %v1457, %v1470
      %v1474 = vmul.f32 %v1471, 1.442695
      %v1475 = vpow.pop %v1474
      %v1476 = vmul.f32 %v1472, 1.442695
      %v1477 = vpow.pop %v1476
      %v1478 = vmul.f32 %v1473, 1.442695
      %v1479 = vpow.pop %v1478
      %v1480 = vsel %vm538, %v1475, 0.0
      %1481 = vadd.xlane.f32.xlu0 %v1480
      %v1482 = vpop.xlane.xlu0 %1481
      %v1483 = vsel %vm538, %v1477, 0.0
      %1484 = vadd.xlane.f32.xlu0 %v1483
      %v1485 = vpop.xlane.xlu0 %1484
      %v1486 = vsel %vm538, %v1479, 0.0
      %1487 = vadd.xlane.f32.xlu0 %v1486
      %v1488 = vpop.xlane.xlu0 %1487
      %v1489 = vrcp.pop %v1482
      %v1490 = vrcp.pop %v1485
      %v1491 = vrcp.pop %v1488
      %v1492 = vmul.f32 %v1475, %v1489
      %v1493 = vmul.f32 %v1477, %v1490
      %v1494 = vmul.f32 %v1479, %v1491
      %v1495 = vpack.c.bf16 %v1492, %v1492
      %v1496 = vpack.c.bf16 %v1493, %v1493
      %v1497 = vpack.c.bf16 %v1494, %v1494
      %1498 = vrot.lane.b32.xlu0 %v532, 48
      %v1499 = vpop.permute.xlu0 %1498
      %v1501 = vsel %vm538, %v1495, 0
      %v1504 = vsel %vm724, %v1499, 0
      %1506 = vmatprep.subr.bf16.mxu0 0
      %1507 = vmatpush1.bf16.msra.mxu0 %v1504
      %1508 = vmatprep.subr.bf16.mxu0 0
      %1509 = vmatpush1.bf16.msra.mxu0 0
      %1510 = vmatprep.subr.bf16.mxu0 0
      %1511 = vmatpush1.bf16.msra.mxu0 0
      %1512 = vmatprep.subr.bf16.mxu0 0
      %1513 = vmatpush1.bf16.msra.mxu0 0
      %1514 = vmatprep.subr.bf16.mxu0 0
      %1515 = vmatpush1.bf16.msra.mxu0 0
      %1516 = vmatprep.subr.bf16.mxu0 0
      %1517 = vmatpush1.bf16.msra.mxu0 0
      %1518 = vmatprep.subr.bf16.mxu0 0
      %1519 = vmatpush1.bf16.msra.mxu0 0
      %1520 = vmatprep.subr.bf16.mxu0 0
      %1521 = vmatpush1.bf16.msra.mxu0 0
      %1522 = vmatprep.subr.bf16.mxu0 0
      %1523 = vmatpush1.bf16.msra.mxu0 0
      %1524 = vmatprep.subr.bf16.mxu0 0
      %1525 = vmatpush1.bf16.msra.mxu0 0
      %1526 = vmatprep.subr.bf16.mxu0 0
      %1527 = vmatpush1.bf16.msra.mxu0 0
      %1528 = vmatprep.subr.bf16.mxu0 0
      %1529 = vmatpush1.bf16.msra.mxu0 0
      %1530 = vmatprep.subr.bf16.mxu0 0
      %1531 = vmatpush1.bf16.msra.mxu0 0
      %1532 = vmatprep.subr.bf16.mxu0 0
      %1533 = vmatpush1.bf16.msra.mxu0 0
      %1534 = vmatprep.subr.bf16.mxu0 0
      %1535 = vmatpush1.bf16.msra.mxu0 0
      %1536 = vmatprep.subr.bf16.mxu0 0
      %1537 = vmatpush1.bf16.msra.mxu0 0
      %1538 = vmatprep.mubr.bf16.mxu0 0
      %1539 = vmatmul.mubr.bf16.gmra.mrb[0].mxu0 %v1501
      %v1540 = vpop.f32.mrb[0].mxu0
      %v1541 = vadd.f32 0.0, %v1540
      %v1542 = vpop.f32.mrb[0].mxu0
      %v1543 = vpop.f32.mrb[0].mxu0
      %v1544 = vpop.f32.mrb[0].mxu0
      %1545 = vdwg.mxu0
      %1546 = vrot.lane.b32.xlu0 %v533, 48
      %v1547 = vpop.permute.xlu0 %1546
      %v1549 = vsel %vm538, %v1496, 0
      %v1552 = vsel %vm724, %v1547, 0
      %1554 = vmatprep.subr.bf16.mxu0 0
      %1555 = vmatpush1.bf16.msra.mxu0 %v1552
      %1556 = vmatprep.subr.bf16.mxu0 0
      %1557 = vmatpush1.bf16.msra.mxu0 0
      %1558 = vmatprep.subr.bf16.mxu0 0
      %1559 = vmatpush1.bf16.msra.mxu0 0
      %1560 = vmatprep.subr.bf16.mxu0 0
      %1561 = vmatpush1.bf16.msra.mxu0 0
      %1562 = vmatprep.subr.bf16.mxu0 0
      %1563 = vmatpush1.bf16.msra.mxu0 0
      %1564 = vmatprep.subr.bf16.mxu0 0
      %1565 = vmatpush1.bf16.msra.mxu0 0
      %1566 = vmatprep.subr.bf16.mxu0 0
      %1567 = vmatpush1.bf16.msra.mxu0 0
      %1568 = vmatprep.subr.bf16.mxu0 0
      %1569 = vmatpush1.bf16.msra.mxu0 0
      %1570 = vmatprep.subr.bf16.mxu0 0
      %1571 = vmatpush1.bf16.msra.mxu0 0
      %1572 = vmatprep.subr.bf16.mxu0 0
      %1573 = vmatpush1.bf16.msra.mxu0 0
      %1574 = vmatprep.subr.bf16.mxu0 0
      %1575 = vmatpush1.bf16.msra.mxu0 0
      %1576 = vmatprep.subr.bf16.mxu0 0
      %1577 = vmatpush1.bf16.msra.mxu0 0
      %1578 = vmatprep.subr.bf16.mxu0 0
      %1579 = vmatpush1.bf16.msra.mxu0 0
      %1580 = vmatprep.subr.bf16.mxu0 0
      %1581 = vmatpush1.bf16.msra.mxu0 0
      %1582 = vmatprep.subr.bf16.mxu0 0
      %1583 = vmatpush1.bf16.msra.mxu0 0
      %1584 = vmatprep.subr.bf16.mxu0 0
      %1585 = vmatpush1.bf16.msra.mxu0 0
      %1586 = vmatprep.mubr.bf16.mxu0 0
      %1587 = vmatmul.mubr.bf16.gmra.mrb[0].mxu0 %v1549
      %v1588 = vpop.f32.mrb[0].mxu0
      %v1589 = vadd.f32 0.0, %v1588
      %v1590 = vpop.f32.mrb[0].mxu0
      %v1591 = vpop.f32.mrb[0].mxu0
      %v1592 = vpop.f32.mrb[0].mxu0
      %1593 = vdwg.mxu0
      %1594 = vrot.lane.b32.xlu0 %v534, 48
      %v1595 = vpop.permute.xlu0 %1594
      %v1597 = vsel %vm538, %v1497, 0
      %v1600 = vsel %vm724, %v1595, 0
      %1602 = vmatprep.subr.bf16.mxu0 0
      %1603 = vmatpush1.bf16.msra.mxu0 %v1600
      %1604 = vmatprep.subr.bf16.mxu0 0
      %1605 = vmatpush1.bf16.msra.mxu0 0
      %1606 = vmatprep.subr.bf16.mxu0 0
      %1607 = vmatpush1.bf16.msra.mxu0 0
      %1608 = vmatprep.subr.bf16.mxu0 0
      %1609 = vmatpush1.bf16.msra.mxu0 0
      %1610 = vmatprep.subr.bf16.mxu0 0
      %1611 = vmatpush1.bf16.msra.mxu0 0
      %1612 = vmatprep.subr.bf16.mxu0 0
      %1613 = vmatpush1.bf16.msra.mxu0 0
      %1614 = vmatprep.subr.bf16.mxu0 0
      %1615 = vmatpush1.bf16.msra.mxu0 0
      %1616 = vmatprep.subr.bf16.mxu0 0
      %1617 = vmatpush1.bf16.msra.mxu0 0
      %1618 = vmatprep.subr.bf16.mxu0 0
      %1619 = vmatpush1.bf16.msra.mxu0 0
      %1620 = vmatprep.subr.bf16.mxu0 0
      %1621 = vmatpush1.bf16.msra.mxu0 0
      %1622 = vmatprep.subr.bf16.mxu0 0
      %1623 = vmatpush1.bf16.msra.mxu0 0
      %1624 = vmatprep.subr.bf16.mxu0 0
      %1625 = vmatpush1.bf16.msra.mxu0 0
      %1626 = vmatprep.subr.bf16.mxu0 0
      %1627 = vmatpush1.bf16.msra.mxu0 0
      %1628 = vmatprep.subr.bf16.mxu0 0
      %1629 = vmatpush1.bf16.msra.mxu0 0
      %1630 = vmatprep.subr.bf16.mxu0 0
      %1631 = vmatpush1.bf16.msra.mxu0 0
      %1632 = vmatprep.subr.bf16.mxu0 0
      %1633 = vmatpush1.bf16.msra.mxu0 0
      %1634 = vmatprep.mubr.bf16.mxu0 0
      %1635 = vmatmul.mubr.bf16.gmra.mrb[0].mxu0 %v1597
      %v1636 = vpop.f32.mrb[0].mxu0
      %v1637 = vadd.f32 0.0, %v1636
      %v1638 = vpop.f32.mrb[0].mxu0
      %v1639 = vpop.f32.mrb[0].mxu0
      %v1640 = vpop.f32.mrb[0].mxu0
      %1641 = vdwg.mxu0
      %v1642 = vpack.c.bf16 %v1589, %v1541
      %v1643 = vpack.c.bf16 %v1637, %v1637
      %v1645 = vsel %vm538, %v1642, 0
      %v1648 = vsel %vm538, %v1643, 0
      %v1651 = vsel %vm724, %v530, 0
      %1653 = vmatprep.subr.bf16.mxu0 0
      %1654 = vmatpush1.bf16.msra.mxu0 %v1651
      %1655 = vmatprep.subr.bf16.mxu0 0
      %1656 = vmatpush1.bf16.msra.mxu0 0
      %1657 = vmatprep.subr.bf16.mxu0 0
      %1658 = vmatpush1.bf16.msra.mxu0 0
      %1659 = vmatprep.subr.bf16.mxu0 0
      %1660 = vmatpush1.bf16.msra.mxu0 0
      %1661 = vmatprep.subr.bf16.mxu0 0
      %1662 = vmatpush1.bf16.msra.mxu0 0
      %1663 = vmatprep.subr.bf16.mxu0 0
      %1664 = vmatpush1.bf16.msra.mxu0 0
      %1665 = vmatprep.subr.bf16.mxu0 0
      %1666 = vmatpush1.bf16.msra.mxu0 0
      %1667 = vmatprep.subr.bf16.mxu0 0
      %1668 = vmatpush1.bf16.msra.mxu0 0
      %1669 = vmatprep.subr.bf16.mxu0 0
      %1670 = vmatpush1.bf16.msra.mxu0 0
      %1671 = vmatprep.subr.bf16.mxu0 0
      %1672 = vmatpush1.bf16.msra.mxu0 0
      %1673 = vmatprep.subr.bf16.mxu0 0
      %1674 = vmatpush1.bf16.msra.mxu0 0
      %1675 = vmatprep.subr.bf16.mxu0 0
      %1676 = vmatpush1.bf16.msra.mxu0 0
      %1677 = vmatprep.subr.bf16.mxu0 0
      %1678 = vmatpush1.bf16.msra.mxu0 0
      %1679 = vmatprep.subr.bf16.mxu0 0
      %1680 = vmatpush1.bf16.msra.mxu0 0
      %1681 = vmatprep.subr.bf16.mxu0 0
      %1682 = vmatpush1.bf16.msra.mxu0 0
      %1683 = vmatprep.subr.bf16.mxu0 0
      %1684 = vmatpush1.bf16.msra.mxu0 0
      %1685 = vmatprep.mubr.bf16.mxu0 0
      %1686 = vmatmul.mubr.bf16.gmra.mrb[0].mxu0 %v1645
      %v1687 = vpop.f32.mrb[0].mxu0
      %v1688 = vadd.f32 0.0, %v1687
      %v1689 = vpop.f32.mrb[0].mxu0
      %v1690 = vpop.f32.mrb[0].mxu0
      %v1691 = vadd.f32 0.0, %v1690
      %v1692 = vpop.f32.mrb[0].mxu0
      %1693 = vmatprep.mubr.bf16.mxu0 0
      %1694 = vmatmul.mubr.bf16.gmra.mrb[0].mxu0 %v1648
      %v1695 = vpop.f32.mrb[0].mxu0
      %v1696 = vadd.f32 0.0, %v1695
      %v1697 = vpop.f32.mrb[0].mxu0
      %v1698 = vpop.f32.mrb[0].mxu0
      %v1699 = vpop.f32.mrb[0].mxu0
      %1700 = vdwg.mxu0
      %v1701 = vadd.f32 %v1299, %v1688
      %v1702 = vadd.f32 %v1302, %v1691
      %v1703 = vadd.f32 %v1307, %v1696
      %1704 = vrot.lane.b32.xlu0 %v532, 104
      %v1705 = vpop.permute.xlu0 %1704
      %1706 = vrot.lane.b32.xlu0 %v532, 72
      %v1707 = vpop.permute.xlu0 %1706
      %v1709 = vsel %vm538, %v1705, 0
      %v1712 = vsel %vm538, %v1707, 0
      %1714 = vmatprep.subr.bf16.mxu0 0
      %1715 = vmatpush1.bf16.xpose.msra.mxu0 %v1712
      %1716 = vmatprep.subr.bf16.mxu0 0
      %1717 = vmatpush1.bf16.xpose.msra.mxu0 0
      %1718 = vmatprep.subr.bf16.mxu0 0
      %1719 = vmatpush1.bf16.xpose.msra.mxu0 0
      %1720 = vmatprep.subr.bf16.mxu0 0
      %1721 = vmatpush1.bf16.xpose.msra.mxu0 0
      %1722 = vmatprep.subr.bf16.mxu0 0
      %1723 = vmatpush1.bf16.xpose.msra.mxu0 0
      %1724 = vmatprep.subr.bf16.mxu0 0
      %1725 = vmatpush1.bf16.xpose.msra.mxu0 0
      %1726 = vmatprep.subr.bf16.mxu0 0
      %1727 = vmatpush1.bf16.xpose.msra.mxu0 0
      %1728 = vmatprep.subr.bf16.mxu0 0
      %1729 = vmatpush1.bf16.xpose.msra.mxu0 0
      %1730 = vmatprep.subr.bf16.mxu0 0
      %1731 = vmatpush1.bf16.xpose.msra.mxu0 0
      %1732 = vmatprep.subr.bf16.mxu0 0
      %1733 = vmatpush1.bf16.xpose.msra.mxu0 0
      %1734 = vmatprep.subr.bf16.mxu0 0
      %1735 = vmatpush1.bf16.xpose.msra.mxu0 0
      %1736 = vmatprep.subr.bf16.mxu0 0
      %1737 = vmatpush1.bf16.xpose.msra.mxu0 0
      %1738 = vmatprep.subr.bf16.mxu0 0
      %1739 = vmatpush1.bf16.xpose.msra.mxu0 0
      %1740 = vmatprep.subr.bf16.mxu0 0
      %1741 = vmatpush1.bf16.xpose.msra.mxu0 0
      %1742 = vmatprep.subr.bf16.mxu0 0
      %1743 = vmatpush1.bf16.xpose.msra.mxu0 0
      %1744 = vmatprep.subr.bf16.mxu0 0
      %1745 = vmatpush1.bf16.xpose.msra.mxu0 0
      %1746 = vmatprep.mubr.bf16.mxu0 0
      %1747 = vmatmul.mubr.bf16.gmra.mrb[0].mxu0 %v1709
      %v1748 = vpop.f32.mrb[0].mxu0
      %v1749 = vadd.f32 0.0, %v1748
      %v1750 = vpop.f32.mrb[0].mxu0
      %v1751 = vpop.f32.mrb[0].mxu0
      %v1752 = vpop.f32.mrb[0].mxu0
      %1753 = vdwg.mxu0
      %1754 = vrot.lane.b32.xlu0 %v533, 104
      %v1755 = vpop.permute.xlu0 %1754
      %1756 = vrot.lane.b32.xlu0 %v533, 72
      %v1757 = vpop.permute.xlu0 %1756
      %v1759 = vsel %vm538, %v1755, 0
      %v1762 = vsel %vm538, %v1757, 0
      %1764 = vmatprep.subr.bf16.mxu0 0
      %1765 = vmatpush1.bf16.xpose.msra.mxu0 %v1762
      %1766 = vmatprep.subr.bf16.mxu0 0
      %1767 = vmatpush1.bf16.xpose.msra.mxu0 0
      %1768 = vmatprep.subr.bf16.mxu0 0
      %1769 = vmatpush1.bf16.xpose.msra.mxu0 0
      %1770 = vmatprep.subr.bf16.mxu0 0
      %1771 = vmatpush1.bf16.xpose.msra.mxu0 0
      %1772 = vmatprep.subr.bf16.mxu0 0
      %1773 = vmatpush1.bf16.xpose.msra.mxu0 0
      %1774 = vmatprep.subr.bf16.mxu0 0
      %1775 = vmatpush1.bf16.xpose.msra.mxu0 0
      %1776 = vmatprep.subr.bf16.mxu0 0
      %1777 = vmatpush1.bf16.xpose.msra.mxu0 0
      %1778 = vmatprep.subr.bf16.mxu0 0
      %1779 = vmatpush1.bf16.xpose.msra.mxu0 0
      %1780 = vmatprep.subr.bf16.mxu0 0
      %1781 = vmatpush1.bf16.xpose.msra.mxu0 0
      %1782 = vmatprep.subr.bf16.mxu0 0
      %1783 = vmatpush1.bf16.xpose.msra.mxu0 0
      %1784 = vmatprep.subr.bf16.mxu0 0
      %1785 = vmatpush1.bf16.xpose.msra.mxu0 0
      %1786 = vmatprep.subr.bf16.mxu0 0
      %1787 = vmatpush1.bf16.xpose.msra.mxu0 0
      %1788 = vmatprep.subr.bf16.mxu0 0
      %1789 = vmatpush1.bf16.xpose.msra.mxu0 0
      %1790 = vmatprep.subr.bf16.mxu0 0
      %1791 = vmatpush1.bf16.xpose.msra.mxu0 0
      %1792 = vmatprep.subr.bf16.mxu0 0
      %1793 = vmatpush1.bf16.xpose.msra.mxu0 0
      %1794 = vmatprep.subr.bf16.mxu0 0
      %1795 = vmatpush1.bf16.xpose.msra.mxu0 0
      %1796 = vmatprep.mubr.bf16.mxu0 0
      %1797 = vmatmul.mubr.bf16.gmra.mrb[0].mxu0 %v1759
      %v1798 = vpop.f32.mrb[0].mxu0
      %v1799 = vadd.f32 0.0, %v1798
      %v1800 = vpop.f32.mrb[0].mxu0
      %v1801 = vpop.f32.mrb[0].mxu0
      %v1802 = vpop.f32.mrb[0].mxu0
      %1803 = vdwg.mxu0
      %1804 = vrot.lane.b32.xlu0 %v534, 104
      %v1805 = vpop.permute.xlu0 %1804
      %1806 = vrot.lane.b32.xlu0 %v534, 72
      %v1807 = vpop.permute.xlu0 %1806
      %v1809 = vsel %vm538, %v1805, 0
      %v1812 = vsel %vm538, %v1807, 0
      %1814 = vmatprep.subr.bf16.mxu0 0
      %1815 = vmatpush1.bf16.xpose.msra.mxu0 %v1812
      %1816 = vmatprep.subr.bf16.mxu0 0
      %1817 = vmatpush1.bf16.xpose.msra.mxu0 0
      %1818 = vmatprep.subr.bf16.mxu0 0
      %1819 = vmatpush1.bf16.xpose.msra.mxu0 0
      %1820 = vmatprep.subr.bf16.mxu0 0
      %1821 = vmatpush1.bf16.xpose.msra.mxu0 0
      %1822 = vmatprep.subr.bf16.mxu0 0
      %1823 = vmatpush1.bf16.xpose.msra.mxu0 0
      %1824 = vmatprep.subr.bf16.mxu0 0
      %1825 = vmatpush1.bf16.xpose.msra.mxu0 0
      %1826 = vmatprep.subr.bf16.mxu0 0
      %1827 = vmatpush1.bf16.xpose.msra.mxu0 0
      %1828 = vmatprep.subr.bf16.mxu0 0
      %1829 = vmatpush1.bf16.xpose.msra.mxu0 0
      %1830 = vmatprep.subr.bf16.mxu0 0
      %1831 = vmatpush1.bf16.xpose.msra.mxu0 0
      %1832 = vmatprep.subr.bf16.mxu0 0
      %1833 = vmatpush1.bf16.xpose.msra.mxu0 0
      %1834 = vmatprep.subr.bf16.mxu0 0
      %1835 = vmatpush1.bf16.xpose.msra.mxu0 0
      %1836 = vmatprep.subr.bf16.mxu0 0
      %1837 = vmatpush1.bf16.xpose.msra.mxu0 0
      %1838 = vmatprep.subr.bf16.mxu0 0
      %1839 = vmatpush1.bf16.xpose.msra.mxu0 0
      %1840 = vmatprep.subr.bf16.mxu0 0
      %1841 = vmatpush1.bf16.xpose.msra.mxu0 0
      %1842 = vmatprep.subr.bf16.mxu0 0
      %1843 = vmatpush1.bf16.xpose.msra.mxu0 0
      %1844 = vmatprep.subr.bf16.mxu0 0
      %1845 = vmatpush1.bf16.xpose.msra.mxu0 0
      %1846 = vmatprep.mubr.bf16.mxu0 0
      %1847 = vmatmul.mubr.bf16.gmra.mrb[0].mxu0 %v1809
      %v1848 = vpop.f32.mrb[0].mxu0
      %v1849 = vadd.f32 0.0, %v1848
      %v1850 = vpop.f32.mrb[0].mxu0
      %v1851 = vpop.f32.mrb[0].mxu0
      %v1852 = vpop.f32.mrb[0].mxu0
      %1853 = vdwg.mxu0
      %v1854 = vsel %vm538, %v1749, -inf
      %1855 = vmax.xlane.f32.xlu0 %v1854
      %v1856 = vpop.xlane.xlu0 %1855
      %v1857 = vsel %vm538, %v1799, -inf
      %1858 = vmax.xlane.f32.xlu0 %v1857
      %v1859 = vpop.xlane.xlu0 %1858
      %v1860 = vsel %vm538, %v1849, -inf
      %1861 = vmax.xlane.f32.xlu0 %v1860
      %v1862 = vpop.xlane.xlu0 %1861
      %v1863 = vsub.f32 %v1749, %v1856
      %v1864 = vsub.f32 %v1799, %v1859
      %v1865 = vsub.f32 %v1849, %v1862
      %v1866 = vmul.f32 %v1863, 1.442695
      %v1867 = vpow.pop %v1866
      %v1868 = vmul.f32 %v1864, 1.442695
      %v1869 = vpow.pop %v1868
      %v1870 = vmul.f32 %v1865, 1.442695
      %v1871 = vpow.pop %v1870
      %v1872 = vsel %vm538, %v1867, 0.0
      %1873 = vadd.xlane.f32.xlu0 %v1872
      %v1874 = vpop.xlane.xlu0 %1873
      %v1875 = vsel %vm538, %v1869, 0.0
      %1876 = vadd.xlane.f32.xlu0 %v1875
      %v1877 = vpop.xlane.xlu0 %1876
      %v1878 = vsel %vm538, %v1871, 0.0
      %1879 = vadd.xlane.f32.xlu0 %v1878
      %v1880 = vpop.xlane.xlu0 %1879
      %v1881 = vrcp.pop %v1874
      %v1882 = vrcp.pop %v1877
      %v1883 = vrcp.pop %v1880
      %v1884 = vmul.f32 %v1867, %v1881
      %v1885 = vmul.f32 %v1869, %v1882
      %v1886 = vmul.f32 %v1871, %v1883
      %v1887 = vpack.c.bf16 %v1884, %v1884
      %v1888 = vpack.c.bf16 %v1885, %v1885
      %v1889 = vpack.c.bf16 %v1886, %v1886
      %1890 = vrot.lane.b32.xlu0 %v532, 40
      %v1891 = vpop.permute.xlu0 %1890
      %v1893 = vsel %vm538, %v1887, 0
      %v1896 = vsel %vm724, %v1891, 0
      %1898 = vmatprep.subr.bf16.mxu0 0
      %1899 = vmatpush1.bf16.msra.mxu0 %v1896
      %1900 = vmatprep.subr.bf16.mxu0 0
      %1901 = vmatpush1.bf16.msra.mxu0 0
      %1902 = vmatprep.subr.bf16.mxu0 0
      %1903 = vmatpush1.bf16.msra.mxu0 0
      %1904 = vmatprep.subr.bf16.mxu0 0
      %1905 = vmatpush1.bf16.msra.mxu0 0
      %1906 = vmatprep.subr.bf16.mxu0 0
      %1907 = vmatpush1.bf16.msra.mxu0 0
      %1908 = vmatprep.subr.bf16.mxu0 0
      %1909 = vmatpush1.bf16.msra.mxu0 0
      %1910 = vmatprep.subr.bf16.mxu0 0
      %1911 = vmatpush1.bf16.msra.mxu0 0
      %1912 = vmatprep.subr.bf16.mxu0 0
      %1913 = vmatpush1.bf16.msra.mxu0 0
      %1914 = vmatprep.subr.bf16.mxu0 0
      %1915 = vmatpush1.bf16.msra.mxu0 0
      %1916 = vmatprep.subr.bf16.mxu0 0
      %1917 = vmatpush1.bf16.msra.mxu0 0
      %1918 = vmatprep.subr.bf16.mxu0 0
      %1919 = vmatpush1.bf16.msra.mxu0 0
      %1920 = vmatprep.subr.bf16.mxu0 0
      %1921 = vmatpush1.bf16.msra.mxu0 0
      %1922 = vmatprep.subr.bf16.mxu0 0
      %1923 = vmatpush1.bf16.msra.mxu0 0
      %1924 = vmatprep.subr.bf16.mxu0 0
      %1925 = vmatpush1.bf16.msra.mxu0 0
      %1926 = vmatprep.subr.bf16.mxu0 0
      %1927 = vmatpush1.bf16.msra.mxu0 0
      %1928 = vmatprep.subr.bf16.mxu0 0
      %1929 = vmatpush1.bf16.msra.mxu0 0
      %1930 = vmatprep.mubr.bf16.mxu0 0
      %1931 = vmatmul.mubr.bf16.gmra.mrb[0].mxu0 %v1893
      %v1932 = vpop.f32.mrb[0].mxu0
      %v1933 = vadd.f32 0.0, %v1932
      %v1934 = vpop.f32.mrb[0].mxu0
      %v1935 = vpop.f32.mrb[0].mxu0
      %v1936 = vpop.f32.mrb[0].mxu0
      %1937 = vdwg.mxu0
      %1938 = vrot.lane.b32.xlu0 %v533, 40
      %v1939 = vpop.permute.xlu0 %1938
      %v1941 = vsel %vm538, %v1888, 0
      %v1944 = vsel %vm724, %v1939, 0
      %1946 = vmatprep.subr.bf16.mxu0 0
      %1947 = vmatpush1.bf16.msra.mxu0 %v1944
      %1948 = vmatprep.subr.bf16.mxu0 0
      %1949 = vmatpush1.bf16.msra.mxu0 0
      %1950 = vmatprep.subr.bf16.mxu0 0
      %1951 = vmatpush1.bf16.msra.mxu0 0
      %1952 = vmatprep.subr.bf16.mxu0 0
      %1953 = vmatpush1.bf16.msra.mxu0 0
      %1954 = vmatprep.subr.bf16.mxu0 0
      %1955 = vmatpush1.bf16.msra.mxu0 0
      %1956 = vmatprep.subr.bf16.mxu0 0
      %1957 = vmatpush1.bf16.msra.mxu0 0
      %1958 = vmatprep.subr.bf16.mxu0 0
      %1959 = vmatpush1.bf16.msra.mxu0 0
      %1960 = vmatprep.subr.bf16.mxu0 0
      %1961 = vmatpush1.bf16.msra.mxu0 0
      %1962 = vmatprep.subr.bf16.mxu0 0
      %1963 = vmatpush1.bf16.msra.mxu0 0
      %1964 = vmatprep.subr.bf16.mxu0 0
      %1965 = vmatpush1.bf16.msra.mxu0 0
      %1966 = vmatprep.subr.bf16.mxu0 0
      %1967 = vmatpush1.bf16.msra.mxu0 0
      %1968 = vmatprep.subr.bf16.mxu0 0
      %1969 = vmatpush1.bf16.msra.mxu0 0
      %1970 = vmatprep.subr.bf16.mxu0 0
      %1971 = vmatpush1.bf16.msra.mxu0 0
      %1972 = vmatprep.subr.bf16.mxu0 0
      %1973 = vmatpush1.bf16.msra.mxu0 0
      %1974 = vmatprep.subr.bf16.mxu0 0
      %1975 = vmatpush1.bf16.msra.mxu0 0
      %1976 = vmatprep.subr.bf16.mxu0 0
      %1977 = vmatpush1.bf16.msra.mxu0 0
      %1978 = vmatprep.mubr.bf16.mxu0 0
      %1979 = vmatmul.mubr.bf16.gmra.mrb[0].mxu0 %v1941
      %v1980 = vpop.f32.mrb[0].mxu0
      %v1981 = vadd.f32 0.0, %v1980
      %v1982 = vpop.f32.mrb[0].mxu0
      %v1983 = vpop.f32.mrb[0].mxu0
      %v1984 = vpop.f32.mrb[0].mxu0
      %1985 = vdwg.mxu0
      %1986 = vrot.lane.b32.xlu0 %v534, 40
      %v1987 = vpop.permute.xlu0 %1986
      %v1989 = vsel %vm538, %v1889, 0
      %v1992 = vsel %vm724, %v1987, 0
      %1994 = vmatprep.subr.bf16.mxu0 0
      %1995 = vmatpush1.bf16.msra.mxu0 %v1992
      %1996 = vmatprep.subr.bf16.mxu0 0
      %1997 = vmatpush1.bf16.msra.mxu0 0
      %1998 = vmatprep.subr.bf16.mxu0 0
      %1999 = vmatpush1.bf16.msra.mxu0 0
      %2000 = vmatprep.subr.bf16.mxu0 0
      %2001 = vmatpush1.bf16.msra.mxu0 0
      %2002 = vmatprep.subr.bf16.mxu0 0
      %2003 = vmatpush1.bf16.msra.mxu0 0
      %2004 = vmatprep.subr.bf16.mxu0 0
      %2005 = vmatpush1.bf16.msra.mxu0 0
      %2006 = vmatprep.subr.bf16.mxu0 0
      %2007 = vmatpush1.bf16.msra.mxu0 0
      %2008 = vmatprep.subr.bf16.mxu0 0
      %2009 = vmatpush1.bf16.msra.mxu0 0
      %2010 = vmatprep.subr.bf16.mxu0 0
      %2011 = vmatpush1.bf16.msra.mxu0 0
      %2012 = vmatprep.subr.bf16.mxu0 0
      %2013 = vmatpush1.bf16.msra.mxu0 0
      %2014 = vmatprep.subr.bf16.mxu0 0
      %2015 = vmatpush1.bf16.msra.mxu0 0
      %2016 = vmatprep.subr.bf16.mxu0 0
      %2017 = vmatpush1.bf16.msra.mxu0 0
      %2018 = vmatprep.subr.bf16.mxu0 0
      %2019 = vmatpush1.bf16.msra.mxu0 0
      %2020 = vmatprep.subr.bf16.mxu0 0
      %2021 = vmatpush1.bf16.msra.mxu0 0
      %2022 = vmatprep.subr.bf16.mxu0 0
      %2023 = vmatpush1.bf16.msra.mxu0 0
      %2024 = vmatprep.subr.bf16.mxu0 0
      %2025 = vmatpush1.bf16.msra.mxu0 0
      %2026 = vmatprep.mubr.bf16.mxu0 0
      %2027 = vmatmul.mubr.bf16.gmra.mrb[0].mxu0 %v1989
      %v2028 = vpop.f32.mrb[0].mxu0
      %v2029 = vadd.f32 0.0, %v2028
      %v2030 = vpop.f32.mrb[0].mxu0
      %v2031 = vpop.f32.mrb[0].mxu0
      %v2032 = vpop.f32.mrb[0].mxu0
      %2033 = vdwg.mxu0
      %v2034 = vpack.c.bf16 %v1981, %v1933
      %v2035 = vpack.c.bf16 %v2029, %v2029
      %v2037 = vsel %vm538, %v2034, 0
      %v2040 = vsel %vm538, %v2035, 0
      %v2043 = vsel %vm724, %v531, 0
      %2045 = vmatprep.subr.bf16.mxu0 0
      %2046 = vmatpush1.bf16.msra.mxu0 %v2043
      %2047 = vmatprep.subr.bf16.mxu0 0
      %2048 = vmatpush1.bf16.msra.mxu0 0
      %2049 = vmatprep.subr.bf16.mxu0 0
      %2050 = vmatpush1.bf16.msra.mxu0 0
      %2051 = vmatprep.subr.bf16.mxu0 0
      %2052 = vmatpush1.bf16.msra.mxu0 0
      %2053 = vmatprep.subr.bf16.mxu0 0
      %2054 = vmatpush1.bf16.msra.mxu0 0
      %2055 = vmatprep.subr.bf16.mxu0 0
      %2056 = vmatpush1.bf16.msra.mxu0 0
      %2057 = vmatprep.subr.bf16.mxu0 0
      %2058 = vmatpush1.bf16.msra.mxu0 0
      %2059 = vmatprep.subr.bf16.mxu0 0
      %2060 = vmatpush1.bf16.msra.mxu0 0
      %2061 = vmatprep.subr.bf16.mxu0 0
      %2062 = vmatpush1.bf16.msra.mxu0 0
      %2063 = vmatprep.subr.bf16.mxu0 0
      %2064 = vmatpush1.bf16.msra.mxu0 0
      %2065 = vmatprep.subr.bf16.mxu0 0
      %2066 = vmatpush1.bf16.msra.mxu0 0
      %2067 = vmatprep.subr.bf16.mxu0 0
      %2068 = vmatpush1.bf16.msra.mxu0 0
      %2069 = vmatprep.subr.bf16.mxu0 0
      %2070 = vmatpush1.bf16.msra.mxu0 0
      %2071 = vmatprep.subr.bf16.mxu0 0
      %2072 = vmatpush1.bf16.msra.mxu0 0
      %2073 = vmatprep.subr.bf16.mxu0 0
      %2074 = vmatpush1.bf16.msra.mxu0 0
      %2075 = vmatprep.subr.bf16.mxu0 0
      %2076 = vmatpush1.bf16.msra.mxu0 0
      %2077 = vmatprep.mubr.bf16.mxu0 0
      %2078 = vmatmul.mubr.bf16.gmra.mrb[0].mxu0 %v2037
      %v2079 = vpop.f32.mrb[0].mxu0
      %v2080 = vadd.f32 0.0, %v2079
      %v2081 = vpop.f32.mrb[0].mxu0
      %v2082 = vpop.f32.mrb[0].mxu0
      %v2083 = vadd.f32 0.0, %v2082
      %v2084 = vpop.f32.mrb[0].mxu0
      %2085 = vmatprep.mubr.bf16.mxu0 0
      %2086 = vmatmul.mubr.bf16.gmra.mrb[0].mxu0 %v2040
      %v2087 = vpop.f32.mrb[0].mxu0
      %v2088 = vadd.f32 0.0, %v2087
      %v2089 = vpop.f32.mrb[0].mxu0
      %v2090 = vpop.f32.mrb[0].mxu0
      %v2091 = vpop.f32.mrb[0].mxu0
      %2092 = vdwg.mxu0
      %v2093 = vadd.f32 %v1701, %v2080
      %v2094 = vadd.f32 %v1702, %v2083
      %v2095 = vadd.f32 %v1703, %v2088
      %v2096 = vld [vmem:[%s4] sm:$0x1]
      %v2098 = vlaneseq
      %v2099 = vshrl.u32 %v2098, 7
      %v2100 = vsub.s32 0, %v2099
      %v2101 = vrot.slane %v2096, %v2100
      %v2103 = vadd.f32 %v2093, %v2101
      %v2104 = vadd.f32 %v2094, %v2101
      %v2105 = vadd.f32 %v2095, %v2101
      %v2106 = vadd.f32 %v445, %v2103
      %v2107 = vadd.f32 %v446, %v2104
      %v2108 = vadd.f32 %v447, %v2105
      %v2109 = vld [vmem:[%s5] sm:$0x1]
      %v2110 = vld [vmem:[%s6] sm:$0x1]
      %v2111 = vsel %vm473, %v2106, 0.0
      %2112 = vadd.xlane.f32.xlu0 %v2111
      %v2113 = vpop.xlane.xlu0 %2112
      %v2114 = vsel %vm473, %v2107, 0.0
      %2115 = vadd.xlane.f32.xlu0 %v2114
      %v2116 = vpop.xlane.xlu0 %2115
      %v2117 = vsel %vm473, %v2108, 0.0
      %2118 = vadd.xlane.f32.xlu0 %v2117
      %v2119 = vpop.xlane.xlu0 %2118
      %v2120 = vrcp.pop 32.0
      %v2121 = vmul.f32 %v2113, %v2120
      %v2122 = vmul.f32 %v2116, %v2120
      %v2123 = vmul.f32 %v2119, %v2120
      %v2124 = vsub.f32 %v2106, %v2121
      %v2125 = vsub.f32 %v2107, %v2122
      %v2126 = vsub.f32 %v2108, %v2123
      %v2127 = vmul.f32 %v2124, %v2124
      %v2128 = vmul.f32 %v2125, %v2125
      %v2129 = vmul.f32 %v2126, %v2126
      %v2130 = vsel %vm473, %v2127, 0.0
      %2131 = vadd.xlane.f32.xlu0 %v2130
      %v2132 = vpop.xlane.xlu0 %2131
      %v2133 = vsel %vm473, %v2128, 0.0
      %2134 = vadd.xlane.f32.xlu0 %v2133
      %v2135 = vpop.xlane.xlu0 %2134
      %v2136 = vsel %vm473, %v2129, 0.0
      %2137 = vadd.xlane.f32.xlu0 %v2136
      %v2138 = vpop.xlane.xlu0 %2137
      %v2139 = vmul.f32 %v2132, %v2120
      %v2140 = vmul.f32 %v2135, %v2120
      %v2141 = vmul.f32 %v2138, %v2120
      %v2142 = vadd.f32 %v2139, 1e-05
      %v2143 = vadd.f32 %v2140, 1e-05
      %v2144 = vadd.f32 %v2141, 1e-05
      %v2145 = vrsqrt.pop %v2142
      %v2146 = vrsqrt.pop %v2143
      %v2147 = vrsqrt.pop %v2144
      %v2148 = vmul.f32 %v2124, %v2145
      %v2149 = vmul.f32 %v2125, %v2146
      %v2150 = vmul.f32 %v2126, %v2147
      %v2152 = vlaneseq
      %v2153 = vshrl.u32 %v2152, 7
      %v2154 = vsub.s32 0, %v2153
      %v2155 = vrot.slane %v2109, %v2154
      %v2157 = vmul.f32 %v2148, %v2155
      %v2158 = vmul.f32 %v2149, %v2155
      %v2159 = vmul.f32 %v2150, %v2155
      %v2161 = vlaneseq
      %v2162 = vshrl.u32 %v2161, 7
      %v2163 = vsub.s32 0, %v2162
      %v2164 = vrot.slane %v2110, %v2163
      %v2166 = vadd.f32 %v2157, %v2164
      %v2167 = vadd.f32 %v2158, %v2164
      %v2168 = vadd.f32 %v2159, %v2164
      %v2169 = vpack.c.bf16 %v2167, %v2166
      %v2170 = vpack.c.bf16 %v2168, %v2168
      %v2171 = vld [vmem:[%s7] sm:$0xf]
      %v2172 = vld [vmem:[%s7 + $0x4] sm:$0xf]
      %v2173 = vld [vmem:[%s7 + $0x8] sm:$0xf]
      %v2174 = vld [vmem:[%s7 + $0xc] sm:$0xf]
      %v2175 = vld [vmem:[%s8] sm:$0x1]
      %v2177 = vlaneseq
      %v2178 = vshrl.u32 %v2177, 7
      %v2179 = vsub.s32 0, %v2178
      %v2180 = vrot.slane %v2175, %v2179
      %v2186 = vunpack.c.l.b16 %v2171
      %v2187 = vunpack.c.l.b16 %v2172
      %v2188 = vunpack.c.l.b16 %v2173
      %v2189 = vunpack.c.l.b16 %v2174
      %v2190 = vpack.c.b16 %v2187, %v2186
      %v2191 = vpack.c.b16 %v2189, %v2188
      %v2195 = vsel %vm473, %v2169, 0
      %v2198 = vsel %vm473, %v2170, 0
      %2200 = vmatprep.subr.bf16.mxu0 0
      %2201 = vmatpush1.bf16.msra.mxu0 %v2190
      %2202 = vmatprep.subr.bf16.mxu0 0
      %2203 = vmatpush1.bf16.msra.mxu0 %v2191
      %2204 = vmatprep.subr.bf16.mxu0 0
      %2205 = vmatpush1.bf16.msra.mxu0 0
      %2206 = vmatprep.subr.bf16.mxu0 0
      %2207 = vmatpush1.bf16.msra.mxu0 0
      %2208 = vmatprep.subr.bf16.mxu0 0
      %2209 = vmatpush1.bf16.msra.mxu0 0
      %2210 = vmatprep.subr.bf16.mxu0 0
      %2211 = vmatpush1.bf16.msra.mxu0 0
      %2212 = vmatprep.subr.bf16.mxu0 0
      %2213 = vmatpush1.bf16.msra.mxu0 0
      %2214 = vmatprep.subr.bf16.mxu0 0
      %2215 = vmatpush1.bf16.msra.mxu0 0
      %2216 = vmatprep.subr.bf16.mxu0 0
      %2217 = vmatpush1.bf16.msra.mxu0 0
      %2218 = vmatprep.subr.bf16.mxu0 0
      %2219 = vmatpush1.bf16.msra.mxu0 0
      %2220 = vmatprep.subr.bf16.mxu0 0
      %2221 = vmatpush1.bf16.msra.mxu0 0
      %2222 = vmatprep.subr.bf16.mxu0 0
      %2223 = vmatpush1.bf16.msra.mxu0 0
      %2224 = vmatprep.subr.bf16.mxu0 0
      %2225 = vmatpush1.bf16.msra.mxu0 0
      %2226 = vmatprep.subr.bf16.mxu0 0
      %2227 = vmatpush1.bf16.msra.mxu0 0
      %2228 = vmatprep.subr.bf16.mxu0 0
      %2229 = vmatpush1.bf16.msra.mxu0 0
      %2230 = vmatprep.subr.bf16.mxu0 0
      %2231 = vmatpush1.bf16.msra.mxu0 0
      %2232 = vmatprep.mubr.bf16.mxu0 0
      %2233 = vmatmul.mubr.bf16.gmra.mrb[0].mxu0 %v2195
      %v2234 = vpop.f32.mrb[0].mxu0
      %v2235 = vadd.f32 %v2180, %v2234
      %v2236 = vpop.f32.mrb[0].mxu0
      %v2237 = vpop.f32.mrb[0].mxu0
      %v2238 = vadd.f32 %v2180, %v2237
      %v2239 = vpop.f32.mrb[0].mxu0
      %2240 = vmatprep.mubr.bf16.mxu0 0
      %2241 = vmatmul.mubr.bf16.gmra.mrb[0].mxu0 %v2198
      %v2242 = vpop.f32.mrb[0].mxu0
      %v2243 = vadd.f32 %v2180, %v2242
      %v2244 = vpop.f32.mrb[0].mxu0
      %v2245 = vpop.f32.mrb[0].mxu0
      %v2246 = vpop.f32.mrb[0].mxu0
      %2247 = vdwg.mxu0
      %v2248 = vmax.f32 %v2235, 0.0
      %v2249 = vmax.f32 %v2238, 0.0
      %v2250 = vmax.f32 %v2243, 0.0
      %v2251 = vpack.c.bf16 %v2249, %v2248
      %v2252 = vpack.c.bf16 %v2250, %v2250
      %v2253 = vld [vmem:[%s9] sm:$0xf]
      %v2254 = vld [vmem:[%s9 + $0x4] sm:$0xf]
      %v2255 = vld [vmem:[%s9 + $0x8] sm:$0xf]
      %v2256 = vld [vmem:[%s9 + $0xc] sm:$0xf]
      %v2257 = vld [vmem:[%s9 + $0x10] sm:$0xf]
      %v2258 = vld [vmem:[%s9 + $0x14] sm:$0xf]
      %v2259 = vld [vmem:[%s9 + $0x18] sm:$0xf]
      %v2260 = vld [vmem:[%s9 + $0x1c] sm:$0xf]
      %v2261 = vld [vmem:[%s9 + $0x20] sm:$0xf]
      %v2262 = vld [vmem:[%s9 + $0x24] sm:$0xf]
      %v2263 = vld [vmem:[%s9 + $0x28] sm:$0xf]
      %v2264 = vld [vmem:[%s9 + $0x2c] sm:$0xf]
      %v2265 = vld [vmem:[%s9 + $0x30] sm:$0xf]
      %v2266 = vld [vmem:[%s9 + $0x34] sm:$0xf]
      %v2267 = vld [vmem:[%s9 + $0x38] sm:$0xf]
      %v2268 = vld [vmem:[%s9 + $0x3c] sm:$0xf]
      %v2269 = vld [vmem:[%s10] sm:$0x1]
      %v2271 = vlaneseq
      %v2272 = vshrl.u32 %v2271, 7
      %v2273 = vsub.s32 0, %v2272
      %v2274 = vrot.slane %v2269, %v2273
      %v2292 = vunpack.c.l.b16 %v2253
      %v2293 = vunpack.c.l.b16 %v2254
      %v2294 = vunpack.c.l.b16 %v2255
      %v2295 = vunpack.c.l.b16 %v2256
      %v2296 = vunpack.c.l.b16 %v2257
      %v2297 = vunpack.c.l.b16 %v2258
      %v2298 = vunpack.c.l.b16 %v2259
      %v2299 = vunpack.c.l.b16 %v2260
      %v2300 = vunpack.c.l.b16 %v2261
      %v2301 = vunpack.c.l.b16 %v2262
      %v2302 = vunpack.c.l.b16 %v2263
      %v2303 = vunpack.c.l.b16 %v2264
      %v2304 = vunpack.c.l.b16 %v2265
      %v2305 = vunpack.c.l.b16 %v2266
      %v2306 = vunpack.c.l.b16 %v2267
      %v2307 = vunpack.c.l.b16 %v2268
      %v2308 = vpack.c.b16 %v2293, %v2292
      %v2309 = vpack.c.b16 %v2295, %v2294
      %v2310 = vpack.c.b16 %v2297, %v2296
      %v2311 = vpack.c.b16 %v2299, %v2298
      %v2312 = vpack.c.b16 %v2301, %v2300
      %v2313 = vpack.c.b16 %v2303, %v2302
      %v2314 = vpack.c.b16 %v2305, %v2304
      %v2315 = vpack.c.b16 %v2307, %v2306
      %2324 = vmatprep.subr.bf16.mxu0 0
      %2325 = vmatpush1.bf16.msra.mxu0 %v2308
      %2326 = vmatprep.subr.bf16.mxu0 0
      %2327 = vmatpush1.bf16.msra.mxu0 %v2309
      %2328 = vmatprep.subr.bf16.mxu0 0
      %2329 = vmatpush1.bf16.msra.mxu0 %v2310
      %2330 = vmatprep.subr.bf16.mxu0 0
      %2331 = vmatpush1.bf16.msra.mxu0 %v2311
      %2332 = vmatprep.subr.bf16.mxu0 0
      %2333 = vmatpush1.bf16.msra.mxu0 %v2312
      %2334 = vmatprep.subr.bf16.mxu0 0
      %2335 = vmatpush1.bf16.msra.mxu0 %v2313
      %2336 = vmatprep.subr.bf16.mxu0 0
      %2337 = vmatpush1.bf16.msra.mxu0 %v2314
      %2338 = vmatprep.subr.bf16.mxu0 0
      %2339 = vmatpush1.bf16.msra.mxu0 %v2315
      %2340 = vmatprep.subr.bf16.mxu0 0
      %2341 = vmatpush1.bf16.msra.mxu0 0
      %2342 = vmatprep.subr.bf16.mxu0 0
      %2343 = vmatpush1.bf16.msra.mxu0 0
      %2344 = vmatprep.subr.bf16.mxu0 0
      %2345 = vmatpush1.bf16.msra.mxu0 0
      %2346 = vmatprep.subr.bf16.mxu0 0
      %2347 = vmatpush1.bf16.msra.mxu0 0
      %2348 = vmatprep.subr.bf16.mxu0 0
      %2349 = vmatpush1.bf16.msra.mxu0 0
      %2350 = vmatprep.subr.bf16.mxu0 0
      %2351 = vmatpush1.bf16.msra.mxu0 0
      %2352 = vmatprep.subr.bf16.mxu0 0
      %2353 = vmatpush1.bf16.msra.mxu0 0
      %2354 = vmatprep.subr.bf16.mxu0 0
      %2355 = vmatpush1.bf16.msra.mxu0 0
      %2356 = vmatprep.mubr.bf16.mxu0 0
      %2357 = vmatmul.mubr.bf16.gmra.mrb[0].mxu0 %v2251
      %v2358 = vpop.f32.mrb[0].mxu0
      %v2359 = vadd.f32 %v2274, %v2358
      %v2360 = vpop.f32.mrb[0].mxu0
      %v2361 = vpop.f32.mrb[0].mxu0
      %v2362 = vadd.f32 %v2274, %v2361
      %v2363 = vpop.f32.mrb[0].mxu0
      %2364 = vmatprep.mubr.bf16.mxu0 0
      %2365 = vmatmul.mubr.bf16.gmra.mrb[0].mxu0 %v2252
      %v2366 = vpop.f32.mrb[0].mxu0
      %v2367 = vadd.f32 %v2274, %v2366
      %v2368 = vpop.f32.mrb[0].mxu0
      %v2369 = vpop.f32.mrb[0].mxu0
      %v2370 = vpop.f32.mrb[0].mxu0
      %2371 = vdwg.mxu0
      %v2372 = vadd.f32 %v2166, %v2359
      %v2373 = vadd.f32 %v2167, %v2362
      %v2374 = vadd.f32 %v2168, %v2367
      %v2375 = vld [vmem:[%s11] sm:$0x1]
      %v2376 = vld [vmem:[%s12] sm:$0x1]
      %v2377 = vsel %vm473, %v2372, 0.0
      %2378 = vadd.xlane.f32.xlu0 %v2377
      %v2379 = vpop.xlane.xlu0 %2378
      %v2380 = vsel %vm473, %v2373, 0.0
      %2381 = vadd.xlane.f32.xlu0 %v2380
      %v2382 = vpop.xlane.xlu0 %2381
      %v2383 = vsel %vm473, %v2374, 0.0
      %2384 = vadd.xlane.f32.xlu0 %v2383
      %v2385 = vpop.xlane.xlu0 %2384
      %v2386 = vmul.f32 %v2379, %v2120
      %v2387 = vmul.f32 %v2382, %v2120
      %v2388 = vmul.f32 %v2385, %v2120
      %v2389 = vsub.f32 %v2372, %v2386
      %v2390 = vsub.f32 %v2373, %v2387
      %v2391 = vsub.f32 %v2374, %v2388
      %v2392 = vmul.f32 %v2389, %v2389
      %v2393 = vmul.f32 %v2390, %v2390
      %v2394 = vmul.f32 %v2391, %v2391
      %v2395 = vsel %vm473, %v2392, 0.0
      %2396 = vadd.xlane.f32.xlu0 %v2395
      %v2397 = vpop.xlane.xlu0 %2396
      %v2398 = vsel %vm473, %v2393, 0.0
      %2399 = vadd.xlane.f32.xlu0 %v2398
      %v2400 = vpop.xlane.xlu0 %2399
      %v2401 = vsel %vm473, %v2394, 0.0
      %2402 = vadd.xlane.f32.xlu0 %v2401
      %v2403 = vpop.xlane.xlu0 %2402
      %v2404 = vmul.f32 %v2397, %v2120
      %v2405 = vmul.f32 %v2400, %v2120
      %v2406 = vmul.f32 %v2403, %v2120
      %v2407 = vadd.f32 %v2404, 1e-05
      %v2408 = vadd.f32 %v2405, 1e-05
      %v2409 = vadd.f32 %v2406, 1e-05
      %v2410 = vrsqrt.pop %v2407
      %v2411 = vrsqrt.pop %v2408
      %v2412 = vrsqrt.pop %v2409
      %v2413 = vmul.f32 %v2389, %v2410
      %v2414 = vmul.f32 %v2390, %v2411
      %v2415 = vmul.f32 %v2391, %v2412
      %v2417 = vlaneseq
      %v2418 = vshrl.u32 %v2417, 7
      %v2419 = vsub.s32 0, %v2418
      %v2420 = vrot.slane %v2375, %v2419
      %v2422 = vmul.f32 %v2413, %v2420
      %v2423 = vmul.f32 %v2414, %v2420
      %v2424 = vmul.f32 %v2415, %v2420
      %v2426 = vlaneseq
      %v2427 = vshrl.u32 %v2426, 7
      %v2428 = vsub.s32 0, %v2427
      %v2429 = vrot.slane %v2376, %v2428
      %v2431 = vadd.f32 %v2422, %v2429
      %v2432 = vadd.f32 %v2423, %v2429
      %v2433 = vadd.f32 %v2424, %v2429
      %v2434 = vpack.c.bf16 %v2432, %v2431
      %v2435 = vpack.c.bf16 %v2433, %v2433
      %s2436 = scalar_lea.vmem %s1, 16
      %v2437 = vld [vmem:[%s2436] sm:$0xf]
      %v2438 = vld [vmem:[%s2436 + $0x4] sm:$0xf]
      %v2439 = vld [vmem:[%s2436 + $0x8] sm:$0xf]
      %v2440 = vld [vmem:[%s2436 + $0xc] sm:$0xf]
      %s2441 = scalar_lea.vmem %s2, 1
      %v2442 = vld [vmem:[%s2441] sm:$0x1]
      %v2444 = vlaneseq
      %v2445 = vshrl.u32 %v2444, 7
      %v2446 = vsub.s32 0, %v2445
      %v2447 = vrot.slane %v2442, %v2446
      %v2453 = vunpack.c.l.b16 %v2437
      %v2454 = vunpack.c.l.b16 %v2438
      %v2455 = vunpack.c.l.b16 %v2439
      %v2456 = vunpack.c.l.b16 %v2440
      %v2457 = vpack.c.b16 %v2454, %v2453
      %v2458 = vpack.c.b16 %v2456, %v2455
      %v2462 = vsel %vm473, %v2434, 0
      %v2465 = vsel %vm473, %v2435, 0
      %2467 = vmatprep.subr.bf16.mxu0 0
      %2468 = vmatpush1.bf16.msra.mxu0 %v2457
      %2469 = vmatprep.subr.bf16.mxu0 0
      %2470 = vmatpush1.bf16.msra.mxu0 %v2458
      %2471 = vmatprep.subr.bf16.mxu0 0
      %2472 = vmatpush1.bf16.msra.mxu0 0
      %2473 = vmatprep.subr.bf16.mxu0 0
      %2474 = vmatpush1.bf16.msra.mxu0 0
      %2475 = vmatprep.subr.bf16.mxu0 0
      %2476 = vmatpush1.bf16.msra.mxu0 0
      %2477 = vmatprep.subr.bf16.mxu0 0
      %2478 = vmatpush1.bf16.msra.mxu0 0
      %2479 = vmatprep.subr.bf16.mxu0 0
      %2480 = vmatpush1.bf16.msra.mxu0 0
      %2481 = vmatprep.subr.bf16.mxu0 0
      %2482 = vmatpush1.bf16.msra.mxu0 0
      %2483 = vmatprep.subr.bf16.mxu0 0
      %2484 = vmatpush1.bf16.msra.mxu0 0
      %2485 = vmatprep.subr.bf16.mxu0 0
      %2486 = vmatpush1.bf16.msra.mxu0 0
      %2487 = vmatprep.subr.bf16.mxu0 0
      %2488 = vmatpush1.bf16.msra.mxu0 0
      %2489 = vmatprep.subr.bf16.mxu0 0
      %2490 = vmatpush1.bf16.msra.mxu0 0
      %2491 = vmatprep.subr.bf16.mxu0 0
      %2492 = vmatpush1.bf16.msra.mxu0 0
      %2493 = vmatprep.subr.bf16.mxu0 0
      %2494 = vmatpush1.bf16.msra.mxu0 0
      %2495 = vmatprep.subr.bf16.mxu0 0
      %2496 = vmatpush1.bf16.msra.mxu0 0
      %2497 = vmatprep.subr.bf16.mxu0 0
      %2498 = vmatpush1.bf16.msra.mxu0 0
      %2499 = vmatprep.mubr.bf16.mxu0 0
      %2500 = vmatmul.mubr.bf16.gmra.mrb[0].mxu0 %v2462
      %v2501 = vpop.f32.mrb[0].mxu0
      %v2502 = vadd.f32 %v2447, %v2501
      %v2503 = vpop.f32.mrb[0].mxu0
      %v2504 = vpop.f32.mrb[0].mxu0
      %v2505 = vadd.f32 %v2447, %v2504
      %v2506 = vpop.f32.mrb[0].mxu0
      %2507 = vmatprep.mubr.bf16.mxu0 0
      %2508 = vmatmul.mubr.bf16.gmra.mrb[0].mxu0 %v2465
      %v2509 = vpop.f32.mrb[0].mxu0
      %v2510 = vadd.f32 %v2447, %v2509
      %v2511 = vpop.f32.mrb[0].mxu0
      %v2512 = vpop.f32.mrb[0].mxu0
      %v2513 = vpop.f32.mrb[0].mxu0
      %2514 = vdwg.mxu0
      %s2515 = scalar_lea.vmem %s3, 16
      %v2516 = vld [vmem:[%s2515] sm:$0xf]
      %v2517 = vld [vmem:[%s2515 + $0x4] sm:$0xf]
      %v2518 = vld [vmem:[%s2515 + $0x8] sm:$0xf]
      %v2519 = vld [vmem:[%s2515 + $0xc] sm:$0xf]
      %v2520 = vpack.c.bf16 %v2502, %v2502
      %v2521 = vpack.c.bf16 %v2505, %v2505
      %v2522 = vpack.c.bf16 %v2510, %v2510
      %2524 = vrot.lane.b32.xlu0 %v2520, 96
      %v2525 = vpop.permute.xlu0 %2524
      %v2527 = vsel %vm538, %v2520, 0
      %v2530 = vsel %vm538, %v2525, 0
      %2532 = vmatprep.subr.bf16.mxu0 0
      %2533 = vmatpush1.bf16.xpose.msra.mxu0 %v2530
      %2534 = vmatprep.subr.bf16.mxu0 0
      %2535 = vmatpush1.bf16.xpose.msra.mxu0 0
      %2536 = vmatprep.subr.bf16.mxu0 0
      %2537 = vmatpush1.bf16.xpose.msra.mxu0 0
      %2538 = vmatprep.subr.bf16.mxu0 0
      %2539 = vmatpush1.bf16.xpose.msra.mxu0 0
      %2540 = vmatprep.subr.bf16.mxu0 0
      %2541 = vmatpush1.bf16.xpose.msra.mxu0 0
      %2542 = vmatprep.subr.bf16.mxu0 0
      %2543 = vmatpush1.bf16.xpose.msra.mxu0 0
      %2544 = vmatprep.subr.bf16.mxu0 0
      %2545 = vmatpush1.bf16.xpose.msra.mxu0 0
      %2546 = vmatprep.subr.bf16.mxu0 0
      %2547 = vmatpush1.bf16.xpose.msra.mxu0 0
      %2548 = vmatprep.subr.bf16.mxu0 0
      %2549 = vmatpush1.bf16.xpose.msra.mxu0 0
      %2550 = vmatprep.subr.bf16.mxu0 0
      %2551 = vmatpush1.bf16.xpose.msra.mxu0 0
      %2552 = vmatprep.subr.bf16.mxu0 0
      %2553 = vmatpush1.bf16.xpose.msra.mxu0 0
      %2554 = vmatprep.subr.bf16.mxu0 0
      %2555 = vmatpush1.bf16.xpose.msra.mxu0 0
      %2556 = vmatprep.subr.bf16.mxu0 0
      %2557 = vmatpush1.bf16.xpose.msra.mxu0 0
      %2558 = vmatprep.subr.bf16.mxu0 0
      %2559 = vmatpush1.bf16.xpose.msra.mxu0 0
      %2560 = vmatprep.subr.bf16.mxu0 0
      %2561 = vmatpush1.bf16.xpose.msra.mxu0 0
      %2562 = vmatprep.subr.bf16.mxu0 0
      %2563 = vmatpush1.bf16.xpose.msra.mxu0 0
      %2564 = vmatprep.mubr.bf16.mxu0 0
      %2565 = vmatmul.mubr.bf16.gmra.mrb[0].mxu0 %v2527
      %v2566 = vpop.f32.mrb[0].mxu0
      %v2567 = vadd.f32 0.0, %v2566
      %v2568 = vpop.f32.mrb[0].mxu0
      %v2569 = vpop.f32.mrb[0].mxu0
      %v2570 = vpop.f32.mrb[0].mxu0
      %2571 = vdwg.mxu0
      %2573 = vrot.lane.b32.xlu0 %v2521, 96
      %v2574 = vpop.permute.xlu0 %2573
      %v2576 = vsel %vm538, %v2521, 0
      %v2579 = vsel %vm538, %v2574, 0
      %2581 = vmatprep.subr.bf16.mxu0 0
      %2582 = vmatpush1.bf16.xpose.msra.mxu0 %v2579
      %2583 = vmatprep.subr.bf16.mxu0 0
      %2584 = vmatpush1.bf16.xpose.msra.mxu0 0
      %2585 = vmatprep.subr.bf16.mxu0 0
      %2586 = vmatpush1.bf16.xpose.msra.mxu0 0
      %2587 = vmatprep.subr.bf16.mxu0 0
      %2588 = vmatpush1.bf16.xpose.msra.mxu0 0
      %2589 = vmatprep.subr.bf16.mxu0 0
      %2590 = vmatpush1.bf16.xpose.msra.mxu0 0
      %2591 = vmatprep.subr.bf16.mxu0 0
      %2592 = vmatpush1.bf16.xpose.msra.mxu0 0
      %2593 = vmatprep.subr.bf16.mxu0 0
      %2594 = vmatpush1.bf16.xpose.msra.mxu0 0
      %2595 = vmatprep.subr.bf16.mxu0 0
      %2596 = vmatpush1.bf16.xpose.msra.mxu0 0
      %2597 = vmatprep.subr.bf16.mxu0 0
      %2598 = vmatpush1.bf16.xpose.msra.mxu0 0
      %2599 = vmatprep.subr.bf16.mxu0 0
      %2600 = vmatpush1.bf16.xpose.msra.mxu0 0
      %2601 = vmatprep.subr.bf16.mxu0 0
      %2602 = vmatpush1.bf16.xpose.msra.mxu0 0
      %2603 = vmatprep.subr.bf16.mxu0 0
      %2604 = vmatpush1.bf16.xpose.msra.mxu0 0
      %2605 = vmatprep.subr.bf16.mxu0 0
      %2606 = vmatpush1.bf16.xpose.msra.mxu0 0
      %2607 = vmatprep.subr.bf16.mxu0 0
      %2608 = vmatpush1.bf16.xpose.msra.mxu0 0
      %2609 = vmatprep.subr.bf16.mxu0 0
      %2610 = vmatpush1.bf16.xpose.msra.mxu0 0
      %2611 = vmatprep.subr.bf16.mxu0 0
      %2612 = vmatpush1.bf16.xpose.msra.mxu0 0
      %2613 = vmatprep.mubr.bf16.mxu0 0
      %2614 = vmatmul.mubr.bf16.gmra.mrb[0].mxu0 %v2576
      %v2615 = vpop.f32.mrb[0].mxu0
      %v2616 = vadd.f32 0.0, %v2615
      %v2617 = vpop.f32.mrb[0].mxu0
      %v2618 = vpop.f32.mrb[0].mxu0
      %v2619 = vpop.f32.mrb[0].mxu0
      %2620 = vdwg.mxu0
      %2622 = vrot.lane.b32.xlu0 %v2522, 96
      %v2623 = vpop.permute.xlu0 %2622
      %v2625 = vsel %vm538, %v2522, 0
      %v2628 = vsel %vm538, %v2623, 0
      %2630 = vmatprep.subr.bf16.mxu0 0
      %2631 = vmatpush1.bf16.xpose.msra.mxu0 %v2628
      %2632 = vmatprep.subr.bf16.mxu0 0
      %2633 = vmatpush1.bf16.xpose.msra.mxu0 0
      %2634 = vmatprep.subr.bf16.mxu0 0
      %2635 = vmatpush1.bf16.xpose.msra.mxu0 0
      %2636 = vmatprep.subr.bf16.mxu0 0
      %2637 = vmatpush1.bf16.xpose.msra.mxu0 0
      %2638 = vmatprep.subr.bf16.mxu0 0
      %2639 = vmatpush1.bf16.xpose.msra.mxu0 0
      %2640 = vmatprep.subr.bf16.mxu0 0
      %2641 = vmatpush1.bf16.xpose.msra.mxu0 0
      %2642 = vmatprep.subr.bf16.mxu0 0
      %2643 = vmatpush1.bf16.xpose.msra.mxu0 0
      %2644 = vmatprep.subr.bf16.mxu0 0
      %2645 = vmatpush1.bf16.xpose.msra.mxu0 0
      %2646 = vmatprep.subr.bf16.mxu0 0
      %2647 = vmatpush1.bf16.xpose.msra.mxu0 0
      %2648 = vmatprep.subr.bf16.mxu0 0
      %2649 = vmatpush1.bf16.xpose.msra.mxu0 0
      %2650 = vmatprep.subr.bf16.mxu0 0
      %2651 = vmatpush1.bf16.xpose.msra.mxu0 0
      %2652 = vmatprep.subr.bf16.mxu0 0
      %2653 = vmatpush1.bf16.xpose.msra.mxu0 0
      %2654 = vmatprep.subr.bf16.mxu0 0
      %2655 = vmatpush1.bf16.xpose.msra.mxu0 0
      %2656 = vmatprep.subr.bf16.mxu0 0
      %2657 = vmatpush1.bf16.xpose.msra.mxu0 0
      %2658 = vmatprep.subr.bf16.mxu0 0
      %2659 = vmatpush1.bf16.xpose.msra.mxu0 0
      %2660 = vmatprep.subr.bf16.mxu0 0
      %2661 = vmatpush1.bf16.xpose.msra.mxu0 0
      %2662 = vmatprep.mubr.bf16.mxu0 0
      %2663 = vmatmul.mubr.bf16.gmra.mrb[0].mxu0 %v2625
      %v2664 = vpop.f32.mrb[0].mxu0
      %v2665 = vadd.f32 0.0, %v2664
      %v2666 = vpop.f32.mrb[0].mxu0
      %v2667 = vpop.f32.mrb[0].mxu0
      %v2668 = vpop.f32.mrb[0].mxu0
      %2669 = vdwg.mxu0
      %v2670 = vsel %vm538, %v2567, -inf
      %2671 = vmax.xlane.f32.xlu0 %v2670
      %v2672 = vpop.xlane.xlu0 %2671
      %v2673 = vsel %vm538, %v2616, -inf
      %2674 = vmax.xlane.f32.xlu0 %v2673
      %v2675 = vpop.xlane.xlu0 %2674
      %v2676 = vsel %vm538, %v2665, -inf
      %2677 = vmax.xlane.f32.xlu0 %v2676
      %v2678 = vpop.xlane.xlu0 %2677
      %v2679 = vsub.f32 %v2567, %v2672
      %v2680 = vsub.f32 %v2616, %v2675
      %v2681 = vsub.f32 %v2665, %v2678
      %v2682 = vmul.f32 %v2679, 1.442695
      %v2683 = vpow.pop %v2682
      %v2684 = vmul.f32 %v2680, 1.442695
      %v2685 = vpow.pop %v2684
      %v2686 = vmul.f32 %v2681, 1.442695
      %v2687 = vpow.pop %v2686
      %v2688 = vsel %vm538, %v2683, 0.0
      %2689 = vadd.xlane.f32.xlu0 %v2688
      %v2690 = vpop.xlane.xlu0 %2689
      %v2691 = vsel %vm538, %v2685, 0.0
      %2692 = vadd.xlane.f32.xlu0 %v2691
      %v2693 = vpop.xlane.xlu0 %2692
      %v2694 = vsel %vm538, %v2687, 0.0
      %2695 = vadd.xlane.f32.xlu0 %v2694
      %v2696 = vpop.xlane.xlu0 %2695
      %v2697 = vrcp.pop %v2690
      %v2698 = vrcp.pop %v2693
      %v2699 = vrcp.pop %v2696
      %v2700 = vmul.f32 %v2683, %v2697
      %v2701 = vmul.f32 %v2685, %v2698
      %v2702 = vmul.f32 %v2687, %v2699
      %v2703 = vpack.c.bf16 %v2700, %v2700
      %v2704 = vpack.c.bf16 %v2701, %v2701
      %v2705 = vpack.c.bf16 %v2702, %v2702
      %2706 = vrot.lane.b32.xlu0 %v2520, 64
      %v2707 = vpop.permute.xlu0 %2706
      %v2709 = vsel %vm538, %v2703, 0
      %v2712 = vsel %vm724, %v2707, 0
      %2714 = vmatprep.subr.bf16.mxu0 0
      %2715 = vmatpush1.bf16.msra.mxu0 %v2712
      %2716 = vmatprep.subr.bf16.mxu0 0
      %2717 = vmatpush1.bf16.msra.mxu0 0
      %2718 = vmatprep.subr.bf16.mxu0 0
      %2719 = vmatpush1.bf16.msra.mxu0 0
      %2720 = vmatprep.subr.bf16.mxu0 0
      %2721 = vmatpush1.bf16.msra.mxu0 0
      %2722 = vmatprep.subr.bf16.mxu0 0
      %2723 = vmatpush1.bf16.msra.mxu0 0
      %2724 = vmatprep.subr.bf16.mxu0 0
      %2725 = vmatpush1.bf16.msra.mxu0 0
      %2726 = vmatprep.subr.bf16.mxu0 0
      %2727 = vmatpush1.bf16.msra.mxu0 0
      %2728 = vmatprep.subr.bf16.mxu0 0
      %2729 = vmatpush1.bf16.msra.mxu0 0
      %2730 = vmatprep.subr.bf16.mxu0 0
      %2731 = vmatpush1.bf16.msra.mxu0 0
      %2732 = vmatprep.subr.bf16.mxu0 0
      %2733 = vmatpush1.bf16.msra.mxu0 0
      %2734 = vmatprep.subr.bf16.mxu0 0
      %2735 = vmatpush1.bf16.msra.mxu0 0
      %2736 = vmatprep.subr.bf16.mxu0 0
      %2737 = vmatpush1.bf16.msra.mxu0 0
      %2738 = vmatprep.subr.bf16.mxu0 0
      %2739 = vmatpush1.bf16.msra.mxu0 0
      %2740 = vmatprep.subr.bf16.mxu0 0
      %2741 = vmatpush1.bf16.msra.mxu0 0
      %2742 = vmatprep.subr.bf16.mxu0 0
      %2743 = vmatpush1.bf16.msra.mxu0 0
      %2744 = vmatprep.subr.bf16.mxu0 0
      %2745 = vmatpush1.bf16.msra.mxu0 0
      %2746 = vmatprep.mubr.bf16.mxu0 0
      %2747 = vmatmul.mubr.bf16.gmra.mrb[0].mxu0 %v2709
      %v2748 = vpop.f32.mrb[0].mxu0
      %v2749 = vadd.f32 0.0, %v2748
      %v2750 = vpop.f32.mrb[0].mxu0
      %v2751 = vpop.f32.mrb[0].mxu0
      %v2752 = vpop.f32.mrb[0].mxu0
      %2753 = vdwg.mxu0
      %2754 = vrot.lane.b32.xlu0 %v2521, 64
      %v2755 = vpop.permute.xlu0 %2754
      %v2757 = vsel %vm538, %v2704, 0
      %v2760 = vsel %vm724, %v2755, 0
      %2762 = vmatprep.subr.bf16.mxu0 0
      %2763 = vmatpush1.bf16.msra.mxu0 %v2760
      %2764 = vmatprep.subr.bf16.mxu0 0
      %2765 = vmatpush1.bf16.msra.mxu0 0
      %2766 = vmatprep.subr.bf16.mxu0 0
      %2767 = vmatpush1.bf16.msra.mxu0 0
      %2768 = vmatprep.subr.bf16.mxu0 0
      %2769 = vmatpush1.bf16.msra.mxu0 0
      %2770 = vmatprep.subr.bf16.mxu0 0
      %2771 = vmatpush1.bf16.msra.mxu0 0
      %2772 = vmatprep.subr.bf16.mxu0 0
      %2773 = vmatpush1.bf16.msra.mxu0 0
      %2774 = vmatprep.subr.bf16.mxu0 0
      %2775 = vmatpush1.bf16.msra.mxu0 0
      %2776 = vmatprep.subr.bf16.mxu0 0
      %2777 = vmatpush1.bf16.msra.mxu0 0
      %2778 = vmatprep.subr.bf16.mxu0 0
      %2779 = vmatpush1.bf16.msra.mxu0 0
      %2780 = vmatprep.subr.bf16.mxu0 0
      %2781 = vmatpush1.bf16.msra.mxu0 0
      %2782 = vmatprep.subr.bf16.mxu0 0
      %2783 = vmatpush1.bf16.msra.mxu0 0
      %2784 = vmatprep.subr.bf16.mxu0 0
      %2785 = vmatpush1.bf16.msra.mxu0 0
      %2786 = vmatprep.subr.bf16.mxu0 0
      %2787 = vmatpush1.bf16.msra.mxu0 0
      %2788 = vmatprep.subr.bf16.mxu0 0
      %2789 = vmatpush1.bf16.msra.mxu0 0
      %2790 = vmatprep.subr.bf16.mxu0 0
      %2791 = vmatpush1.bf16.msra.mxu0 0
      %2792 = vmatprep.subr.bf16.mxu0 0
      %2793 = vmatpush1.bf16.msra.mxu0 0
      %2794 = vmatprep.mubr.bf16.mxu0 0
      %2795 = vmatmul.mubr.bf16.gmra.mrb[0].mxu0 %v2757
      %v2796 = vpop.f32.mrb[0].mxu0
      %v2797 = vadd.f32 0.0, %v2796
      %v2798 = vpop.f32.mrb[0].mxu0
      %v2799 = vpop.f32.mrb[0].mxu0
      %v2800 = vpop.f32.mrb[0].mxu0
      %2801 = vdwg.mxu0
      %2802 = vrot.lane.b32.xlu0 %v2522, 64
      %v2803 = vpop.permute.xlu0 %2802
      %v2805 = vsel %vm538, %v2705, 0
      %v2808 = vsel %vm724, %v2803, 0
      %2810 = vmatprep.subr.bf16.mxu0 0
      %2811 = vmatpush1.bf16.msra.mxu0 %v2808
      %2812 = vmatprep.subr.bf16.mxu0 0
      %2813 = vmatpush1.bf16.msra.mxu0 0
      %2814 = vmatprep.subr.bf16.mxu0 0
      %2815 = vmatpush1.bf16.msra.mxu0 0
      %2816 = vmatprep.subr.bf16.mxu0 0
      %2817 = vmatpush1.bf16.msra.mxu0 0
      %2818 = vmatprep.subr.bf16.mxu0 0
      %2819 = vmatpush1.bf16.msra.mxu0 0
      %2820 = vmatprep.subr.bf16.mxu0 0
      %2821 = vmatpush1.bf16.msra.mxu0 0
      %2822 = vmatprep.subr.bf16.mxu0 0
      %2823 = vmatpush1.bf16.msra.mxu0 0
      %2824 = vmatprep.subr.bf16.mxu0 0
      %2825 = vmatpush1.bf16.msra.mxu0 0
      %2826 = vmatprep.subr.bf16.mxu0 0
      %2827 = vmatpush1.bf16.msra.mxu0 0
      %2828 = vmatprep.subr.bf16.mxu0 0
      %2829 = vmatpush1.bf16.msra.mxu0 0
      %2830 = vmatprep.subr.bf16.mxu0 0
      %2831 = vmatpush1.bf16.msra.mxu0 0
      %2832 = vmatprep.subr.bf16.mxu0 0
      %2833 = vmatpush1.bf16.msra.mxu0 0
      %2834 = vmatprep.subr.bf16.mxu0 0
      %2835 = vmatpush1.bf16.msra.mxu0 0
      %2836 = vmatprep.subr.bf16.mxu0 0
      %2837 = vmatpush1.bf16.msra.mxu0 0
      %2838 = vmatprep.subr.bf16.mxu0 0
      %2839 = vmatpush1.bf16.msra.mxu0 0
      %2840 = vmatprep.subr.bf16.mxu0 0
      %2841 = vmatpush1.bf16.msra.mxu0 0
      %2842 = vmatprep.mubr.bf16.mxu0 0
      %2843 = vmatmul.mubr.bf16.gmra.mrb[0].mxu0 %v2805
      %v2844 = vpop.f32.mrb[0].mxu0
      %v2845 = vadd.f32 0.0, %v2844
      %v2846 = vpop.f32.mrb[0].mxu0
      %v2847 = vpop.f32.mrb[0].mxu0
      %v2848 = vpop.f32.mrb[0].mxu0
      %2849 = vdwg.mxu0
      %v2850 = vpack.c.bf16 %v2797, %v2749
      %v2851 = vpack.c.bf16 %v2845, %v2845
      %2852 = vrot.lane.b32.xlu0 %v2520, 120
      %v2853 = vpop.permute.xlu0 %2852
      %2854 = vrot.lane.b32.xlu0 %v2520, 88
      %v2855 = vpop.permute.xlu0 %2854
      %v2857 = vsel %vm538, %v2853, 0
      %v2860 = vsel %vm538, %v2855, 0
      %2862 = vmatprep.subr.bf16.mxu0 0
      %2863 = vmatpush1.bf16.xpose.msra.mxu0 %v2860
      %2864 = vmatprep.subr.bf16.mxu0 0
      %2865 = vmatpush1.bf16.xpose.msra.mxu0 0
      %2866 = vmatprep.subr.bf16.mxu0 0
      %2867 = vmatpush1.bf16.xpose.msra.mxu0 0
      %2868 = vmatprep.subr.bf16.mxu0 0
      %2869 = vmatpush1.bf16.xpose.msra.mxu0 0
      %2870 = vmatprep.subr.bf16.mxu0 0
      %2871 = vmatpush1.bf16.xpose.msra.mxu0 0
      %2872 = vmatprep.subr.bf16.mxu0 0
      %2873 = vmatpush1.bf16.xpose.msra.mxu0 0
      %2874 = vmatprep.subr.bf16.mxu0 0
      %2875 = vmatpush1.bf16.xpose.msra.mxu0 0
      %2876 = vmatprep.subr.bf16.mxu0 0
      %2877 = vmatpush1.bf16.xpose.msra.mxu0 0
      %2878 = vmatprep.subr.bf16.mxu0 0
      %2879 = vmatpush1.bf16.xpose.msra.mxu0 0
      %2880 = vmatprep.subr.bf16.mxu0 0
      %2881 = vmatpush1.bf16.xpose.msra.mxu0 0
      %2882 = vmatprep.subr.bf16.mxu0 0
      %2883 = vmatpush1.bf16.xpose.msra.mxu0 0
      %2884 = vmatprep.subr.bf16.mxu0 0
      %2885 = vmatpush1.bf16.xpose.msra.mxu0 0
      %2886 = vmatprep.subr.bf16.mxu0 0
      %2887 = vmatpush1.bf16.xpose.msra.mxu0 0
      %2888 = vmatprep.subr.bf16.mxu0 0
      %2889 = vmatpush1.bf16.xpose.msra.mxu0 0
      %2890 = vmatprep.subr.bf16.mxu0 0
      %2891 = vmatpush1.bf16.xpose.msra.mxu0 0
      %2892 = vmatprep.subr.bf16.mxu0 0
      %2893 = vmatpush1.bf16.xpose.msra.mxu0 0
      %2894 = vmatprep.mubr.bf16.mxu0 0
      %2895 = vmatmul.mubr.bf16.gmra.mrb[0].mxu0 %v2857
      %v2896 = vpop.f32.mrb[0].mxu0
      %v2897 = vadd.f32 0.0, %v2896
      %v2898 = vpop.f32.mrb[0].mxu0
      %v2899 = vpop.f32.mrb[0].mxu0
      %v2900 = vpop.f32.mrb[0].mxu0
      %2901 = vdwg.mxu0
      %2902 = vrot.lane.b32.xlu0 %v2521, 120
      %v2903 = vpop.permute.xlu0 %2902
      %2904 = vrot.lane.b32.xlu0 %v2521, 88
      %v2905 = vpop.permute.xlu0 %2904
      %v2907 = vsel %vm538, %v2903, 0
      %v2910 = vsel %vm538, %v2905, 0
      %2912 = vmatprep.subr.bf16.mxu0 0
      %2913 = vmatpush1.bf16.xpose.msra.mxu0 %v2910
      %2914 = vmatprep.subr.bf16.mxu0 0
      %2915 = vmatpush1.bf16.xpose.msra.mxu0 0
      %2916 = vmatprep.subr.bf16.mxu0 0
      %2917 = vmatpush1.bf16.xpose.msra.mxu0 0
      %2918 = vmatprep.subr.bf16.mxu0 0
      %2919 = vmatpush1.bf16.xpose.msra.mxu0 0
      %2920 = vmatprep.subr.bf16.mxu0 0
      %2921 = vmatpush1.bf16.xpose.msra.mxu0 0
      %2922 = vmatprep.subr.bf16.mxu0 0
      %2923 = vmatpush1.bf16.xpose.msra.mxu0 0
      %2924 = vmatprep.subr.bf16.mxu0 0
      %2925 = vmatpush1.bf16.xpose.msra.mxu0 0
      %2926 = vmatprep.subr.bf16.mxu0 0
      %2927 = vmatpush1.bf16.xpose.msra.mxu0 0
      %2928 = vmatprep.subr.bf16.mxu0 0
      %2929 = vmatpush1.bf16.xpose.msra.mxu0 0
      %2930 = vmatprep.subr.bf16.mxu0 0
      %2931 = vmatpush1.bf16.xpose.msra.mxu0 0
      %2932 = vmatprep.subr.bf16.mxu0 0
      %2933 = vmatpush1.bf16.xpose.msra.mxu0 0
      %2934 = vmatprep.subr.bf16.mxu0 0
      %2935 = vmatpush1.bf16.xpose.msra.mxu0 0
      %2936 = vmatprep.subr.bf16.mxu0 0
      %2937 = vmatpush1.bf16.xpose.msra.mxu0 0
      %2938 = vmatprep.subr.bf16.mxu0 0
      %2939 = vmatpush1.bf16.xpose.msra.mxu0 0
      %2940 = vmatprep.subr.bf16.mxu0 0
      %2941 = vmatpush1.bf16.xpose.msra.mxu0 0
      %2942 = vmatprep.subr.bf16.mxu0 0
      %2943 = vmatpush1.bf16.xpose.msra.mxu0 0
      %2944 = vmatprep.mubr.bf16.mxu0 0
      %2945 = vmatmul.mubr.bf16.gmra.mrb[0].mxu0 %v2907
      %v2946 = vpop.f32.mrb[0].mxu0
      %v2947 = vadd.f32 0.0, %v2946
      %v2948 = vpop.f32.mrb[0].mxu0
      %v2949 = vpop.f32.mrb[0].mxu0
      %v2950 = vpop.f32.mrb[0].mxu0
      %2951 = vdwg.mxu0
      %2952 = vrot.lane.b32.xlu0 %v2522, 120
      %v2953 = vpop.permute.xlu0 %2952
      %2954 = vrot.lane.b32.xlu0 %v2522, 88
      %v2955 = vpop.permute.xlu0 %2954
      %v2957 = vsel %vm538, %v2953, 0
      %v2960 = vsel %vm538, %v2955, 0
      %2962 = vmatprep.subr.bf16.mxu0 0
      %2963 = vmatpush1.bf16.xpose.msra.mxu0 %v2960
      %2964 = vmatprep.subr.bf16.mxu0 0
      %2965 = vmatpush1.bf16.xpose.msra.mxu0 0
      %2966 = vmatprep.subr.bf16.mxu0 0
      %2967 = vmatpush1.bf16.xpose.msra.mxu0 0
      %2968 = vmatprep.subr.bf16.mxu0 0
      %2969 = vmatpush1.bf16.xpose.msra.mxu0 0
      %2970 = vmatprep.subr.bf16.mxu0 0
      %2971 = vmatpush1.bf16.xpose.msra.mxu0 0
      %2972 = vmatprep.subr.bf16.mxu0 0
      %2973 = vmatpush1.bf16.xpose.msra.mxu0 0
      %2974 = vmatprep.subr.bf16.mxu0 0
      %2975 = vmatpush1.bf16.xpose.msra.mxu0 0
      %2976 = vmatprep.subr.bf16.mxu0 0
      %2977 = vmatpush1.bf16.xpose.msra.mxu0 0
      %2978 = vmatprep.subr.bf16.mxu0 0
      %2979 = vmatpush1.bf16.xpose.msra.mxu0 0
      %2980 = vmatprep.subr.bf16.mxu0 0
      %2981 = vmatpush1.bf16.xpose.msra.mxu0 0
      %2982 = vmatprep.subr.bf16.mxu0 0
      %2983 = vmatpush1.bf16.xpose.msra.mxu0 0
      %2984 = vmatprep.subr.bf16.mxu0 0
      %2985 = vmatpush1.bf16.xpose.msra.mxu0 0
      %2986 = vmatprep.subr.bf16.mxu0 0
      %2987 = vmatpush1.bf16.xpose.msra.mxu0 0
      %2988 = vmatprep.subr.bf16.mxu0 0
      %2989 = vmatpush1.bf16.xpose.msra.mxu0 0
      %2990 = vmatprep.subr.bf16.mxu0 0
      %2991 = vmatpush1.bf16.xpose.msra.mxu0 0
      %2992 = vmatprep.subr.bf16.mxu0 0
      %2993 = vmatpush1.bf16.xpose.msra.mxu0 0
      %2994 = vmatprep.mubr.bf16.mxu0 0
      %2995 = vmatmul.mubr.bf16.gmra.mrb[0].mxu0 %v2957
      %v2996 = vpop.f32.mrb[0].mxu0
      %v2997 = vadd.f32 0.0, %v2996
      %v2998 = vpop.f32.mrb[0].mxu0
      %v2999 = vpop.f32.mrb[0].mxu0
      %v3000 = vpop.f32.mrb[0].mxu0
      %3001 = vdwg.mxu0
      %v3002 = vsel %vm538, %v2897, -inf
      %3003 = vmax.xlane.f32.xlu0 %v3002
      %v3004 = vpop.xlane.xlu0 %3003
      %v3005 = vsel %vm538, %v2947, -inf
      %3006 = vmax.xlane.f32.xlu0 %v3005
      %v3007 = vpop.xlane.xlu0 %3006
      %v3008 = vsel %vm538, %v2997, -inf
      %3009 = vmax.xlane.f32.xlu0 %v3008
      %v3010 = vpop.xlane.xlu0 %3009
      %v3011 = vsub.f32 %v2897, %v3004
      %v3012 = vsub.f32 %v2947, %v3007
      %v3013 = vsub.f32 %v2997, %v3010
      %v3014 = vmul.f32 %v3011, 1.442695
      %v3015 = vpow.pop %v3014
      %v3016 = vmul.f32 %v3012, 1.442695
      %v3017 = vpow.pop %v3016
      %v3018 = vmul.f32 %v3013, 1.442695
      %v3019 = vpow.pop %v3018
      %v3020 = vsel %vm538, %v3015, 0.0
      %3021 = vadd.xlane.f32.xlu0 %v3020
      %v3022 = vpop.xlane.xlu0 %3021
      %v3023 = vsel %vm538, %v3017, 0.0
      %3024 = vadd.xlane.f32.xlu0 %v3023
      %v3025 = vpop.xlane.xlu0 %3024
      %v3026 = vsel %vm538, %v3019, 0.0
      %3027 = vadd.xlane.f32.xlu0 %v3026
      %v3028 = vpop.xlane.xlu0 %3027
      %v3029 = vrcp.pop %v3022
      %v3030 = vrcp.pop %v3025
      %v3031 = vrcp.pop %v3028
      %v3032 = vmul.f32 %v3015, %v3029
      %v3033 = vmul.f32 %v3017, %v3030
      %v3034 = vmul.f32 %v3019, %v3031
      %v3035 = vpack.c.bf16 %v3032, %v3032
      %v3036 = vpack.c.bf16 %v3033, %v3033
      %v3037 = vpack.c.bf16 %v3034, %v3034
      %3038 = vrot.lane.b32.xlu0 %v2520, 56
      %v3039 = vpop.permute.xlu0 %3038
      %v3041 = vsel %vm538, %v3035, 0
      %v3044 = vsel %vm724, %v3039, 0
      %3046 = vmatprep.subr.bf16.mxu0 0
      %3047 = vmatpush1.bf16.msra.mxu0 %v3044
      %3048 = vmatprep.subr.bf16.mxu0 0
      %3049 = vmatpush1.bf16.msra.mxu0 0
      %3050 = vmatprep.subr.bf16.mxu0 0
      %3051 = vmatpush1.bf16.msra.mxu0 0
      %3052 = vmatprep.subr.bf16.mxu0 0
      %3053 = vmatpush1.bf16.msra.mxu0 0
      %3054 = vmatprep.subr.bf16.mxu0 0
      %3055 = vmatpush1.bf16.msra.mxu0 0
      %3056 = vmatprep.subr.bf16.mxu0 0
      %3057 = vmatpush1.bf16.msra.mxu0 0
      %3058 = vmatprep.subr.bf16.mxu0 0
      %3059 = vmatpush1.bf16.msra.mxu0 0
      %3060 = vmatprep.subr.bf16.mxu0 0
      %3061 = vmatpush1.bf16.msra.mxu0 0
      %3062 = vmatprep.subr.bf16.mxu0 0
      %3063 = vmatpush1.bf16.msra.mxu0 0
      %3064 = vmatprep.subr.bf16.mxu0 0
      %3065 = vmatpush1.bf16.msra.mxu0 0
      %3066 = vmatprep.subr.bf16.mxu0 0
      %3067 = vmatpush1.bf16.msra.mxu0 0
      %3068 = vmatprep.subr.bf16.mxu0 0
      %3069 = vmatpush1.bf16.msra.mxu0 0
      %3070 = vmatprep.subr.bf16.mxu0 0
      %3071 = vmatpush1.bf16.msra.mxu0 0
      %3072 = vmatprep.subr.bf16.mxu0 0
      %3073 = vmatpush1.bf16.msra.mxu0 0
      %3074 = vmatprep.subr.bf16.mxu0 0
      %3075 = vmatpush1.bf16.msra.mxu0 0
      %3076 = vmatprep.subr.bf16.mxu0 0
      %3077 = vmatpush1.bf16.msra.mxu0 0
      %3078 = vmatprep.mubr.bf16.mxu0 0
      %3079 = vmatmul.mubr.bf16.gmra.mrb[0].mxu0 %v3041
      %v3080 = vpop.f32.mrb[0].mxu0
      %v3081 = vadd.f32 0.0, %v3080
      %v3082 = vpop.f32.mrb[0].mxu0
      %v3083 = vpop.f32.mrb[0].mxu0
      %v3084 = vpop.f32.mrb[0].mxu0
      %3085 = vdwg.mxu0
      %3086 = vrot.lane.b32.xlu0 %v2521, 56
      %v3087 = vpop.permute.xlu0 %3086
      %v3089 = vsel %vm538, %v3036, 0
      %v3092 = vsel %vm724, %v3087, 0
      %3094 = vmatprep.subr.bf16.mxu0 0
      %3095 = vmatpush1.bf16.msra.mxu0 %v3092
      %3096 = vmatprep.subr.bf16.mxu0 0
      %3097 = vmatpush1.bf16.msra.mxu0 0
      %3098 = vmatprep.subr.bf16.mxu0 0
      %3099 = vmatpush1.bf16.msra.mxu0 0
      %3100 = vmatprep.subr.bf16.mxu0 0
      %3101 = vmatpush1.bf16.msra.mxu0 0
      %3102 = vmatprep.subr.bf16.mxu0 0
      %3103 = vmatpush1.bf16.msra.mxu0 0
      %3104 = vmatprep.subr.bf16.mxu0 0
      %3105 = vmatpush1.bf16.msra.mxu0 0
      %3106 = vmatprep.subr.bf16.mxu0 0
      %3107 = vmatpush1.bf16.msra.mxu0 0
      %3108 = vmatprep.subr.bf16.mxu0 0
      %3109 = vmatpush1.bf16.msra.mxu0 0
      %3110 = vmatprep.subr.bf16.mxu0 0
      %3111 = vmatpush1.bf16.msra.mxu0 0
      %3112 = vmatprep.subr.bf16.mxu0 0
      %3113 = vmatpush1.bf16.msra.mxu0 0
      %3114 = vmatprep.subr.bf16.mxu0 0
      %3115 = vmatpush1.bf16.msra.mxu0 0
      %3116 = vmatprep.subr.bf16.mxu0 0
      %3117 = vmatpush1.bf16.msra.mxu0 0
      %3118 = vmatprep.subr.bf16.mxu0 0
      %3119 = vmatpush1.bf16.msra.mxu0 0
      %3120 = vmatprep.subr.bf16.mxu0 0
      %3121 = vmatpush1.bf16.msra.mxu0 0
      %3122 = vmatprep.subr.bf16.mxu0 0
      %3123 = vmatpush1.bf16.msra.mxu0 0
      %3124 = vmatprep.subr.bf16.mxu0 0
      %3125 = vmatpush1.bf16.msra.mxu0 0
      %3126 = vmatprep.mubr.bf16.mxu0 0
      %3127 = vmatmul.mubr.bf16.gmra.mrb[0].mxu0 %v3089
      %v3128 = vpop.f32.mrb[0].mxu0
      %v3129 = vadd.f32 0.0, %v3128
      %v3130 = vpop.f32.mrb[0].mxu0
      %v3131 = vpop.f32.mrb[0].mxu0
      %v3132 = vpop.f32.mrb[0].mxu0
      %3133 = vdwg.mxu0
      %3134 = vrot.lane.b32.xlu0 %v2522, 56
      %v3135 = vpop.permute.xlu0 %3134
      %v3137 = vsel %vm538, %v3037, 0
      %v3140 = vsel %vm724, %v3135, 0
      %3142 = vmatprep.subr.bf16.mxu0 0
      %3143 = vmatpush1.bf16.msra.mxu0 %v3140
      %3144 = vmatprep.subr.bf16.mxu0 0
      %3145 = vmatpush1.bf16.msra.mxu0 0
      %3146 = vmatprep.subr.bf16.mxu0 0
      %3147 = vmatpush1.bf16.msra.mxu0 0
      %3148 = vmatprep.subr.bf16.mxu0 0
      %3149 = vmatpush1.bf16.msra.mxu0 0
      %3150 = vmatprep.subr.bf16.mxu0 0
      %3151 = vmatpush1.bf16.msra.mxu0 0
      %3152 = vmatprep.subr.bf16.mxu0 0
      %3153 = vmatpush1.bf16.msra.mxu0 0
      %3154 = vmatprep.subr.bf16.mxu0 0
      %3155 = vmatpush1.bf16.msra.mxu0 0
      %3156 = vmatprep.subr.bf16.mxu0 0
      %3157 = vmatpush1.bf16.msra.mxu0 0
      %3158 = vmatprep.subr.bf16.mxu0 0
      %3159 = vmatpush1.bf16.msra.mxu0 0
      %3160 = vmatprep.subr.bf16.mxu0 0
      %3161 = vmatpush1.bf16.msra.mxu0 0
      %3162 = vmatprep.subr.bf16.mxu0 0
      %3163 = vmatpush1.bf16.msra.mxu0 0
      %3164 = vmatprep.subr.bf16.mxu0 0
      %3165 = vmatpush1.bf16.msra.mxu0 0
      %3166 = vmatprep.subr.bf16.mxu0 0
      %3167 = vmatpush1.bf16.msra.mxu0 0
      %3168 = vmatprep.subr.bf16.mxu0 0
      %3169 = vmatpush1.bf16.msra.mxu0 0
      %3170 = vmatprep.subr.bf16.mxu0 0
      %3171 = vmatpush1.bf16.msra.mxu0 0
      %3172 = vmatprep.subr.bf16.mxu0 0
      %3173 = vmatpush1.bf16.msra.mxu0 0
      %3174 = vmatprep.mubr.bf16.mxu0 0
      %3175 = vmatmul.mubr.bf16.gmra.mrb[0].mxu0 %v3137
      %v3176 = vpop.f32.mrb[0].mxu0
      %v3177 = vadd.f32 0.0, %v3176
      %v3178 = vpop.f32.mrb[0].mxu0
      %v3179 = vpop.f32.mrb[0].mxu0
      %v3180 = vpop.f32.mrb[0].mxu0
      %3181 = vdwg.mxu0
      %v3182 = vpack.c.bf16 %v3129, %v3081
      %v3183 = vpack.c.bf16 %v3177, %v3177
      %v3185 = vsel %vm538, %v3182, 0
      %v3188 = vsel %vm538, %v3183, 0
      %v3191 = vsel %vm724, %v2517, 0
      %3193 = vmatprep.subr.bf16.mxu0 0
      %3194 = vmatpush1.bf16.msra.mxu0 %v3191
      %3195 = vmatprep.subr.bf16.mxu0 0
      %3196 = vmatpush1.bf16.msra.mxu0 0
      %3197 = vmatprep.subr.bf16.mxu0 0
      %3198 = vmatpush1.bf16.msra.mxu0 0
      %3199 = vmatprep.subr.bf16.mxu0 0
      %3200 = vmatpush1.bf16.msra.mxu0 0
      %3201 = vmatprep.subr.bf16.mxu0 0
      %3202 = vmatpush1.bf16.msra.mxu0 0
      %3203 = vmatprep.subr.bf16.mxu0 0
      %3204 = vmatpush1.bf16.msra.mxu0 0
      %3205 = vmatprep.subr.bf16.mxu0 0
      %3206 = vmatpush1.bf16.msra.mxu0 0
      %3207 = vmatprep.subr.bf16.mxu0 0
      %3208 = vmatpush1.bf16.msra.mxu0 0
      %3209 = vmatprep.subr.bf16.mxu0 0
      %3210 = vmatpush1.bf16.msra.mxu0 0
      %3211 = vmatprep.subr.bf16.mxu0 0
      %3212 = vmatpush1.bf16.msra.mxu0 0
      %3213 = vmatprep.subr.bf16.mxu0 0
      %3214 = vmatpush1.bf16.msra.mxu0 0
      %3215 = vmatprep.subr.bf16.mxu0 0
      %3216 = vmatpush1.bf16.msra.mxu0 0
      %3217 = vmatprep.subr.bf16.mxu0 0
      %3218 = vmatpush1.bf16.msra.mxu0 0
      %3219 = vmatprep.subr.bf16.mxu0 0
      %3220 = vmatpush1.bf16.msra.mxu0 0
      %3221 = vmatprep.subr.bf16.mxu0 0
      %3222 = vmatpush1.bf16.msra.mxu0 0
      %3223 = vmatprep.subr.bf16.mxu0 0
      %3224 = vmatpush1.bf16.msra.mxu0 0
      %3225 = vmatprep.mubr.bf16.mxu0 0
      %3226 = vmatmul.mubr.bf16.gmra.mrb[0].mxu0 %v3185
      %v3227 = vpop.f32.mrb[0].mxu0
      %v3228 = vadd.f32 0.0, %v3227
      %v3229 = vpop.f32.mrb[0].mxu0
      %v3230 = vpop.f32.mrb[0].mxu0
      %v3231 = vadd.f32 0.0, %v3230
      %v3232 = vpop.f32.mrb[0].mxu0
      %3233 = vmatprep.mubr.bf16.mxu0 0
      %3234 = vmatmul.mubr.bf16.gmra.mrb[0].mxu0 %v3188
      %v3235 = vpop.f32.mrb[0].mxu0
      %v3236 = vadd.f32 0.0, %v3235
      %v3237 = vpop.f32.mrb[0].mxu0
      %v3238 = vpop.f32.mrb[0].mxu0
      %v3239 = vpop.f32.mrb[0].mxu0
      %3240 = vdwg.mxu0
      %v3242 = vsel %vm538, %v2850, 0
      %v3245 = vsel %vm538, %v2851, 0
      %v3248 = vsel %vm724, %v2516, 0
      %3250 = vmatprep.subr.bf16.mxu0 0
      %3251 = vmatpush1.bf16.msra.mxu0 %v3248
      %3252 = vmatprep.subr.bf16.mxu0 0
      %3253 = vmatpush1.bf16.msra.mxu0 0
      %3254 = vmatprep.subr.bf16.mxu0 0
      %3255 = vmatpush1.bf16.msra.mxu0 0
      %3256 = vmatprep.subr.bf16.mxu0 0
      %3257 = vmatpush1.bf16.msra.mxu0 0
      %3258 = vmatprep.subr.bf16.mxu0 0
      %3259 = vmatpush1.bf16.msra.mxu0 0
      %3260 = vmatprep.subr.bf16.mxu0 0
      %3261 = vmatpush1.bf16.msra.mxu0 0
      %3262 = vmatprep.subr.bf16.mxu0 0
      %3263 = vmatpush1.bf16.msra.mxu0 0
      %3264 = vmatprep.subr.bf16.mxu0 0
      %3265 = vmatpush1.bf16.msra.mxu0 0
      %3266 = vmatprep.subr.bf16.mxu0 0
      %3267 = vmatpush1.bf16.msra.mxu0 0
      %3268 = vmatprep.subr.bf16.mxu0 0
      %3269 = vmatpush1.bf16.msra.mxu0 0
      %3270 = vmatprep.subr.bf16.mxu0 0
      %3271 = vmatpush1.bf16.msra.mxu0 0
      %3272 = vmatprep.subr.bf16.mxu0 0
      %3273 = vmatpush1.bf16.msra.mxu0 0
      %3274 = vmatprep.subr.bf16.mxu0 0
      %3275 = vmatpush1.bf16.msra.mxu0 0
      %3276 = vmatprep.subr.bf16.mxu0 0
      %3277 = vmatpush1.bf16.msra.mxu0 0
      %3278 = vmatprep.subr.bf16.mxu0 0
      %3279 = vmatpush1.bf16.msra.mxu0 0
      %3280 = vmatprep.subr.bf16.mxu0 0
      %3281 = vmatpush1.bf16.msra.mxu0 0
      %3282 = vmatprep.mubr.bf16.mxu0 0
      %3283 = vmatmul.mubr.bf16.gmra.mrb[0].mxu0 %v3242
      %v3284 = vpop.f32.mrb[0].mxu0
      %v3285 = vadd.f32 %v3228, %v3284
      %v3286 = vpop.f32.mrb[0].mxu0
      %v3287 = vpop.f32.mrb[0].mxu0
      %v3288 = vadd.f32 %v3231, %v3287
      %v3289 = vpop.f32.mrb[0].mxu0
      %3290 = vmatprep.mubr.bf16.mxu0 0
      %3291 = vmatmul.mubr.bf16.gmra.mrb[0].mxu0 %v3245
      %v3292 = vpop.f32.mrb[0].mxu0
      %v3293 = vadd.f32 %v3236, %v3292
      %v3294 = vpop.f32.mrb[0].mxu0
      %v3295 = vpop.f32.mrb[0].mxu0
      %v3296 = vpop.f32.mrb[0].mxu0
      %3297 = vdwg.mxu0
      %3298 = vrot.lane.b32.xlu0 %v2520, 112
      %v3299 = vpop.permute.xlu0 %3298
      %3300 = vrot.lane.b32.xlu0 %v2520, 80
      %v3301 = vpop.permute.xlu0 %3300
      %v3303 = vsel %vm538, %v3299, 0
      %v3306 = vsel %vm538, %v3301, 0
      %3308 = vmatprep.subr.bf16.mxu0 0
      %3309 = vmatpush1.bf16.xpose.msra.mxu0 %v3306
      %3310 = vmatprep.subr.bf16.mxu0 0
      %3311 = vmatpush1.bf16.xpose.msra.mxu0 0
      %3312 = vmatprep.subr.bf16.mxu0 0
      %3313 = vmatpush1.bf16.xpose.msra.mxu0 0
      %3314 = vmatprep.subr.bf16.mxu0 0
      %3315 = vmatpush1.bf16.xpose.msra.mxu0 0
      %3316 = vmatprep.subr.bf16.mxu0 0
      %3317 = vmatpush1.bf16.xpose.msra.mxu0 0
      %3318 = vmatprep.subr.bf16.mxu0 0
      %3319 = vmatpush1.bf16.xpose.msra.mxu0 0
      %3320 = vmatprep.subr.bf16.mxu0 0
      %3321 = vmatpush1.bf16.xpose.msra.mxu0 0
      %3322 = vmatprep.subr.bf16.mxu0 0
      %3323 = vmatpush1.bf16.xpose.msra.mxu0 0
      %3324 = vmatprep.subr.bf16.mxu0 0
      %3325 = vmatpush1.bf16.xpose.msra.mxu0 0
      %3326 = vmatprep.subr.bf16.mxu0 0
      %3327 = vmatpush1.bf16.xpose.msra.mxu0 0
      %3328 = vmatprep.subr.bf16.mxu0 0
      %3329 = vmatpush1.bf16.xpose.msra.mxu0 0
      %3330 = vmatprep.subr.bf16.mxu0 0
      %3331 = vmatpush1.bf16.xpose.msra.mxu0 0
      %3332 = vmatprep.subr.bf16.mxu0 0
      %3333 = vmatpush1.bf16.xpose.msra.mxu0 0
      %3334 = vmatprep.subr.bf16.mxu0 0
      %3335 = vmatpush1.bf16.xpose.msra.mxu0 0
      %3336 = vmatprep.subr.bf16.mxu0 0
      %3337 = vmatpush1.bf16.xpose.msra.mxu0 0
      %3338 = vmatprep.subr.bf16.mxu0 0
      %3339 = vmatpush1.bf16.xpose.msra.mxu0 0
      %3340 = vmatprep.mubr.bf16.mxu0 0
      %3341 = vmatmul.mubr.bf16.gmra.mrb[0].mxu0 %v3303
      %v3342 = vpop.f32.mrb[0].mxu0
      %v3343 = vadd.f32 0.0, %v3342
      %v3344 = vpop.f32.mrb[0].mxu0
      %v3345 = vpop.f32.mrb[0].mxu0
      %v3346 = vpop.f32.mrb[0].mxu0
      %3347 = vdwg.mxu0
      %3348 = vrot.lane.b32.xlu0 %v2521, 112
      %v3349 = vpop.permute.xlu0 %3348
      %3350 = vrot.lane.b32.xlu0 %v2521, 80
      %v3351 = vpop.permute.xlu0 %3350
      %v3353 = vsel %vm538, %v3349, 0
      %v3356 = vsel %vm538, %v3351, 0
      %3358 = vmatprep.subr.bf16.mxu0 0
      %3359 = vmatpush1.bf16.xpose.msra.mxu0 %v3356
      %3360 = vmatprep.subr.bf16.mxu0 0
      %3361 = vmatpush1.bf16.xpose.msra.mxu0 0
      %3362 = vmatprep.subr.bf16.mxu0 0
      %3363 = vmatpush1.bf16.xpose.msra.mxu0 0
      %3364 = vmatprep.subr.bf16.mxu0 0
      %3365 = vmatpush1.bf16.xpose.msra.mxu0 0
      %3366 = vmatprep.subr.bf16.mxu0 0
      %3367 = vmatpush1.bf16.xpose.msra.mxu0 0
      %3368 = vmatprep.subr.bf16.mxu0 0
      %3369 = vmatpush1.bf16.xpose.msra.mxu0 0
      %3370 = vmatprep.subr.bf16.mxu0 0
      %3371 = vmatpush1.bf16.xpose.msra.mxu0 0
      %3372 = vmatprep.subr.bf16.mxu0 0
      %3373 = vmatpush1.bf16.xpose.msra.mxu0 0
      %3374 = vmatprep.subr.bf16.mxu0 0
      %3375 = vmatpush1.bf16.xpose.msra.mxu0 0
      %3376 = vmatprep.subr.bf16.mxu0 0
      %3377 = vmatpush1.bf16.xpose.msra.mxu0 0
      %3378 = vmatprep.subr.bf16.mxu0 0
      %3379 = vmatpush1.bf16.xpose.msra.mxu0 0
      %3380 = vmatprep.subr.bf16.mxu0 0
      %3381 = vmatpush1.bf16.xpose.msra.mxu0 0
      %3382 = vmatprep.subr.bf16.mxu0 0
      %3383 = vmatpush1.bf16.xpose.msra.mxu0 0
      %3384 = vmatprep.subr.bf16.mxu0 0
      %3385 = vmatpush1.bf16.xpose.msra.mxu0 0
      %3386 = vmatprep.subr.bf16.mxu0 0
      %3387 = vmatpush1.bf16.xpose.msra.mxu0 0
      %3388 = vmatprep.subr.bf16.mxu0 0
      %3389 = vmatpush1.bf16.xpose.msra.mxu0 0
      %3390 = vmatprep.mubr.bf16.mxu0 0
      %3391 = vmatmul.mubr.bf16.gmra.mrb[0].mxu0 %v3353
      %v3392 = vpop.f32.mrb[0].mxu0
      %v3393 = vadd.f32 0.0, %v3392
      %v3394 = vpop.f32.mrb[0].mxu0
      %v3395 = vpop.f32.mrb[0].mxu0
      %v3396 = vpop.f32.mrb[0].mxu0
      %3397 = vdwg.mxu0
      %3398 = vrot.lane.b32.xlu0 %v2522, 112
      %v3399 = vpop.permute.xlu0 %3398
      %3400 = vrot.lane.b32.xlu0 %v2522, 80
      %v3401 = vpop.permute.xlu0 %3400
      %v3403 = vsel %vm538, %v3399, 0
      %v3406 = vsel %vm538, %v3401, 0
      %3408 = vmatprep.subr.bf16.mxu0 0
      %3409 = vmatpush1.bf16.xpose.msra.mxu0 %v3406
      %3410 = vmatprep.subr.bf16.mxu0 0
      %3411 = vmatpush1.bf16.xpose.msra.mxu0 0
      %3412 = vmatprep.subr.bf16.mxu0 0
      %3413 = vmatpush1.bf16.xpose.msra.mxu0 0
      %3414 = vmatprep.subr.bf16.mxu0 0
      %3415 = vmatpush1.bf16.xpose.msra.mxu0 0
      %3416 = vmatprep.subr.bf16.mxu0 0
      %3417 = vmatpush1.bf16.xpose.msra.mxu0 0
      %3418 = vmatprep.subr.bf16.mxu0 0
      %3419 = vmatpush1.bf16.xpose.msra.mxu0 0
      %3420 = vmatprep.subr.bf16.mxu0 0
      %3421 = vmatpush1.bf16.xpose.msra.mxu0 0
      %3422 = vmatprep.subr.bf16.mxu0 0
      %3423 = vmatpush1.bf16.xpose.msra.mxu0 0
      %3424 = vmatprep.subr.bf16.mxu0 0
      %3425 = vmatpush1.bf16.xpose.msra.mxu0 0
      %3426 = vmatprep.subr.bf16.mxu0 0
      %3427 = vmatpush1.bf16.xpose.msra.mxu0 0
      %3428 = vmatprep.subr.bf16.mxu0 0
      %3429 = vmatpush1.bf16.xpose.msra.mxu0 0
      %3430 = vmatprep.subr.bf16.mxu0 0
      %3431 = vmatpush1.bf16.xpose.msra.mxu0 0
      %3432 = vmatprep.subr.bf16.mxu0 0
      %3433 = vmatpush1.bf16.xpose.msra.mxu0 0
      %3434 = vmatprep.subr.bf16.mxu0 0
      %3435 = vmatpush1.bf16.xpose.msra.mxu0 0
      %3436 = vmatprep.subr.bf16.mxu0 0
      %3437 = vmatpush1.bf16.xpose.msra.mxu0 0
      %3438 = vmatprep.subr.bf16.mxu0 0
      %3439 = vmatpush1.bf16.xpose.msra.mxu0 0
      %3440 = vmatprep.mubr.bf16.mxu0 0
      %3441 = vmatmul.mubr.bf16.gmra.mrb[0].mxu0 %v3403
      %v3442 = vpop.f32.mrb[0].mxu0
      %v3443 = vadd.f32 0.0, %v3442
      %v3444 = vpop.f32.mrb[0].mxu0
      %v3445 = vpop.f32.mrb[0].mxu0
      %v3446 = vpop.f32.mrb[0].mxu0
      %3447 = vdwg.mxu0
      %v3448 = vsel %vm538, %v3343, -inf
      %3449 = vmax.xlane.f32.xlu0 %v3448
      %v3450 = vpop.xlane.xlu0 %3449
      %v3451 = vsel %vm538, %v3393, -inf
      %3452 = vmax.xlane.f32.xlu0 %v3451
      %v3453 = vpop.xlane.xlu0 %3452
      %v3454 = vsel %vm538, %v3443, -inf
      %3455 = vmax.xlane.f32.xlu0 %v3454
      %v3456 = vpop.xlane.xlu0 %3455
      %v3457 = vsub.f32 %v3343, %v3450
      %v3458 = vsub.f32 %v3393, %v3453
      %v3459 = vsub.f32 %v3443, %v3456
      %v3460 = vmul.f32 %v3457, 1.442695
      %v3461 = vpow.pop %v3460
      %v3462 = vmul.f32 %v3458, 1.442695
      %v3463 = vpow.pop %v3462
      %v3464 = vmul.f32 %v3459, 1.442695
      %v3465 = vpow.pop %v3464
      %v3466 = vsel %vm538, %v3461, 0.0
      %3467 = vadd.xlane.f32.xlu0 %v3466
      %v3468 = vpop.xlane.xlu0 %3467
      %v3469 = vsel %vm538, %v3463, 0.0
      %3470 = vadd.xlane.f32.xlu0 %v3469
      %v3471 = vpop.xlane.xlu0 %3470
      %v3472 = vsel %vm538, %v3465, 0.0
      %3473 = vadd.xlane.f32.xlu0 %v3472
      %v3474 = vpop.xlane.xlu0 %3473
      %v3475 = vrcp.pop %v3468
      %v3476 = vrcp.pop %v3471
      %v3477 = vrcp.pop %v3474
      %v3478 = vmul.f32 %v3461, %v3475
      %v3479 = vmul.f32 %v3463, %v3476
      %v3480 = vmul.f32 %v3465, %v3477
      %v3481 = vpack.c.bf16 %v3478, %v3478
      %v3482 = vpack.c.bf16 %v3479, %v3479
      %v3483 = vpack.c.bf16 %v3480, %v3480
      %3484 = vrot.lane.b32.xlu0 %v2520, 48
      %v3485 = vpop.permute.xlu0 %3484
      %v3487 = vsel %vm538, %v3481, 0
      %v3490 = vsel %vm724, %v3485, 0
      %3492 = vmatprep.subr.bf16.mxu0 0
      %3493 = vmatpush1.bf16.msra.mxu0 %v3490
      %3494 = vmatprep.subr.bf16.mxu0 0
      %3495 = vmatpush1.bf16.msra.mxu0 0
      %3496 = vmatprep.subr.bf16.mxu0 0
      %3497 = vmatpush1.bf16.msra.mxu0 0
      %3498 = vmatprep.subr.bf16.mxu0 0
      %3499 = vmatpush1.bf16.msra.mxu0 0
      %3500 = vmatprep.subr.bf16.mxu0 0
      %3501 = vmatpush1.bf16.msra.mxu0 0
      %3502 = vmatprep.subr.bf16.mxu0 0
      %3503 = vmatpush1.bf16.msra.mxu0 0
      %3504 = vmatprep.subr.bf16.mxu0 0
      %3505 = vmatpush1.bf16.msra.mxu0 0
      %3506 = vmatprep.subr.bf16.mxu0 0
      %3507 = vmatpush1.bf16.msra.mxu0 0
      %3508 = vmatprep.subr.bf16.mxu0 0
      %3509 = vmatpush1.bf16.msra.mxu0 0
      %3510 = vmatprep.subr.bf16.mxu0 0
      %3511 = vmatpush1.bf16.msra.mxu0 0
      %3512 = vmatprep.subr.bf16.mxu0 0
      %3513 = vmatpush1.bf16.msra.mxu0 0
      %3514 = vmatprep.subr.bf16.mxu0 0
      %3515 = vmatpush1.bf16.msra.mxu0 0
      %3516 = vmatprep.subr.bf16.mxu0 0
      %3517 = vmatpush1.bf16.msra.mxu0 0
      %3518 = vmatprep.subr.bf16.mxu0 0
      %3519 = vmatpush1.bf16.msra.mxu0 0
      %3520 = vmatprep.subr.bf16.mxu0 0
      %3521 = vmatpush1.bf16.msra.mxu0 0
      %3522 = vmatprep.subr.bf16.mxu0 0
      %3523 = vmatpush1.bf16.msra.mxu0 0
      %3524 = vmatprep.mubr.bf16.mxu0 0
      %3525 = vmatmul.mubr.bf16.gmra.mrb[0].mxu0 %v3487
      %v3526 = vpop.f32.mrb[0].mxu0
      %v3527 = vadd.f32 0.0, %v3526
      %v3528 = vpop.f32.mrb[0].mxu0
      %v3529 = vpop.f32.mrb[0].mxu0
      %v3530 = vpop.f32.mrb[0].mxu0
      %3531 = vdwg.mxu0
      %3532 = vrot.lane.b32.xlu0 %v2521, 48
      %v3533 = vpop.permute.xlu0 %3532
      %v3535 = vsel %vm538, %v3482, 0
      %v3538 = vsel %vm724, %v3533, 0
      %3540 = vmatprep.subr.bf16.mxu0 0
      %3541 = vmatpush1.bf16.msra.mxu0 %v3538
      %3542 = vmatprep.subr.bf16.mxu0 0
      %3543 = vmatpush1.bf16.msra.mxu0 0
      %3544 = vmatprep.subr.bf16.mxu0 0
      %3545 = vmatpush1.bf16.msra.mxu0 0
      %3546 = vmatprep.subr.bf16.mxu0 0
      %3547 = vmatpush1.bf16.msra.mxu0 0
      %3548 = vmatprep.subr.bf16.mxu0 0
      %3549 = vmatpush1.bf16.msra.mxu0 0
      %3550 = vmatprep.subr.bf16.mxu0 0
      %3551 = vmatpush1.bf16.msra.mxu0 0
      %3552 = vmatprep.subr.bf16.mxu0 0
      %3553 = vmatpush1.bf16.msra.mxu0 0
      %3554 = vmatprep.subr.bf16.mxu0 0
      %3555 = vmatpush1.bf16.msra.mxu0 0
      %3556 = vmatprep.subr.bf16.mxu0 0
      %3557 = vmatpush1.bf16.msra.mxu0 0
      %3558 = vmatprep.subr.bf16.mxu0 0
      %3559 = vmatpush1.bf16.msra.mxu0 0
      %3560 = vmatprep.subr.bf16.mxu0 0
      %3561 = vmatpush1.bf16.msra.mxu0 0
      %3562 = vmatprep.subr.bf16.mxu0 0
      %3563 = vmatpush1.bf16.msra.mxu0 0
      %3564 = vmatprep.subr.bf16.mxu0 0
      %3565 = vmatpush1.bf16.msra.mxu0 0
      %3566 = vmatprep.subr.bf16.mxu0 0
      %3567 = vmatpush1.bf16.msra.mxu0 0
      %3568 = vmatprep.subr.bf16.mxu0 0
      %3569 = vmatpush1.bf16.msra.mxu0 0
      %3570 = vmatprep.subr.bf16.mxu0 0
      %3571 = vmatpush1.bf16.msra.mxu0 0
      %3572 = vmatprep.mubr.bf16.mxu0 0
      %3573 = vmatmul.mubr.bf16.gmra.mrb[0].mxu0 %v3535
      %v3574 = vpop.f32.mrb[0].mxu0
      %v3575 = vadd.f32 0.0, %v3574
      %v3576 = vpop.f32.mrb[0].mxu0
      %v3577 = vpop.f32.mrb[0].mxu0
      %v3578 = vpop.f32.mrb[0].mxu0
      %3579 = vdwg.mxu0
      %3580 = vrot.lane.b32.xlu0 %v2522, 48
      %v3581 = vpop.permute.xlu0 %3580
      %v3583 = vsel %vm538, %v3483, 0
      %v3586 = vsel %vm724, %v3581, 0
      %3588 = vmatprep.subr.bf16.mxu0 0
      %3589 = vmatpush1.bf16.msra.mxu0 %v3586
      %3590 = vmatprep.subr.bf16.mxu0 0
      %3591 = vmatpush1.bf16.msra.mxu0 0
      %3592 = vmatprep.subr.bf16.mxu0 0
      %3593 = vmatpush1.bf16.msra.mxu0 0
      %3594 = vmatprep.subr.bf16.mxu0 0
      %3595 = vmatpush1.bf16.msra.mxu0 0
      %3596 = vmatprep.subr.bf16.mxu0 0
      %3597 = vmatpush1.bf16.msra.mxu0 0
      %3598 = vmatprep.subr.bf16.mxu0 0
      %3599 = vmatpush1.bf16.msra.mxu0 0
      %3600 = vmatprep.subr.bf16.mxu0 0
      %3601 = vmatpush1.bf16.msra.mxu0 0
      %3602 = vmatprep.subr.bf16.mxu0 0
      %3603 = vmatpush1.bf16.msra.mxu0 0
      %3604 = vmatprep.subr.bf16.mxu0 0
      %3605 = vmatpush1.bf16.msra.mxu0 0
      %3606 = vmatprep.subr.bf16.mxu0 0
      %3607 = vmatpush1.bf16.msra.mxu0 0
      %3608 = vmatprep.subr.bf16.mxu0 0
      %3609 = vmatpush1.bf16.msra.mxu0 0
      %3610 = vmatprep.subr.bf16.mxu0 0
      %3611 = vmatpush1.bf16.msra.mxu0 0
      %3612 = vmatprep.subr.bf16.mxu0 0
      %3613 = vmatpush1.bf16.msra.mxu0 0
      %3614 = vmatprep.subr.bf16.mxu0 0
      %3615 = vmatpush1.bf16.msra.mxu0 0
      %3616 = vmatprep.subr.bf16.mxu0 0
      %3617 = vmatpush1.bf16.msra.mxu0 0
      %3618 = vmatprep.subr.bf16.mxu0 0
      %3619 = vmatpush1.bf16.msra.mxu0 0
      %3620 = vmatprep.mubr.bf16.mxu0 0
      %3621 = vmatmul.mubr.bf16.gmra.mrb[0].mxu0 %v3583
      %v3622 = vpop.f32.mrb[0].mxu0
      %v3623 = vadd.f32 0.0, %v3622
      %v3624 = vpop.f32.mrb[0].mxu0
      %v3625 = vpop.f32.mrb[0].mxu0
      %v3626 = vpop.f32.mrb[0].mxu0
      %3627 = vdwg.mxu0
      %v3628 = vpack.c.bf16 %v3575, %v3527
      %v3629 = vpack.c.bf16 %v3623, %v3623
      %v3631 = vsel %vm538, %v3628, 0
      %v3634 = vsel %vm538, %v3629, 0
      %v3637 = vsel %vm724, %v2518, 0
      %3639 = vmatprep.subr.bf16.mxu0 0
      %3640 = vmatpush1.bf16.msra.mxu0 %v3637
      %3641 = vmatprep.subr.bf16.mxu0 0
      %3642 = vmatpush1.bf16.msra.mxu0 0
      %3643 = vmatprep.subr.bf16.mxu0 0
      %3644 = vmatpush1.bf16.msra.mxu0 0
      %3645 = vmatprep.subr.bf16.mxu0 0
      %3646 = vmatpush1.bf16.msra.mxu0 0
      %3647 = vmatprep.subr.bf16.mxu0 0
      %3648 = vmatpush1.bf16.msra.mxu0 0
      %3649 = vmatprep.subr.bf16.mxu0 0
      %3650 = vmatpush1.bf16.msra.mxu0 0
      %3651 = vmatprep.subr.bf16.mxu0 0
      %3652 = vmatpush1.bf16.msra.mxu0 0
      %3653 = vmatprep.subr.bf16.mxu0 0
      %3654 = vmatpush1.bf16.msra.mxu0 0
      %3655 = vmatprep.subr.bf16.mxu0 0
      %3656 = vmatpush1.bf16.msra.mxu0 0
      %3657 = vmatprep.subr.bf16.mxu0 0
      %3658 = vmatpush1.bf16.msra.mxu0 0
      %3659 = vmatprep.subr.bf16.mxu0 0
      %3660 = vmatpush1.bf16.msra.mxu0 0
      %3661 = vmatprep.subr.bf16.mxu0 0
      %3662 = vmatpush1.bf16.msra.mxu0 0
      %3663 = vmatprep.subr.bf16.mxu0 0
      %3664 = vmatpush1.bf16.msra.mxu0 0
      %3665 = vmatprep.subr.bf16.mxu0 0
      %3666 = vmatpush1.bf16.msra.mxu0 0
      %3667 = vmatprep.subr.bf16.mxu0 0
      %3668 = vmatpush1.bf16.msra.mxu0 0
      %3669 = vmatprep.subr.bf16.mxu0 0
      %3670 = vmatpush1.bf16.msra.mxu0 0
      %3671 = vmatprep.mubr.bf16.mxu0 0
      %3672 = vmatmul.mubr.bf16.gmra.mrb[0].mxu0 %v3631
      %v3673 = vpop.f32.mrb[0].mxu0
      %v3674 = vadd.f32 0.0, %v3673
      %v3675 = vpop.f32.mrb[0].mxu0
      %v3676 = vpop.f32.mrb[0].mxu0
      %v3677 = vadd.f32 0.0, %v3676
      %v3678 = vpop.f32.mrb[0].mxu0
      %3679 = vmatprep.mubr.bf16.mxu0 0
      %3680 = vmatmul.mubr.bf16.gmra.mrb[0].mxu0 %v3634
      %v3681 = vpop.f32.mrb[0].mxu0
      %v3682 = vadd.f32 0.0, %v3681
      %v3683 = vpop.f32.mrb[0].mxu0
      %v3684 = vpop.f32.mrb[0].mxu0
      %v3685 = vpop.f32.mrb[0].mxu0
      %3686 = vdwg.mxu0
      %v3687 = vadd.f32 %v3285, %v3674
      %v3688 = vadd.f32 %v3288, %v3677
      %v3689 = vadd.f32 %v3293, %v3682
      %3690 = vrot.lane.b32.xlu0 %v2520, 104
      %v3691 = vpop.permute.xlu0 %3690
      %3692 = vrot.lane.b32.xlu0 %v2520, 72
      %v3693 = vpop.permute.xlu0 %3692
      %v3695 = vsel %vm538, %v3691, 0
      %v3698 = vsel %vm538, %v3693, 0
      %3700 = vmatprep.subr.bf16.mxu0 0
      %3701 = vmatpush1.bf16.xpose.msra.mxu0 %v3698
      %3702 = vmatprep.subr.bf16.mxu0 0
      %3703 = vmatpush1.bf16.xpose.msra.mxu0 0
      %3704 = vmatprep.subr.bf16.mxu0 0
      %3705 = vmatpush1.bf16.xpose.msra.mxu0 0
      %3706 = vmatprep.subr.bf16.mxu0 0
      %3707 = vmatpush1.bf16.xpose.msra.mxu0 0
      %3708 = vmatprep.subr.bf16.mxu0 0
      %3709 = vmatpush1.bf16.xpose.msra.mxu0 0
      %3710 = vmatprep.subr.bf16.mxu0 0
      %3711 = vmatpush1.bf16.xpose.msra.mxu0 0
      %3712 = vmatprep.subr.bf16.mxu0 0
      %3713 = vmatpush1.bf16.xpose.msra.mxu0 0
      %3714 = vmatprep.subr.bf16.mxu0 0
      %3715 = vmatpush1.bf16.xpose.msra.mxu0 0
      %3716 = vmatprep.subr.bf16.mxu0 0
      %3717 = vmatpush1.bf16.xpose.msra.mxu0 0
      %3718 = vmatprep.subr.bf16.mxu0 0
      %3719 = vmatpush1.bf16.xpose.msra.mxu0 0
      %3720 = vmatprep.subr.bf16.mxu0 0
      %3721 = vmatpush1.bf16.xpose.msra.mxu0 0
      %3722 = vmatprep.subr.bf16.mxu0 0
      %3723 = vmatpush1.bf16.xpose.msra.mxu0 0
      %3724 = vmatprep.subr.bf16.mxu0 0
      %3725 = vmatpush1.bf16.xpose.msra.mxu0 0
      %3726 = vmatprep.subr.bf16.mxu0 0
      %3727 = vmatpush1.bf16.xpose.msra.mxu0 0
      %3728 = vmatprep.subr.bf16.mxu0 0
      %3729 = vmatpush1.bf16.xpose.msra.mxu0 0
      %3730 = vmatprep.subr.bf16.mxu0 0
      %3731 = vmatpush1.bf16.xpose.msra.mxu0 0
      %3732 = vmatprep.mubr.bf16.mxu0 0
      %3733 = vmatmul.mubr.bf16.gmra.mrb[0].mxu0 %v3695
      %v3734 = vpop.f32.mrb[0].mxu0
      %v3735 = vadd.f32 0.0, %v3734
      %v3736 = vpop.f32.mrb[0].mxu0
      %v3737 = vpop.f32.mrb[0].mxu0
      %v3738 = vpop.f32.mrb[0].mxu0
      %3739 = vdwg.mxu0
      %3740 = vrot.lane.b32.xlu0 %v2521, 104
      %v3741 = vpop.permute.xlu0 %3740
      %3742 = vrot.lane.b32.xlu0 %v2521, 72
      %v3743 = vpop.permute.xlu0 %3742
      %v3745 = vsel %vm538, %v3741, 0
      %v3748 = vsel %vm538, %v3743, 0
      %3750 = vmatprep.subr.bf16.mxu0 0
      %3751 = vmatpush1.bf16.xpose.msra.mxu0 %v3748
      %3752 = vmatprep.subr.bf16.mxu0 0
      %3753 = vmatpush1.bf16.xpose.msra.mxu0 0
      %3754 = vmatprep.subr.bf16.mxu0 0
      %3755 = vmatpush1.bf16.xpose.msra.mxu0 0
      %3756 = vmatprep.subr.bf16.mxu0 0
      %3757 = vmatpush1.bf16.xpose.msra.mxu0 0
      %3758 = vmatprep.subr.bf16.mxu0 0
      %3759 = vmatpush1.bf16.xpose.msra.mxu0 0
      %3760 = vmatprep.subr.bf16.mxu0 0
      %3761 = vmatpush1.bf16.xpose.msra.mxu0 0
      %3762 = vmatprep.subr.bf16.mxu0 0
      %3763 = vmatpush1.bf16.xpose.msra.mxu0 0
      %3764 = vmatprep.subr.bf16.mxu0 0
      %3765 = vmatpush1.bf16.xpose.msra.mxu0 0
      %3766 = vmatprep.subr.bf16.mxu0 0
      %3767 = vmatpush1.bf16.xpose.msra.mxu0 0
      %3768 = vmatprep.subr.bf16.mxu0 0
      %3769 = vmatpush1.bf16.xpose.msra.mxu0 0
      %3770 = vmatprep.subr.bf16.mxu0 0
      %3771 = vmatpush1.bf16.xpose.msra.mxu0 0
      %3772 = vmatprep.subr.bf16.mxu0 0
      %3773 = vmatpush1.bf16.xpose.msra.mxu0 0
      %3774 = vmatprep.subr.bf16.mxu0 0
      %3775 = vmatpush1.bf16.xpose.msra.mxu0 0
      %3776 = vmatprep.subr.bf16.mxu0 0
      %3777 = vmatpush1.bf16.xpose.msra.mxu0 0
      %3778 = vmatprep.subr.bf16.mxu0 0
      %3779 = vmatpush1.bf16.xpose.msra.mxu0 0
      %3780 = vmatprep.subr.bf16.mxu0 0
      %3781 = vmatpush1.bf16.xpose.msra.mxu0 0
      %3782 = vmatprep.mubr.bf16.mxu0 0
      %3783 = vmatmul.mubr.bf16.gmra.mrb[0].mxu0 %v3745
      %v3784 = vpop.f32.mrb[0].mxu0
      %v3785 = vadd.f32 0.0, %v3784
      %v3786 = vpop.f32.mrb[0].mxu0
      %v3787 = vpop.f32.mrb[0].mxu0
      %v3788 = vpop.f32.mrb[0].mxu0
      %3789 = vdwg.mxu0
      %3790 = vrot.lane.b32.xlu0 %v2522, 104
      %v3791 = vpop.permute.xlu0 %3790
      %3792 = vrot.lane.b32.xlu0 %v2522, 72
      %v3793 = vpop.permute.xlu0 %3792
      %v3795 = vsel %vm538, %v3791, 0
      %v3798 = vsel %vm538, %v3793, 0
      %3800 = vmatprep.subr.bf16.mxu0 0
      %3801 = vmatpush1.bf16.xpose.msra.mxu0 %v3798
      %3802 = vmatprep.subr.bf16.mxu0 0
      %3803 = vmatpush1.bf16.xpose.msra.mxu0 0
      %3804 = vmatprep.subr.bf16.mxu0 0
      %3805 = vmatpush1.bf16.xpose.msra.mxu0 0
      %3806 = vmatprep.subr.bf16.mxu0 0
      %3807 = vmatpush1.bf16.xpose.msra.mxu0 0
      %3808 = vmatprep.subr.bf16.mxu0 0
      %3809 = vmatpush1.bf16.xpose.msra.mxu0 0
      %3810 = vmatprep.subr.bf16.mxu0 0
      %3811 = vmatpush1.bf16.xpose.msra.mxu0 0
      %3812 = vmatprep.subr.bf16.mxu0 0
      %3813 = vmatpush1.bf16.xpose.msra.mxu0 0
      %3814 = vmatprep.subr.bf16.mxu0 0
      %3815 = vmatpush1.bf16.xpose.msra.mxu0 0
      %3816 = vmatprep.subr.bf16.mxu0 0
      %3817 = vmatpush1.bf16.xpose.msra.mxu0 0
      %3818 = vmatprep.subr.bf16.mxu0 0
      %3819 = vmatpush1.bf16.xpose.msra.mxu0 0
      %3820 = vmatprep.subr.bf16.mxu0 0
      %3821 = vmatpush1.bf16.xpose.msra.mxu0 0
      %3822 = vmatprep.subr.bf16.mxu0 0
      %3823 = vmatpush1.bf16.xpose.msra.mxu0 0
      %3824 = vmatprep.subr.bf16.mxu0 0
      %3825 = vmatpush1.bf16.xpose.msra.mxu0 0
      %3826 = vmatprep.subr.bf16.mxu0 0
      %3827 = vmatpush1.bf16.xpose.msra.mxu0 0
      %3828 = vmatprep.subr.bf16.mxu0 0
      %3829 = vmatpush1.bf16.xpose.msra.mxu0 0
      %3830 = vmatprep.subr.bf16.mxu0 0
      %3831 = vmatpush1.bf16.xpose.msra.mxu0 0
      %3832 = vmatprep.mubr.bf16.mxu0 0
      %3833 = vmatmul.mubr.bf16.gmra.mrb[0].mxu0 %v3795
      %v3834 = vpop.f32.mrb[0].mxu0
      %v3835 = vadd.f32 0.0, %v3834
      %v3836 = vpop.f32.mrb[0].mxu0
      %v3837 = vpop.f32.mrb[0].mxu0
      %v3838 = vpop.f32.mrb[0].mxu0
      %3839 = vdwg.mxu0
      %v3840 = vsel %vm538, %v3735, -inf
      %3841 = vmax.xlane.f32.xlu0 %v3840
      %v3842 = vpop.xlane.xlu0 %3841
      %v3843 = vsel %vm538, %v3785, -inf
      %3844 = vmax.xlane.f32.xlu0 %v3843
      %v3845 = vpop.xlane.xlu0 %3844
      %v3846 = vsel %vm538, %v3835, -inf
      %3847 = vmax.xlane.f32.xlu0 %v3846
      %v3848 = vpop.xlane.xlu0 %3847
      %v3849 = vsub.f32 %v3735, %v3842
      %v3850 = vsub.f32 %v3785, %v3845
      %v3851 = vsub.f32 %v3835, %v3848
      %v3852 = vmul.f32 %v3849, 1.442695
      %v3853 = vpow.pop %v3852
      %v3854 = vmul.f32 %v3850, 1.442695
      %v3855 = vpow.pop %v3854
      %v3856 = vmul.f32 %v3851, 1.442695
      %v3857 = vpow.pop %v3856
      %v3858 = vsel %vm538, %v3853, 0.0
      %3859 = vadd.xlane.f32.xlu0 %v3858
      %v3860 = vpop.xlane.xlu0 %3859
      %v3861 = vsel %vm538, %v3855, 0.0
      %3862 = vadd.xlane.f32.xlu0 %v3861
      %v3863 = vpop.xlane.xlu0 %3862
      %v3864 = vsel %vm538, %v3857, 0.0
      %3865 = vadd.xlane.f32.xlu0 %v3864
      %v3866 = vpop.xlane.xlu0 %3865
      %v3867 = vrcp.pop %v3860
      %v3868 = vrcp.pop %v3863
      %v3869 = vrcp.pop %v3866
      %v3870 = vmul.f32 %v3853, %v3867
      %v3871 = vmul.f32 %v3855, %v3868
      %v3872 = vmul.f32 %v3857, %v3869
      %v3873 = vpack.c.bf16 %v3870, %v3870
      %v3874 = vpack.c.bf16 %v3871, %v3871
      %v3875 = vpack.c.bf16 %v3872, %v3872
      %3876 = vrot.lane.b32.xlu0 %v2520, 40
      %v3877 = vpop.permute.xlu0 %3876
      %v3879 = vsel %vm538, %v3873, 0
      %v3882 = vsel %vm724, %v3877, 0
      %3884 = vmatprep.subr.bf16.mxu0 0
      %3885 = vmatpush1.bf16.msra.mxu0 %v3882
      %3886 = vmatprep.subr.bf16.mxu0 0
      %3887 = vmatpush1.bf16.msra.mxu0 0
      %3888 = vmatprep.subr.bf16.mxu0 0
      %3889 = vmatpush1.bf16.msra.mxu0 0
      %3890 = vmatprep.subr.bf16.mxu0 0
      %3891 = vmatpush1.bf16.msra.mxu0 0
      %3892 = vmatprep.subr.bf16.mxu0 0
      %3893 = vmatpush1.bf16.msra.mxu0 0
      %3894 = vmatprep.subr.bf16.mxu0 0
      %3895 = vmatpush1.bf16.msra.mxu0 0
      %3896 = vmatprep.subr.bf16.mxu0 0
      %3897 = vmatpush1.bf16.msra.mxu0 0
      %3898 = vmatprep.subr.bf16.mxu0 0
      %3899 = vmatpush1.bf16.msra.mxu0 0
      %3900 = vmatprep.subr.bf16.mxu0 0
      %3901 = vmatpush1.bf16.msra.mxu0 0
      %3902 = vmatprep.subr.bf16.mxu0 0
      %3903 = vmatpush1.bf16.msra.mxu0 0
      %3904 = vmatprep.subr.bf16.mxu0 0
      %3905 = vmatpush1.bf16.msra.mxu0 0
      %3906 = vmatprep.subr.bf16.mxu0 0
      %3907 = vmatpush1.bf16.msra.mxu0 0
      %3908 = vmatprep.subr.bf16.mxu0 0
      %3909 = vmatpush1.bf16.msra.mxu0 0
      %3910 = vmatprep.subr.bf16.mxu0 0
      %3911 = vmatpush1.bf16.msra.mxu0 0
      %3912 = vmatprep.subr.bf16.mxu0 0
      %3913 = vmatpush1.bf16.msra.mxu0 0
      %3914 = vmatprep.subr.bf16.mxu0 0
      %3915 = vmatpush1.bf16.msra.mxu0 0
      %3916 = vmatprep.mubr.bf16.mxu0 0
      %3917 = vmatmul.mubr.bf16.gmra.mrb[0].mxu0 %v3879
      %v3918 = vpop.f32.mrb[0].mxu0
      %v3919 = vadd.f32 0.0, %v3918
      %v3920 = vpop.f32.mrb[0].mxu0
      %v3921 = vpop.f32.mrb[0].mxu0
      %v3922 = vpop.f32.mrb[0].mxu0
      %3923 = vdwg.mxu0
      %3924 = vrot.lane.b32.xlu0 %v2521, 40
      %v3925 = vpop.permute.xlu0 %3924
      %v3927 = vsel %vm538, %v3874, 0
      %v3930 = vsel %vm724, %v3925, 0
      %3932 = vmatprep.subr.bf16.mxu0 0
      %3933 = vmatpush1.bf16.msra.mxu0 %v3930
      %3934 = vmatprep.subr.bf16.mxu0 0
      %3935 = vmatpush1.bf16.msra.mxu0 0
      %3936 = vmatprep.subr.bf16.mxu0 0
      %3937 = vmatpush1.bf16.msra.mxu0 0
      %3938 = vmatprep.subr.bf16.mxu0 0
      %3939 = vmatpush1.bf16.msra.mxu0 0
      %3940 = vmatprep.subr.bf16.mxu0 0
      %3941 = vmatpush1.bf16.msra.mxu0 0
      %3942 = vmatprep.subr.bf16.mxu0 0
      %3943 = vmatpush1.bf16.msra.mxu0 0
      %3944 = vmatprep.subr.bf16.mxu0 0
      %3945 = vmatpush1.bf16.msra.mxu0 0
      %3946 = vmatprep.subr.bf16.mxu0 0
      %3947 = vmatpush1.bf16.msra.mxu0 0
      %3948 = vmatprep.subr.bf16.mxu0 0
      %3949 = vmatpush1.bf16.msra.mxu0 0
      %3950 = vmatprep.subr.bf16.mxu0 0
      %3951 = vmatpush1.bf16.msra.mxu0 0
      %3952 = vmatprep.subr.bf16.mxu0 0
      %3953 = vmatpush1.bf16.msra.mxu0 0
      %3954 = vmatprep.subr.bf16.mxu0 0
      %3955 = vmatpush1.bf16.msra.mxu0 0
      %3956 = vmatprep.subr.bf16.mxu0 0
      %3957 = vmatpush1.bf16.msra.mxu0 0
      %3958 = vmatprep.subr.bf16.mxu0 0
      %3959 = vmatpush1.bf16.msra.mxu0 0
      %3960 = vmatprep.subr.bf16.mxu0 0
      %3961 = vmatpush1.bf16.msra.mxu0 0
      %3962 = vmatprep.subr.bf16.mxu0 0
      %3963 = vmatpush1.bf16.msra.mxu0 0
      %3964 = vmatprep.mubr.bf16.mxu0 0
      %3965 = vmatmul.mubr.bf16.gmra.mrb[0].mxu0 %v3927
      %v3966 = vpop.f32.mrb[0].mxu0
      %v3967 = vadd.f32 0.0, %v3966
      %v3968 = vpop.f32.mrb[0].mxu0
      %v3969 = vpop.f32.mrb[0].mxu0
      %v3970 = vpop.f32.mrb[0].mxu0
      %3971 = vdwg.mxu0
      %3972 = vrot.lane.b32.xlu0 %v2522, 40
      %v3973 = vpop.permute.xlu0 %3972
      %v3975 = vsel %vm538, %v3875, 0
      %v3978 = vsel %vm724, %v3973, 0
      %3980 = vmatprep.subr.bf16.mxu0 0
      %3981 = vmatpush1.bf16.msra.mxu0 %v3978
      %3982 = vmatprep.subr.bf16.mxu0 0
      %3983 = vmatpush1.bf16.msra.mxu0 0
      %3984 = vmatprep.subr.bf16.mxu0 0
      %3985 = vmatpush1.bf16.msra.mxu0 0
      %3986 = vmatprep.subr.bf16.mxu0 0
      %3987 = vmatpush1.bf16.msra.mxu0 0
      %3988 = vmatprep.subr.bf16.mxu0 0
      %3989 = vmatpush1.bf16.msra.mxu0 0
      %3990 = vmatprep.subr.bf16.mxu0 0
      %3991 = vmatpush1.bf16.msra.mxu0 0
      %3992 = vmatprep.subr.bf16.mxu0 0
      %3993 = vmatpush1.bf16.msra.mxu0 0
      %3994 = vmatprep.subr.bf16.mxu0 0
      %3995 = vmatpush1.bf16.msra.mxu0 0
      %3996 = vmatprep.subr.bf16.mxu0 0
      %3997 = vmatpush1.bf16.msra.mxu0 0
      %3998 = vmatprep.subr.bf16.mxu0 0
      %3999 = vmatpush1.bf16.msra.mxu0 0
      %4000 = vmatprep.subr.bf16.mxu0 0
      %4001 = vmatpush1.bf16.msra.mxu0 0
      %4002 = vmatprep.subr.bf16.mxu0 0
      %4003 = vmatpush1.bf16.msra.mxu0 0
      %4004 = vmatprep.subr.bf16.mxu0 0
      %4005 = vmatpush1.bf16.msra.mxu0 0
      %4006 = vmatprep.subr.bf16.mxu0 0
      %4007 = vmatpush1.bf16.msra.mxu0 0
      %4008 = vmatprep.subr.bf16.mxu0 0
      %4009 = vmatpush1.bf16.msra.mxu0 0
      %4010 = vmatprep.subr.bf16.mxu0 0
      %4011 = vmatpush1.bf16.msra.mxu0 0
      %4012 = vmatprep.mubr.bf16.mxu0 0
      %4013 = vmatmul.mubr.bf16.gmra.mrb[0].mxu0 %v3975
      %v4014 = vpop.f32.mrb[0].mxu0
      %v4015 = vadd.f32 0.0, %v4014
      %v4016 = vpop.f32.mrb[0].mxu0
      %v4017 = vpop.f32.mrb[0].mxu0
      %v4018 = vpop.f32.mrb[0].mxu0
      %4019 = vdwg.mxu0
      %v4020 = vpack.c.bf16 %v3967, %v3919
      %v4021 = vpack.c.bf16 %v4015, %v4015
      %v4023 = vsel %vm538, %v4020, 0
      %v4026 = vsel %vm538, %v4021, 0
      %v4029 = vsel %vm724, %v2519, 0
      %4031 = vmatprep.subr.bf16.mxu0 0
      %4032 = vmatpush1.bf16.msra.mxu0 %v4029
      %4033 = vmatprep.subr.bf16.mxu0 0
      %4034 = vmatpush1.bf16.msra.mxu0 0
      %4035 = vmatprep.subr.bf16.mxu0 0
      %4036 = vmatpush1.bf16.msra.mxu0 0
      %4037 = vmatprep.subr.bf16.mxu0 0
      %4038 = vmatpush1.bf16.msra.mxu0 0
      %4039 = vmatprep.subr.bf16.mxu0 0
      %4040 = vmatpush1.bf16.msra.mxu0 0
      %4041 = vmatprep.subr.bf16.mxu0 0
      %4042 = vmatpush1.bf16.msra.mxu0 0
      %4043 = vmatprep.subr.bf16.mxu0 0
      %4044 = vmatpush1.bf16.msra.mxu0 0
      %4045 = vmatprep.subr.bf16.mxu0 0
      %4046 = vmatpush1.bf16.msra.mxu0 0
      %4047 = vmatprep.subr.bf16.mxu0 0
      %4048 = vmatpush1.bf16.msra.mxu0 0
      %4049 = vmatprep.subr.bf16.mxu0 0
      %4050 = vmatpush1.bf16.msra.mxu0 0
      %4051 = vmatprep.subr.bf16.mxu0 0
      %4052 = vmatpush1.bf16.msra.mxu0 0
      %4053 = vmatprep.subr.bf16.mxu0 0
      %4054 = vmatpush1.bf16.msra.mxu0 0
      %4055 = vmatprep.subr.bf16.mxu0 0
      %4056 = vmatpush1.bf16.msra.mxu0 0
      %4057 = vmatprep.subr.bf16.mxu0 0
      %4058 = vmatpush1.bf16.msra.mxu0 0
      %4059 = vmatprep.subr.bf16.mxu0 0
      %4060 = vmatpush1.bf16.msra.mxu0 0
      %4061 = vmatprep.subr.bf16.mxu0 0
      %4062 = vmatpush1.bf16.msra.mxu0 0
      %4063 = vmatprep.mubr.bf16.mxu0 0
      %4064 = vmatmul.mubr.bf16.gmra.mrb[0].mxu0 %v4023
      %v4065 = vpop.f32.mrb[0].mxu0
      %v4066 = vadd.f32 0.0, %v4065
      %v4067 = vpop.f32.mrb[0].mxu0
      %v4068 = vpop.f32.mrb[0].mxu0
      %v4069 = vadd.f32 0.0, %v4068
      %v4070 = vpop.f32.mrb[0].mxu0
      %4071 = vmatprep.mubr.bf16.mxu0 0
      %4072 = vmatmul.mubr.bf16.gmra.mrb[0].mxu0 %v4026
      %v4073 = vpop.f32.mrb[0].mxu0
      %v4074 = vadd.f32 0.0, %v4073
      %v4075 = vpop.f32.mrb[0].mxu0
      %v4076 = vpop.f32.mrb[0].mxu0
      %v4077 = vpop.f32.mrb[0].mxu0
      %4078 = vdwg.mxu0
      %v4079 = vadd.f32 %v3687, %v4066
      %v4080 = vadd.f32 %v3688, %v4069
      %v4081 = vadd.f32 %v3689, %v4074
      %s4082 = scalar_lea.vmem %s4, 1
      %v4083 = vld [vmem:[%s4082] sm:$0x1]
      %v4085 = vlaneseq
      %v4086 = vshrl.u32 %v4085, 7
      %v4087 = vsub.s32 0, %v4086
      %v4088 = vrot.slane %v4083, %v4087
      %v4090 = vadd.f32 %v4079, %v4088
      %v4091 = vadd.f32 %v4080, %v4088
      %v4092 = vadd.f32 %v4081, %v4088
      %v4093 = vadd.f32 %v2431, %v4090
      %v4094 = vadd.f32 %v2432, %v4091
      %v4095 = vadd.f32 %v2433, %v4092
      %s4096 = scalar_lea.vmem %s5, 1
      %v4097 = vld [vmem:[%s4096] sm:$0x1]
      %s4098 = scalar_lea.vmem %s6, 1
      %v4099 = vld [vmem:[%s4098] sm:$0x1]
      %v4100 = vsel %vm473, %v4093, 0.0
      %4101 = vadd.xlane.f32.xlu0 %v4100
      %v4102 = vpop.xlane.xlu0 %4101
      %v4103 = vsel %vm473, %v4094, 0.0
      %4104 = vadd.xlane.f32.xlu0 %v4103
      %v4105 = vpop.xlane.xlu0 %4104
      %v4106 = vsel %vm473, %v4095, 0.0
      %4107 = vadd.xlane.f32.xlu0 %v4106
      %v4108 = vpop.xlane.xlu0 %4107
      %v4109 = vmul.f32 %v4102, %v2120
      %v4110 = vmul.f32 %v4105, %v2120
      %v4111 = vmul.f32 %v4108, %v2120
      %v4112 = vsub.f32 %v4093, %v4109
      %v4113 = vsub.f32 %v4094, %v4110
      %v4114 = vsub.f32 %v4095, %v4111
      %v4115 = vmul.f32 %v4112, %v4112
      %v4116 = vmul.f32 %v4113, %v4113
      %v4117 = vmul.f32 %v4114, %v4114
      %v4118 = vsel %vm473, %v4115, 0.0
      %4119 = vadd.xlane.f32.xlu0 %v4118
      %v4120 = vpop.xlane.xlu0 %4119
      %v4121 = vsel %vm473, %v4116, 0.0
      %4122 = vadd.xlane.f32.xlu0 %v4121
      %v4123 = vpop.xlane.xlu0 %4122
      %v4124 = vsel %vm473, %v4117, 0.0
      %4125 = vadd.xlane.f32.xlu0 %v4124
      %v4126 = vpop.xlane.xlu0 %4125
      %v4127 = vmul.f32 %v4120, %v2120
      %v4128 = vmul.f32 %v4123, %v2120
      %v4129 = vmul.f32 %v4126, %v2120
      %v4130 = vadd.f32 %v4127, 1e-05
      %v4131 = vadd.f32 %v4128, 1e-05
      %v4132 = vadd.f32 %v4129, 1e-05
      %v4133 = vrsqrt.pop %v4130
      %v4134 = vrsqrt.pop %v4131
      %v4135 = vrsqrt.pop %v4132
      %v4136 = vmul.f32 %v4112, %v4133
      %v4137 = vmul.f32 %v4113, %v4134
      %v4138 = vmul.f32 %v4114, %v4135
      %v4140 = vlaneseq
      %v4141 = vshrl.u32 %v4140, 7
      %v4142 = vsub.s32 0, %v4141
      %v4143 = vrot.slane %v4097, %v4142
      %v4145 = vmul.f32 %v4136, %v4143
      %v4146 = vmul.f32 %v4137, %v4143
      %v4147 = vmul.f32 %v4138, %v4143
      %v4149 = vlaneseq
      %v4150 = vshrl.u32 %v4149, 7
      %v4151 = vsub.s32 0, %v4150
      %v4152 = vrot.slane %v4099, %v4151
      %v4154 = vadd.f32 %v4145, %v4152
      %v4155 = vadd.f32 %v4146, %v4152
      %v4156 = vadd.f32 %v4147, %v4152
      %v4157 = vpack.c.bf16 %v4155, %v4154
      %v4158 = vpack.c.bf16 %v4156, %v4156
      %s4159 = scalar_lea.vmem %s7, 16
      %v4160 = vld [vmem:[%s4159] sm:$0xf]
      %v4161 = vld [vmem:[%s4159 + $0x4] sm:$0xf]
      %v4162 = vld [vmem:[%s4159 + $0x8] sm:$0xf]
      %v4163 = vld [vmem:[%s4159 + $0xc] sm:$0xf]
      %s4164 = scalar_lea.vmem %s8, 1
      %v4165 = vld [vmem:[%s4164] sm:$0x1]
      %v4167 = vlaneseq
      %v4168 = vshrl.u32 %v4167, 7
      %v4169 = vsub.s32 0, %v4168
      %v4170 = vrot.slane %v4165, %v4169
      %v4176 = vunpack.c.l.b16 %v4160
      %v4177 = vunpack.c.l.b16 %v4161
      %v4178 = vunpack.c.l.b16 %v4162
      %v4179 = vunpack.c.l.b16 %v4163
      %v4180 = vpack.c.b16 %v4177, %v4176
      %v4181 = vpack.c.b16 %v4179, %v4178
      %v4185 = vsel %vm473, %v4157, 0
      %v4188 = vsel %vm473, %v4158, 0
      %4190 = vmatprep.subr.bf16.mxu0 0
      %4191 = vmatpush1.bf16.msra.mxu0 %v4180
      %4192 = vmatprep.subr.bf16.mxu0 0
      %4193 = vmatpush1.bf16.msra.mxu0 %v4181
      %4194 = vmatprep.subr.bf16.mxu0 0
      %4195 = vmatpush1.bf16.msra.mxu0 0
      %4196 = vmatprep.subr.bf16.mxu0 0
      %4197 = vmatpush1.bf16.msra.mxu0 0
      %4198 = vmatprep.subr.bf16.mxu0 0
      %4199 = vmatpush1.bf16.msra.mxu0 0
      %4200 = vmatprep.subr.bf16.mxu0 0
      %4201 = vmatpush1.bf16.msra.mxu0 0
      %4202 = vmatprep.subr.bf16.mxu0 0
      %4203 = vmatpush1.bf16.msra.mxu0 0
      %4204 = vmatprep.subr.bf16.mxu0 0
      %4205 = vmatpush1.bf16.msra.mxu0 0
      %4206 = vmatprep.subr.bf16.mxu0 0
      %4207 = vmatpush1.bf16.msra.mxu0 0
      %4208 = vmatprep.subr.bf16.mxu0 0
      %4209 = vmatpush1.bf16.msra.mxu0 0
      %4210 = vmatprep.subr.bf16.mxu0 0
      %4211 = vmatpush1.bf16.msra.mxu0 0
      %4212 = vmatprep.subr.bf16.mxu0 0
      %4213 = vmatpush1.bf16.msra.mxu0 0
      %4214 = vmatprep.subr.bf16.mxu0 0
      %4215 = vmatpush1.bf16.msra.mxu0 0
      %4216 = vmatprep.subr.bf16.mxu0 0
      %4217 = vmatpush1.bf16.msra.mxu0 0
      %4218 = vmatprep.subr.bf16.mxu0 0
      %4219 = vmatpush1.bf16.msra.mxu0 0
      %4220 = vmatprep.subr.bf16.mxu0 0
      %4221 = vmatpush1.bf16.msra.mxu0 0
      %4222 = vmatprep.mubr.bf16.mxu0 0
      %4223 = vmatmul.mubr.bf16.gmra.mrb[0].mxu0 %v4185
      %v4224 = vpop.f32.mrb[0].mxu0
      %v4225 = vadd.f32 %v4170, %v4224
      %v4226 = vpop.f32.mrb[0].mxu0
      %v4227 = vpop.f32.mrb[0].mxu0
      %v4228 = vadd.f32 %v4170, %v4227
      %v4229 = vpop.f32.mrb[0].mxu0
      %4230 = vmatprep.mubr.bf16.mxu0 0
      %4231 = vmatmul.mubr.bf16.gmra.mrb[0].mxu0 %v4188
      %v4232 = vpop.f32.mrb[0].mxu0
      %v4233 = vadd.f32 %v4170, %v4232
      %v4234 = vpop.f32.mrb[0].mxu0
      %v4235 = vpop.f32.mrb[0].mxu0
      %v4236 = vpop.f32.mrb[0].mxu0
      %4237 = vdwg.mxu0
      %v4238 = vmax.f32 %v4225, 0.0
      %v4239 = vmax.f32 %v4228, 0.0
      %v4240 = vmax.f32 %v4233, 0.0
      %v4241 = vpack.c.bf16 %v4239, %v4238
      %v4242 = vpack.c.bf16 %v4240, %v4240
      %s4243 = scalar_lea.vmem %s9, 64
      %v4244 = vld [vmem:[%s4243] sm:$0xf]
      %v4245 = vld [vmem:[%s4243 + $0x4] sm:$0xf]
      %v4246 = vld [vmem:[%s4243 + $0x8] sm:$0xf]
      %v4247 = vld [vmem:[%s4243 + $0xc] sm:$0xf]
      %v4248 = vld [vmem:[%s4243 + $0x10] sm:$0xf]
      %v4249 = vld [vmem:[%s4243 + $0x14] sm:$0xf]
      %v4250 = vld [vmem:[%s4243 + $0x18] sm:$0xf]
      %v4251 = vld [vmem:[%s4243 + $0x1c] sm:$0xf]
      %v4252 = vld [vmem:[%s4243 + $0x20] sm:$0xf]
      %v4253 = vld [vmem:[%s4243 + $0x24] sm:$0xf]
      %v4254 = vld [vmem:[%s4243 + $0x28] sm:$0xf]
      %v4255 = vld [vmem:[%s4243 + $0x2c] sm:$0xf]
      %v4256 = vld [vmem:[%s4243 + $0x30] sm:$0xf]
      %v4257 = vld [vmem:[%s4243 + $0x34] sm:$0xf]
      %v4258 = vld [vmem:[%s4243 + $0x38] sm:$0xf]
      %v4259 = vld [vmem:[%s4243 + $0x3c] sm:$0xf]
      %s4260 = scalar_lea.vmem %s10, 1
      %v4261 = vld [vmem:[%s4260] sm:$0x1]
      %v4263 = vlaneseq
      %v4264 = vshrl.u32 %v4263, 7
      %v4265 = vsub.s32 0, %v4264
      %v4266 = vrot.slane %v4261, %v4265
      %v4284 = vunpack.c.l.b16 %v4244
      %v4285 = vunpack.c.l.b16 %v4245
      %v4286 = vunpack.c.l.b16 %v4246
      %v4287 = vunpack.c.l.b16 %v4247
      %v4288 = vunpack.c.l.b16 %v4248
      %v4289 = vunpack.c.l.b16 %v4249
      %v4290 = vunpack.c.l.b16 %v4250
      %v4291 = vunpack.c.l.b16 %v4251
      %v4292 = vunpack.c.l.b16 %v4252
      %v4293 = vunpack.c.l.b16 %v4253
      %v4294 = vunpack.c.l.b16 %v4254
      %v4295 = vunpack.c.l.b16 %v4255
      %v4296 = vunpack.c.l.b16 %v4256
      %v4297 = vunpack.c.l.b16 %v4257
      %v4298 = vunpack.c.l.b16 %v4258
      %v4299 = vunpack.c.l.b16 %v4259
      %v4300 = vpack.c.b16 %v4285, %v4284
      %v4301 = vpack.c.b16 %v4287, %v4286
      %v4302 = vpack.c.b16 %v4289, %v4288
      %v4303 = vpack.c.b16 %v4291, %v4290
      %v4304 = vpack.c.b16 %v4293, %v4292
      %v4305 = vpack.c.b16 %v4295, %v4294
      %v4306 = vpack.c.b16 %v4297, %v4296
      %v4307 = vpack.c.b16 %v4299, %v4298
      %4316 = vmatprep.subr.bf16.mxu0 0
      %4317 = vmatpush1.bf16.msra.mxu0 %v4300
      %4318 = vmatprep.subr.bf16.mxu0 0
      %4319 = vmatpush1.bf16.msra.mxu0 %v4301
      %4320 = vmatprep.subr.bf16.mxu0 0
      %4321 = vmatpush1.bf16.msra.mxu0 %v4302
      %4322 = vmatprep.subr.bf16.mxu0 0
      %4323 = vmatpush1.bf16.msra.mxu0 %v4303
      %4324 = vmatprep.subr.bf16.mxu0 0
      %4325 = vmatpush1.bf16.msra.mxu0 %v4304
      %4326 = vmatprep.subr.bf16.mxu0 0
      %4327 = vmatpush1.bf16.msra.mxu0 %v4305
      %4328 = vmatprep.subr.bf16.mxu0 0
      %4329 = vmatpush1.bf16.msra.mxu0 %v4306
      %4330 = vmatprep.subr.bf16.mxu0 0
      %4331 = vmatpush1.bf16.msra.mxu0 %v4307
      %4332 = vmatprep.subr.bf16.mxu0 0
      %4333 = vmatpush1.bf16.msra.mxu0 0
      %4334 = vmatprep.subr.bf16.mxu0 0
      %4335 = vmatpush1.bf16.msra.mxu0 0
      %4336 = vmatprep.subr.bf16.mxu0 0
      %4337 = vmatpush1.bf16.msra.mxu0 0
      %4338 = vmatprep.subr.bf16.mxu0 0
      %4339 = vmatpush1.bf16.msra.mxu0 0
      %4340 = vmatprep.subr.bf16.mxu0 0
      %4341 = vmatpush1.bf16.msra.mxu0 0
      %4342 = vmatprep.subr.bf16.mxu0 0
      %4343 = vmatpush1.bf16.msra.mxu0 0
      %4344 = vmatprep.subr.bf16.mxu0 0
      %4345 = vmatpush1.bf16.msra.mxu0 0
      %4346 = vmatprep.subr.bf16.mxu0 0
      %4347 = vmatpush1.bf16.msra.mxu0 0
      %4348 = vmatprep.mubr.bf16.mxu0 0
      %4349 = vmatmul.mubr.bf16.gmra.mrb[0].mxu0 %v4241
      %v4350 = vpop.f32.mrb[0].mxu0
      %v4351 = vadd.f32 %v4266, %v4350
      %v4352 = vpop.f32.mrb[0].mxu0
      %v4353 = vpop.f32.mrb[0].mxu0
      %v4354 = vadd.f32 %v4266, %v4353
      %v4355 = vpop.f32.mrb[0].mxu0
      %4356 = vmatprep.mubr.bf16.mxu0 0
      %4357 = vmatmul.mubr.bf16.gmra.mrb[0].mxu0 %v4242
      %v4358 = vpop.f32.mrb[0].mxu0
      %v4359 = vadd.f32 %v4266, %v4358
      %v4360 = vpop.f32.mrb[0].mxu0
      %v4361 = vpop.f32.mrb[0].mxu0
      %v4362 = vpop.f32.mrb[0].mxu0
      %4363 = vdwg.mxu0
      %v4364 = vadd.f32 %v4154, %v4351
      %v4365 = vadd.f32 %v4155, %v4354
      %v4366 = vadd.f32 %v4156, %v4359
      %s4367 = scalar_lea.vmem %s11, 1
      %v4368 = vld [vmem:[%s4367] sm:$0x1]
      %s4369 = scalar_lea.vmem %s12, 1
      %v4370 = vld [vmem:[%s4369] sm:$0x1]
      %v4371 = vsel %vm473, %v4364, 0.0
      %4372 = vadd.xlane.f32.xlu0 %v4371
      %v4373 = vpop.xlane.xlu0 %4372
      %v4374 = vsel %vm473, %v4365, 0.0
      %4375 = vadd.xlane.f32.xlu0 %v4374
      %v4376 = vpop.xlane.xlu0 %4375
      %v4377 = vsel %vm473, %v4366, 0.0
      %4378 = vadd.xlane.f32.xlu0 %v4377
      %v4379 = vpop.xlane.xlu0 %4378
      %v4380 = vmul.f32 %v4373, %v2120
      %v4381 = vmul.f32 %v4376, %v2120
      %v4382 = vmul.f32 %v4379, %v2120
      %v4383 = vsub.f32 %v4364, %v4380
      %v4384 = vsub.f32 %v4365, %v4381
      %v4385 = vsub.f32 %v4366, %v4382
      %v4386 = vmul.f32 %v4383, %v4383
      %v4387 = vmul.f32 %v4384, %v4384
      %v4388 = vmul.f32 %v4385, %v4385
      %v4389 = vsel %vm473, %v4386, 0.0
      %4390 = vadd.xlane.f32.xlu0 %v4389
      %v4391 = vpop.xlane.xlu0 %4390
      %v4392 = vsel %vm473, %v4387, 0.0
      %4393 = vadd.xlane.f32.xlu0 %v4392
      %v4394 = vpop.xlane.xlu0 %4393
      %v4395 = vsel %vm473, %v4388, 0.0
      %4396 = vadd.xlane.f32.xlu0 %v4395
      %v4397 = vpop.xlane.xlu0 %4396
      %v4398 = vmul.f32 %v4391, %v2120
      %v4399 = vmul.f32 %v4394, %v2120
      %v4400 = vmul.f32 %v4397, %v2120
      %v4401 = vadd.f32 %v4398, 1e-05
      %v4402 = vadd.f32 %v4399, 1e-05
      %v4403 = vadd.f32 %v4400, 1e-05
      %v4404 = vrsqrt.pop %v4401
      %v4405 = vrsqrt.pop %v4402
      %v4406 = vrsqrt.pop %v4403
      %v4407 = vmul.f32 %v4383, %v4404
      %v4408 = vmul.f32 %v4384, %v4405
      %v4409 = vmul.f32 %v4385, %v4406
      %v4411 = vlaneseq
      %v4412 = vshrl.u32 %v4411, 7
      %v4413 = vsub.s32 0, %v4412
      %v4414 = vrot.slane %v4368, %v4413
      %v4416 = vmul.f32 %v4407, %v4414
      %v4417 = vmul.f32 %v4408, %v4414
      %v4418 = vmul.f32 %v4409, %v4414
      %v4420 = vlaneseq
      %v4421 = vshrl.u32 %v4420, 7
      %v4422 = vsub.s32 0, %v4421
      %v4423 = vrot.slane %v4370, %v4422
      %v4425 = vadd.f32 %v4416, %v4423
      %v4426 = vadd.f32 %v4417, %v4423
      %v4427 = vadd.f32 %v4418, %v4423
      %4428 = vst.msk [vmem:[%s442] sm:$0xff] %vm473, %v4425
      %4429 = vst.msk [vmem:[%s442 + $0x8] sm:$0xff] %vm473, %v4426
      %4430 = vst.msk [vmem:[%s442 + $0x10] sm:$0xff] %vm473, %v4427
      %s4431 = smul.u32 3, %s24
      %p4432 = scmp.lt.s32.totalorder %s4431, 5
      %s4433 = scalar_select %p4432, %s4431, 5
      %s4434 = smul.addr %s4433, 8
      %s4435 = scalar_lea.vmem %s13, %s4434
      // Predicated region
      $region73: #{tpu_custom_call.1} parent=71 // pred_check
        %p4436 = pneg %p320
      $region74: #{tpu_custom_call.1} parent=71 // pred_check_branch
        %4438 = sbr.rel (%p4436) target = $region76
      $region75: #{tpu_custom_call.1} parent=71 // pred_region
        %s4439 = smul.u32 3, %s24
      $region76: #{tpu_custom_call.1} parent=71 // pred_fallthru
        _
    $region72: #{tpu_custom_call.1} parent=5 // pred_fallthru
      _
    %p4440 = scmp.le.s32.totalorder 2, %s19
    // Predicated region
    $region77: #{tpu_custom_call.1} parent=5 // pred_check
      %p4441 = pneg %p4440
    $region78: #{tpu_custom_call.1} parent=5 // pred_check_branch
      %4443 = sbr.rel (%p4441) target = $region80
    $region79: #{tpu_custom_call.1} parent=5 // pred_region
      %s4444 = ssub.s32 %s19, 2
      // Predicated region
      $region81: #{tpu_custom_call.1} parent=79 // pred_check
        %p4445 = pneg %p326
      $region82: #{tpu_custom_call.1} parent=79 // pred_check_branch
        %4447 = sbr.rel (%p4445) target = $region84
      $region83: #{tpu_custom_call.1} parent=79 // pred_region
        %s4448 = smul.u32 3, %s25
        %p4449 = scmp.lt.s32.totalorder %s4448, 5
        %s4450 = scalar_select %p4449, %s4448, 5
        %s4451 = smul.addr %s4450, 8
        %s4452 = scalar_lea.vmem %s13, %s4451
      $region84: #{tpu_custom_call.1} parent=79 // pred_fallthru
        _
    $region80: #{tpu_custom_call.1} parent=5 // pred_fallthru
      _
  $region6: #{tpu_custom_call.1} parent=0 // loop_footer
    %s23 = sadd.s32 1, %s19
  $region7: #{tpu_custom_call.1} parent=0 // loop_footer_branch
    %18 = sbr.rel target = $region3
  $region8: #{tpu_custom_call.1} parent=0 // loop_exit
    _

// kernel: tpu_custom_call.1
$region0: #{tpu_custom_call.1}
  #allocation0 [shape = 'u32[]', space=smem, size = 0x4, offset = 0x4, fixed_abs, tag = 'smem constant byte address 0x4 - core index']
  #allocation1 [shape = 'u32[144,128]{1,0:T(1,128)}', space=vmem, size = 0x12000, scoped, tag = 'internal scratch']
  %s0 = inlined_call_operand.vmem [shape: f32[48,32], index: 0, kind: input, shape index: {}]
  %s1 = inlined_call_operand.vmem [shape: bf16[2,32,96], index: 1, kind: input, shape index: {}]
  %s2 = inlined_call_operand.vmem [shape: f32[2,1,96], index: 2, kind: input, shape index: {}]
  %s3 = inlined_call_operand.vmem [shape: bf16[2,32,32], index: 3, kind: input, shape index: {}]
  %s4 = inlined_call_operand.vmem [shape: f32[2,1,32], index: 4, kind: input, shape index: {}]
  %s5 = inlined_call_operand.vmem [shape: f32[2,1,32], index: 5, kind: input, shape index: {}]
  %s6 = inlined_call_operand.vmem [shape: f32[2,1,32], index: 6, kind: input, shape index: {}]
  %s7 = inlined_call_operand.vmem [shape: bf16[2,32,128], index: 7, kind: input, shape index: {}]
  %s8 = inlined_call_operand.vmem [shape: f32[2,1,128], index: 8, kind: input, shape index: {}]
  %s9 = inlined_call_operand.vmem [shape: bf16[2,128,32], index: 9, kind: input, shape index: {}]
  %s10 = inlined_call_operand.vmem [shape: f32[2,1,32], index: 10, kind: input, shape index: {}]
  %s11 = inlined_call_operand.vmem [shape: f32[2,1,32], index: 11, kind: input, shape index: {}]
  %s12 = inlined_call_operand.vmem [shape: f32[2,1,32], index: 12, kind: input, shape index: {}]
  %s13 = inlined_call_operand.vmem [shape: f32[48,32], index: 13, kind: output, shape index: {}]
  %s14 = sld [smem:[#allocation0]]
  $region85: #{tpu_custom_call.1} parent=0
    _
  %s16 = ssub.s32 1, %s14
  %s17 = scalar_select 0, %s16, %s14
  loop: start=0, step=1, limit=4
  $region2: #{tpu_custom_call.1} parent=0 // loop_pre_header
    _
  $region3: #{tpu_custom_call.1} parent=0 // loop_header
    %s19 = sphi 0, %s23
    %p20 = scmp.ge.s32.totalorder %s19, 4
    %s29 = sphi 0, %s31
    %s32 = sphi 0, %s29
    %s33 = sphi 0, %s32
    %s49 = sphi 0, %s33
    %s53 = sphi 0, %s53
    %s55 = sphi 0, %s53
    %s56 = sphi 0, %s55
    %s70 = sphi 0, %s56
    %s74 = sphi 0, %s74
    %s76 = sphi 0, %s74
    %s77 = sphi 0, %s76
    %s91 = sphi 0, %s77
    %s95 = sphi 0, %s95
    %s97 = sphi 0, %s95
    %s98 = sphi 0, %s97
    %s112 = sphi 0, %s98
    %s116 = sphi 0, %s116
    %s118 = sphi 0, %s116
    %s119 = sphi 0, %s118
    %s133 = sphi 0, %s119
    %s137 = sphi 0, %s137
    %s139 = sphi 0, %s137
    %s140 = sphi 0, %s139
    %s154 = sphi 0, %s140
    %s158 = sphi 0, %s158
    %s160 = sphi 0, %s158
    %s161 = sphi 0, %s160
    %s175 = sphi 0, %s161
    %s179 = sphi 0, %s179
    %s181 = sphi 0, %s179
    %s182 = sphi 0, %s181
    %s196 = sphi 0, %s182
    %s200 = sphi 0, %s200
    %s202 = sphi 0, %s200
    %s203 = sphi 0, %s202
    %s217 = sphi 0, %s203
    %s221 = sphi 0, %s221
    %s223 = sphi 0, %s221
    %s224 = sphi 0, %s223
    %s238 = sphi 0, %s224
    %s242 = sphi 0, %s242
    %s244 = sphi 0, %s242
    %s245 = sphi 0, %s244
    %s259 = sphi 0, %s245
    %s263 = sphi 0, %s263
    %s265 = sphi 0, %s263
    %s266 = sphi 0, %s265
    %s280 = sphi 0, %s266
    %s284 = sphi 0, %s284
    %s286 = sphi 0, %s284
    %s287 = sphi 0, %s286
    %s301 = sphi 0, %s287
    %s307 = sphi 0, %s309
    %s310 = sphi 0, %s307
    %s311 = sphi 0, %s310
    %s327 = sphi 0, %s311
  $region4: #{tpu_custom_call.1} parent=0 // loop_header_branch
    %22 = sbr.rel (%p20) target = $region8
  $region5: #{tpu_custom_call.1} parent=0 // loop_body
    %s24 = ssub.s32 %s19, 1
    %s25 = ssub.s32 %s19, 2
    %s26 = sadd.s32 %s19, 1
    %s27 = ssub.s32 %s19, %s26
    %p28 = scmp.eq.s32.totalorder %s27, 0
    %s30 = sadd.s32 %s29, 1
    %s31 = scalar_select %p28, %s29, %s30
    %p34 = pneg %p28
    %p35 = scmp.eq.s32.totalorder %s19, 1
    %p36 = por %p34, %p35
    %p37 = scmp.ne.s32.totalorder %s29, %s32
    %p38 = scmp.eq.s32.totalorder %s19, 0
    %p39 = por %p37, %p38
    %p40 = scmp.ne.s32.totalorder %s29, %s32
    %p41 = scmp.eq.s32.totalorder %s24, 1
    %p42 = por %p40, %p41
    %p43 = scmp.ne.s32.totalorder %s32, %s33
    %p44 = scmp.eq.s32.totalorder %s24, 0
    %p45 = por %p43, %p44
    %p46 = scmp.ne.s32.totalorder %s32, %s33
    %p47 = scmp.eq.s32.totalorder %s25, 1
    %p48 = por %p46, %p47
    %p50 = scmp.ne.s32.totalorder %s33, %s49
    %p51 = scmp.eq.s32.totalorder %s25, 0
    %p52 = por %p50, %p51
    %s54 = sadd.s32 %s53, 1
    %p57 = scmp.eq.s32.totalorder %s19, 1
    %p58 = scmp.ne.s32.totalorder %s53, %s55
    %p59 = scmp.eq.s32.totalorder %s19, 0
    %p60 = por %p58, %p59
    %p61 = scmp.ne.s32.totalorder %s53, %s55
    %p62 = scmp.eq.s32.totalorder %s24, 1
    %p63 = por %p61, %p62
    %p64 = scmp.ne.s32.totalorder %s55, %s56
    %p65 = scmp.eq.s32.totalorder %s24, 0
    %p66 = por %p64, %p65
    %p67 = scmp.ne.s32.totalorder %s55, %s56
    %p68 = scmp.eq.s32.totalorder %s25, 1
    %p69 = por %p67, %p68
    %p71 = scmp.ne.s32.totalorder %s56, %s70
    %p72 = scmp.eq.s32.totalorder %s25, 0
    %p73 = por %p71, %p72
    %s75 = sadd.s32 %s74, 1
    %p78 = scmp.eq.s32.totalorder %s19, 1
    %p79 = scmp.ne.s32.totalorder %s74, %s76
    %p80 = scmp.eq.s32.totalorder %s19, 0
    %p81 = por %p79, %p80
    %p82 = scmp.ne.s32.totalorder %s74, %s76
    %p83 = scmp.eq.s32.totalorder %s24, 1
    %p84 = por %p82, %p83
    %p85 = scmp.ne.s32.totalorder %s76, %s77
    %p86 = scmp.eq.s32.totalorder %s24, 0
    %p87 = por %p85, %p86
    %p88 = scmp.ne.s32.totalorder %s76, %s77
    %p89 = scmp.eq.s32.totalorder %s25, 1
    %p90 = por %p88, %p89
    %p92 = scmp.ne.s32.totalorder %s77, %s91
    %p93 = scmp.eq.s32.totalorder %s25, 0
    %p94 = por %p92, %p93
    %s96 = sadd.s32 %s95, 1
    %p99 = scmp.eq.s32.totalorder %s19, 1
    %p100 = scmp.ne.s32.totalorder %s95, %s97
    %p101 = scmp.eq.s32.totalorder %s19, 0
    %p102 = por %p100, %p101
    %p103 = scmp.ne.s32.totalorder %s95, %s97
    %p104 = scmp.eq.s32.totalorder %s24, 1
    %p105 = por %p103, %p104
    %p106 = scmp.ne.s32.totalorder %s97, %s98
    %p107 = scmp.eq.s32.totalorder %s24, 0
    %p108 = por %p106, %p107
    %p109 = scmp.ne.s32.totalorder %s97, %s98
    %p110 = scmp.eq.s32.totalorder %s25, 1
    %p111 = por %p109, %p110
    %p113 = scmp.ne.s32.totalorder %s98, %s112
    %p114 = scmp.eq.s32.totalorder %s25, 0
    %p115 = por %p113, %p114
    %s117 = sadd.s32 %s116, 1
    %p120 = scmp.eq.s32.totalorder %s19, 1
    %p121 = scmp.ne.s32.totalorder %s116, %s118
    %p122 = scmp.eq.s32.totalorder %s19, 0
    %p123 = por %p121, %p122
    %p124 = scmp.ne.s32.totalorder %s116, %s118
    %p125 = scmp.eq.s32.totalorder %s24, 1
    %p126 = por %p124, %p125
    %p127 = scmp.ne.s32.totalorder %s118, %s119
    %p128 = scmp.eq.s32.totalorder %s24, 0
    %p129 = por %p127, %p128
    %p130 = scmp.ne.s32.totalorder %s118, %s119
    %p131 = scmp.eq.s32.totalorder %s25, 1
    %p132 = por %p130, %p131
    %p134 = scmp.ne.s32.totalorder %s119, %s133
    %p135 = scmp.eq.s32.totalorder %s25, 0
    %p136 = por %p134, %p135
    %s138 = sadd.s32 %s137, 1
    %p141 = scmp.eq.s32.totalorder %s19, 1
    %p142 = scmp.ne.s32.totalorder %s137, %s139
    %p143 = scmp.eq.s32.totalorder %s19, 0
    %p144 = por %p142, %p143
    %p145 = scmp.ne.s32.totalorder %s137, %s139
    %p146 = scmp.eq.s32.totalorder %s24, 1
    %p147 = por %p145, %p146
    %p148 = scmp.ne.s32.totalorder %s139, %s140
    %p149 = scmp.eq.s32.totalorder %s24, 0
    %p150 = por %p148, %p149
    %p151 = scmp.ne.s32.totalorder %s139, %s140
    %p152 = scmp.eq.s32.totalorder %s25, 1
    %p153 = por %p151, %p152
    %p155 = scmp.ne.s32.totalorder %s140, %s154
    %p156 = scmp.eq.s32.totalorder %s25, 0
    %p157 = por %p155, %p156
    %s159 = sadd.s32 %s158, 1
    %p162 = scmp.eq.s32.totalorder %s19, 1
    %p163 = scmp.ne.s32.totalorder %s158, %s160
    %p164 = scmp.eq.s32.totalorder %s19, 0
    %p165 = por %p163, %p164
    %p166 = scmp.ne.s32.totalorder %s158, %s160
    %p167 = scmp.eq.s32.totalorder %s24, 1
    %p168 = por %p166, %p167
    %p169 = scmp.ne.s32.totalorder %s160, %s161
    %p170 = scmp.eq.s32.totalorder %s24, 0
    %p171 = por %p169, %p170
    %p172 = scmp.ne.s32.totalorder %s160, %s161
    %p173 = scmp.eq.s32.totalorder %s25, 1
    %p174 = por %p172, %p173
    %p176 = scmp.ne.s32.totalorder %s161, %s175
    %p177 = scmp.eq.s32.totalorder %s25, 0
    %p178 = por %p176, %p177
    %s180 = sadd.s32 %s179, 1
    %p183 = scmp.eq.s32.totalorder %s19, 1
    %p184 = scmp.ne.s32.totalorder %s179, %s181
    %p185 = scmp.eq.s32.totalorder %s19, 0
    %p186 = por %p184, %p185
    %p187 = scmp.ne.s32.totalorder %s179, %s181
    %p188 = scmp.eq.s32.totalorder %s24, 1
    %p189 = por %p187, %p188
    %p190 = scmp.ne.s32.totalorder %s181, %s182
    %p191 = scmp.eq.s32.totalorder %s24, 0
    %p192 = por %p190, %p191
    %p193 = scmp.ne.s32.totalorder %s181, %s182
    %p194 = scmp.eq.s32.totalorder %s25, 1
    %p195 = por %p193, %p194
    %p197 = scmp.ne.s32.totalorder %s182, %s196
    %p198 = scmp.eq.s32.totalorder %s25, 0
    %p199 = por %p197, %p198
    %s201 = sadd.s32 %s200, 1
    %p204 = scmp.eq.s32.totalorder %s19, 1
    %p205 = scmp.ne.s32.totalorder %s200, %s202
    %p206 = scmp.eq.s32.totalorder %s19, 0
    %p207 = por %p205, %p206
    %p208 = scmp.ne.s32.totalorder %s200, %s202
    %p209 = scmp.eq.s32.totalorder %s24, 1
    %p210 = por %p208, %p209
    %p211 = scmp.ne.s32.totalorder %s202, %s203
    %p212 = scmp.eq.s32.totalorder %s24, 0
    %p213 = por %p211, %p212
    %p214 = scmp.ne.s32.totalorder %s202, %s203
    %p215 = scmp.eq.s32.totalorder %s25, 1
    %p216 = por %p214, %p215
    %p218 = scmp.ne.s32.totalorder %s203, %s217
    %p219 = scmp.eq.s32.totalorder %s25, 0
    %p220 = por %p218, %p219
    %s222 = sadd.s32 %s221, 1
    %p225 = scmp.eq.s32.totalorder %s19, 1
    %p226 = scmp.ne.s32.totalorder %s221, %s223
    %p227 = scmp.eq.s32.totalorder %s19, 0
    %p228 = por %p226, %p227
    %p229 = scmp.ne.s32.totalorder %s221, %s223
    %p230 = scmp.eq.s32.totalorder %s24, 1
    %p231 = por %p229, %p230
    %p232 = scmp.ne.s32.totalorder %s223, %s224
    %p233 = scmp.eq.s32.totalorder %s24, 0
    %p234 = por %p232, %p233
    %p235 = scmp.ne.s32.totalorder %s223, %s224
    %p236 = scmp.eq.s32.totalorder %s25, 1
    %p237 = por %p235, %p236
    %p239 = scmp.ne.s32.totalorder %s224, %s238
    %p240 = scmp.eq.s32.totalorder %s25, 0
    %p241 = por %p239, %p240
    %s243 = sadd.s32 %s242, 1
    %p246 = scmp.eq.s32.totalorder %s19, 1
    %p247 = scmp.ne.s32.totalorder %s242, %s244
    %p248 = scmp.eq.s32.totalorder %s19, 0
    %p249 = por %p247, %p248
    %p250 = scmp.ne.s32.totalorder %s242, %s244
    %p251 = scmp.eq.s32.totalorder %s24, 1
    %p252 = por %p250, %p251
    %p253 = scmp.ne.s32.totalorder %s244, %s245
    %p254 = scmp.eq.s32.totalorder %s24, 0
    %p255 = por %p253, %p254
    %p256 = scmp.ne.s32.totalorder %s244, %s245
    %p257 = scmp.eq.s32.totalorder %s25, 1
    %p258 = por %p256, %p257
    %p260 = scmp.ne.s32.totalorder %s245, %s259
    %p261 = scmp.eq.s32.totalorder %s25, 0
    %p262 = por %p260, %p261
    %s264 = sadd.s32 %s263, 1
    %p267 = scmp.eq.s32.totalorder %s19, 1
    %p268 = scmp.ne.s32.totalorder %s263, %s265
    %p269 = scmp.eq.s32.totalorder %s19, 0
    %p270 = por %p268, %p269
    %p271 = scmp.ne.s32.totalorder %s263, %s265
    %p272 = scmp.eq.s32.totalorder %s24, 1
    %p273 = por %p271, %p272
    %p274 = scmp.ne.s32.totalorder %s265, %s266
    %p275 = scmp.eq.s32.totalorder %s24, 0
    %p276 = por %p274, %p275
    %p277 = scmp.ne.s32.totalorder %s265, %s266
    %p278 = scmp.eq.s32.totalorder %s25, 1
    %p279 = por %p277, %p278
    %p281 = scmp.ne.s32.totalorder %s266, %s280
    %p282 = scmp.eq.s32.totalorder %s25, 0
    %p283 = por %p281, %p282
    %s285 = sadd.s32 %s284, 1
    %p288 = scmp.eq.s32.totalorder %s19, 1
    %p289 = scmp.ne.s32.totalorder %s284, %s286
    %p290 = scmp.eq.s32.totalorder %s19, 0
    %p291 = por %p289, %p290
    %p292 = scmp.ne.s32.totalorder %s284, %s286
    %p293 = scmp.eq.s32.totalorder %s24, 1
    %p294 = por %p292, %p293
    %p295 = scmp.ne.s32.totalorder %s286, %s287
    %p296 = scmp.eq.s32.totalorder %s24, 0
    %p297 = por %p295, %p296
    %p298 = scmp.ne.s32.totalorder %s286, %s287
    %p299 = scmp.eq.s32.totalorder %s25, 1
    %p300 = por %p298, %p299
    %p302 = scmp.ne.s32.totalorder %s287, %s301
    %p303 = scmp.eq.s32.totalorder %s25, 0
    %p304 = por %p302, %p303
    %s305 = ssub.s32 %s19, %s26
    %p306 = scmp.eq.s32.totalorder %s305, 0
    %s308 = sadd.s32 %s307, 1
    %s309 = scalar_select %p306, %s307, %s308
    %p312 = pneg %p306
    %p313 = scmp.eq.s32.totalorder %s19, 1
    %p314 = por %p312, %p313
    %p315 = scmp.ne.s32.totalorder %s307, %s310
    %p316 = scmp.eq.s32.totalorder %s19, 0
    %p317 = por %p315, %p316
    %p318 = scmp.ne.s32.totalorder %s307, %s310
    %p319 = scmp.eq.s32.totalorder %s24, 1
    %p320 = por %p318, %p319
    %p321 = scmp.ne.s32.totalorder %s310, %s311
    %p322 = scmp.eq.s32.totalorder %s24, 0
    %p323 = por %p321, %p322
    %p324 = scmp.ne.s32.totalorder %s310, %s311
    %p325 = scmp.eq.s32.totalorder %s25, 1
    %p326 = por %p324, %p325
    %p328 = scmp.ne.s32.totalorder %s311, %s327
    %p329 = scmp.eq.s32.totalorder %s25, 0
    %p330 = por %p328, %p329
    %p331 = scmp.le.s32.totalorder 1, %s19
    %p332 = scmp.lt.s32.totalorder %s19, 3
    %p333 = pnand %p331, %p332
    %p334 = pneg %p333
    // Predicated region
    $region9: #{tpu_custom_call.1} parent=5 // pred_check
      _
    $region10: #{tpu_custom_call.1} parent=5 // pred_check_branch
      %336 = sbr.rel (%p333) target = $region12
    $region11: #{tpu_custom_call.1} parent=5 // pred_region
      %s337 = ssub.s32 %s19, 1
      // Predicated region
      $region13: #{tpu_custom_call.1} parent=11 // pred_check
        %p338 = pneg %p66
      $region14: #{tpu_custom_call.1} parent=11 // pred_check_branch
        %340 = sbr.rel (%p338) target = $region16
      $region15: #{tpu_custom_call.1} parent=11 // pred_region
        _
      $region16: #{tpu_custom_call.1} parent=11 // pred_fallthru
        _
      // Predicated region
      $region17: #{tpu_custom_call.1} parent=11 // pred_check
        %p341 = pneg %p87
      $region18: #{tpu_custom_call.1} parent=11 // pred_check_branch
        %343 = sbr.rel (%p341) target = $region20
      $region19: #{tpu_custom_call.1} parent=11 // pred_region
        _
      $region20: #{tpu_custom_call.1} parent=11 // pred_fallthru
        _
      // Predicated region
      $region21: #{tpu_custom_call.1} parent=11 // pred_check
        %p344 = pneg %p108
      $region22: #{tpu_custom_call.1} parent=11 // pred_check_branch
        %346 = sbr.rel (%p344) target = $region24
      $region23: #{tpu_custom_call.1} parent=11 // pred_region
        _
      $region24: #{tpu_custom_call.1} parent=11 // pred_fallthru
        _
      // Predicated region
      $region25: #{tpu_custom_call.1} parent=11 // pred_check
        %p347 = pneg %p129
      $region26: #{tpu_custom_call.1} parent=11 // pred_check_branch
        %349 = sbr.rel (%p347) target = $region28
      $region27: #{tpu_custom_call.1} parent=11 // pred_region
        _
      $region28: #{tpu_custom_call.1} parent=11 // pred_fallthru
        _
      // Predicated region
      $region29: #{tpu_custom_call.1} parent=11 // pred_check
        %p350 = pneg %p150
      $region30: #{tpu_custom_call.1} parent=11 // pred_check_branch
        %352 = sbr.rel (%p350) target = $region32
      $region31: #{tpu_custom_call.1} parent=11 // pred_region
        _
      $region32: #{tpu_custom_call.1} parent=11 // pred_fallthru
        _
      // Predicated region
      $region33: #{tpu_custom_call.1} parent=11 // pred_check
        %p353 = pneg %p171
      $region34: #{tpu_custom_call.1} parent=11 // pred_check_branch
        %355 = sbr.rel (%p353) target = $region36
      $region35: #{tpu_custom_call.1} parent=11 // pred_region
        _
      $region36: #{tpu_custom_call.1} parent=11 // pred_fallthru
        _
      // Predicated region
      $region37: #{tpu_custom_call.1} parent=11 // pred_check
        %p356 = pneg %p192
      $region38: #{tpu_custom_call.1} parent=11 // pred_check_branch
        %358 = sbr.rel (%p356) target = $region40
      $region39: #{tpu_custom_call.1} parent=11 // pred_region
        _
      $region40: #{tpu_custom_call.1} parent=11 // pred_fallthru
        _
      // Predicated region
      $region41: #{tpu_custom_call.1} parent=11 // pred_check
        %p359 = pneg %p213
      $region42: #{tpu_custom_call.1} parent=11 // pred_check_branch
        %361 = sbr.rel (%p359) target = $region44
      $region43: #{tpu_custom_call.1} parent=11 // pred_region
        _
      $region44: #{tpu_custom_call.1} parent=11 // pred_fallthru
        _
      // Predicated region
      $region45: #{tpu_custom_call.1} parent=11 // pred_check
        %p362 = pneg %p234
      $region46: #{tpu_custom_call.1} parent=11 // pred_check_branch
        %364 = sbr.rel (%p362) target = $region48
      $region47: #{tpu_custom_call.1} parent=11 // pred_region
        _
      $region48: #{tpu_custom_call.1} parent=11 // pred_fallthru
        _
      // Predicated region
      $region49: #{tpu_custom_call.1} parent=11 // pred_check
        %p365 = pneg %p255
      $region50: #{tpu_custom_call.1} parent=11 // pred_check_branch
        %367 = sbr.rel (%p365) target = $region52
      $region51: #{tpu_custom_call.1} parent=11 // pred_region
        _
      $region52: #{tpu_custom_call.1} parent=11 // pred_fallthru
        _
      // Predicated region
      $region53: #{tpu_custom_call.1} parent=11 // pred_check
        %p368 = pneg %p276
      $region54: #{tpu_custom_call.1} parent=11 // pred_check_branch
        %370 = sbr.rel (%p368) target = $region56
      $region55: #{tpu_custom_call.1} parent=11 // pred_region
        _
      $region56: #{tpu_custom_call.1} parent=11 // pred_fallthru
        _
      // Predicated region
      $region57: #{tpu_custom_call.1} parent=11 // pred_check
        %p371 = pneg %p297
      $region58: #{tpu_custom_call.1} parent=11 // pred_check_branch
        %373 = sbr.rel (%p371) target = $region60
      $region59: #{tpu_custom_call.1} parent=11 // pred_region
        _
      $region60: #{tpu_custom_call.1} parent=11 // pred_fallthru
        _
    $region12: #{tpu_custom_call.1} parent=5 // pred_fallthru
      _
    %p374 = scmp.lt.s32.totalorder %s19, 2
    // Predicated region
    $region61: #{tpu_custom_call.1} parent=5 // pred_check
      %p375 = pneg %p374
    $region62: #{tpu_custom_call.1} parent=5 // pred_check_branch
      %377 = sbr.rel (%p375) target = $region64
    $region63: #{tpu_custom_call.1} parent=5 // pred_region
      // Predicated region
      $region65: #{tpu_custom_call.1} parent=63 // pred_check
        %p378 = pneg %p39
      $region66: #{tpu_custom_call.1} parent=63 // pred_check_branch
        %380 = sbr.rel (%p378) target = $region68
      $region67: #{tpu_custom_call.1} parent=63 // pred_region
        %s381 = smul.u32 3, %s19
        %p382 = scmp.lt.s32.totalorder %s381, 5
        %s383 = scalar_select %p382, %s381, 5
        %s384 = smul.addr %s383, 8
        %s385 = scalar_lea.vmem %s0, %s384
        %s386 = smul.u32 3, %s19
      $region68: #{tpu_custom_call.1} parent=63 // pred_fallthru
        _
    $region64: #{tpu_custom_call.1} parent=5 // pred_fallthru
      _
    %p387 = scmp.le.s32.totalorder 1, %s19
    %p388 = scmp.lt.s32.totalorder %s19, 3
    %p389 = pnand %p387, %p388
    %p390 = pneg %p389
    // Predicated region
    $region69: #{tpu_custom_call.1} parent=5 // pred_check
      _
    $region70: #{tpu_custom_call.1} parent=5 // pred_check_branch
      %392 = sbr.rel (%p389) target = $region72
    $region71: #{tpu_custom_call.1} parent=5 // pred_region
      %s393 = ssub.s32 %s19, 1
      %s394 = smul.u32 3, %s24
      %p395 = scmp.lt.s32.totalorder %s394, 5
      %s396 = scalar_select %p395, %s394, 5
      %s397 = smul.addr %s396, 8
      %s398 = scalar_lea.vmem %s0, %s397
      %p399 = pneg %p45
      %p400 = pneg %p42
      %p401 = pneg %p66
      %p402 = pneg %p63
      %p403 = pneg %p87
      %p404 = pneg %p84
      %p405 = pneg %p108
      %p406 = pneg %p105
      %p407 = pneg %p129
      %p408 = pneg %p126
      %p409 = pneg %p150
      %p410 = pneg %p147
      %p411 = pneg %p171
      %p412 = pneg %p168
      %p413 = pneg %p192
      %p414 = pneg %p189
      %p415 = pneg %p213
      %p416 = pneg %p210
      %p417 = pneg %p234
      %p418 = pneg %p231
      %p419 = pneg %p255
      %p420 = pneg %p252
      %p421 = pneg %p276
      %p422 = pneg %p273
      %p423 = pneg %p297
      %p424 = pneg %p294
      %p425 = pneg %p323
      %p426 = pneg %p320
      %s427 = smul.u32 3, %s24
      %p428 = scmp.lt.s32.totalorder %s427, 5
      %s429 = scalar_select %p428, %s427, 5
      %s430 = smul.addr %s429, 8
      %s431 = scalar_lea.vmem %s13, %s430
      %s432 = smul.u32 3, %s24
      %p433 = scmp.lt.s32.totalorder %s432, 5
      %s434 = scalar_select %p433, %s432, 5
      %s435 = smul.addr %s434, 8
      %s436 = scalar_lea.vmem %s0, %s435
      %s437 = smul.u32 3, %s24
      %s438 = smul.u32 3, %s24
      %p439 = scmp.lt.s32.totalorder %s438, 5
      %s440 = scalar_select %p439, %s438, 5
      %s441 = smul.addr %s440, 8
      %s442 = scalar_lea.vmem %s13, %s441
      %s443 = smul.u32 3, %s24
      %v445 = vld [vmem:[%s436] sm:$0xff]
      %v446 = vld [vmem:[%s436 + $0x8] sm:$0xff]
      %v447 = vld [vmem:[%s436 + $0x10] sm:$0xff]
      %v448 = vpack.c.bf16 %v446, %v445
      %v449 = vpack.c.bf16 %v447, %v447
      %v450 = vld [vmem:[%s1] sm:$0xf]
      %v451 = vld [vmem:[%s1 + $0x4] sm:$0xf]
      %v452 = vld [vmem:[%s1 + $0x8] sm:$0xf]
      %v453 = vld [vmem:[%s1 + $0xc] sm:$0xf]
      %v454 = vld [vmem:[%s2] sm:$0x1]
      %v456 = vlaneseq
      %v457 = vshrl.u32 %v456, 7
      %v458 = vsub.s32 0, %v457
      %v459 = vrot.slane %v454, %v458
      %v465 = vunpack.c.l.b16 %v450
      %v466 = vunpack.c.l.b16 %v451
      %v467 = vunpack.c.l.b16 %v452
      %v468 = vunpack.c.l.b16 %v453
      %v469 = vpack.c.b16 %v466, %v465
      %v470 = vpack.c.b16 %v468, %v467
      %vm473 = vcmask 261120
      %v475 = vsel %vm473, %v448, 0
      %v478 = vsel %vm473, %v449, 0
      %480 = vmatprep.subr.bf16.mxu0 0
      %481 = vmatpush1.bf16.msra.mxu0 %v469
      %482 = vmatprep.subr.bf16.mxu0 0
      %483 = vmatpush1.bf16.msra.mxu0 %v470
      %484 = vmatprep.subr.bf16.mxu0 0
      %485 = vmatpush1.bf16.msra.mxu0 0
      %486 = vmatprep.subr.bf16.mxu0 0
      %487 = vmatpush1.bf16.msra.mxu0 0
      %488 = vmatprep.subr.bf16.mxu0 0
      %489 = vmatpush1.bf16.msra.mxu0 0
      %490 = vmatprep.subr.bf16.mxu0 0
      %491 = vmatpush1.bf16.msra.mxu0 0
      %492 = vmatprep.subr.bf16.mxu0 0
      %493 = vmatpush1.bf16.msra.mxu0 0
      %494 = vmatprep.subr.bf16.mxu0 0
      %495 = vmatpush1.bf16.msra.mxu0 0
      %496 = vmatprep.subr.bf16.mxu0 0
      %497 = vmatpush1.bf16.msra.mxu0 0
      %498 = vmatprep.subr.bf16.mxu0 0
      %499 = vmatpush1.bf16.msra.mxu0 0
      %500 = vmatprep.subr.bf16.mxu0 0
      %501 = vmatpush1.bf16.msra.mxu0 0
      %502 = vmatprep.subr.bf16.mxu0 0
      %503 = vmatpush1.bf16.msra.mxu0 0
      %504 = vmatprep.subr.bf16.mxu0 0
      %505 = vmatpush1.bf16.msra.mxu0 0
      %506 = vmatprep.subr.bf16.mxu0 0
      %507 = vmatpush1.bf16.msra.mxu0 0
      %508 = vmatprep.subr.bf16.mxu0 0
      %509 = vmatpush1.bf16.msra.mxu0 0
      %510 = vmatprep.subr.bf16.mxu0 0
      %511 = vmatpush1.bf16.msra.mxu0 0
      %512 = vmatprep.mubr.bf16.mxu0 0
      %513 = vmatmul.mubr.bf16.gmra.mrb[0].mxu0 %v475
      %v514 = vpop.f32.mrb[0].mxu0
      %v515 = vadd.f32 %v459, %v514
      %v516 = vpop.f32.mrb[0].mxu0
      %v517 = vpop.f32.mrb[0].mxu0
      %v518 = vadd.f32 %v459, %v517
      %v519 = vpop.f32.mrb[0].mxu0
      %520 = vmatprep.mubr.bf16.mxu0 0
      %521 = vmatmul.mubr.bf16.gmra.mrb[0].mxu0 %v478
      %v522 = vpop.f32.mrb[0].mxu0
      %v523 = vadd.f32 %v459, %v522
      %v524 = vpop.f32.mrb[0].mxu0
      %v525 = vpop.f32.mrb[0].mxu0
      %v526 = vpop.f32.mrb[0].mxu0
      %527 = vdwg.mxu0
      %v528 = vld [vmem:[%s3] sm:$0xf]
      %v529 = vld [vmem:[%s3 + $0x4] sm:$0xf]
      %v530 = vld [vmem:[%s3 + $0x8] sm:$0xf]
      %v531 = vld [vmem:[%s3 + $0xc] sm:$0xf]
      %v532 = vpack.c.bf16 %v515, %v515
      %v533 = vpack.c.bf16 %v518, %v518
      %v534 = vpack.c.bf16 %v523, %v523
      %536 = vrot.lane.b32.xlu0 %v532, 96
      %v537 = vpop.permute.xlu0 %536
      %vm538 = vcmask 64512
      %v540 = vsel %vm538, %v532, 0
      %v543 = vsel %vm538, %v537, 0
      %545 = vmatprep.subr.bf16.mxu0 0
      %546 = vmatpush1.bf16.xpose.msra.mxu0 %v543
      %547 = vmatprep.subr.bf16.mxu0 0
      %548 = vmatpush1.bf16.xpose.msra.mxu0 0
      %549 = vmatprep.subr.bf16.mxu0 0
      %550 = vmatpush1.bf16.xpose.msra.mxu0 0
      %551 = vmatprep.subr.bf16.mxu0 0
      %552 = vmatpush1.bf16.xpose.msra.mxu0 0
      %553 = vmatprep.subr.bf16.mxu0 0
      %554 = vmatpush1.bf16.xpose.msra.mxu0 0
      %555 = vmatprep.subr.bf16.mxu0 0
      %556 = vmatpush1.bf16.xpose.msra.mxu0 0
      %557 = vmatprep.subr.bf16.mxu0 0
      %558 = vmatpush1.bf16.xpose.msra.mxu0 0
      %559 = vmatprep.subr.bf16.mxu0 0
      %560 = vmatpush1.bf16.xpose.msra.mxu0 0
      %561 = vmatprep.subr.bf16.mxu0 0
      %562 = vmatpush1.bf16.xpose.msra.mxu0 0
      %563 = vmatprep.subr.bf16.mxu0 0
      %564 = vmatpush1.bf16.xpose.msra.mxu0 0
      %565 = vmatprep.subr.bf16.mxu0 0
      %566 = vmatpush1.bf16.xpose.msra.mxu0 0
      %567 = vmatprep.subr.bf16.mxu0 0
      %568 = vmatpush1.bf16.xpose.msra.mxu0 0
      %569 = vmatprep.subr.bf16.mxu0 0
      %570 = vmatpush1.bf16.xpose.msra.mxu0 0
      %571 = vmatprep.subr.bf16.mxu0 0
      %572 = vmatpush1.bf16.xpose.msra.mxu0 0
      %573 = vmatprep.subr.bf16.mxu0 0
      %574 = vmatpush1.bf16.xpose.msra.mxu0 0
      %575 = vmatprep.subr.bf16.mxu0 0
      %576 = vmatpush1.bf16.xpose.msra.mxu0 0
      %577 = vmatprep.mubr.bf16.mxu0 0
      %578 = vmatmul.mubr.bf16.gmra.mrb[0].mxu0 %v540
      %v579 = vpop.f32.mrb[0].mxu0
      %v580 = vadd.f32 0.0, %v579
      %v581 = vpop.f32.mrb[0].mxu0
      %v582 = vpop.f32.mrb[0].mxu0
      %v583 = vpop.f32.mrb[0].mxu0
      %584 = vdwg.mxu0
      %586 = vrot.lane.b32.xlu0 %v533, 96
      %v587 = vpop.permute.xlu0 %586
      %v589 = vsel %vm538, %v533, 0
      %v592 = vsel %vm538, %v587, 0
      %594 = vmatprep.subr.bf16.mxu0 0
      %595 = vmatpush1.bf16.xpose.msra.mxu0 %v592
      %596 = vmatprep.subr.bf16.mxu0 0
      %597 = vmatpush1.bf16.xpose.msra.mxu0 0
      %598 = vmatprep.subr.bf16.mxu0 0
      %599 = vmatpush1.bf16.xpose.msra.mxu0 0
      %600 = vmatprep.subr.bf16.mxu0 0
      %601 = vmatpush1.bf16.xpose.msra.mxu0 0
      %602 = vmatprep.subr.bf16.mxu0 0
      %603 = vmatpush1.bf16.xpose.msra.mxu0 0
      %604 = vmatprep.subr.bf16.mxu0 0
      %605 = vmatpush1.bf16.xpose.msra.mxu0 0
      %606 = vmatprep.subr.bf16.mxu0 0
      %607 = vmatpush1.bf16.xpose.msra.mxu0 0
      %608 = vmatprep.subr.bf16.mxu0 0
      %609 = vmatpush1.bf16.xpose.msra.mxu0 0
      %610 = vmatprep.subr.bf16.mxu0 0
      %611 = vmatpush1.bf16.xpose.msra.mxu0 0
      %612 = vmatprep.subr.bf16.mxu0 0
      %613 = vmatpush1.bf16.xpose.msra.mxu0 0
      %614 = vmatprep.subr.bf16.mxu0 0
      %615 = vmatpush1.bf16.xpose.msra.mxu0 0
      %616 = vmatprep.subr.bf16.mxu0 0
      %617 = vmatpush1.bf16.xpose.msra.mxu0 0
      %618 = vmatprep.subr.bf16.mxu0 0
      %619 = vmatpush1.bf16.xpose.msra.mxu0 0
      %620 = vmatprep.subr.bf16.mxu0 0
      %621 = vmatpush1.bf16.xpose.msra.mxu0 0
      %622 = vmatprep.subr.bf16.mxu0 0
      %623 = vmatpush1.bf16.xpose.msra.mxu0 0
      %624 = vmatprep.subr.bf16.mxu0 0
      %625 = vmatpush1.bf16.xpose.msra.mxu0 0
      %626 = vmatprep.mubr.bf16.mxu0 0
      %627 = vmatmul.mubr.bf16.gmra.mrb[0].mxu0 %v589
      %v628 = vpop.f32.mrb[0].mxu0
      %v629 = vadd.f32 0.0, %v628
      %v630 = vpop.f32.mrb[0].mxu0
      %v631 = vpop.f32.mrb[0].mxu0
      %v632 = vpop.f32.mrb[0].mxu0
      %633 = vdwg.mxu0
      %635 = vrot.lane.b32.xlu0 %v534, 96
      %v636 = vpop.permute.xlu0 %635
      %v638 = vsel %vm538, %v534, 0
      %v641 = vsel %vm538, %v636, 0
      %643 = vmatprep.subr.bf16.mxu0 0
      %644 = vmatpush1.bf16.xpose.msra.mxu0 %v641
      %645 = vmatprep.subr.bf16.mxu0 0
      %646 = vmatpush1.bf16.xpose.msra.mxu0 0
      %647 = vmatprep.subr.bf16.mxu0 0
      %648 = vmatpush1.bf16.xpose.msra.mxu0 0
      %649 = vmatprep.subr.bf16.mxu0 0
      %650 = vmatpush1.bf16.xpose.msra.mxu0 0
      %651 = vmatprep.subr.bf16.mxu0 0
      %652 = vmatpush1.bf16.xpose.msra.mxu0 0
      %653 = vmatprep.subr.bf16.mxu0 0
      %654 = vmatpush1.bf16.xpose.msra.mxu0 0
      %655 = vmatprep.subr.bf16.mxu0 0
      %656 = vmatpush1.bf16.xpose.msra.mxu0 0
      %657 = vmatprep.subr.bf16.mxu0 0
      %658 = vmatpush1.bf16.xpose.msra.mxu0 0
      %659 = vmatprep.subr.bf16.mxu0 0
      %660 = vmatpush1.bf16.xpose.msra.mxu0 0
      %661 = vmatprep.subr.bf16.mxu0 0
      %662 = vmatpush1.bf16.xpose.msra.mxu0 0
      %663 = vmatprep.subr.bf16.mxu0 0
      %664 = vmatpush1.bf16.xpose.msra.mxu0 0
      %665 = vmatprep.subr.bf16.mxu0 0
      %666 = vmatpush1.bf16.xpose.msra.mxu0 0
      %667 = vmatprep.subr.bf16.mxu0 0
      %668 = vmatpush1.bf16.xpose.msra.mxu0 0
      %669 = vmatprep.subr.bf16.mxu0 0
      %670 = vmatpush1.bf16.xpose.msra.mxu0 0
      %671 = vmatprep.subr.bf16.mxu0 0
      %672 = vmatpush1.bf16.xpose.msra.mxu0 0
      %673 = vmatprep.subr.bf16.mxu0 0
      %674 = vmatpush1.bf16.xpose.msra.mxu0 0
      %675 = vmatprep.mubr.bf16.mxu0 0
      %676 = vmatmul.mubr.bf16.gmra.mrb[0].mxu0 %v638
      %v677 = vpop.f32.mrb[0].mxu0
      %v678 = vadd.f32 0.0, %v677
      %v679 = vpop.f32.mrb[0].mxu0
      %v680 = vpop.f32.mrb[0].mxu0
      %v681 = vpop.f32.mrb[0].mxu0
      %682 = vdwg.mxu0
      %v683 = vsel %vm538, %v580, -inf
      %684 = vmax.xlane.f32.xlu0 %v683
      %v685 = vpop.xlane.xlu0 %684
      %v686 = vsel %vm538, %v629, -inf
      %687 = vmax.xlane.f32.xlu0 %v686
      %v688 = vpop.xlane.xlu0 %687
      %v689 = vsel %vm538, %v678, -inf
      %690 = vmax.xlane.f32.xlu0 %v689
      %v691 = vpop.xlane.xlu0 %690
      %v692 = vsub.f32 %v580, %v685
      %v693 = vsub.f32 %v629, %v688
      %v694 = vsub.f32 %v678, %v691
      %v695 = vmul.f32 %v692, 1.442695
      %v696 = vpow.pop %v695
      %v697 = vmul.f32 %v693, 1.442695
      %v698 = vpow.pop %v697
      %v699 = vmul.f32 %v694, 1.442695
      %v700 = vpow.pop %v699
      %v701 = vsel %vm538, %v696, 0.0
      %702 = vadd.xlane.f32.xlu0 %v701
      %v703 = vpop.xlane.xlu0 %702
      %v704 = vsel %vm538, %v698, 0.0
      %705 = vadd.xlane.f32.xlu0 %v704
      %v706 = vpop.xlane.xlu0 %705
      %v707 = vsel %vm538, %v700, 0.0
      %708 = vadd.xlane.f32.xlu0 %v707
      %v709 = vpop.xlane.xlu0 %708
      %v710 = vrcp.pop %v703
      %v711 = vrcp.pop %v706
      %v712 = vrcp.pop %v709
      %v713 = vmul.f32 %v696, %v710
      %v714 = vmul.f32 %v698, %v711
      %v715 = vmul.f32 %v700, %v712
      %v716 = vpack.c.bf16 %v713, %v713
      %v717 = vpack.c.bf16 %v714, %v714
      %v718 = vpack.c.bf16 %v715, %v715
      %719 = vrot.lane.b32.xlu0 %v532, 64
      %v720 = vpop.permute.xlu0 %719
      %v722 = vsel %vm538, %v716, 0
      %vm724 = vcmask 1043456
      %v726 = vsel %vm724, %v720, 0
      %728 = vmatprep.subr.bf16.mxu0 0
      %729 = vmatpush1.bf16.msra.mxu0 %v726
      %730 = vmatprep.subr.bf16.mxu0 0
      %731 = vmatpush1.bf16.msra.mxu0 0
      %732 = vmatprep.subr.bf16.mxu0 0
      %733 = vmatpush1.bf16.msra.mxu0 0
      %734 = vmatprep.subr.bf16.mxu0 0
      %735 = vmatpush1.bf16.msra.mxu0 0
      %736 = vmatprep.subr.bf16.mxu0 0
      %737 = vmatpush1.bf16.msra.mxu0 0
      %738 = vmatprep.subr.bf16.mxu0 0
      %739 = vmatpush1.bf16.msra.mxu0 0
      %740 = vmatprep.subr.bf16.mxu0 0
      %741 = vmatpush1.bf16.msra.mxu0 0
      %742 = vmatprep.subr.bf16.mxu0 0
      %743 = vmatpush1.bf16.msra.mxu0 0
      %744 = vmatprep.subr.bf16.mxu0 0
      %745 = vmatpush1.bf16.msra.mxu0 0
      %746 = vmatprep.subr.bf16.mxu0 0
      %747 = vmatpush1.bf16.msra.mxu0 0
      %748 = vmatprep.subr.bf16.mxu0 0
      %749 = vmatpush1.bf16.msra.mxu0 0
      %750 = vmatprep.subr.bf16.mxu0 0
      %751 = vmatpush1.bf16.msra.mxu0 0
      %752 = vmatprep.subr.bf16.mxu0 0
      %753 = vmatpush1.bf16.msra.mxu0 0
      %754 = vmatprep.subr.bf16.mxu0 0
      %755 = vmatpush1.bf16.msra.mxu0 0
      %756 = vmatprep.subr.bf16.mxu0 0
      %757 = vmatpush1.bf16.msra.mxu0 0
      %758 = vmatprep.subr.bf16.mxu0 0
      %759 = vmatpush1.bf16.msra.mxu0 0
      %760 = vmatprep.mubr.bf16.mxu0 0
      %761 = vmatmul.mubr.bf16.gmra.mrb[0].mxu0 %v722
      %v762 = vpop.f32.mrb[0].mxu0
      %v763 = vadd.f32 0.0, %v762
      %v764 = vpop.f32.mrb[0].mxu0
      %v765 = vpop.f32.mrb[0].mxu0
      %v766 = vpop.f32.mrb[0].mxu0
      %767 = vdwg.mxu0
      %768 = vrot.lane.b32.xlu0 %v533, 64
      %v769 = vpop.permute.xlu0 %768
      %v771 = vsel %vm538, %v717, 0
      %v774 = vsel %vm724, %v769, 0
      %776 = vmatprep.subr.bf16.mxu0 0
      %777 = vmatpush1.bf16.msra.mxu0 %v774
      %778 = vmatprep.subr.bf16.mxu0 0
      %779 = vmatpush1.bf16.msra.mxu0 0
      %780 = vmatprep.subr.bf16.mxu0 0
      %781 = vmatpush1.bf16.msra.mxu0 0
      %782 = vmatprep.subr.bf16.mxu0 0
      %783 = vmatpush1.bf16.msra.mxu0 0
      %784 = vmatprep.subr.bf16.mxu0 0
      %785 = vmatpush1.bf16.msra.mxu0 0
      %786 = vmatprep.subr.bf16.mxu0 0
      %787 = vmatpush1.bf16.msra.mxu0 0
      %788 = vmatprep.subr.bf16.mxu0 0
      %789 = vmatpush1.bf16.msra.mxu0 0
      %790 = vmatprep.subr.bf16.mxu0 0
      %791 = vmatpush1.bf16.msra.mxu0 0
      %792 = vmatprep.subr.bf16.mxu0 0
      %793 = vmatpush1.bf16.msra.mxu0 0
      %794 = vmatprep.subr.bf16.mxu0 0
      %795 = vmatpush1.bf16.msra.mxu0 0
      %796 = vmatprep.subr.bf16.mxu0 0
      %797 = vmatpush1.bf16.msra.mxu0 0
      %798 = vmatprep.subr.bf16.mxu0 0
      %799 = vmatpush1.bf16.msra.mxu0 0
      %800 = vmatprep.subr.bf16.mxu0 0
      %801 = vmatpush1.bf16.msra.mxu0 0
      %802 = vmatprep.subr.bf16.mxu0 0
      %803 = vmatpush1.bf16.msra.mxu0 0
      %804 = vmatprep.subr.bf16.mxu0 0
      %805 = vmatpush1.bf16.msra.mxu0 0
      %806 = vmatprep.subr.bf16.mxu0 0
      %807 = vmatpush1.bf16.msra.mxu0 0
      %808 = vmatprep.mubr.bf16.mxu0 0
      %809 = vmatmul.mubr.bf16.gmra.mrb[0].mxu0 %v771
      %v810 = vpop.f32.mrb[0].mxu0
      %v811 = vadd.f32 0.0, %v810
      %v812 = vpop.f32.mrb[0].mxu0
      %v813 = vpop.f32.mrb[0].mxu0
      %v814 = vpop.f32.mrb[0].mxu0
      %815 = vdwg.mxu0
      %816 = vrot.lane.b32.xlu0 %v534, 64
      %v817 = vpop.permute.xlu0 %816
      %v819 = vsel %vm538, %v718, 0
      %v822 = vsel %vm724, %v817, 0
      %824 = vmatprep.subr.bf16.mxu0 0
      %825 = vmatpush1.bf16.msra.mxu0 %v822
      %826 = vmatprep.subr.bf16.mxu0 0
      %827 = vmatpush1.bf16.msra.mxu0 0
      %828 = vmatprep.subr.bf16.mxu0 0
      %829 = vmatpush1.bf16.msra.mxu0 0
      %830 = vmatprep.subr.bf16.mxu0 0
      %831 = vmatpush1.bf16.msra.mxu0 0
      %832 = vmatprep.subr.bf16.mxu0 0
      %833 = vmatpush1.bf16.msra.mxu0 0
      %834 = vmatprep.subr.bf16.mxu0 0
      %835 = vmatpush1.bf16.msra.mxu0 0
      %836 = vmatprep.subr.bf16.mxu0 0
      %837 = vmatpush1.bf16.msra.mxu0 0
      %838 = vmatprep.subr.bf16.mxu0 0
      %839 = vmatpush1.bf16.msra.mxu0 0
      %840 = vmatprep.subr.bf16.mxu0 0
      %841 = vmatpush1.bf16.msra.mxu0 0
      %842 = vmatprep.subr.bf16.mxu0 0
      %843 = vmatpush1.bf16.msra.mxu0 0
      %844 = vmatprep.subr.bf16.mxu0 0
      %845 = vmatpush1.bf16.msra.mxu0 0
      %846 = vmatprep.subr.bf16.mxu0 0
      %847 = vmatpush1.bf16.msra.mxu0 0
      %848 = vmatprep.subr.bf16.mxu0 0
      %849 = vmatpush1.bf16.msra.mxu0 0
      %850 = vmatprep.subr.bf16.mxu0 0
      %851 = vmatpush1.bf16.msra.mxu0 0
      %852 = vmatprep.subr.bf16.mxu0 0
      %853 = vmatpush1.bf16.msra.mxu0 0
      %854 = vmatprep.subr.bf16.mxu0 0
      %855 = vmatpush1.bf16.msra.mxu0 0
      %856 = vmatprep.mubr.bf16.mxu0 0
      %857 = vmatmul.mubr.bf16.gmra.mrb[0].mxu0 %v819
      %v858 = vpop.f32.mrb[0].mxu0
      %v859 = vadd.f32 0.0, %v858
      %v860 = vpop.f32.mrb[0].mxu0
      %v861 = vpop.f32.mrb[0].mxu0
      %v862 = vpop.f32.mrb[0].mxu0
      %863 = vdwg.mxu0
      %v864 = vpack.c.bf16 %v811, %v763
      %v865 = vpack.c.bf16 %v859, %v859
      %866 = vrot.lane.b32.xlu0 %v532, 120
      %v867 = vpop.permute.xlu0 %866
      %868 = vrot.lane.b32.xlu0 %v532, 88
      %v869 = vpop.permute.xlu0 %868
      %v871 = vsel %vm538, %v867, 0
      %v874 = vsel %vm538, %v869, 0
      %876 = vmatprep.subr.bf16.mxu0 0
      %877 = vmatpush1.bf16.xpose.msra.mxu0 %v874
      %878 = vmatprep.subr.bf16.mxu0 0
      %879 = vmatpush1.bf16.xpose.msra.mxu0 0
      %880 = vmatprep.subr.bf16.mxu0 0
      %881 = vmatpush1.bf16.xpose.msra.mxu0 0
      %882 = vmatprep.subr.bf16.mxu0 0
      %883 = vmatpush1.bf16.xpose.msra.mxu0 0
      %884 = vmatprep.subr.bf16.mxu0 0
      %885 = vmatpush1.bf16.xpose.msra.mxu0 0
      %886 = vmatprep.subr.bf16.mxu0 0
      %887 = vmatpush1.bf16.xpose.msra.mxu0 0
      %888 = vmatprep.subr.bf16.mxu0 0
      %889 = vmatpush1.bf16.xpose.msra.mxu0 0
      %890 = vmatprep.subr.bf16.mxu0 0
      %891 = vmatpush1.bf16.xpose.msra.mxu0 0
      %892 = vmatprep.subr.bf16.mxu0 0
      %893 = vmatpush1.bf16.xpose.msra.mxu0 0
      %894 = vmatprep.subr.bf16.mxu0 0
      %895 = vmatpush1.bf16.xpose.msra.mxu0 0
      %896 = vmatprep.subr.bf16.mxu0 0
      %897 = vmatpush1.bf16.xpose.msra.mxu0 0
      %898 = vmatprep.subr.bf16.mxu0 0
      %899 = vmatpush1.bf16.xpose.msra.mxu0 0
      %900 = vmatprep.subr.bf16.mxu0 0
      %901 = vmatpush1.bf16.xpose.msra.mxu0 0
      %902 = vmatprep.subr.bf16.mxu0 0
      %903 = vmatpush1.bf16.xpose.msra.mxu0 0
      %904 = vmatprep.subr.bf16.mxu0 0
      %905 = vmatpush1.bf16.xpose.msra.mxu0 0
      %906 = vmatprep.subr.bf16.mxu0 0
      %907 = vmatpush1.bf16.xpose.msra.mxu0 0
      %908 = vmatprep.mubr.bf16.mxu0 0
      %909 = vmatmul.mubr.bf16.gmra.mrb[0].mxu0 %v871
      %v910 = vpop.f32.mrb[0].mxu0
      %v911 = vadd.f32 0.0, %v910
      %v912 = vpop.f32.mrb[0].mxu0
      %v913 = vpop.f32.mrb[0].mxu0
      %v914 = vpop.f32.mrb[0].mxu0
      %915 = vdwg.mxu0
      %916 = vrot.lane.b32.xlu0 %v533, 120
      %v917 = vpop.permute.xlu0 %916
      %918 = vrot.lane.b32.xlu0 %v533, 88
      %v919 = vpop.permute.xlu0 %918
      %v921 = vsel %vm538, %v917, 0
      %v924 = vsel %vm538, %v919, 0
      %926 = vmatprep.subr.bf16.mxu0 0
      %927 = vmatpush1.bf16.xpose.msra.mxu0 %v924
      %928 = vmatprep.subr.bf16.mxu0 0
      %929 = vmatpush1.bf16.xpose.msra.mxu0 0
      %930 = vmatprep.subr.bf16.mxu0 0
      %931 = vmatpush1.bf16.xpose.msra.mxu0 0
      %932 = vmatprep.subr.bf16.mxu0 0
      %933 = vmatpush1.bf16.xpose.msra.mxu0 0
      %934 = vmatprep.subr.bf16.mxu0 0
      %935 = vmatpush1.bf16.xpose.msra.mxu0 0
      %936 = vmatprep.subr.bf16.mxu0 0
      %937 = vmatpush1.bf16.xpose.msra.mxu0 0
      %938 = vmatprep.subr.bf16.mxu0 0
      %939 = vmatpush1.bf16.xpose.msra.mxu0 0
      %940 = vmatprep.subr.bf16.mxu0 0
      %941 = vmatpush1.bf16.xpose.msra.mxu0 0
      %942 = vmatprep.subr.bf16.mxu0 0
      %943 = vmatpush1.bf16.xpose.msra.mxu0 0
      %944 = vmatprep.subr.bf16.mxu0 0
      %945 = vmatpush1.bf16.xpose.msra.mxu0 0
      %946 = vmatprep.subr.bf16.mxu0 0
      %947 = vmatpush1.bf16.xpose.msra.mxu0 0
      %948 = vmatprep.subr.bf16.mxu0 0
      %949 = vmatpush1.bf16.xpose.msra.mxu0 0
      %950 = vmatprep.subr.bf16.mxu0 0
      %951 = vmatpush1.bf16.xpose.msra.mxu0 0
      %952 = vmatprep.subr.bf16.mxu0 0
      %953 = vmatpush1.bf16.xpose.msra.mxu0 0
      %954 = vmatprep.subr.bf16.mxu0 0
      %955 = vmatpush1.bf16.xpose.msra.mxu0 0
      %956 = vmatprep.subr.bf16.mxu0 0
      %957 = vmatpush1.bf16.xpose.msra.mxu0 0
      %958 = vmatprep.mubr.bf16.mxu0 0
      %959 = vmatmul.mubr.bf16.gmra.mrb[0].mxu0 %v921
      %v960 = vpop.f32.mrb[0].mxu0
      %v961 = vadd.f32 0.0, %v960
      %v962 = vpop.f32.mrb[0].mxu0
      %v963 = vpop.f32.mrb[0].mxu0
      %v964 = vpop.f32.mrb[0].mxu0
      %965 = vdwg.mxu0
      %966 = vrot.lane.b32.xlu0 %v534, 120
      %v967 = vpop.permute.xlu0 %966
      %968 = vrot.lane.b32.xlu0 %v534, 88
      %v969 = vpop.permute.xlu0 %968
      %v971 = vsel %vm538, %v967, 0
      %v974 = vsel %vm538, %v969, 0
      %976 = vmatprep.subr.bf16.mxu0 0
      %977 = vmatpush1.bf16.xpose.msra.mxu0 %v974
      %978 = vmatprep.subr.bf16.mxu0 0
      %979 = vmatpush1.bf16.xpose.msra.mxu0 0
      %980 = vmatprep.subr.bf16.mxu0 0
      %981 = vmatpush1.bf16.xpose.msra.mxu0 0
      %982 = vmatprep.subr.bf16.mxu0 0
      %983 = vmatpush1.bf16.xpose.msra.mxu0 0
      %984 = vmatprep.subr.bf16.mxu0 0
      %985 = vmatpush1.bf16.xpose.msra.mxu0 0
      %986 = vmatprep.subr.bf16.mxu0 0
      %987 = vmatpush1.bf16.xpose.msra.mxu0 0
      %988 = vmatprep.subr.bf16.mxu0 0
      %989 = vmatpush1.bf16.xpose.msra.mxu0 0
      %990 = vmatprep.subr.bf16.mxu0 0
      %991 = vmatpush1.bf16.xpose.msra.mxu0 0
      %992 = vmatprep.subr.bf16.mxu0 0
      %993 = vmatpush1.bf16.xpose.msra.mxu0 0
      %994 = vmatprep.subr.bf16.mxu0 0
      %995 = vmatpush1.bf16.xpose.msra.mxu0 0
      %996 = vmatprep.subr.bf16.mxu0 0
      %997 = vmatpush1.bf16.xpose.msra.mxu0 0
      %998 = vmatprep.subr.bf16.mxu0 0
      %999 = vmatpush1.bf16.xpose.msra.mxu0 0
      %1000 = vmatprep.subr.bf16.mxu0 0
      %1001 = vmatpush1.bf16.xpose.msra.mxu0 0
      %1002 = vmatprep.subr.bf16.mxu0 0
      %1003 = vmatpush1.bf16.xpose.msra.mxu0 0
      %1004 = vmatprep.subr.bf16.mxu0 0
      %1005 = vmatpush1.bf16.xpose.msra.mxu0 0
      %1006 = vmatprep.subr.bf16.mxu0 0
      %1007 = vmatpush1.bf16.xpose.msra.mxu0 0
      %1008 = vmatprep.mubr.bf16.mxu0 0
      %1009 = vmatmul.mubr.bf16.gmra.mrb[0].mxu0 %v971
      %v1010 = vpop.f32.mrb[0].mxu0
      %v1011 = vadd.f32 0.0, %v1010
      %v1012 = vpop.f32.mrb[0].mxu0
      %v1013 = vpop.f32.mrb[0].mxu0
      %v1014 = vpop.f32.mrb[0].mxu0
      %1015 = vdwg.mxu0
      %v1016 = vsel %vm538, %v911, -inf
      %1017 = vmax.xlane.f32.xlu0 %v1016
      %v1018 = vpop.xlane.xlu0 %1017
      %v1019 = vsel %vm538, %v961, -inf
      %1020 = vmax.xlane.f32.xlu0 %v1019
      %v1021 = vpop.xlane.xlu0 %1020
      %v1022 = vsel %vm538, %v1011, -inf
      %1023 = vmax.xlane.f32.xlu0 %v1022
      %v1024 = vpop.xlane.xlu0 %1023
      %v1025 = vsub.f32 %v911, %v1018
      %v1026 = vsub.f32 %v961, %v1021
      %v1027 = vsub.f32 %v1011, %v1024
      %v1028 = vmul.f32 %v1025, 1.442695
      %v1029 = vpow.pop %v1028
      %v1030 = vmul.f32 %v1026, 1.442695
      %v1031 = vpow.pop %v1030
      %v1032 = vmul.f32 %v1027, 1.442695
      %v1033 = vpow.pop %v1032
      %v1034 = vsel %vm538, %v1029, 0.0
      %1035 = vadd.xlane.f32.xlu0 %v1034
      %v1036 = vpop.xlane.xlu0 %1035
      %v1037 = vsel %vm538, %v1031, 0.0
      %1038 = vadd.xlane.f32.xlu0 %v1037
      %v1039 = vpop.xlane.xlu0 %1038
      %v1040 = vsel %vm538, %v1033, 0.0
      %1041 = vadd.xlane.f32.xlu0 %v1040
      %v1042 = vpop.xlane.xlu0 %1041
      %v1043 = vrcp.pop %v1036
      %v1044 = vrcp.pop %v1039
      %v1045 = vrcp.pop %v1042
      %v1046 = vmul.f32 %v1029, %v1043
      %v1047 = vmul.f32 %v1031, %v1044
      %v1048 = vmul.f32 %v1033, %v1045
      %v1049 = vpack.c.bf16 %v1046, %v1046
      %v1050 = vpack.c.bf16 %v1047, %v1047
      %v1051 = vpack.c.bf16 %v1048, %v1048
      %1052 = vrot.lane.b32.xlu0 %v532, 56
      %v1053 = vpop.permute.xlu0 %1052
      %v1055 = vsel %vm538, %v1049, 0
      %v1058 = vsel %vm724, %v1053, 0
      %1060 = vmatprep.subr.bf16.mxu0 0
      %1061 = vmatpush1.bf16.msra.mxu0 %v1058
      %1062 = vmatprep.subr.bf16.mxu0 0
      %1063 = vmatpush1.bf16.msra.mxu0 0
      %1064 = vmatprep.subr.bf16.mxu0 0
      %1065 = vmatpush1.bf16.msra.mxu0 0
      %1066 = vmatprep.subr.bf16.mxu0 0
      %1067 = vmatpush1.bf16.msra.mxu0 0
      %1068 = vmatprep.subr.bf16.mxu0 0
      %1069 = vmatpush1.bf16.msra.mxu0 0
      %1070 = vmatprep.subr.bf16.mxu0 0
      %1071 = vmatpush1.bf16.msra.mxu0 0
      %1072 = vmatprep.subr.bf16.mxu0 0
      %1073 = vmatpush1.bf16.msra.mxu0 0
      %1074 = vmatprep.subr.bf16.mxu0 0
      %1075 = vmatpush1.bf16.msra.mxu0 0
      %1076 = vmatprep.subr.bf16.mxu0 0
      %1077 = vmatpush1.bf16.msra.mxu0 0
      %1078 = vmatprep.subr.bf16.mxu0 0
      %1079 = vmatpush1.bf16.msra.mxu0 0
      %1080 = vmatprep.subr.bf16.mxu0 0
      %1081 = vmatpush1.bf16.msra.mxu0 0
      %1082 = vmatprep.subr.bf16.mxu0 0
      %1083 = vmatpush1.bf16.msra.mxu0 0
      %1084 = vmatprep.subr.bf16.mxu0 0
      %1085 = vmatpush1.bf16.msra.mxu0 0
      %1086 = vmatprep.subr.bf16.mxu0 0
      %1087 = vmatpush1.bf16.msra.mxu0 0
      %1088 = vmatprep.subr.bf16.mxu0 0
      %1089 = vmatpush1.bf16.msra.mxu0 0
      %1090 = vmatprep.subr.bf16.mxu0 0
      %1091 = vmatpush1.bf16.msra.mxu0 0
      %1092 = vmatprep.mubr.bf16.mxu0 0
      %1093 = vmatmul.mubr.bf16.gmra.mrb[0].mxu0 %v1055
      %v1094 = vpop.f32.mrb[0].mxu0
      %v1095 = vadd.f32 0.0, %v1094
      %v1096 = vpop.f32.mrb[0].mxu0
      %v1097 = vpop.f32.mrb[0].mxu0
      %v1098 = vpop.f32.mrb[0].mxu0
      %1099 = vdwg.mxu0
      %1100 = vrot.lane.b32.xlu0 %v533, 56
      %v1101 = vpop.permute.xlu0 %1100
      %v1103 = vsel %vm538, %v1050, 0
      %v1106 = vsel %vm724, %v1101, 0
      %1108 = vmatprep.subr.bf16.mxu0 0
      %1109 = vmatpush1.bf16.msra.mxu0 %v1106
      %1110 = vmatprep.subr.bf16.mxu0 0
      %1111 = vmatpush1.bf16.msra.mxu0 0
      %1112 = vmatprep.subr.bf16.mxu0 0
      %1113 = vmatpush1.bf16.msra.mxu0 0
      %1114 = vmatprep.subr.bf16.mxu0 0
      %1115 = vmatpush1.bf16.msra.mxu0 0
      %1116 = vmatprep.subr.bf16.mxu0 0
      %1117 = vmatpush1.bf16.msra.mxu0 0
      %1118 = vmatprep.subr.bf16.mxu0 0
      %1119 = vmatpush1.bf16.msra.mxu0 0
      %1120 = vmatprep.subr.bf16.mxu0 0
      %1121 = vmatpush1.bf16.msra.mxu0 0
      %1122 = vmatprep.subr.bf16.mxu0 0
      %1123 = vmatpush1.bf16.msra.mxu0 0
      %1124 = vmatprep.subr.bf16.mxu0 0
      %1125 = vmatpush1.bf16.msra.mxu0 0
      %1126 = vmatprep.subr.bf16.mxu0 0
      %1127 = vmatpush1.bf16.msra.mxu0 0
      %1128 = vmatprep.subr.bf16.mxu0 0
      %1129 = vmatpush1.bf16.msra.mxu0 0
      %1130 = vmatprep.subr.bf16.mxu0 0
      %1131 = vmatpush1.bf16.msra.mxu0 0
      %1132 = vmatprep.subr.bf16.mxu0 0
      %1133 = vmatpush1.bf16.msra.mxu0 0
      %1134 = vmatprep.subr.bf16.mxu0 0
      %1135 = vmatpush1.bf16.msra.mxu0 0
      %1136 = vmatprep.subr.bf16.mxu0 0
      %1137 = vmatpush1.bf16.msra.mxu0 0
      %1138 = vmatprep.subr.bf16.mxu0 0
      %1139 = vmatpush1.bf16.msra.mxu0 0
      %1140 = vmatprep.mubr.bf16.mxu0 0
      %1141 = vmatmul.mubr.bf16.gmra.mrb[0].mxu0 %v1103
      %v1142 = vpop.f32.mrb[0].mxu0
      %v1143 = vadd.f32 0.0, %v1142
      %v1144 = vpop.f32.mrb[0].mxu0
      %v1145 = vpop.f32.mrb[0].mxu0
      %v1146 = vpop.f32.mrb[0].mxu0
      %1147 = vdwg.mxu0
      %1148 = vrot.lane.b32.xlu0 %v534, 56
      %v1149 = vpop.permute.xlu0 %1148
      %v1151 = vsel %vm538, %v1051, 0
      %v1154 = vsel %vm724, %v1149, 0
      %1156 = vmatprep.subr.bf16.mxu0 0
      %1157 = vmatpush1.bf16.msra.mxu0 %v1154
      %1158 = vmatprep.subr.bf16.mxu0 0
      %1159 = vmatpush1.bf16.msra.mxu0 0
      %1160 = vmatprep.subr.bf16.mxu0 0
      %1161 = vmatpush1.bf16.msra.mxu0 0
      %1162 = vmatprep.subr.bf16.mxu0 0
      %1163 = vmatpush1.bf16.msra.mxu0 0
      %1164 = vmatprep.subr.bf16.mxu0 0
      %1165 = vmatpush1.bf16.msra.mxu0 0
      %1166 = vmatprep.subr.bf16.mxu0 0
      %1167 = vmatpush1.bf16.msra.mxu0 0
      %1168 = vmatprep.subr.bf16.mxu0 0
      %1169 = vmatpush1.bf16.msra.mxu0 0
      %1170 = vmatprep.subr.bf16.mxu0 0
      %1171 = vmatpush1.bf16.msra.mxu0 0
      %1172 = vmatprep.subr.bf16.mxu0 0
      %1173 = vmatpush1.bf16.msra.mxu0 0
      %1174 = vmatprep.subr.bf16.mxu0 0
      %1175 = vmatpush1.bf16.msra.mxu0 0
      %1176 = vmatprep.subr.bf16.mxu0 0
      %1177 = vmatpush1.bf16.msra.mxu0 0
      %1178 = vmatprep.subr.bf16.mxu0 0
      %1179 = vmatpush1.bf16.msra.mxu0 0
      %1180 = vmatprep.subr.bf16.mxu0 0
      %1181 = vmatpush1.bf16.msra.mxu0 0
      %1182 = vmatprep.subr.bf16.mxu0 0
      %1183 = vmatpush1.bf16.msra.mxu0 0
      %1184 = vmatprep.subr.bf16.mxu0 0
      %1185 = vmatpush1.bf16.msra.mxu0 0
      %1186 = vmatprep.subr.bf16.mxu0 0
      %1187 = vmatpush1.bf16.msra.mxu0 0
      %1188 = vmatprep.mubr.bf16.mxu0 0
      %1189 = vmatmul.mubr.bf16.gmra.mrb[0].mxu0 %v1151
      %v1190 = vpop.f32.mrb[0].mxu0
      %v1191 = vadd.f32 0.0, %v1190
      %v1192 = vpop.f32.mrb[0].mxu0
      %v1193 = vpop.f32.mrb[0].mxu0
      %v1194 = vpop.f32.mrb[0].mxu0
      %1195 = vdwg.mxu0
      %v1196 = vpack.c.bf16 %v1143, %v1095
      %v1197 = vpack.c.bf16 %v1191, %v1191
      %v1199 = vsel %vm538, %v1196, 0
      %v1202 = vsel %vm538, %v1197, 0
      %v1205 = vsel %vm724, %v529, 0
      %1207 = vmatprep.subr.bf16.mxu0 0
      %1208 = vmatpush1.bf16.msra.mxu0 %v1205
      %1209 = vmatprep.subr.bf16.mxu0 0
      %1210 = vmatpush1.bf16.msra.mxu0 0
      %1211 = vmatprep.subr.bf16.mxu0 0
      %1212 = vmatpush1.bf16.msra.mxu0 0
      %1213 = vmatprep.subr.bf16.mxu0 0
      %1214 = vmatpush1.bf16.msra.mxu0 0
      %1215 = vmatprep.subr.bf16.mxu0 0
      %1216 = vmatpush1.bf16.msra.mxu0 0
      %1217 = vmatprep.subr.bf16.mxu0 0
      %1218 = vmatpush1.bf16.msra.mxu0 0
      %1219 = vmatprep.subr.bf16.mxu0 0
      %1220 = vmatpush1.bf16.msra.mxu0 0
      %1221 = vmatprep.subr.bf16.mxu0 0
      %1222 = vmatpush1.bf16.msra.mxu0 0
      %1223 = vmatprep.subr.bf16.mxu0 0
      %1224 = vmatpush1.bf16.msra.mxu0 0
      %1225 = vmatprep.subr.bf16.mxu0 0
      %1226 = vmatpush1.bf16.msra.mxu0 0
      %1227 = vmatprep.subr.bf16.mxu0 0
      %1228 = vmatpush1.bf16.msra.mxu0 0
      %1229 = vmatprep.subr.bf16.mxu0 0
      %1230 = vmatpush1.bf16.msra.mxu0 0
      %1231 = vmatprep.subr.bf16.mxu0 0
      %1232 = vmatpush1.bf16.msra.mxu0 0
      %1233 = vmatprep.subr.bf16.mxu0 0
      %1234 = vmatpush1.bf16.msra.mxu0 0
      %1235 = vmatprep.subr.bf16.mxu0 0
      %1236 = vmatpush1.bf16.msra.mxu0 0
      %1237 = vmatprep.subr.bf16.mxu0 0
      %1238 = vmatpush1.bf16.msra.mxu0 0
      %1239 = vmatprep.mubr.bf16.mxu0 0
      %1240 = vmatmul.mubr.bf16.gmra.mrb[0].mxu0 %v1199
      %v1241 = vpop.f32.mrb[0].mxu0
      %v1242 = vadd.f32 0.0, %v1241
      %v1243 = vpop.f32.mrb[0].mxu0
      %v1244 = vpop.f32.mrb[0].mxu0
      %v1245 = vadd.f32 0.0, %v1244
      %v1246 = vpop.f32.mrb[0].mxu0
      %1247 = vmatprep.mubr.bf16.mxu0 0
      %1248 = vmatmul.mubr.bf16.gmra.mrb[0].mxu0 %v1202
      %v1249 = vpop.f32.mrb[0].mxu0
      %v1250 = vadd.f32 0.0, %v1249
      %v1251 = vpop.f32.mrb[0].mxu0
      %v1252 = vpop.f32.mrb[0].mxu0
      %v1253 = vpop.f32.mrb[0].mxu0
      %1254 = vdwg.mxu0
      %v1256 = vsel %vm538, %v864, 0
      %v1259 = vsel %vm538, %v865, 0
      %v1262 = vsel %vm724, %v528, 0
      %1264 = vmatprep.subr.bf16.mxu0 0
      %1265 = vmatpush1.bf16.msra.mxu0 %v1262
      %1266 = vmatprep.subr.bf16.mxu0 0
      %1267 = vmatpush1.bf16.msra.mxu0 0
      %1268 = vmatprep.subr.bf16.mxu0 0
      %1269 = vmatpush1.bf16.msra.mxu0 0
      %1270 = vmatprep.subr.bf16.mxu0 0
      %1271 = vmatpush1.bf16.msra.mxu0 0
      %1272 = vmatprep.subr.bf16.mxu0 0
      %1273 = vmatpush1.bf16.msra.mxu0 0
      %1274 = vmatprep.subr.bf16.mxu0 0
      %1275 = vmatpush1.bf16.msra.mxu0 0
      %1276 = vmatprep.subr.bf16.mxu0 0
      %1277 = vmatpush1.bf16.msra.mxu0 0
      %1278 = vmatprep.subr.bf16.mxu0 0
      %1279 = vmatpush1.bf16.msra.mxu0 0
      %1280 = vmatprep.subr.bf16.mxu0 0
      %1281 = vmatpush1.bf16.msra.mxu0 0
      %1282 = vmatprep.subr.bf16.mxu0 0
      %1283 = vmatpush1.bf16.msra.mxu0 0
      %1284 = vmatprep.subr.bf16.mxu0 0
      %1285 = vmatpush1.bf16.msra.mxu0 0
      %1286 = vmatprep.subr.bf16.mxu0 0
      %1287 = vmatpush1.bf16.msra.mxu0 0
      %1288 = vmatprep.subr.bf16.mxu0 0
      %1289 = vmatpush1.bf16.msra.mxu0 0
      %1290 = vmatprep.subr.bf16.mxu0 0
      %1291 = vmatpush1.bf16.msra.mxu0 0
      %1292 = vmatprep.subr.bf16.mxu0 0
      %1293 = vmatpush1.bf16.msra.mxu0 0
      %1294 = vmatprep.subr.bf16.mxu0 0
      %1295 = vmatpush1.bf16.msra.mxu0 0
      %1296 = vmatprep.mubr.bf16.mxu0 0
      %1297 = vmatmul.mubr.bf16.gmra.mrb[0].mxu0 %v1256
      %v1298 = vpop.f32.mrb[0].mxu0
      %v1299 = vadd.f32 %v1242, %v1298
      %v1300 = vpop.f32.mrb[0].mxu0
      %v1301 = vpop.f32.mrb[0].mxu0
      %v1302 = vadd.f32 %v1245, %v1301
      %v1303 = vpop.f32.mrb[0].mxu0
      %1304 = vmatprep.mubr.bf16.mxu0 0
      %1305 = vmatmul.mubr.bf16.gmra.mrb[0].mxu0 %v1259
      %v1306 = vpop.f32.mrb[0].mxu0
      %v1307 = vadd.f32 %v1250, %v1306
      %v1308 = vpop.f32.mrb[0].mxu0
      %v1309 = vpop.f32.mrb[0].mxu0
      %v1310 = vpop.f32.mrb[0].mxu0
      %1311 = vdwg.mxu0
      %1312 = vrot.lane.b32.xlu0 %v532, 112
      %v1313 = vpop.permute.xlu0 %1312
      %1314 = vrot.lane.b32.xlu0 %v532, 80
      %v1315 = vpop.permute.xlu0 %1314
      %v1317 = vsel %vm538, %v1313, 0
      %v1320 = vsel %vm538, %v1315, 0
      %1322 = vmatprep.subr.bf16.mxu0 0
      %1323 = vmatpush1.bf16.xpose.msra.mxu0 %v1320
      %1324 = vmatprep.subr.bf16.mxu0 0
      %1325 = vmatpush1.bf16.xpose.msra.mxu0 0
      %1326 = vmatprep.subr.bf16.mxu0 0
      %1327 = vmatpush1.bf16.xpose.msra.mxu0 0
      %1328 = vmatprep.subr.bf16.mxu0 0
      %1329 = vmatpush1.bf16.xpose.msra.mxu0 0
      %1330 = vmatprep.subr.bf16.mxu0 0
      %1331 = vmatpush1.bf16.xpose.msra.mxu0 0
      %1332 = vmatprep.subr.bf16.mxu0 0
      %1333 = vmatpush1.bf16.xpose.msra.mxu0 0
      %1334 = vmatprep.subr.bf16.mxu0 0
      %1335 = vmatpush1.bf16.xpose.msra.mxu0 0
      %1336 = vmatprep.subr.bf16.mxu0 0
      %1337 = vmatpush1.bf16.xpose.msra.mxu0 0
      %1338 = vmatprep.subr.bf16.mxu0 0
      %1339 = vmatpush1.bf16.xpose.msra.mxu0 0
      %1340 = vmatprep.subr.bf16.mxu0 0
      %1341 = vmatpush1.bf16.xpose.msra.mxu0 0
      %1342 = vmatprep.subr.bf16.mxu0 0
      %1343 = vmatpush1.bf16.xpose.msra.mxu0 0
      %1344 = vmatprep.subr.bf16.mxu0 0
      %1345 = vmatpush1.bf16.xpose.msra.mxu0 0
      %1346 = vmatprep.subr.bf16.mxu0 0
      %1347 = vmatpush1.bf16.xpose.msra.mxu0 0
      %1348 = vmatprep.subr.bf16.mxu0 0
      %1349 = vmatpush1.bf16.xpose.msra.mxu0 0
      %1350 = vmatprep.subr.bf16.mxu0 0
      %1351 = vmatpush1.bf16.xpose.msra.mxu0 0
      %1352 = vmatprep.subr.bf16.mxu0 0
      %1353 = vmatpush1.bf16.xpose.msra.mxu0 0
      %1354 = vmatprep.mubr.bf16.mxu0 0
      %1355 = vmatmul.mubr.bf16.gmra.mrb[0].mxu0 %v1317
      %v1356 = vpop.f32.mrb[0].mxu0
      %v1357 = vadd.f32 0.0, %v1356
      %v1358 = vpop.f32.mrb[0].mxu0
      %v1359 = vpop.f32.mrb[0].mxu0
      %v1360 = vpop.f32.mrb[0].mxu0
      %1361 = vdwg.mxu0
      %1362 = vrot.lane.b32.xlu0 %v533, 112
      %v1363 = vpop.permute.xlu0 %1362
      %1364 = vrot.lane.b32.xlu0 %v533, 80
      %v1365 = vpop.permute.xlu0 %1364
      %v1367 = vsel %vm538, %v1363, 0
      %v1370 = vsel %vm538, %v1365, 0
      %1372 = vmatprep.subr.bf16.mxu0 0
      %1373 = vmatpush1.bf16.xpose.msra.mxu0 %v1370
      %1374 = vmatprep.subr.bf16.mxu0 0
      %1375 = vmatpush1.bf16.xpose.msra.mxu0 0
      %1376 = vmatprep.subr.bf16.mxu0 0
      %1377 = vmatpush1.bf16.xpose.msra.mxu0 0
      %1378 = vmatprep.subr.bf16.mxu0 0
      %1379 = vmatpush1.bf16.xpose.msra.mxu0 0
      %1380 = vmatprep.subr.bf16.mxu0 0
      %1381 = vmatpush1.bf16.xpose.msra.mxu0 0
      %1382 = vmatprep.subr.bf16.mxu0 0
      %1383 = vmatpush1.bf16.xpose.msra.mxu0 0
      %1384 = vmatprep.subr.bf16.mxu0 0
      %1385 = vmatpush1.bf16.xpose.msra.mxu0 0
      %1386 = vmatprep.subr.bf16.mxu0 0
      %1387 = vmatpush1.bf16.xpose.msra.mxu0 0
      %1388 = vmatprep.subr.bf16.mxu0 0
      %1389 = vmatpush1.bf16.xpose.msra.mxu0 0
      %1390 = vmatprep.subr.bf16.mxu0 0
      %1391 = vmatpush1.bf16.xpose.msra.mxu0 0
      %1392 = vmatprep.subr.bf16.mxu0 0
      %1393 = vmatpush1.bf16.xpose.msra.mxu0 0
      %1394 = vmatprep.subr.bf16.mxu0 0
      %1395 = vmatpush1.bf16.xpose.msra.mxu0 0
      %1396 = vmatprep.subr.bf16.mxu0 0
      %1397 = vmatpush1.bf16.xpose.msra.mxu0 0
      %1398 = vmatprep.subr.bf16.mxu0 0
      %1399 = vmatpush1.bf16.xpose.msra.mxu0 0
      %1400 = vmatprep.subr.bf16.mxu0 0
      %1401 = vmatpush1.bf16.xpose.msra.mxu0 0
      %1402 = vmatprep.subr.bf16.mxu0 0
      %1403 = vmatpush1.bf16.xpose.msra.mxu0 0
      %1404 = vmatprep.mubr.bf16.mxu0 0
      %1405 = vmatmul.mubr.bf16.gmra.mrb[0].mxu0 %v1367
      %v1406 = vpop.f32.mrb[0].mxu0
      %v1407 = vadd.f32 0.0, %v1406
      %v1408 = vpop.f32.mrb[0].mxu0
      %v1409 = vpop.f32.mrb[0].mxu0
      %v1410 = vpop.f32.mrb[0].mxu0
      %1411 = vdwg.mxu0
      %1412 = vrot.lane.b32.xlu0 %v534, 112
      %v1413 = vpop.permute.xlu0 %1412
      %1414 = vrot.lane.b32.xlu0 %v534, 80
      %v1415 = vpop.permute.xlu0 %1414
      %v1417 = vsel %vm538, %v1413, 0
      %v1420 = vsel %vm538, %v1415, 0
      %1422 = vmatprep.subr.bf16.mxu0 0
      %1423 = vmatpush1.bf16.xpose.msra.mxu0 %v1420
      %1424 = vmatprep.subr.bf16.mxu0 0
      %1425 = vmatpush1.bf16.xpose.msra.mxu0 0
      %1426 = vmatprep.subr.bf16.mxu0 0
      %1427 = vmatpush1.bf16.xpose.msra.mxu0 0
      %1428 = vmatprep.subr.bf16.mxu0 0
      %1429 = vmatpush1.bf16.xpose.msra.mxu0 0
      %1430 = vmatprep.subr.bf16.mxu0 0
      %1431 = vmatpush1.bf16.xpose.msra.mxu0 0
      %1432 = vmatprep.subr.bf16.mxu0 0
      %1433 = vmatpush1.bf16.xpose.msra.mxu0 0
      %1434 = vmatprep.subr.bf16.mxu0 0
      %1435 = vmatpush1.bf16.xpose.msra.mxu0 0
      %1436 = vmatprep.subr.bf16.mxu0 0
      %1437 = vmatpush1.bf16.xpose.msra.mxu0 0
      %1438 = vmatprep.subr.bf16.mxu0 0
      %1439 = vmatpush1.bf16.xpose.msra.mxu0 0
      %1440 = vmatprep.subr.bf16.mxu0 0
      %1441 = vmatpush1.bf16.xpose.msra.mxu0 0
      %1442 = vmatprep.subr.bf16.mxu0 0
      %1443 = vmatpush1.bf16.xpose.msra.mxu0 0
      %1444 = vmatprep.subr.bf16.mxu0 0
      %1445 = vmatpush1.bf16.xpose.msra.mxu0 0
      %1446 = vmatprep.subr.bf16.mxu0 0
      %1447 = vmatpush1.bf16.xpose.msra.mxu0 0
      %1448 = vmatprep.subr.bf16.mxu0 0
      %1449 = vmatpush1.bf16.xpose.msra.mxu0 0
      %1450 = vmatprep.subr.bf16.mxu0 0
      %1451 = vmatpush1.bf16.xpose.msra.mxu0 0
      %1452 = vmatprep.subr.bf16.mxu0 0
      %1453 = vmatpush1.bf16.xpose.msra.mxu0 0
      %1454 = vmatprep.mubr.bf16.mxu0 0
      %1455 = vmatmul.mubr.bf16.gmra.mrb[0].mxu0 %v1417
      %v1456 = vpop.f32.mrb[0].mxu0
      %v1457 = vadd.f32 0.0, %v1456
      %v1458 = vpop.f32.mrb[0].mxu0
      %v1459 = vpop.f32.mrb[0].mxu0
      %v1460 = vpop.f32.mrb[0].mxu0
      %1461 = vdwg.mxu0
      %v1462 = vsel %vm538, %v1357, -inf
      %1463 = vmax.xlane.f32.xlu0 %v1462
      %v1464 = vpop.xlane.xlu0 %1463
      %v1465 = vsel %vm538, %v1407, -inf
      %1466 = vmax.xlane.f32.xlu0 %v1465
      %v1467 = vpop.xlane.xlu0 %1466
      %v1468 = vsel %vm538, %v1457, -inf
      %1469 = vmax.xlane.f32.xlu0 %v1468
      %v1470 = vpop.xlane.xlu0 %1469
      %v1471 = vsub.f32 %v1357, %v1464
      %v1472 = vsub.f32 %v1407, %v1467
      %v1473 = vsub.f32 %v1457, %v1470
      %v1474 = vmul.f32 %v1471, 1.442695
      %v1475 = vpow.pop %v1474
      %v1476 = vmul.f32 %v1472, 1.442695
      %v1477 = vpow.pop %v1476
      %v1478 = vmul.f32 %v1473, 1.442695
      %v1479 = vpow.pop %v1478
      %v1480 = vsel %vm538, %v1475, 0.0
      %1481 = vadd.xlane.f32.xlu0 %v1480
      %v1482 = vpop.xlane.xlu0 %1481
      %v1483 = vsel %vm538, %v1477, 0.0
      %1484 = vadd.xlane.f32.xlu0 %v1483
      %v1485 = vpop.xlane.xlu0 %1484
      %v1486 = vsel %vm538, %v1479, 0.0
      %1487 = vadd.xlane.f32.xlu0 %v1486
      %v1488 = vpop.xlane.xlu0 %1487
      %v1489 = vrcp.pop %v1482
      %v1490 = vrcp.pop %v1485
      %v1491 = vrcp.pop %v1488
      %v1492 = vmul.f32 %v1475, %v1489
      %v1493 = vmul.f32 %v1477, %v1490
      %v1494 = vmul.f32 %v1479, %v1491
      %v1495 = vpack.c.bf16 %v1492, %v1492
      %v1496 = vpack.c.bf16 %v1493, %v1493
      %v1497 = vpack.c.bf16 %v1494, %v1494
      %1498 = vrot.lane.b32.xlu0 %v532, 48
      %v1499 = vpop.permute.xlu0 %1498
      %v1501 = vsel %vm538, %v1495, 0
      %v1504 = vsel %vm724, %v1499, 0
      %1506 = vmatprep.subr.bf16.mxu0 0
      %1507 = vmatpush1.bf16.msra.mxu0 %v1504
      %1508 = vmatprep.subr.bf16.mxu0 0
      %1509 = vmatpush1.bf16.msra.mxu0 0
      %1510 = vmatprep.subr.bf16.mxu0 0
      %1511 = vmatpush1.bf16.msra.mxu0 0
      %1512 = vmatprep.subr.bf16.mxu0 0
      %1513 = vmatpush1.bf16.msra.mxu0 0
      %1514 = vmatprep.subr.bf16.mxu0 0
      %1515 = vmatpush1.bf16.msra.mxu0 0
      %1516 = vmatprep.subr.bf16.mxu0 0
      %1517 = vmatpush1.bf16.msra.mxu0 0
      %1518 = vmatprep.subr.bf16.mxu0 0
      %1519 = vmatpush1.bf16.msra.mxu0 0
      %1520 = vmatprep.subr.bf16.mxu0 0
      %1521 = vmatpush1.bf16.msra.mxu0 0
      %1522 = vmatprep.subr.bf16.mxu0 0
      %1523 = vmatpush1.bf16.msra.mxu0 0
      %1524 = vmatprep.subr.bf16.mxu0 0
      %1525 = vmatpush1.bf16.msra.mxu0 0
      %1526 = vmatprep.subr.bf16.mxu0 0
      %1527 = vmatpush1.bf16.msra.mxu0 0
      %1528 = vmatprep.subr.bf16.mxu0 0
      %1529 = vmatpush1.bf16.msra.mxu0 0
      %1530 = vmatprep.subr.bf16.mxu0 0
      %1531 = vmatpush1.bf16.msra.mxu0 0
      %1532 = vmatprep.subr.bf16.mxu0 0
      %1533 = vmatpush1.bf16.msra.mxu0 0
      %1534 = vmatprep.subr.bf16.mxu0 0
      %1535 = vmatpush1.bf16.msra.mxu0 0
      %1536 = vmatprep.subr.bf16.mxu0 0
      %1537 = vmatpush1.bf16.msra.mxu0 0
      %1538 = vmatprep.mubr.bf16.mxu0 0
      %1539 = vmatmul.mubr.bf16.gmra.mrb[0].mxu0 %v1501
      %v1540 = vpop.f32.mrb[0].mxu0
      %v1541 = vadd.f32 0.0, %v1540
      %v1542 = vpop.f32.mrb[0].mxu0
      %v1543 = vpop.f32.mrb[0].mxu0
      %v1544 = vpop.f32.mrb[0].mxu0
      %1545 = vdwg.mxu0
      %1546 = vrot.lane.b32.xlu0 %v533, 48
      %v1547 = vpop.permute.xlu0 %1546
      %v1549 = vsel %vm538, %v1496, 0
      %v1552 = vsel %vm724, %v1547, 0
      %1554 = vmatprep.subr.bf16.mxu0 0
      %1555 = vmatpush1.bf16.msra.mxu0 %v1552
      %1556 = vmatprep.subr.bf16.mxu0 0
      %1557 = vmatpush1.bf16.msra.mxu0 0
      %1558 = vmatprep.subr.bf16.mxu0 0
      %1559 = vmatpush1.bf16.msra.mxu0 0
      %1560 = vmatprep.subr.bf16.mxu0 0
      %1561 = vmatpush1.bf16.msra.mxu0 0
      %1562 = vmatprep.subr.bf16.mxu0 0
      %1563 = vmatpush1.bf16.msra.mxu0 0
      %1564 = vmatprep.subr.bf16.mxu0 0
      %1565 = vmatpush1.bf16.msra.mxu0 0
      %1566 = vmatprep.subr.bf16.mxu0 0
      %1567 = vmatpush1.bf16.msra.mxu0 0
      %1568 = vmatprep.subr.bf16.mxu0 0
      %1569 = vmatpush1.bf16.msra.mxu0 0
      %1570 = vmatprep.subr.bf16.mxu0 0
      %1571 = vmatpush1.bf16.msra.mxu0 0
      %1572 = vmatprep.subr.bf16.mxu0 0
      %1573 = vmatpush1.bf16.msra.mxu0 0
      %1574 = vmatprep.subr.bf16.mxu0 0
      %1575 = vmatpush1.bf16.msra.mxu0 0
      %1576 = vmatprep.subr.bf16.mxu0 0
      %1577 = vmatpush1.bf16.msra.mxu0 0
      %1578 = vmatprep.subr.bf16.mxu0 0
      %1579 = vmatpush1.bf16.msra.mxu0 0
      %1580 = vmatprep.subr.bf16.mxu0 0
      %1581 = vmatpush1.bf16.msra.mxu0 0
      %1582 = vmatprep.subr.bf16.mxu0 0
      %1583 = vmatpush1.bf16.msra.mxu0 0
      %1584 = vmatprep.subr.bf16.mxu0 0
      %1585 = vmatpush1.bf16.msra.mxu0 0
      %1586 = vmatprep.mubr.bf16.mxu0 0
      %1587 = vmatmul.mubr.bf16.gmra.mrb[0].mxu0 %v1549
      %v1588 = vpop.f32.mrb[0].mxu0
      %v1589 = vadd.f32 0.0, %v1588
      %v1590 = vpop.f32.mrb[0].mxu0
      %v1591 = vpop.f32.mrb[0].mxu0
      %v1592 = vpop.f32.mrb[0].mxu0
      %1593 = vdwg.mxu0
      %1594 = vrot.lane.b32.xlu0 %v534, 48
      %v1595 = vpop.permute.xlu0 %1594
      %v1597 = vsel %vm538, %v1497, 0
      %v1600 = vsel %vm724, %v1595, 0
      %1602 = vmatprep.subr.bf16.mxu0 0
      %1603 = vmatpush1.bf16.msra.mxu0 %v1600
      %1604 = vmatprep.subr.bf16.mxu0 0
      %1605 = vmatpush1.bf16.msra.mxu0 0
      %1606 = vmatprep.subr.bf16.mxu0 0
      %1607 = vmatpush1.bf16.msra.mxu0 0
      %1608 = vmatprep.subr.bf16.mxu0 0
      %1609 = vmatpush1.bf16.msra.mxu0 0
      %1610 = vmatprep.subr.bf16.mxu0 0
      %1611 = vmatpush1.bf16.msra.mxu0 0
      %1612 = vmatprep.subr.bf16.mxu0 0
      %1613 = vmatpush1.bf16.msra.mxu0 0
      %1614 = vmatprep.subr.bf16.mxu0 0
      %1615 = vmatpush1.bf16.msra.mxu0 0
      %1616 = vmatprep.subr.bf16.mxu0 0
      %1617 = vmatpush1.bf16.msra.mxu0 0
      %1618 = vmatprep.subr.bf16.mxu0 0
      %1619 = vmatpush1.bf16.msra.mxu0 0
      %1620 = vmatprep.subr.bf16.mxu0 0
      %1621 = vmatpush1.bf16.msra.mxu0 0
      %1622 = vmatprep.subr.bf16.mxu0 0
      %1623 = vmatpush1.bf16.msra.mxu0 0
      %1624 = vmatprep.subr.bf16.mxu0 0
      %1625 = vmatpush1.bf16.msra.mxu0 0
      %1626 = vmatprep.subr.bf16.mxu0 0
      %1627 = vmatpush1.bf16.msra.mxu0 0
      %1628 = vmatprep.subr.bf16.mxu0 0
      %1629 = vmatpush1.bf16.msra.mxu0 0
      %1630 = vmatprep.subr.bf16.mxu0 0
      %1631 = vmatpush1.bf16.msra.mxu0 0
      %1632 = vmatprep.subr.bf16.mxu0 0
      %1633 = vmatpush1.bf16.msra.mxu0 0
      %1634 = vmatprep.mubr.bf16.mxu0 0
      %1635 = vmatmul.mubr.bf16.gmra.mrb[0].mxu0 %v1597
      %v1636 = vpop.f32.mrb[0].mxu0
      %v1637 = vadd.f32 0.0, %v1636
      %v1638 = vpop.f32.mrb[0].mxu0
      %v1639 = vpop.f32.mrb[0].mxu0
      %v1640 = vpop.f32.mrb[0].mxu0
      %1641 = vdwg.mxu0
      %v1642 = vpack.c.bf16 %v1589, %v1541
      %v1643 = vpack.c.bf16 %v1637, %v1637
      %v1645 = vsel %vm538, %v1642, 0
      %v1648 = vsel %vm538, %v1643, 0
      %v1651 = vsel %vm724, %v530, 0
      %1653 = vmatprep.subr.bf16.mxu0 0
      %1654 = vmatpush1.bf16.msra.mxu0 %v1651
      %1655 = vmatprep.subr.bf16.mxu0 0
      %1656 = vmatpush1.bf16.msra.mxu0 0
      %1657 = vmatprep.subr.bf16.mxu0 0
      %1658 = vmatpush1.bf16.msra.mxu0 0
      %1659 = vmatprep.subr.bf16.mxu0 0
      %1660 = vmatpush1.bf16.msra.mxu0 0
      %1661 = vmatprep.subr.bf16.mxu0 0
      %1662 = vmatpush1.bf16.msra.mxu0 0
      %1663 = vmatprep.subr.bf16.mxu0 0
      %1664 = vmatpush1.bf16.msra.mxu0 0
      %1665 = vmatprep.subr.bf16.mxu0 0
      %1666 = vmatpush1.bf16.msra.mxu0 0
      %1667 = vmatprep.subr.bf16.mxu0 0
      %1668 = vmatpush1.bf16.msra.mxu0 0
      %1669 = vmatprep.subr.bf16.mxu0 0
      %1670 = vmatpush1.bf16.msra.mxu0 0
      %1671 = vmatprep.subr.bf16.mxu0 0
      %1672 = vmatpush1.bf16.msra.mxu0 0
      %1673 = vmatprep.subr.bf16.mxu0 0
      %1674 = vmatpush1.bf16.msra.mxu0 0
      %1675 = vmatprep.subr.bf16.mxu0 0
      %1676 = vmatpush1.bf16.msra.mxu0 0
      %1677 = vmatprep.subr.bf16.mxu0 0
      %1678 = vmatpush1.bf16.msra.mxu0 0
      %1679 = vmatprep.subr.bf16.mxu0 0
      %1680 = vmatpush1.bf16.msra.mxu0 0
      %1681 = vmatprep.subr.bf16.mxu0 0
      %1682 = vmatpush1.bf16.msra.mxu0 0
      %1683 = vmatprep.subr.bf16.mxu0 0
      %1684 = vmatpush1.bf16.msra.mxu0 0
      %1685 = vmatprep.mubr.bf16.mxu0 0
      %1686 = vmatmul.mubr.bf16.gmra.mrb[0].mxu0 %v1645
      %v1687 = vpop.f32.mrb[0].mxu0
      %v1688 = vadd.f32 0.0, %v1687
      %v1689 = vpop.f32.mrb[0].mxu0
      %v1690 = vpop.f32.mrb[0].mxu0
      %v1691 = vadd.f32 0.0, %v1690
      %v1692 = vpop.f32.mrb[0].mxu0
      %1693 = vmatprep.mubr.bf16.mxu0 0
      %1694 = vmatmul.mubr.bf16.gmra.mrb[0].mxu0 %v1648
      %v1695 = vpop.f32.mrb[0].mxu0
      %v1696 = vadd.f32 0.0, %v1695
      %v1697 = vpop.f32.mrb[0].mxu0
      %v1698 = vpop.f32.mrb[0].mxu0
      %v1699 = vpop.f32.mrb[0].mxu0
      %1700 = vdwg.mxu0
      %v1701 = vadd.f32 %v1299, %v1688
      %v1702 = vadd.f32 %v1302, %v1691
      %v1703 = vadd.f32 %v1307, %v1696
      %1704 = vrot.lane.b32.xlu0 %v532, 104
      %v1705 = vpop.permute.xlu0 %1704
      %1706 = vrot.lane.b32.xlu0 %v532, 72
      %v1707 = vpop.permute.xlu0 %1706
      %v1709 = vsel %vm538, %v1705, 0
      %v1712 = vsel %vm538, %v1707, 0
      %1714 = vmatprep.subr.bf16.mxu0 0
      %1715 = vmatpush1.bf16.xpose.msra.mxu0 %v1712
      %1716 = vmatprep.subr.bf16.mxu0 0
      %1717 = vmatpush1.bf16.xpose.msra.mxu0 0
      %1718 = vmatprep.subr.bf16.mxu0 0
      %1719 = vmatpush1.bf16.xpose.msra.mxu0 0
      %1720 = vmatprep.subr.bf16.mxu0 0
      %1721 = vmatpush1.bf16.xpose.msra.mxu0 0
      %1722 = vmatprep.subr.bf16.mxu0 0
      %1723 = vmatpush1.bf16.xpose.msra.mxu0 0
      %1724 = vmatprep.subr.bf16.mxu0 0
      %1725 = vmatpush1.bf16.xpose.msra.mxu0 0
      %1726 = vmatprep.subr.bf16.mxu0 0
      %1727 = vmatpush1.bf16.xpose.msra.mxu0 0
      %1728 = vmatprep.subr.bf16.mxu0 0
      %1729 = vmatpush1.bf16.xpose.msra.mxu0 0
      %1730 = vmatprep.subr.bf16.mxu0 0
      %1731 = vmatpush1.bf16.xpose.msra.mxu0 0
      %1732 = vmatprep.subr.bf16.mxu0 0
      %1733 = vmatpush1.bf16.xpose.msra.mxu0 0
      %1734 = vmatprep.subr.bf16.mxu0 0
      %1735 = vmatpush1.bf16.xpose.msra.mxu0 0
      %1736 = vmatprep.subr.bf16.mxu0 0
      %1737 = vmatpush1.bf16.xpose.msra.mxu0 0
      %1738 = vmatprep.subr.bf16.mxu0 0
      %1739 = vmatpush1.bf16.xpose.msra.mxu0 0
      %1740 = vmatprep.subr.bf16.mxu0 0
      %1741 = vmatpush1.bf16.xpose.msra.mxu0 0
      %1742 = vmatprep.subr.bf16.mxu0 0
      %1743 = vmatpush1.bf16.xpose.msra.mxu0 0
      %1744 = vmatprep.subr.bf16.mxu0 0
      %1745 = vmatpush1.bf16.xpose.msra.mxu0 0
      %1746 = vmatprep.mubr.bf16.mxu0 0
      %1747 = vmatmul.mubr.bf16.gmra.mrb[0].mxu0 %v1709
      %v1748 = vpop.f32.mrb[0].mxu0
      %v1749 = vadd.f32 0.0, %v1748
      %v1750 = vpop.f32.mrb[0].mxu0
      %v1751 = vpop.f32.mrb[0].mxu0
      %v1752 = vpop.f32.mrb[0].mxu0
      %1753 = vdwg.mxu0
      %1754 = vrot.lane.b32.xlu0 %v533, 104
      %v1755 = vpop.permute.xlu0 %1754
      %1756 = vrot.lane.b32.xlu0 %v533, 72
      %v1757 = vpop.permute.xlu0 %1756
      %v1759 = vsel %vm538, %v1755, 0
      %v1762 = vsel %vm538, %v1757, 0
      %1764 = vmatprep.subr.bf16.mxu0 0
      %1765 = vmatpush1.bf16.xpose.msra.mxu0 %v1762
      %1766 = vmatprep.subr.bf16.mxu0 0
      %1767 = vmatpush1.bf16.xpose.msra.mxu0 0
      %1768 = vmatprep.subr.bf16.mxu0 0
      %1769 = vmatpush1.bf16.xpose.msra.mxu0 0
      %1770 = vmatprep.subr.bf16.mxu0 0
      %1771 = vmatpush1.bf16.xpose.msra.mxu0 0
      %1772 = vmatprep.subr.bf16.mxu0 0
      %1773 = vmatpush1.bf16.xpose.msra.mxu0 0
      %1774 = vmatprep.subr.bf16.mxu0 0
      %1775 = vmatpush1.bf16.xpose.msra.mxu0 0
      %1776 = vmatprep.subr.bf16.mxu0 0
      %1777 = vmatpush1.bf16.xpose.msra.mxu0 0
      %1778 = vmatprep.subr.bf16.mxu0 0
      %1779 = vmatpush1.bf16.xpose.msra.mxu0 0
      %1780 = vmatprep.subr.bf16.mxu0 0
      %1781 = vmatpush1.bf16.xpose.msra.mxu0 0
      %1782 = vmatprep.subr.bf16.mxu0 0
      %1783 = vmatpush1.bf16.xpose.msra.mxu0 0
      %1784 = vmatprep.subr.bf16.mxu0 0
      %1785 = vmatpush1.bf16.xpose.msra.mxu0 0
      %1786 = vmatprep.subr.bf16.mxu0 0
      %1787 = vmatpush1.bf16.xpose.msra.mxu0 0
      %1788 = vmatprep.subr.bf16.mxu0 0
      %1789 = vmatpush1.bf16.xpose.msra.mxu0 0
      %1790 = vmatprep.subr.bf16.mxu0 0
      %1791 = vmatpush1.bf16.xpose.msra.mxu0 0
      %1792 = vmatprep.subr.bf16.mxu0 0
      %1793 = vmatpush1.bf16.xpose.msra.mxu0 0
      %1794 = vmatprep.subr.bf16.mxu0 0
      %1795 = vmatpush1.bf16.xpose.msra.mxu0 0
      %1796 = vmatprep.mubr.bf16.mxu0 0
      %1797 = vmatmul.mubr.bf16.gmra.mrb[0].mxu0 %v1759
      %v1798 = vpop.f32.mrb[0].mxu0
      %v1799 = vadd.f32 0.0, %v1798
      %v1800 = vpop.f32.mrb[0].mxu0
      %v1801 = vpop.f32.mrb[0].mxu0
      %v1802 = vpop.f32.mrb[0].mxu0
      %1803 = vdwg.mxu0
      %1804 = vrot.lane.b32.xlu0 %v534, 104
      %v1805 = vpop.permute.xlu0 %1804
      %1806 = vrot.lane.b32.xlu0 %v534, 72
      %v1807 = vpop.permute.xlu0 %1806
      %v1809 = vsel %vm538, %v1805, 0
      %v1812 = vsel %vm538, %v1807, 0
      %1814 = vmatprep.subr.bf16.mxu0 0
      %1815 = vmatpush1.bf16.xpose.msra.mxu0 %v1812
      %1816 = vmatprep.subr.bf16.mxu0 0
      %1817 = vmatpush1.bf16.xpose.msra.mxu0 0
      %1818 = vmatprep.subr.bf16.mxu0 0
      %1819 = vmatpush1.bf16.xpose.msra.mxu0 0
      %1820 = vmatprep.subr.bf16.mxu0 0
      %1821 = vmatpush1.bf16.xpose.msra.mxu0 0
      %1822 = vmatprep.subr.bf16.mxu0 0
      %1823 = vmatpush1.bf16.xpose.msra.mxu0 0
      %1824 = vmatprep.subr.bf16.mxu0 0
      %1825 = vmatpush1.bf16.xpose.msra.mxu0 0
      %1826 = vmatprep.subr.bf16.mxu0 0
      %1827 = vmatpush1.bf16.xpose.msra.mxu0 0
      %1828 = vmatprep.subr.bf16.mxu0 0
      %1829 = vmatpush1.bf16.xpose.msra.mxu0 0
      %1830 = vmatprep.subr.bf16.mxu0 0
      %1831 = vmatpush1.bf16.xpose.msra.mxu0 0
      %1832 = vmatprep.subr.bf16.mxu0 0
      %1833 = vmatpush1.bf16.xpose.msra.mxu0 0
      %1834 = vmatprep.subr.bf16.mxu0 0
      %1835 = vmatpush1.bf16.xpose.msra.mxu0 0
      %1836 = vmatprep.subr.bf16.mxu0 0
      %1837 = vmatpush1.bf16.xpose.msra.mxu0 0
      %1838 = vmatprep.subr.bf16.mxu0 0
      %1839 = vmatpush1.bf16.xpose.msra.mxu0 0
      %1840 = vmatprep.subr.bf16.mxu0 0
      %1841 = vmatpush1.bf16.xpose.msra.mxu0 0
      %1842 = vmatprep.subr.bf16.mxu0 0
      %1843 = vmatpush1.bf16.xpose.msra.mxu0 0
      %1844 = vmatprep.subr.bf16.mxu0 0
      %1845 = vmatpush1.bf16.xpose.msra.mxu0 0
      %1846 = vmatprep.mubr.bf16.mxu0 0
      %1847 = vmatmul.mubr.bf16.gmra.mrb[0].mxu0 %v1809
      %v1848 = vpop.f32.mrb[0].mxu0
      %v1849 = vadd.f32 0.0, %v1848
      %v1850 = vpop.f32.mrb[0].mxu0
      %v1851 = vpop.f32.mrb[0].mxu0
      %v1852 = vpop.f32.mrb[0].mxu0
      %1853 = vdwg.mxu0
      %v1854 = vsel %vm538, %v1749, -inf
      %1855 = vmax.xlane.f32.xlu0 %v1854
      %v1856 = vpop.xlane.xlu0 %1855
      %v1857 = vsel %vm538, %v1799, -inf
      %1858 = vmax.xlane.f32.xlu0 %v1857
      %v1859 = vpop.xlane.xlu0 %1858
      %v1860 = vsel %vm538, %v1849, -inf
      %1861 = vmax.xlane.f32.xlu0 %v1860
      %v1862 = vpop.xlane.xlu0 %1861
      %v1863 = vsub.f32 %v1749, %v1856
      %v1864 = vsub.f32 %v1799, %v1859
      %v1865 = vsub.f32 %v1849, %v1862
      %v1866 = vmul.f32 %v1863, 1.442695
      %v1867 = vpow.pop %v1866
      %v1868 = vmul.f32 %v1864, 1.442695
      %v1869 = vpow.pop %v1868
      %v1870 = vmul.f32 %v1865, 1.442695
      %v1871 = vpow.pop %v1870
      %v1872 = vsel %vm538, %v1867, 0.0
      %1873 = vadd.xlane.f32.xlu0 %v1872
      %v1874 = vpop.xlane.xlu0 %1873
      %v1875 = vsel %vm538, %v1869, 0.0
      %1876 = vadd.xlane.f32.xlu0 %v1875
      %v1877 = vpop.xlane.xlu0 %1876
      %v1878 = vsel %vm538, %v1871, 0.0
      %1879 = vadd.xlane.f32.xlu0 %v1878
      %v1880 = vpop.xlane.xlu0 %1879
      %v1881 = vrcp.pop %v1874
      %v1882 = vrcp.pop %v1877
      %v1883 = vrcp.pop %v1880
      %v1884 = vmul.f32 %v1867, %v1881
      %v1885 = vmul.f32 %v1869, %v1882
      %v1886 = vmul.f32 %v1871, %v1883
      %v1887 = vpack.c.bf16 %v1884, %v1884
      %v1888 = vpack.c.bf16 %v1885, %v1885
      %v1889 = vpack.c.bf16 %v1886, %v1886
      %1890 = vrot.lane.b32.xlu0 %v532, 40
      %v1891 = vpop.permute.xlu0 %1890
      %v1893 = vsel %vm538, %v1887, 0
      %v1896 = vsel %vm724, %v1891, 0
      %1898 = vmatprep.subr.bf16.mxu0 0
      %1899 = vmatpush1.bf16.msra.mxu0 %v1896
      %1900 = vmatprep.subr.bf16.mxu0 0
      %1901 = vmatpush1.bf16.msra.mxu0 0
      %1902 = vmatprep.subr.bf16.mxu0 0
      %1903 = vmatpush1.bf16.msra.mxu0 0
      %1904 = vmatprep.subr.bf16.mxu0 0
      %1905 = vmatpush1.bf16.msra.mxu0 0
      %1906 = vmatprep.subr.bf16.mxu0 0
      %1907 = vmatpush1.bf16.msra.mxu0 0
      %1908 = vmatprep.subr.bf16.mxu0 0
      %1909 = vmatpush1.bf16.msra.mxu0 0
      %1910 = vmatprep.subr.bf16.mxu0 0
      %1911 = vmatpush1.bf16.msra.mxu0 0
      %1912 = vmatprep.subr.bf16.mxu0 0
      %1913 = vmatpush1.bf16.msra.mxu0 0
      %1914 = vmatprep.subr.bf16.mxu0 0
      %1915 = vmatpush1.bf16.msra.mxu0 0
      %1916 = vmatprep.subr.bf16.mxu0 0
      %1917 = vmatpush1.bf16.msra.mxu0 0
      %1918 = vmatprep.subr.bf16.mxu0 0
      %1919 = vmatpush1.bf16.msra.mxu0 0
      %1920 = vmatprep.subr.bf16.mxu0 0
      %1921 = vmatpush1.bf16.msra.mxu0 0
      %1922 = vmatprep.subr.bf16.mxu0 0
      %1923 = vmatpush1.bf16.msra.mxu0 0
      %1924 = vmatprep.subr.bf16.mxu0 0
      %1925 = vmatpush1.bf16.msra.mxu0 0
      %1926 = vmatprep.subr.bf16.mxu0 0
      %1927 = vmatpush1.bf16.msra.mxu0 0
      %1928 = vmatprep.subr.bf16.mxu0 0
      %1929 = vmatpush1.bf16.msra.mxu0 0
      %1930 = vmatprep.mubr.bf16.mxu0 0
      %1931 = vmatmul.mubr.bf16.gmra.mrb[0].mxu0 %v1893
      %v1932 = vpop.f32.mrb[0].mxu0
      %v1933 = vadd.f32 0.0, %v1932
      %v1934 = vpop.f32.mrb[0].mxu0
      %v1935 = vpop.f32.mrb[0].mxu0
      %v1936 = vpop.f32.mrb[0].mxu0
      %1937 = vdwg.mxu0
      %1938 = vrot.lane.b32.xlu0 %v533, 40
      %v1939 = vpop.permute.xlu0 %1938
      %v1941 = vsel %vm538, %v1888, 0
      %v1944 = vsel %vm724, %v1939, 0
      %1946 = vmatprep.subr.bf16.mxu0 0
      %1947 = vmatpush1.bf16.msra.mxu0 %v1944
      %1948 = vmatprep.subr.bf16.mxu0 0
      %1949 = vmatpush1.bf16.msra.mxu0 0
      %1950 = vmatprep.subr.bf16.mxu0 0
      %1951 = vmatpush1.bf16.msra.mxu0 0
      %1952 = vmatprep.subr.bf16.mxu0 0
      %1953 = vmatpush1.bf16.msra.mxu0 0
      %1954 = vmatprep.subr.bf16.mxu0 0
      %1955 = vmatpush1.bf16.msra.mxu0 0
      %1956 = vmatprep.subr.bf16.mxu0 0
      %1957 = vmatpush1.bf16.msra.mxu0 0
      %1958 = vmatprep.subr.bf16.mxu0 0
      %1959 = vmatpush1.bf16.msra.mxu0 0
      %1960 = vmatprep.subr.bf16.mxu0 0
      %1961 = vmatpush1.bf16.msra.mxu0 0
      %1962 = vmatprep.subr.bf16.mxu0 0
      %1963 = vmatpush1.bf16.msra.mxu0 0
      %1964 = vmatprep.subr.bf16.mxu0 0
      %1965 = vmatpush1.bf16.msra.mxu0 0
      %1966 = vmatprep.subr.bf16.mxu0 0
      %1967 = vmatpush1.bf16.msra.mxu0 0
      %1968 = vmatprep.subr.bf16.mxu0 0
      %1969 = vmatpush1.bf16.msra.mxu0 0
      %1970 = vmatprep.subr.bf16.mxu0 0
      %1971 = vmatpush1.bf16.msra.mxu0 0
      %1972 = vmatprep.subr.bf16.mxu0 0
      %1973 = vmatpush1.bf16.msra.mxu0 0
      %1974 = vmatprep.subr.bf16.mxu0 0
      %1975 = vmatpush1.bf16.msra.mxu0 0
      %1976 = vmatprep.subr.bf16.mxu0 0
      %1977 = vmatpush1.bf16.msra.mxu0 0
      %1978 = vmatprep.mubr.bf16.mxu0 0
      %1979 = vmatmul.mubr.bf16.gmra.mrb[0].mxu0 %v1941
      %v1980 = vpop.f32.mrb[0].mxu0
      %v1981 = vadd.f32 0.0, %v1980
      %v1982 = vpop.f32.mrb[0].mxu0
      %v1983 = vpop.f32.mrb[0].mxu0
      %v1984 = vpop.f32.mrb[0].mxu0
      %1985 = vdwg.mxu0
      %1986 = vrot.lane.b32.xlu0 %v534, 40
      %v1987 = vpop.permute.xlu0 %1986
      %v1989 = vsel %vm538, %v1889, 0
      %v1992 = vsel %vm724, %v1987, 0
      %1994 = vmatprep.subr.bf16.mxu0 0
      %1995 = vmatpush1.bf16.msra.mxu0 %v1992
      %1996 = vmatprep.subr.bf16.mxu0 0
      %1997 = vmatpush1.bf16.msra.mxu0 0
      %1998 = vmatprep.subr.bf16.mxu0 0
      %1999 = vmatpush1.bf16.msra.mxu0 0
      %2000 = vmatprep.subr.bf16.mxu0 0
      %2001 = vmatpush1.bf16.msra.mxu0 0
      %2002 = vmatprep.subr.bf16.mxu0 0
      %2003 = vmatpush1.bf16.msra.mxu0 0
      %2004 = vmatprep.subr.bf16.mxu0 0
      %2005 = vmatpush1.bf16.msra.mxu0 0
      %2006 = vmatprep.subr.bf16.mxu0 0
      %2007 = vmatpush1.bf16.msra.mxu0 0
      %2008 = vmatprep.subr.bf16.mxu0 0
      %2009 = vmatpush1.bf16.msra.mxu0 0
      %2010 = vmatprep.subr.bf16.mxu0 0
      %2011 = vmatpush1.bf16.msra.mxu0 0
      %2012 = vmatprep.subr.bf16.mxu0 0
      %2013 = vmatpush1.bf16.msra.mxu0 0
      %2014 = vmatprep.subr.bf16.mxu0 0
      %2015 = vmatpush1.bf16.msra.mxu0 0
      %2016 = vmatprep.subr.bf16.mxu0 0
      %2017 = vmatpush1.bf16.msra.mxu0 0
      %2018 = vmatprep.subr.bf16.mxu0 0
      %2019 = vmatpush1.bf16.msra.mxu0 0
      %2020 = vmatprep.subr.bf16.mxu0 0
      %2021 = vmatpush1.bf16.msra.mxu0 0
      %2022 = vmatprep.subr.bf16.mxu0 0
      %2023 = vmatpush1.bf16.msra.mxu0 0
      %2024 = vmatprep.subr.bf16.mxu0 0
      %2025 = vmatpush1.bf16.msra.mxu0 0
      %2026 = vmatprep.mubr.bf16.mxu0 0
      %2027 = vmatmul.mubr.bf16.gmra.mrb[0].mxu0 %v1989
      %v2028 = vpop.f32.mrb[0].mxu0
      %v2029 = vadd.f32 0.0, %v2028
      %v2030 = vpop.f32.mrb[0].mxu0
      %v2031 = vpop.f32.mrb[0].mxu0
      %v2032 = vpop.f32.mrb[0].mxu0
      %2033 = vdwg.mxu0
      %v2034 = vpack.c.bf16 %v1981, %v1933
      %v2035 = vpack.c.bf16 %v2029, %v2029
      %v2037 = vsel %vm538, %v2034, 0
      %v2040 = vsel %vm538, %v2035, 0
      %v2043 = vsel %vm724, %v531, 0
      %2045 = vmatprep.subr.bf16.mxu0 0
      %2046 = vmatpush1.bf16.msra.mxu0 %v2043
      %2047 = vmatprep.subr.bf16.mxu0 0
      %2048 = vmatpush1.bf16.msra.mxu0 0
      %2049 = vmatprep.subr.bf16.mxu0 0
      %2050 = vmatpush1.bf16.msra.mxu0 0
      %2051 = vmatprep.subr.bf16.mxu0 0
      %2052 = vmatpush1.bf16.msra.mxu0 0
      %2053 = vmatprep.subr.bf16.mxu0 0
      %2054 = vmatpush1.bf16.msra.mxu0 0
      %2055 = vmatprep.subr.bf16.mxu0 0
      %2056 = vmatpush1.bf16.msra.mxu0 0
      %2057 = vmatprep.subr.bf16.mxu0 0
      %2058 = vmatpush1.bf16.msra.mxu0 0
      %2059 = vmatprep.subr.bf16.mxu0 0
      %2060 = vmatpush1.bf16.msra.mxu0 0
      %2061 = vmatprep.subr.bf16.mxu0 0
      %2062 = vmatpush1.bf16.msra.mxu0 0
      %2063 = vmatprep.subr.bf16.mxu0 0
      %2064 = vmatpush1.bf16.msra.mxu0 0
      %2065 = vmatprep.subr.bf16.mxu0 0
      %2066 = vmatpush1.bf16.msra.mxu0 0
      %2067 = vmatprep.subr.bf16.mxu0 0
      %2068 = vmatpush1.bf16.msra.mxu0 0
      %2069 = vmatprep.subr.bf16.mxu0 0
      %2070 = vmatpush1.bf16.msra.mxu0 0
      %2071 = vmatprep.subr.bf16.mxu0 0
      %2072 = vmatpush1.bf16.msra.mxu0 0
      %2073 = vmatprep.subr.bf16.mxu0 0
      %2074 = vmatpush1.bf16.msra.mxu0 0
      %2075 = vmatprep.subr.bf16.mxu0 0
      %2076 = vmatpush1.bf16.msra.mxu0 0
      %2077 = vmatprep.mubr.bf16.mxu0 0
      %2078 = vmatmul.mubr.bf16.gmra.mrb[0].mxu0 %v2037
      %v2079 = vpop.f32.mrb[0].mxu0
      %v2080 = vadd.f32 0.0, %v2079
      %v2081 = vpop.f32.mrb[0].mxu0
      %v2082 = vpop.f32.mrb[0].mxu0
      %v2083 = vadd.f32 0.0, %v2082
      %v2084 = vpop.f32.mrb[0].mxu0
      %2085 = vmatprep.mubr.bf16.mxu0 0
      %2086 = vmatmul.mubr.bf16.gmra.mrb[0].mxu0 %v2040
      %v2087 = vpop.f32.mrb[0].mxu0
      %v2088 = vadd.f32 0.0, %v2087
      %v2089 = vpop.f32.mrb[0].mxu0
      %v2090 = vpop.f32.mrb[0].mxu0
      %v2091 = vpop.f32.mrb[0].mxu0
      %2092 = vdwg.mxu0
      %v2093 = vadd.f32 %v1701, %v2080
      %v2094 = vadd.f32 %v1702, %v2083
      %v2095 = vadd.f32 %v1703, %v2088
      %v2096 = vld [vmem:[%s4] sm:$0x1]
      %v2098 = vlaneseq
      %v2099 = vshrl.u32 %v2098, 7
      %v2100 = vsub.s32 0, %v2099
      %v2101 = vrot.slane %v2096, %v2100
      %v2103 = vadd.f32 %v2093, %v2101
      %v2104 = vadd.f32 %v2094, %v2101
      %v2105 = vadd.f32 %v2095, %v2101
      %v2106 = vadd.f32 %v445, %v2103
      %v2107 = vadd.f32 %v446, %v2104
      %v2108 = vadd.f32 %v447, %v2105
      %v2109 = vld [vmem:[%s5] sm:$0x1]
      %v2110 = vld [vmem:[%s6] sm:$0x1]
      %v2111 = vsel %vm473, %v2106, 0.0
      %2112 = vadd.xlane.f32.xlu0 %v2111
      %v2113 = vpop.xlane.xlu0 %2112
      %v2114 = vsel %vm473, %v2107, 0.0
      %2115 = vadd.xlane.f32.xlu0 %v2114
      %v2116 = vpop.xlane.xlu0 %2115
      %v2117 = vsel %vm473, %v2108, 0.0
      %2118 = vadd.xlane.f32.xlu0 %v2117
      %v2119 = vpop.xlane.xlu0 %2118
      %v2120 = vrcp.pop 32.0
      %v2121 = vmul.f32 %v2113, %v2120
      %v2122 = vmul.f32 %v2116, %v2120
      %v2123 = vmul.f32 %v2119, %v2120
      %v2124 = vsub.f32 %v2106, %v2121
      %v2125 = vsub.f32 %v2107, %v2122
      %v2126 = vsub.f32 %v2108, %v2123
      %v2127 = vmul.f32 %v2124, %v2124
      %v2128 = vmul.f32 %v2125, %v2125
      %v2129 = vmul.f32 %v2126, %v2126
      %v2130 = vsel %vm473, %v2127, 0.0
      %2131 = vadd.xlane.f32.xlu0 %v2130
      %v2132 = vpop.xlane.xlu0 %2131
      %v2133 = vsel %vm473, %v2128, 0.0
      %2134 = vadd.xlane.f32.xlu0 %v2133
      %v2135 = vpop.xlane.xlu0 %2134
      %v2136 = vsel %vm473, %v2129, 0.0
      %2137 = vadd.xlane.f32.xlu0 %v2136
      %v2138 = vpop.xlane.xlu0 %2137
      %v2139 = vmul.f32 %v2132, %v2120
      %v2140 = vmul.f32 %v2135, %v2120
      %v2141 = vmul.f32 %v2138, %v2120
      %v2142 = vadd.f32 %v2139, 1e-05
      %v2143 = vadd.f32 %v2140, 1e-05
      %v2144 = vadd.f32 %v2141, 1e-05
      %v2145 = vrsqrt.pop %v2142
      %v2146 = vrsqrt.pop %v2143
      %v2147 = vrsqrt.pop %v2144
      %v2148 = vmul.f32 %v2124, %v2145
      %v2149 = vmul.f32 %v2125, %v2146
      %v2150 = vmul.f32 %v2126, %v2147
      %v2152 = vlaneseq
      %v2153 = vshrl.u32 %v2152, 7
      %v2154 = vsub.s32 0, %v2153
      %v2155 = vrot.slane %v2109, %v2154
      %v2157 = vmul.f32 %v2148, %v2155
      %v2158 = vmul.f32 %v2149, %v2155
      %v2159 = vmul.f32 %v2150, %v2155
      %v2161 = vlaneseq
      %v2162 = vshrl.u32 %v2161, 7
      %v2163 = vsub.s32 0, %v2162
      %v2164 = vrot.slane %v2110, %v2163
      %v2166 = vadd.f32 %v2157, %v2164
      %v2167 = vadd.f32 %v2158, %v2164
      %v2168 = vadd.f32 %v2159, %v2164
      %v2169 = vpack.c.bf16 %v2167, %v2166
      %v2170 = vpack.c.bf16 %v2168, %v2168
      %v2171 = vld [vmem:[%s7] sm:$0xf]
      %v2172 = vld [vmem:[%s7 + $0x4] sm:$0xf]
      %v2173 = vld [vmem:[%s7 + $0x8] sm:$0xf]
      %v2174 = vld [vmem:[%s7 + $0xc] sm:$0xf]
      %v2175 = vld [vmem:[%s8] sm:$0x1]
      %v2177 = vlaneseq
      %v2178 = vshrl.u32 %v2177, 7
      %v2179 = vsub.s32 0, %v2178
      %v2180 = vrot.slane %v2175, %v2179
      %v2186 = vunpack.c.l.b16 %v2171
      %v2187 = vunpack.c.l.b16 %v2172
      %v2188 = vunpack.c.l.b16 %v2173
      %v2189 = vunpack.c.l.b16 %v2174
      %v2190 = vpack.c.b16 %v2187, %v2186
      %v2191 = vpack.c.b16 %v2189, %v2188
      %v2195 = vsel %vm473, %v2169, 0
      %v2198 = vsel %vm473, %v2170, 0
      %2200 = vmatprep.subr.bf16.mxu0 0
      %2201 = vmatpush1.bf16.msra.mxu0 %v2190
      %2202 = vmatprep.subr.bf16.mxu0 0
      %2203 = vmatpush1.bf16.msra.mxu0 %v2191
      %2204 = vmatprep.subr.bf16.mxu0 0
      %2205 = vmatpush1.bf16.msra.mxu0 0
      %2206 = vmatprep.subr.bf16.mxu0 0
      %2207 = vmatpush1.bf16.msra.mxu0 0
      %2208 = vmatprep.subr.bf16.mxu0 0
      %2209 = vmatpush1.bf16.msra.mxu0 0
      %2210 = vmatprep.subr.bf16.mxu0 0
      %2211 = vmatpush1.bf16.msra.mxu0 0
      %2212 = vmatprep.subr.bf16.mxu0 0
      %2213 = vmatpush1.bf16.msra.mxu0 0
      %2214 = vmatprep.subr.bf16.mxu0 0
      %2215 = vmatpush1.bf16.msra.mxu0 0
      %2216 = vmatprep.subr.bf16.mxu0 0
      %2217 = vmatpush1.bf16.msra.mxu0 0
      %2218 = vmatprep.subr.bf16.mxu0 0
      %2219 = vmatpush1.bf16.msra.mxu0 0
      %2220 = vmatprep.subr.bf16.mxu0 0
      %2221 = vmatpush1.bf16.msra.mxu0 0
      %2222 = vmatprep.subr.bf16.mxu0 0
      %2223 = vmatpush1.bf16.msra.mxu0 0
      %2224 = vmatprep.subr.bf16.mxu0 0
      %2225 = vmatpush1.bf16.msra.mxu0 0
      %2226 = vmatprep.subr.bf16.mxu0 0
      %2227 = vmatpush1.bf16.msra.mxu0 0
      %2228 = vmatprep.subr.bf16.mxu0 0
      %2229 = vmatpush1.bf16.msra.mxu0 0
      %2230 = vmatprep.subr.bf16.mxu0 0
      %2231 = vmatpush1.bf16.msra.mxu0 0
      %2232 = vmatprep.mubr.bf16.mxu0 0
      %2233 = vmatmul.mubr.bf16.gmra.mrb[0].mxu0 %v2195
      %v2234 = vpop.f32.mrb[0].mxu0
      %v2235 = vadd.f32 %v2180, %v2234
      %v2236 = vpop.f32.mrb[0].mxu0
      %v2237 = vpop.f32.mrb[0].mxu0
      %v2238 = vadd.f32 %v2180, %v2237
      %v2239 = vpop.f32.mrb[0].mxu0
      %2240 = vmatprep.mubr.bf16.mxu0 0
      %2241 = vmatmul.mubr.bf16.gmra.mrb[0].mxu0 %v2198
      %v2242 = vpop.f32.mrb[0].mxu0
      %v2243 = vadd.f32 %v2180, %v2242
      %v2244 = vpop.f32.mrb[0].mxu0
      %v2245 = vpop.f32.mrb[0].mxu0
      %v2246 = vpop.f32.mrb[0].mxu0
      %2247 = vdwg.mxu0
      %v2248 = vmax.f32 %v2235, 0.0
      %v2249 = vmax.f32 %v2238, 0.0
      %v2250 = vmax.f32 %v2243, 0.0
      %v2251 = vpack.c.bf16 %v2249, %v2248
      %v2252 = vpack.c.bf16 %v2250, %v2250
      %v2253 = vld [vmem:[%s9] sm:$0xf]
      %v2254 = vld [vmem:[%s9 + $0x4] sm:$0xf]
      %v2255 = vld [vmem:[%s9 + $0x8] sm:$0xf]
      %v2256 = vld [vmem:[%s9 + $0xc] sm:$0xf]
      %v2257 = vld [vmem:[%s9 + $0x10] sm:$0xf]
      %v2258 = vld [vmem:[%s9 + $0x14] sm:$0xf]
      %v2259 = vld [vmem:[%s9 + $0x18] sm:$0xf]
      %v2260 = vld [vmem:[%s9 + $0x1c] sm:$0xf]
      %v2261 = vld [vmem:[%s9 + $0x20] sm:$0xf]
      %v2262 = vld [vmem:[%s9 + $0x24] sm:$0xf]
      %v2263 = vld [vmem:[%s9 + $0x28] sm:$0xf]
      %v2264 = vld [vmem:[%s9 + $0x2c] sm:$0xf]
      %v2265 = vld [vmem:[%s9 + $0x30] sm:$0xf]
      %v2266 = vld [vmem:[%s9 + $0x34] sm:$0xf]
      %v2267 = vld [vmem:[%s9 + $0x38] sm:$0xf]
      %v2268 = vld [vmem:[%s9 + $0x3c] sm:$0xf]
      %v2269 = vld [vmem:[%s10] sm:$0x1]
      %v2271 = vlaneseq
      %v2272 = vshrl.u32 %v2271, 7
      %v2273 = vsub.s32 0, %v2272
      %v2274 = vrot.slane %v2269, %v2273
      %v2292 = vunpack.c.l.b16 %v2253
      %v2293 = vunpack.c.l.b16 %v2254
      %v2294 = vunpack.c.l.b16 %v2255
      %v2295 = vunpack.c.l.b16 %v2256
      %v2296 = vunpack.c.l.b16 %v2257
      %v2297 = vunpack.c.l.b16 %v2258
      %v2298 = vunpack.c.l.b16 %v2259
      %v2299 = vunpack.c.l.b16 %v2260
      %v2300 = vunpack.c.l.b16 %v2261
      %v2301 = vunpack.c.l.b16 %v2262
      %v2302 = vunpack.c.l.b16 %v2263
      %v2303 = vunpack.c.l.b16 %v2264
      %v2304 = vunpack.c.l.b16 %v2265
      %v2305 = vunpack.c.l.b16 %v2266
      %v2306 = vunpack.c.l.b16 %v2267
      %v2307 = vunpack.c.l.b16 %v2268
      %v2308 = vpack.c.b16 %v2293, %v2292
      %v2309 = vpack.c.b16 %v2295, %v2294
      %v2310 = vpack.c.b16 %v2297, %v2296
      %v2311 = vpack.c.b16 %v2299, %v2298
      %v2312 = vpack.c.b16 %v2301, %v2300
      %v2313 = vpack.c.b16 %v2303, %v2302
      %v2314 = vpack.c.b16 %v2305, %v2304
      %v2315 = vpack.c.b16 %v2307, %v2306
      %2324 = vmatprep.subr.bf16.mxu0 0
      %2325 = vmatpush1.bf16.msra.mxu0 %v2308
      %2326 = vmatprep.subr.bf16.mxu0 0
      %2327 = vmatpush1.bf16.msra.mxu0 %v2309
      %2328 = vmatprep.subr.bf16.mxu0 0
      %2329 = vmatpush1.bf16.msra.mxu0 %v2310
      %2330 = vmatprep.subr.bf16.mxu0 0
      %2331 = vmatpush1.bf16.msra.mxu0 %v2311
      %2332 = vmatprep.subr.bf16.mxu0 0
      %2333 = vmatpush1.bf16.msra.mxu0 %v2312
      %2334 = vmatprep.subr.bf16.mxu0 0
      %2335 = vmatpush1.bf16.msra.mxu0 %v2313
      %2336 = vmatprep.subr.bf16.mxu0 0
      %2337 = vmatpush1.bf16.msra.mxu0 %v2314
      %2338 = vmatprep.subr.bf16.mxu0 0
      %2339 = vmatpush1.bf16.msra.mxu0 %v2315
      %2340 = vmatprep.subr.bf16.mxu0 0
      %2341 = vmatpush1.bf16.msra.mxu0 0
      %2342 = vmatprep.subr.bf16.mxu0 0
      %2343 = vmatpush1.bf16.msra.mxu0 0
      %2344 = vmatprep.subr.bf16.mxu0 0
      %2345 = vmatpush1.bf16.msra.mxu0 0
      %2346 = vmatprep.subr.bf16.mxu0 0
      %2347 = vmatpush1.bf16.msra.mxu0 0
      %2348 = vmatprep.subr.bf16.mxu0 0
      %2349 = vmatpush1.bf16.msra.mxu0 0
      %2350 = vmatprep.subr.bf16.mxu0 0
      %2351 = vmatpush1.bf16.msra.mxu0 0
      %2352 = vmatprep.subr.bf16.mxu0 0
      %2353 = vmatpush1.bf16.msra.mxu0 0
      %2354 = vmatprep.subr.bf16.mxu0 0
      %2355 = vmatpush1.bf16.msra.mxu0 0
      %2356 = vmatprep.mubr.bf16.mxu0 0
      %2357 = vmatmul.mubr.bf16.gmra.mrb[0].mxu0 %v2251
      %v2358 = vpop.f32.mrb[0].mxu0
      %v2359 = vadd.f32 %v2274, %v2358
      %v2360 = vpop.f32.mrb[0].mxu0
      %v2361 = vpop.f32.mrb[0].mxu0
      %v2362 = vadd.f32 %v2274, %v2361
      %v2363 = vpop.f32.mrb[0].mxu0
      %2364 = vmatprep.mubr.bf16.mxu0 0
      %2365 = vmatmul.mubr.bf16.gmra.mrb[0].mxu0 %v2252
      %v2366 = vpop.f32.mrb[0].mxu0
      %v2367 = vadd.f32 %v2274, %v2366
      %v2368 = vpop.f32.mrb[0].mxu0
      %v2369 = vpop.f32.mrb[0].mxu0
      %v2370 = vpop.f32.mrb[0].mxu0
      %2371 = vdwg.mxu0
      %v2372 = vadd.f32 %v2166, %v2359
      %v2373 = vadd.f32 %v2167, %v2362
      %v2374 = vadd.f32 %v2168, %v2367
      %v2375 = vld [vmem:[%s11] sm:$0x1]
      %v2376 = vld [vmem:[%s12] sm:$0x1]
      %v2377 = vsel %vm473, %v2372, 0.0
      %2378 = vadd.xlane.f32.xlu0 %v2377
      %v2379 = vpop.xlane.xlu0 %2378
      %v2380 = vsel %vm473, %v2373, 0.0
      %2381 = vadd.xlane.f32.xlu0 %v2380
      %v2382 = vpop.xlane.xlu0 %2381
      %v2383 = vsel %vm473, %v2374, 0.0
      %2384 = vadd.xlane.f32.xlu0 %v2383
      %v2385 = vpop.xlane.xlu0 %2384
      %v2386 = vmul.f32 %v2379, %v2120
      %v2387 = vmul.f32 %v2382, %v2120
      %v2388 = vmul.f32 %v2385, %v2120
      %v2389 = vsub.f32 %v2372, %v2386
      %v2390 = vsub.f32 %v2373, %v2387
      %v2391 = vsub.f32 %v2374, %v2388
      %v2392 = vmul.f32 %v2389, %v2389
      %v2393 = vmul.f32 %v2390, %v2390
      %v2394 = vmul.f32 %v2391, %v2391
      %v2395 = vsel %vm473, %v2392, 0.0
      %2396 = vadd.xlane.f32.xlu0 %v2395
      %v2397 = vpop.xlane.xlu0 %2396
      %v2398 = vsel %vm473, %v2393, 0.0
      %2399 = vadd.xlane.f32.xlu0 %v2398
      %v2400 = vpop.xlane.xlu0 %2399
      %v2401 = vsel %vm473, %v2394, 0.0
      %2402 = vadd.xlane.f32.xlu0 %v2401
      %v2403 = vpop.xlane.xlu0 %2402
      %v2404 = vmul.f32 %v2397, %v2120
      %v2405 = vmul.f32 %v2400, %v2120
      %v2406 = vmul.f32 %v2403, %v2120
      %v2407 = vadd.f32 %v2404, 1e-05
      %v2408 = vadd.f32 %v2405, 1e-05
      %v2409 = vadd.f32 %v2406, 1e-05
      %v2410 = vrsqrt.pop %v2407
      %v2411 = vrsqrt.pop %v2408
      %v2412 = vrsqrt.pop %v2409
      %v2413 = vmul.f32 %v2389, %v2410
      %v2414 = vmul.f32 %v2390, %v2411
      %v2415 = vmul.f32 %v2391, %v2412
      %v2417 = vlaneseq
      %v2418 = vshrl.u32 %v2417, 7
      %v2419 = vsub.s32 0, %v2418
      %v2420 = vrot.slane %v2375, %v2419
      %v2422 = vmul.f32 %v2413, %v2420
      %v2423 = vmul.f32 %v2414, %v2420
      %v2424 = vmul.f32 %v2415, %v2420
      %v2426 = vlaneseq
      %v2427 = vshrl.u32 %v2426, 7
      %v2428 = vsub.s32 0, %v2427
      %v2429 = vrot.slane %v2376, %v2428
      %v2431 = vadd.f32 %v2422, %v2429
      %v2432 = vadd.f32 %v2423, %v2429
      %v2433 = vadd.f32 %v2424, %v2429
      %v2434 = vpack.c.bf16 %v2432, %v2431
      %v2435 = vpack.c.bf16 %v2433, %v2433
      %s2436 = scalar_lea.vmem %s1, 16
      %v2437 = vld [vmem:[%s2436] sm:$0xf]
      %v2438 = vld [vmem:[%s2436 + $0x4] sm:$0xf]
      %v2439 = vld [vmem:[%s2436 + $0x8] sm:$0xf]
      %v2440 = vld [vmem:[%s2436 + $0xc] sm:$0xf]
      %s2441 = scalar_lea.vmem %s2, 1
      %v2442 = vld [vmem:[%s2441] sm:$0x1]
      %v2444 = vlaneseq
      %v2445 = vshrl.u32 %v2444, 7
      %v2446 = vsub.s32 0, %v2445
      %v2447 = vrot.slane %v2442, %v2446
      %v2453 = vunpack.c.l.b16 %v2437
      %v2454 = vunpack.c.l.b16 %v2438
      %v2455 = vunpack.c.l.b16 %v2439
      %v2456 = vunpack.c.l.b16 %v2440
      %v2457 = vpack.c.b16 %v2454, %v2453
      %v2458 = vpack.c.b16 %v2456, %v2455
      %v2462 = vsel %vm473, %v2434, 0
      %v2465 = vsel %vm473, %v2435, 0
      %2467 = vmatprep.subr.bf16.mxu0 0
      %2468 = vmatpush1.bf16.msra.mxu0 %v2457
      %2469 = vmatprep.subr.bf16.mxu0 0
      %2470 = vmatpush1.bf16.msra.mxu0 %v2458
      %2471 = vmatprep.subr.bf16.mxu0 0
      %2472 = vmatpush1.bf16.msra.mxu0 0
      %2473 = vmatprep.subr.bf16.mxu0 0
      %2474 = vmatpush1.bf16.msra.mxu0 0
      %2475 = vmatprep.subr.bf16.mxu0 0
      %2476 = vmatpush1.bf16.msra.mxu0 0
      %2477 = vmatprep.subr.bf16.mxu0 0
      %2478 = vmatpush1.bf16.msra.mxu0 0
      %2479 = vmatprep.subr.bf16.mxu0 0
      %2480 = vmatpush1.bf16.msra.mxu0 0
      %2481 = vmatprep.subr.bf16.mxu0 0
      %2482 = vmatpush1.bf16.msra.mxu0 0
      %2483 = vmatprep.subr.bf16.mxu0 0
      %2484 = vmatpush1.bf16.msra.mxu0 0
      %2485 = vmatprep.subr.bf16.mxu0 0
      %2486 = vmatpush1.bf16.msra.mxu0 0
      %2487 = vmatprep.subr.bf16.mxu0 0
      %2488 = vmatpush1.bf16.msra.mxu0 0
      %2489 = vmatprep.subr.bf16.mxu0 0
      %2490 = vmatpush1.bf16.msra.mxu0 0
      %2491 = vmatprep.subr.bf16.mxu0 0
      %2492 = vmatpush1.bf16.msra.mxu0 0
      %2493 = vmatprep.subr.bf16.mxu0 0
      %2494 = vmatpush1.bf16.msra.mxu0 0
      %2495 = vmatprep.subr.bf16.mxu0 0
      %2496 = vmatpush1.bf16.msra.mxu0 0
      %2497 = vmatprep.subr.bf16.mxu0 0
      %2498 = vmatpush1.bf16.msra.mxu0 0
      %2499 = vmatprep.mubr.bf16.mxu0 0
      %2500 = vmatmul.mubr.bf16.gmra.mrb[0].mxu0 %v2462
      %v2501 = vpop.f32.mrb[0].mxu0
      %v2502 = vadd.f32 %v2447, %v2501
      %v2503 = vpop.f32.mrb[0].mxu0
      %v2504 = vpop.f32.mrb[0].mxu0
      %v2505 = vadd.f32 %v2447, %v2504
      %v2506 = vpop.f32.mrb[0].mxu0
      %2507 = vmatprep.mubr.bf16.mxu0 0
      %2508 = vmatmul.mubr.bf16.gmra.mrb[0].mxu0 %v2465
      %v2509 = vpop.f32.mrb[0].mxu0
      %v2510 = vadd.f32 %v2447, %v2509
      %v2511 = vpop.f32.mrb[0].mxu0
      %v2512 = vpop.f32.mrb[0].mxu0
      %v2513 = vpop.f32.mrb[0].mxu0
      %2514 = vdwg.mxu0
      %s2515 = scalar_lea.vmem %s3, 16
      %v2516 = vld [vmem:[%s2515] sm:$0xf]
      %v2517 = vld [vmem:[%s2515 + $0x4] sm:$0xf]
      %v2518 = vld [vmem:[%s2515 + $0x8] sm:$0xf]
      %v2519 = vld [vmem:[%s2515 + $0xc] sm:$0xf]
      %v2520 = vpack.c.bf16 %v2502, %v2502
      %v2521 = vpack.c.bf16 %v2505, %v2505
      %v2522 = vpack.c.bf16 %v2510, %v2510
      %2524 = vrot.lane.b32.xlu0 %v2520, 96
      %v2525 = vpop.permute.xlu0 %2524
      %v2527 = vsel %vm538, %v2520, 0
      %v2530 = vsel %vm538, %v2525, 0
      %2532 = vmatprep.subr.bf16.mxu0 0
      %2533 = vmatpush1.bf16.xpose.msra.mxu0 %v2530
      %2534 = vmatprep.subr.bf16.mxu0 0
      %2535 = vmatpush1.bf16.xpose.msra.mxu0 0
      %2536 = vmatprep.subr.bf16.mxu0 0
      %2537 = vmatpush1.bf16.xpose.msra.mxu0 0
      %2538 = vmatprep.subr.bf16.mxu0 0
      %2539 = vmatpush1.bf16.xpose.msra.mxu0 0
      %2540 = vmatprep.subr.bf16.mxu0 0
      %2541 = vmatpush1.bf16.xpose.msra.mxu0 0
      %2542 = vmatprep.subr.bf16.mxu0 0
      %2543 = vmatpush1.bf16.xpose.msra.mxu0 0
      %2544 = vmatprep.subr.bf16.mxu0 0
      %2545 = vmatpush1.bf16.xpose.msra.mxu0 0
      %2546 = vmatprep.subr.bf16.mxu0 0
      %2547 = vmatpush1.bf16.xpose.msra.mxu0 0
      %2548 = vmatprep.subr.bf16.mxu0 0
      %2549 = vmatpush1.bf16.xpose.msra.mxu0 0
      %2550 = vmatprep.subr.bf16.mxu0 0
      %2551 = vmatpush1.bf16.xpose.msra.mxu0 0
      %2552 = vmatprep.subr.bf16.mxu0 0
      %2553 = vmatpush1.bf16.xpose.msra.mxu0 0
      %2554 = vmatprep.subr.bf16.mxu0 0
      %2555 = vmatpush1.bf16.xpose.msra.mxu0 0
      %2556 = vmatprep.subr.bf16.mxu0 0
      %2557 = vmatpush1.bf16.xpose.msra.mxu0 0
      %2558 = vmatprep.subr.bf16.mxu0 0
      %2559 = vmatpush1.bf16.xpose.msra.mxu0 0
      %2560 = vmatprep.subr.bf16.mxu0 0
      %2561 = vmatpush1.bf16.xpose.msra.mxu0 0
      %2562 = vmatprep.subr.bf16.mxu0 0
      %2563 = vmatpush1.bf16.xpose.msra.mxu0 0
      %2564 = vmatprep.mubr.bf16.mxu0 0
      %2565 = vmatmul.mubr.bf16.gmra.mrb[0].mxu0 %v2527
      %v2566 = vpop.f32.mrb[0].mxu0
      %v2567 = vadd.f32 0.0, %v2566
      %v2568 = vpop.f32.mrb[0].mxu0
      %v2569 = vpop.f32.mrb[0].mxu0
      %v2570 = vpop.f32.mrb[0].mxu0
      %2571 = vdwg.mxu0
      %2573 = vrot.lane.b32.xlu0 %v2521, 96
      %v2574 = vpop.permute.xlu0 %2573
      %v2576 = vsel %vm538, %v2521, 0
      %v2579 = vsel %vm538, %v2574, 0
      %2581 = vmatprep.subr.bf16.mxu0 0
      %2582 = vmatpush1.bf16.xpose.msra.mxu0 %v2579
      %2583 = vmatprep.subr.bf16.mxu0 0
      %2584 = vmatpush1.bf16.xpose.msra.mxu0 0
      %2585 = vmatprep.subr.bf16.mxu0 0
      %2586 = vmatpush1.bf16.xpose.msra.mxu0 0
      %2587 = vmatprep.subr.bf16.mxu0 0
      %2588 = vmatpush1.bf16.xpose.msra.mxu0 0
      %2589 = vmatprep.subr.bf16.mxu0 0
      %2590 = vmatpush1.bf16.xpose.msra.mxu0 0
      %2591 = vmatprep.subr.bf16.mxu0 0
      %2592 = vmatpush1.bf16.xpose.msra.mxu0 0
      %2593 = vmatprep.subr.bf16.mxu0 0
      %2594 = vmatpush1.bf16.xpose.msra.mxu0 0
      %2595 = vmatprep.subr.bf16.mxu0 0
      %2596 = vmatpush1.bf16.xpose.msra.mxu0 0
      %2597 = vmatprep.subr.bf16.mxu0 0
      %2598 = vmatpush1.bf16.xpose.msra.mxu0 0
      %2599 = vmatprep.subr.bf16.mxu0 0
      %2600 = vmatpush1.bf16.xpose.msra.mxu0 0
      %2601 = vmatprep.subr.bf16.mxu0 0
      %2602 = vmatpush1.bf16.xpose.msra.mxu0 0
      %2603 = vmatprep.subr.bf16.mxu0 0
      %2604 = vmatpush1.bf16.xpose.msra.mxu0 0
      %2605 = vmatprep.subr.bf16.mxu0 0
      %2606 = vmatpush1.bf16.xpose.msra.mxu0 0
      %2607 = vmatprep.subr.bf16.mxu0 0
      %2608 = vmatpush1.bf16.xpose.msra.mxu0 0
      %2609 = vmatprep.subr.bf16.mxu0 0
      %2610 = vmatpush1.bf16.xpose.msra.mxu0 0
      %2611 = vmatprep.subr.bf16.mxu0 0
      %2612 = vmatpush1.bf16.xpose.msra.mxu0 0
      %2613 = vmatprep.mubr.bf16.mxu0 0
      %2614 = vmatmul.mubr.bf16.gmra.mrb[0].mxu0 %v2576
      %v2615 = vpop.f32.mrb[0].mxu0
      %v2616 = vadd.f32 0.0, %v2615
      %v2617 = vpop.f32.mrb[0].mxu0
      %v2618 = vpop.f32.mrb[0].mxu0
      %v2619 = vpop.f32.mrb[0].mxu0
      %2620 = vdwg.mxu0
      %2622 = vrot.lane.b32.xlu0 %v2522, 96
      %v2623 = vpop.permute.xlu0 %2622
      %v2625 = vsel %vm538, %v2522, 0
      %v2628 = vsel %vm538, %v2623, 0
      %2630 = vmatprep.subr.bf16.mxu0 0
      %2631 = vmatpush1.bf16.xpose.msra.mxu0 %v2628
      %2632 = vmatprep.subr.bf16.mxu0 0
      %2633 = vmatpush1.bf16.xpose.msra.mxu0 0
      %2634 = vmatprep.subr.bf16.mxu0 0
      %2635 = vmatpush1.bf16.xpose.msra.mxu0 0
      %2636 = vmatprep.subr.bf16.mxu0 0
      %2637 = vmatpush1.bf16.xpose.msra.mxu0 0
      %2638 = vmatprep.subr.bf16.mxu0 0
      %2639 = vmatpush1.bf16.xpose.msra.mxu0 0
      %2640 = vmatprep.subr.bf16.mxu0 0
      %2641 = vmatpush1.bf16.xpose.msra.mxu0 0
      %2642 = vmatprep.subr.bf16.mxu0 0
      %2643 = vmatpush1.bf16.xpose.msra.mxu0 0
      %2644 = vmatprep.subr.bf16.mxu0 0
      %2645 = vmatpush1.bf16.xpose.msra.mxu0 0
      %2646 = vmatprep.subr.bf16.mxu0 0
      %2647 = vmatpush1.bf16.xpose.msra.mxu0 0
      %2648 = vmatprep.subr.bf16.mxu0 0
      %2649 = vmatpush1.bf16.xpose.msra.mxu0 0
      %2650 = vmatprep.subr.bf16.mxu0 0
      %2651 = vmatpush1.bf16.xpose.msra.mxu0 0
      %2652 = vmatprep.subr.bf16.mxu0 0
      %2653 = vmatpush1.bf16.xpose.msra.mxu0 0
      %2654 = vmatprep.subr.bf16.mxu0 0
      %2655 = vmatpush1.bf16.xpose.msra.mxu0 0
      %2656 = vmatprep.subr.bf16.mxu0 0
      %2657 = vmatpush1.bf16.xpose.msra.mxu0 0
      %2658 = vmatprep.subr.bf16.mxu0 0
      %2659 = vmatpush1.bf16.xpose.msra.mxu0 0
      %2660 = vmatprep.subr.bf16.mxu0 0
      %2661 = vmatpush1.bf16.xpose.msra.mxu0 0
      %2662 = vmatprep.mubr.bf16.mxu0 0
      %2663 = vmatmul.mubr.bf16.gmra.mrb[0].mxu0 %v2625
      %v2664 = vpop.f32.mrb[0].mxu0
      %v2665 = vadd.f32 0.0, %v2664
      %v2666 = vpop.f32.mrb[0].mxu0
      %v2667 = vpop.f32.mrb[0].mxu0
      %v2668 = vpop.f32.mrb[0].mxu0
      %2669 = vdwg.mxu0
      %v2670 = vsel %vm538, %v2567, -inf
      %2671 = vmax.xlane.f32.xlu0 %v2670
      %v2672 = vpop.xlane.xlu0 %2671
      %v2673 = vsel %vm538, %v2616, -inf
      %2674 = vmax.xlane.f32.xlu0 %v2673
      %v2675 = vpop.xlane.xlu0 %2674
      %v2676 = vsel %vm538, %v2665, -inf
      %2677 = vmax.xlane.f32.xlu0 %v2676
      %v2678 = vpop.xlane.xlu0 %2677
      %v2679 = vsub.f32 %v2567, %v2672
      %v2680 = vsub.f32 %v2616, %v2675
      %v2681 = vsub.f32 %v2665, %v2678
      %v2682 = vmul.f32 %v2679, 1.442695
      %v2683 = vpow.pop %v2682
      %v2684 = vmul.f32 %v2680, 1.442695
      %v2685 = vpow.pop %v2684
      %v2686 = vmul.f32 %v2681, 1.442695
      %v2687 = vpow.pop %v2686
      %v2688 = vsel %vm538, %v2683, 0.0
      %2689 = vadd.xlane.f32.xlu0 %v2688
      %v2690 = vpop.xlane.xlu0 %2689
      %v2691 = vsel %vm538, %v2685, 0.0
      %2692 = vadd.xlane.f32.xlu0 %v2691
      %v2693 = vpop.xlane.xlu0 %2692
      %v2694 = vsel %vm538, %v2687, 0.0
      %2695 = vadd.xlane.f32.xlu0 %v2694
      %v2696 = vpop.xlane.xlu0 %2695
      %v2697 = vrcp.pop %v2690
      %v2698 = vrcp.pop %v2693
      %v2699 = vrcp.pop %v2696
      %v2700 = vmul.f32 %v2683, %v2697
      %v2701 = vmul.f32 %v2685, %v2698
      %v2702 = vmul.f32 %v2687, %v2699
      %v2703 = vpack.c.bf16 %v2700, %v2700
      %v2704 = vpack.c.bf16 %v2701, %v2701
      %v2705 = vpack.c.bf16 %v2702, %v2702
      %2706 = vrot.lane.b32.xlu0 %v2520, 64
      %v2707 = vpop.permute.xlu0 %2706
      %v2709 = vsel %vm538, %v2703, 0
      %v2712 = vsel %vm724, %v2707, 0
      %2714 = vmatprep.subr.bf16.mxu0 0
      %2715 = vmatpush1.bf16.msra.mxu0 %v2712
      %2716 = vmatprep.subr.bf16.mxu0 0
      %2717 = vmatpush1.bf16.msra.mxu0 0
      %2718 = vmatprep.subr.bf16.mxu0 0
      %2719 = vmatpush1.bf16.msra.mxu0 0
      %2720 = vmatprep.subr.bf16.mxu0 0
      %2721 = vmatpush1.bf16.msra.mxu0 0
      %2722 = vmatprep.subr.bf16.mxu0 0
      %2723 = vmatpush1.bf16.msra.mxu0 0
      %2724 = vmatprep.subr.bf16.mxu0 0
      %2725 = vmatpush1.bf16.msra.mxu0 0
      %2726 = vmatprep.subr.bf16.mxu0 0
      %2727 = vmatpush1.bf16.msra.mxu0 0
      %2728 = vmatprep.subr.bf16.mxu0 0
      %2729 = vmatpush1.bf16.msra.mxu0 0
      %2730 = vmatprep.subr.bf16.mxu0 0
      %2731 = vmatpush1.bf16.msra.mxu0 0
      %2732 = vmatprep.subr.bf16.mxu0 0
      %2733 = vmatpush1.bf16.msra.mxu0 0
      %2734 = vmatprep.subr.bf16.mxu0 0
      %2735 = vmatpush1.bf16.msra.mxu0 0
      %2736 = vmatprep.subr.bf16.mxu0 0
      %2737 = vmatpush1.bf16.msra.mxu0 0
      %2738 = vmatprep.subr.bf16.mxu0 0
      %2739 = vmatpush1.bf16.msra.mxu0 0
      %2740 = vmatprep.subr.bf16.mxu0 0
      %2741 = vmatpush1.bf16.msra.mxu0 0
      %2742 = vmatprep.subr.bf16.mxu0 0
      %2743 = vmatpush1.bf16.msra.mxu0 0
      %2744 = vmatprep.subr.bf16.mxu0 0
      %2745 = vmatpush1.bf16.msra.mxu0 0
      %2746 = vmatprep.mubr.bf16.mxu0 0
      %2747 = vmatmul.mubr.bf16.gmra.mrb[0].mxu0 %v2709
      %v2748 = vpop.f32.mrb[0].mxu0
      %v2749 = vadd.f32 0.0, %v2748
      %v2750 = vpop.f32.mrb[0].mxu0
      %v2751 = vpop.f32.mrb[0].mxu0
      %v2752 = vpop.f32.mrb[0].mxu0
      %2753 = vdwg.mxu0
      %2754 = vrot.lane.b32.xlu0 %v2521, 64
      %v2755 = vpop.permute.xlu0 %2754
      %v2757 = vsel %vm538, %v2704, 0
      %v2760 = vsel %vm724, %v2755, 0
      %2762 = vmatprep.subr.bf16.mxu0 0
      %2763 = vmatpush1.bf16.msra.mxu0 %v2760
      %2764 = vmatprep.subr.bf16.mxu0 0
      %2765 = vmatpush1.bf16.msra.mxu0 0
      %2766 = vmatprep.subr.bf16.mxu0 0
      %2767 = vmatpush1.bf16.msra.mxu0 0
      %2768 = vmatprep.subr.bf16.mxu0 0
      %2769 = vmatpush1.bf16.msra.mxu0 0
      %2770 = vmatprep.subr.bf16.mxu0 0
      %2771 = vmatpush1.bf16.msra.mxu0 0
      %2772 = vmatprep.subr.bf16.mxu0 0
      %2773 = vmatpush1.bf16.msra.mxu0 0
      %2774 = vmatprep.subr.bf16.mxu0 0
      %2775 = vmatpush1.bf16.msra.mxu0 0
      %2776 = vmatprep.subr.bf16.mxu0 0
      %2777 = vmatpush1.bf16.msra.mxu0 0
      %2778 = vmatprep.subr.bf16.mxu0 0
      %2779 = vmatpush1.bf16.msra.mxu0 0
      %2780 = vmatprep.subr.bf16.mxu0 0
      %2781 = vmatpush1.bf16.msra.mxu0 0
      %2782 = vmatprep.subr.bf16.mxu0 0
      %2783 = vmatpush1.bf16.msra.mxu0 0
      %2784 = vmatprep.subr.bf16.mxu0 0
      %2785 = vmatpush1.bf16.msra.mxu0 0
      %2786 = vmatprep.subr.bf16.mxu0 0
      %2787 = vmatpush1.bf16.msra.mxu0 0
      %2788 = vmatprep.subr.bf16.mxu0 0
      %2789 = vmatpush1.bf16.msra.mxu0 0
      %2790 = vmatprep.subr.bf16.mxu0 0
      %2791 = vmatpush1.bf16.msra.mxu0 0
      %2792 = vmatprep.subr.bf16.mxu0 0
      %2793 = vmatpush1.bf16.msra.mxu0 0
      %2794 = vmatprep.mubr.bf16.mxu0 0
      %2795 = vmatmul.mubr.bf16.gmra.mrb[0].mxu0 %v2757
      %v2796 = vpop.f32.mrb[0].mxu0
      %v2797 = vadd.f32 0.0, %v2796
      %v2798 = vpop.f32.mrb[0].mxu0
      %v2799 = vpop.f32.mrb[0].mxu0
      %v2800 = vpop.f32.mrb[0].mxu0
      %2801 = vdwg.mxu0
      %2802 = vrot.lane.b32.xlu0 %v2522, 64
      %v2803 = vpop.permute.xlu0 %2802
      %v2805 = vsel %vm538, %v2705, 0
      %v2808 = vsel %vm724, %v2803, 0
      %2810 = vmatprep.subr.bf16.mxu0 0
      %2811 = vmatpush1.bf16.msra.mxu0 %v2808
      %2812 = vmatprep.subr.bf16.mxu0 0
      %2813 = vmatpush1.bf16.msra.mxu0 0
      %2814 = vmatprep.subr.bf16.mxu0 0
      %2815 = vmatpush1.bf16.msra.mxu0 0
      %2816 = vmatprep.subr.bf16.mxu0 0
      %2817 = vmatpush1.bf16.msra.mxu0 0
      %2818 = vmatprep.subr.bf16.mxu0 0
      %2819 = vmatpush1.bf16.msra.mxu0 0
      %2820 = vmatprep.subr.bf16.mxu0 0
      %2821 = vmatpush1.bf16.msra.mxu0 0
      %2822 = vmatprep.subr.bf16.mxu0 0
      %2823 = vmatpush1.bf16.msra.mxu0 0
      %2824 = vmatprep.subr.bf16.mxu0 0
      %2825 = vmatpush1.bf16.msra.mxu0 0
      %2826 = vmatprep.subr.bf16.mxu0 0
      %2827 = vmatpush1.bf16.msra.mxu0 0
      %2828 = vmatprep.subr.bf16.mxu0 0
      %2829 = vmatpush1.bf16.msra.mxu0 0
      %2830 = vmatprep.subr.bf16.mxu0 0
      %2831 = vmatpush1.bf16.msra.mxu0 0
      %2832 = vmatprep.subr.bf16.mxu0 0
      %2833 = vmatpush1.bf16.msra.mxu0 0
      %2834 = vmatprep.subr.bf16.mxu0 0
      %2835 = vmatpush1.bf16.msra.mxu0 0
      %2836 = vmatprep.subr.bf16.mxu0 0
      %2837 = vmatpush1.bf16.msra.mxu0 0
      %2838 = vmatprep.subr.bf16.mxu0 0
      %2839 = vmatpush1.bf16.msra.mxu0 0
      %2840 = vmatprep.subr.bf16.mxu0 0
      %2841 = vmatpush1.bf16.msra.mxu0 0
      %2842 = vmatprep.mubr.bf16.mxu0 0
      %2843 = vmatmul.mubr.bf16.gmra.mrb[0].mxu0 %v2805
      %v2844 = vpop.f32.mrb[0].mxu0
      %v2845 = vadd.f32 0.0, %v2844
      %v2846 = vpop.f32.mrb[0].mxu0
      %v2847 = vpop.f32.mrb[0].mxu0
      %v2848 = vpop.f32.mrb[0].mxu0
      %2849 = vdwg.mxu0
      %v2850 = vpack.c.bf16 %v2797, %v2749
      %v2851 = vpack.c.bf16 %v2845, %v2845
      %2852 = vrot.lane.b32.xlu0 %v2520, 120
      %v2853 = vpop.permute.xlu0 %2852
      %2854 = vrot.lane.b32.xlu0 %v2520, 88
      %v2855 = vpop.permute.xlu0 %2854
      %v2857 = vsel %vm538, %v2853, 0
      %v2860 = vsel %vm538, %v2855, 0
      %2862 = vmatprep.subr.bf16.mxu0 0
      %2863 = vmatpush1.bf16.xpose.msra.mxu0 %v2860
      %2864 = vmatprep.subr.bf16.mxu0 0
      %2865 = vmatpush1.bf16.xpose.msra.mxu0 0
      %2866 = vmatprep.subr.bf16.mxu0 0
      %2867 = vmatpush1.bf16.xpose.msra.mxu0 0
      %2868 = vmatprep.subr.bf16.mxu0 0
      %2869 = vmatpush1.bf16.xpose.msra.mxu0 0
      %2870 = vmatprep.subr.bf16.mxu0 0
      %2871 = vmatpush1.bf16.xpose.msra.mxu0 0
      %2872 = vmatprep.subr.bf16.mxu0 0
      %2873 = vmatpush1.bf16.xpose.msra.mxu0 0
      %2874 = vmatprep.subr.bf16.mxu0 0
      %2875 = vmatpush1.bf16.xpose.msra.mxu0 0
      %2876 = vmatprep.subr.bf16.mxu0 0
      %2877 = vmatpush1.bf16.xpose.msra.mxu0 0
      %2878 = vmatprep.subr.bf16.mxu0 0
      %2879 = vmatpush1.bf16.xpose.msra.mxu0 0
      %2880 = vmatprep.subr.bf16.mxu0 0
      %2881 = vmatpush1.bf16.xpose.msra.mxu0 0
      %2882 = vmatprep.subr.bf16.mxu0 0
      %2883 = vmatpush1.bf16.xpose.msra.mxu0 0
      %2884 = vmatprep.subr.bf16.mxu0 0
      %2885 = vmatpush1.bf16.xpose.msra.mxu0 0
      %2886 = vmatprep.subr.bf16.mxu0 0
      %2887 = vmatpush1.bf16.xpose.msra.mxu0 0
      %2888 = vmatprep.subr.bf16.mxu0 0
      %2889 = vmatpush1.bf16.xpose.msra.mxu0 0
      %2890 = vmatprep.subr.bf16.mxu0 0
      %2891 = vmatpush1.bf16.xpose.msra.mxu0 0
      %2892 = vmatprep.subr.bf16.mxu0 0
      %2893 = vmatpush1.bf16.xpose.msra.mxu0 0
      %2894 = vmatprep.mubr.bf16.mxu0 0
      %2895 = vmatmul.mubr.bf16.gmra.mrb[0].mxu0 %v2857
      %v2896 = vpop.f32.mrb[0].mxu0
      %v2897 = vadd.f32 0.0, %v2896
      %v2898 = vpop.f32.mrb[0].mxu0
      %v2899 = vpop.f32.mrb[0].mxu0
      %v2900 = vpop.f32.mrb[0].mxu0
      %2901 = vdwg.mxu0
      %2902 = vrot.lane.b32.xlu0 %v2521, 120
      %v2903 = vpop.permute.xlu0 %2902
      %2904 = vrot.lane.b32.xlu0 %v2521, 88
      %v2905 = vpop.permute.xlu0 %2904
      %v2907 = vsel %vm538, %v2903, 0
      %v2910 = vsel %vm538, %v2905, 0
      %2912 = vmatprep.subr.bf16.mxu0 0
      %2913 = vmatpush1.bf16.xpose.msra.mxu0 %v2910
      %2914 = vmatprep.subr.bf16.mxu0 0
      %2915 = vmatpush1.bf16.xpose.msra.mxu0 0
      %2916 = vmatprep.subr.bf16.mxu0 0
      %2917 = vmatpush1.bf16.xpose.msra.mxu0 0
      %2918 = vmatprep.subr.bf16.mxu0 0
      %2919 = vmatpush1.bf16.xpose.msra.mxu0 0
      %2920 = vmatprep.subr.bf16.mxu0 0
      %2921 = vmatpush1.bf16.xpose.msra.mxu0 0
      %2922 = vmatprep.subr.bf16.mxu0 0
      %2923 = vmatpush1.bf16.xpose.msra.mxu0 0
      %2924 = vmatprep.subr.bf16.mxu0 0
      %2925 = vmatpush1.bf16.xpose.msra.mxu0 0
      %2926 = vmatprep.subr.bf16.mxu0 0
      %2927 = vmatpush1.bf16.xpose.msra.mxu0 0
      %2928 = vmatprep.subr.bf16.mxu0 0
      %2929 = vmatpush1.bf16.xpose.msra.mxu0 0
      %2930 = vmatprep.subr.bf16.mxu0 0
      %2931 = vmatpush1.bf16.xpose.msra.mxu0 0
      %2932 = vmatprep.subr.bf16.mxu0 0
      %2933 = vmatpush1.bf16.xpose.msra.mxu0 0
      %2934 = vmatprep.subr.bf16.mxu0 0
      %2935 = vmatpush1.bf16.xpose.msra.mxu0 0
      %2936 = vmatprep.subr.bf16.mxu0 0
      %2937 = vmatpush1.bf16.xpose.msra.mxu0 0
      %2938 = vmatprep.subr.bf16.mxu0 0
      %2939 = vmatpush1.bf16.xpose.msra.mxu0 0
      %2940 = vmatprep.subr.bf16.mxu0 0
      %2941 = vmatpush1.bf16.xpose.msra.mxu0 0
      %2942 = vmatprep.subr.bf16.mxu0 0
      %2943 = vmatpush1.bf16.xpose.msra.mxu0 0
      %2944 = vmatprep.mubr.bf16.mxu0 0
      %2945 = vmatmul.mubr.bf16.gmra.mrb[0].mxu0 %v2907
      %v2946 = vpop.f32.mrb[0].mxu0
      %v2947 = vadd.f32 0.0, %v2946
      %v2948 = vpop.f32.mrb[0].mxu0
      %v2949 = vpop.f32.mrb[0].mxu0
      %v2950 = vpop.f32.mrb[0].mxu0
      %2951 = vdwg.mxu0
      %2952 = vrot.lane.b32.xlu0 %v2522, 120
      %v2953 = vpop.permute.xlu0 %2952
      %2954 = vrot.lane.b32.xlu0 %v2522, 88
      %v2955 = vpop.permute.xlu0 %2954
      %v2957 = vsel %vm538, %v2953, 0
      %v2960 = vsel %vm538, %v2955, 0
      %2962 = vmatprep.subr.bf16.mxu0 0
      %2963 = vmatpush1.bf16.xpose.msra.mxu0 %v2960
      %2964 = vmatprep.subr.bf16.mxu0 0
      %2965 = vmatpush1.bf16.xpose.msra.mxu0 0
      %2966 = vmatprep.subr.bf16.mxu0 0
      %2967 = vmatpush1.bf16.xpose.msra.mxu0 0
      %2968 = vmatprep.subr.bf16.mxu0 0
      %2969 = vmatpush1.bf16.xpose.msra.mxu0 0
      %2970 = vmatprep.subr.bf16.mxu0 0
      %2971 = vmatpush1.bf16.xpose.msra.mxu0 0
      %2972 = vmatprep.subr.bf16.mxu0 0
      %2973 = vmatpush1.bf16.xpose.msra.mxu0 0
      %2974 = vmatprep.subr.bf16.mxu0 0
      %2975 = vmatpush1.bf16.xpose.msra.mxu0 0
      %2976 = vmatprep.subr.bf16.mxu0 0
      %2977 = vmatpush1.bf16.xpose.msra.mxu0 0
      %2978 = vmatprep.subr.bf16.mxu0 0
      %2979 = vmatpush1.bf16.xpose.msra.mxu0 0
      %2980 = vmatprep.subr.bf16.mxu0 0
      %2981 = vmatpush1.bf16.xpose.msra.mxu0 0
      %2982 = vmatprep.subr.bf16.mxu0 0
      %2983 = vmatpush1.bf16.xpose.msra.mxu0 0
      %2984 = vmatprep.subr.bf16.mxu0 0
      %2985 = vmatpush1.bf16.xpose.msra.mxu0 0
      %2986 = vmatprep.subr.bf16.mxu0 0
      %2987 = vmatpush1.bf16.xpose.msra.mxu0 0
      %2988 = vmatprep.subr.bf16.mxu0 0
      %2989 = vmatpush1.bf16.xpose.msra.mxu0 0
      %2990 = vmatprep.subr.bf16.mxu0 0
      %2991 = vmatpush1.bf16.xpose.msra.mxu0 0
      %2992 = vmatprep.subr.bf16.mxu0 0
      %2993 = vmatpush1.bf16.xpose.msra.mxu0 0
      %2994 = vmatprep.mubr.bf16.mxu0 0
      %2995 = vmatmul.mubr.bf16.gmra.mrb[0].mxu0 %v2957
      %v2996 = vpop.f32.mrb[0].mxu0
      %v2997 = vadd.f32 0.0, %v2996
      %v2998 = vpop.f32.mrb[0].mxu0
      %v2999 = vpop.f32.mrb[0].mxu0
      %v3000 = vpop.f32.mrb[0].mxu0
      %3001 = vdwg.mxu0
      %v3002 = vsel %vm538, %v2897, -inf
      %3003 = vmax.xlane.f32.xlu0 %v3002
      %v3004 = vpop.xlane.xlu0 %3003
      %v3005 = vsel %vm538, %v2947, -inf
      %3006 = vmax.xlane.f32.xlu0 %v3005
      %v3007 = vpop.xlane.xlu0 %3006
      %v3008 = vsel %vm538, %v2997, -inf
      %3009 = vmax.xlane.f32.xlu0 %v3008
      %v3010 = vpop.xlane.xlu0 %3009
      %v3011 = vsub.f32 %v2897, %v3004
      %v3012 = vsub.f32 %v2947, %v3007
      %v3013 = vsub.f32 %v2997, %v3010
      %v3014 = vmul.f32 %v3011, 1.442695
      %v3015 = vpow.pop %v3014
      %v3016 = vmul.f32 %v3012, 1.442695
      %v3017 = vpow.pop %v3016
      %v3018 = vmul.f32 %v3013, 1.442695
      %v3019 = vpow.pop %v3018
      %v3020 = vsel %vm538, %v3015, 0.0
      %3021 = vadd.xlane.f32.xlu0 %v3020
      %v3022 = vpop.xlane.xlu0 %3021
      %v3023 = vsel %vm538, %v3017, 0.0
      %3024 = vadd.xlane.f32.xlu0 %v3023
      %v3025 = vpop.xlane.xlu0 %3024
      %v3026 = vsel %vm538, %v3019, 0.0
      %3027 = vadd.xlane.f32.xlu0 %v3026
      %v3028 = vpop.xlane.xlu0 %3027
      %v3029 = vrcp.pop %v3022
      %v3030 = vrcp.pop %v3025
      %v3031 = vrcp.pop %v3028
      %v3032 = vmul.f32 %v3015, %v3029
      %v3033 = vmul.f32 %v3017, %v3030
      %v3034 = vmul.f32 %v3019, %v3031
      %v3035 = vpack.c.bf16 %v3032, %v3032
      %v3036 = vpack.c.bf16 %v3033, %v3033
      %v3037 = vpack.c.bf16 %v3034, %v3034
      %3038 = vrot.lane.b32.xlu0 %v2520, 56
      %v3039 = vpop.permute.xlu0 %3038
      %v3041 = vsel %vm538, %v3035, 0
      %v3044 = vsel %vm724, %v3039, 0
      %3046 = vmatprep.subr.bf16.mxu0 0
      %3047 = vmatpush1.bf16.msra.mxu0 %v3044
      %3048 = vmatprep.subr.bf16.mxu0 0
      %3049 = vmatpush1.bf16.msra.mxu0 0
      %3050 = vmatprep.subr.bf16.mxu0 0
      %3051 = vmatpush1.bf16.msra.mxu0 0
      %3052 = vmatprep.subr.bf16.mxu0 0
      %3053 = vmatpush1.bf16.msra.mxu0 0
      %3054 = vmatprep.subr.bf16.mxu0 0
      %3055 = vmatpush1.bf16.msra.mxu0 0
      %3056 = vmatprep.subr.bf16.mxu0 0
      %3057 = vmatpush1.bf16.msra.mxu0 0
      %3058 = vmatprep.subr.bf16.mxu0 0
      %3059 = vmatpush1.bf16.msra.mxu0 0
      %3060 = vmatprep.subr.bf16.mxu0 0
      %3061 = vmatpush1.bf16.msra.mxu0 0
      %3062 = vmatprep.subr.bf16.mxu0 0
      %3063 = vmatpush1.bf16.msra.mxu0 0
      %3064 = vmatprep.subr.bf16.mxu0 0
      %3065 = vmatpush1.bf16.msra.mxu0 0
      %3066 = vmatprep.subr.bf16.mxu0 0
      %3067 = vmatpush1.bf16.msra.mxu0 0
      %3068 = vmatprep.subr.bf16.mxu0 0
      %3069 = vmatpush1.bf16.msra.mxu0 0
      %3070 = vmatprep.subr.bf16.mxu0 0
      %3071 = vmatpush1.bf16.msra.mxu0 0
      %3072 = vmatprep.subr.bf16.mxu0 0
      %3073 = vmatpush1.bf16.msra.mxu0 0
      %3074 = vmatprep.subr.bf16.mxu0 0
      %3075 = vmatpush1.bf16.msra.mxu0 0
      %3076 = vmatprep.subr.bf16.mxu0 0
      %3077 = vmatpush1.bf16.msra.mxu0 0
      %3078 = vmatprep.mubr.bf16.mxu0 0
      %3079 = vmatmul.mubr.bf16.gmra.mrb[0].mxu0 %v3041
      %v3080 = vpop.f32.mrb[0].mxu0
      %v3081 = vadd.f32 0.0, %v3080
      %v3082 = vpop.f32.mrb[0].mxu0
      %v3083 = vpop.f32.mrb[0].mxu0
      %v3084 = vpop.f32.mrb[0].mxu0
      %3085 = vdwg.mxu0
      %3086 = vrot.lane.b32.xlu0 %v2521, 56
      %v3087 = vpop.permute.xlu0 %3086
      %v3089 = vsel %vm538, %v3036, 0
      %v3092 = vsel %vm724, %v3087, 0
      %3094 = vmatprep.subr.bf16.mxu0 0
      %3095 = vmatpush1.bf16.msra.mxu0 %v3092
      %3096 = vmatprep.subr.bf16.mxu0 0
      %3097 = vmatpush1.bf16.msra.mxu0 0
      %3098 = vmatprep.subr.bf16.mxu0 0
      %3099 = vmatpush1.bf16.msra.mxu0 0
      %3100 = vmatprep.subr.bf16.mxu0 0
      %3101 = vmatpush1.bf16.msra.mxu0 0
      %3102 = vmatprep.subr.bf16.mxu0 0
      %3103 = vmatpush1.bf16.msra.mxu0 0
      %3104 = vmatprep.subr.bf16.mxu0 0
      %3105 = vmatpush1.bf16.msra.mxu0 0
      %3106 = vmatprep.subr.bf16.mxu0 0
      %3107 = vmatpush1.bf16.msra.mxu0 0
      %3108 = vmatprep.subr.bf16.mxu0 0
      %3109 = vmatpush1.bf16.msra.mxu0 0
      %3110 = vmatprep.subr.bf16.mxu0 0
      %3111 = vmatpush1.bf16.msra.mxu0 0
      %3112 = vmatprep.subr.bf16.mxu0 0
      %3113 = vmatpush1.bf16.msra.mxu0 0
      %3114 = vmatprep.subr.bf16.mxu0 0
      %3115 = vmatpush1.bf16.msra.mxu0 0
      %3116 = vmatprep.subr.bf16.mxu0 0
      %3117 = vmatpush1.bf16.msra.mxu0 0
      %3118 = vmatprep.subr.bf16.mxu0 0
      %3119 = vmatpush1.bf16.msra.mxu0 0
      %3120 = vmatprep.subr.bf16.mxu0 0
      %3121 = vmatpush1.bf16.msra.mxu0 0
      %3122 = vmatprep.subr.bf16.mxu0 0
      %3123 = vmatpush1.bf16.msra.mxu0 0
      %3124 = vmatprep.subr.bf16.mxu0 0
      %3125 = vmatpush1.bf16.msra.mxu0 0
      %3126 = vmatprep.mubr.bf16.mxu0 0
      %3127 = vmatmul.mubr.bf16.gmra.mrb[0].mxu0 %v3089
      %v3128 = vpop.f32.mrb[0].mxu0
      %v3129 = vadd.f32 0.0, %v3128
      %v3130 = vpop.f32.mrb[0].mxu0
      %v3131 = vpop.f32.mrb[0].mxu0
      %v3132 = vpop.f32.mrb[0].mxu0
      %3133 = vdwg.mxu0
      %3134 = vrot.lane.b32.xlu0 %v2522, 56
      %v3135 = vpop.permute.xlu0 %3134
      %v3137 = vsel %vm538, %v3037, 0
      %v3140 = vsel %vm724, %v3135, 0
      %3142 = vmatprep.subr.bf16.mxu0 0
      %3143 = vmatpush1.bf16.msra.mxu0 %v3140
      %3144 = vmatprep.subr.bf16.mxu0 0
      %3145 = vmatpush1.bf16.msra.mxu0 0
      %3146 = vmatprep.subr.bf16.mxu0 0
      %3147 = vmatpush1.bf16.msra.mxu0 0
      %3148 = vmatprep.subr.bf16.mxu0 0
      %3149 = vmatpush1.bf16.msra.mxu0 0
      %3150 = vmatprep.subr.bf16.mxu0 0
      %3151 = vmatpush1.bf16.msra.mxu0 0
      %3152 = vmatprep.subr.bf16.mxu0 0
      %3153 = vmatpush1.bf16.msra.mxu0 0
      %3154 = vmatprep.subr.bf16.mxu0 0
      %3155 = vmatpush1.bf16.msra.mxu0 0
      %3156 = vmatprep.subr.bf16.mxu0 0
      %3157 = vmatpush1.bf16.msra.mxu0 0
      %3158 = vmatprep.subr.bf16.mxu0 0
      %3159 = vmatpush1.bf16.msra.mxu0 0
      %3160 = vmatprep.subr.bf16.mxu0 0
      %3161 = vmatpush1.bf16.msra.mxu0 0
      %3162 = vmatprep.subr.bf16.mxu0 0
      %3163 = vmatpush1.bf16.msra.mxu0 0
      %3164 = vmatprep.subr.bf16.mxu0 0
      %3165 = vmatpush1.bf16.msra.mxu0 0
      %3166 = vmatprep.subr.bf16.mxu0 0
      %3167 = vmatpush1.bf16.msra.mxu0 0
      %3168 = vmatprep.subr.bf16.mxu0 0
      %3169 = vmatpush1.bf16.msra.mxu0 0
      %3170 = vmatprep.subr.bf16.mxu0 0
      %3171 = vmatpush1.bf16.msra.mxu0 0
      %3172 = vmatprep.subr.bf16.mxu0 0
      %3173 = vmatpush1.bf16.msra.mxu0 0
      %3174 = vmatprep.mubr.bf16.mxu0 0
      %3175 = vmatmul.mubr.bf16.gmra.mrb[0].mxu0 %v3137
      %v3176 = vpop.f32.mrb[0].mxu0
      %v3177 = vadd.f32 0.0, %v3176
      %v3178 = vpop.f32.mrb[0].mxu0
      %v3179 = vpop.f32.mrb[0].mxu0
      %v3180 = vpop.f32.mrb[0].mxu0
      %3181 = vdwg.mxu0
      %v3182 = vpack.c.bf16 %v3129, %v3081
      %v3183 = vpack.c.bf16 %v3177, %v3177
      %v3185 = vsel %vm538, %v3182, 0
      %v3188 = vsel %vm538, %v3183, 0
      %v3191 = vsel %vm724, %v2517, 0
      %3193 = vmatprep.subr.bf16.mxu0 0
      %3194 = vmatpush1.bf16.msra.mxu0 %v3191
      %3195 = vmatprep.subr.bf16.mxu0 0
      %3196 = vmatpush1.bf16.msra.mxu0 0
      %3197 = vmatprep.subr.bf16.mxu0 0
      %3198 = vmatpush1.bf16.msra.mxu0 0
      %3199 = vmatprep.subr.bf16.mxu0 0
      %3200 = vmatpush1.bf16.msra.mxu0 0
      %3201 = vmatprep.subr.bf16.mxu0 0
      %3202 = vmatpush1.bf16.msra.mxu0 0
      %3203 = vmatprep.subr.bf16.mxu0 0
      %3204 = vmatpush1.bf16.msra.mxu0 0
      %3205 = vmatprep.subr.bf16.mxu0 0
      %3206 = vmatpush1.bf16.msra.mxu0 0
      %3207 = vmatprep.subr.bf16.mxu0 0
      %3208 = vmatpush1.bf16.msra.mxu0 0
      %3209 = vmatprep.subr.bf16.mxu0 0
      %3210 = vmatpush1.bf16.msra.mxu0 0
      %3211 = vmatprep.subr.bf16.mxu0 0
      %3212 = vmatpush1.bf16.msra.mxu0 0
      %3213 = vmatprep.subr.bf16.mxu0 0
      %3214 = vmatpush1.bf16.msra.mxu0 0
      %3215 = vmatprep.subr.bf16.mxu0 0
      %3216 = vmatpush1.bf16.msra.mxu0 0
      %3217 = vmatprep.subr.bf16.mxu0 0
      %3218 = vmatpush1.bf16.msra.mxu0 0
      %3219 = vmatprep.subr.bf16.mxu0 0
      %3220 = vmatpush1.bf16.msra.mxu0 0
      %3221 = vmatprep.subr.bf16.mxu0 0
      %3222 = vmatpush1.bf16.msra.mxu0 0
      %3223 = vmatprep.subr.bf16.mxu0 0
      %3224 = vmatpush1.bf16.msra.mxu0 0
      %3225 = vmatprep.mubr.bf16.mxu0 0
      %3226 = vmatmul.mubr.bf16.gmra.mrb[0].mxu0 %v3185
      %v3227 = vpop.f32.mrb[0].mxu0
      %v3228 = vadd.f32 0.0, %v3227
      %v3229 = vpop.f32.mrb[0].mxu0
      %v3230 = vpop.f32.mrb[0].mxu0
      %v3231 = vadd.f32 0.0, %v3230
      %v3232 = vpop.f32.mrb[0].mxu0
      %3233 = vmatprep.mubr.bf16.mxu0 0
      %3234 = vmatmul.mubr.bf16.gmra.mrb[0].mxu0 %v3188
      %v3235 = vpop.f32.mrb[0].mxu0
      %v3236 = vadd.f32 0.0, %v3235
      %v3237 = vpop.f32.mrb[0].mxu0
      %v3238 = vpop.f32.mrb[0].mxu0
      %v3239 = vpop.f32.mrb[0].mxu0
      %3240 = vdwg.mxu0
      %v3242 = vsel %vm538, %v2850, 0
      %v3245 = vsel %vm538, %v2851, 0
      %v3248 = vsel %vm724, %v2516, 0
      %3250 = vmatprep.subr.bf16.mxu0 0
      %3251 = vmatpush1.bf16.msra.mxu0 %v3248
      %3252 = vmatprep.subr.bf16.mxu0 0
      %3253 = vmatpush1.bf16.msra.mxu0 0
      %3254 = vmatprep.subr.bf16.mxu0 0
      %3255 = vmatpush1.bf16.msra.mxu0 0
      %3256 = vmatprep.subr.bf16.mxu0 0
      %3257 = vmatpush1.bf16.msra.mxu0 0
      %3258 = vmatprep.subr.bf16.mxu0 0
      %3259 = vmatpush1.bf16.msra.mxu0 0
      %3260 = vmatprep.subr.bf16.mxu0 0
      %3261 = vmatpush1.bf16.msra.mxu0 0
      %3262 = vmatprep.subr.bf16.mxu0 0
      %3263 = vmatpush1.bf16.msra.mxu0 0
      %3264 = vmatprep.subr.bf16.mxu0 0
      %3265 = vmatpush1.bf16.msra.mxu0 0
      %3266 = vmatprep.subr.bf16.mxu0 0
      %3267 = vmatpush1.bf16.msra.mxu0 0
      %3268 = vmatprep.subr.bf16.mxu0 0
      %3269 = vmatpush1.bf16.msra.mxu0 0
      %3270 = vmatprep.subr.bf16.mxu0 0
      %3271 = vmatpush1.bf16.msra.mxu0 0
      %3272 = vmatprep.subr.bf16.mxu0 0
      %3273 = vmatpush1.bf16.msra.mxu0 0
      %3274 = vmatprep.subr.bf16.mxu0 0
      %3275 = vmatpush1.bf16.msra.mxu0 0
      %3276 = vmatprep.subr.bf16.mxu0 0
      %3277 = vmatpush1.bf16.msra.mxu0 0
      %3278 = vmatprep.subr.bf16.mxu0 0
      %3279 = vmatpush1.bf16.msra.mxu0 0
      %3280 = vmatprep.subr.bf16.mxu0 0
      %3281 = vmatpush1.bf16.msra.mxu0 0
      %3282 = vmatprep.mubr.bf16.mxu0 0
      %3283 = vmatmul.mubr.bf16.gmra.mrb[0].mxu0 %v3242
      %v3284 = vpop.f32.mrb[0].mxu0
      %v3285 = vadd.f32 %v3228, %v3284
      %v3286 = vpop.f32.mrb[0].mxu0
      %v3287 = vpop.f32.mrb[0].mxu0
      %v3288 = vadd.f32 %v3231, %v3287
      %v3289 = vpop.f32.mrb[0].mxu0
      %3290 = vmatprep.mubr.bf16.mxu0 0
      %3291 = vmatmul.mubr.bf16.gmra.mrb[0].mxu0 %v3245
      %v3292 = vpop.f32.mrb[0].mxu0
      %v3293 = vadd.f32 %v3236, %v3292
      %v3294 = vpop.f32.mrb[0].mxu0
      %v3295 = vpop.f32.mrb[0].mxu0
      %v3296 = vpop.f32.mrb[0].mxu0
      %3297 = vdwg.mxu0
      %3298 = vrot.lane.b32.xlu0 %v2520, 112
      %v3299 = vpop.permute.xlu0 %3298
      %3300 = vrot.lane.b32.xlu0 %v2520, 80
      %v3301 = vpop.permute.xlu0 %3300
      %v3303 = vsel %vm538, %v3299, 0
      %v3306 = vsel %vm538, %v3301, 0
      %3308 = vmatprep.subr.bf16.mxu0 0
      %3309 = vmatpush1.bf16.xpose.msra.mxu0 %v3306
      %3310 = vmatprep.subr.bf16.mxu0 0
      %3311 = vmatpush1.bf16.xpose.msra.mxu0 0
      %3312 = vmatprep.subr.bf16.mxu0 0
      %3313 = vmatpush1.bf16.xpose.msra.mxu0 0
      %3314 = vmatprep.subr.bf16.mxu0 0
      %3315 = vmatpush1.bf16.xpose.msra.mxu0 0
      %3316 = vmatprep.subr.bf16.mxu0 0
      %3317 = vmatpush1.bf16.xpose.msra.mxu0 0
      %3318 = vmatprep.subr.bf16.mxu0 0
      %3319 = vmatpush1.bf16.xpose.msra.mxu0 0
      %3320 = vmatprep.subr.bf16.mxu0 0
      %3321 = vmatpush1.bf16.xpose.msra.mxu0 0
      %3322 = vmatprep.subr.bf16.mxu0 0
      %3323 = vmatpush1.bf16.xpose.msra.mxu0 0
      %3324 = vmatprep.subr.bf16.mxu0 0
      %3325 = vmatpush1.bf16.xpose.msra.mxu0 0
      %3326 = vmatprep.subr.bf16.mxu0 0
      %3327 = vmatpush1.bf16.xpose.msra.mxu0 0
      %3328 = vmatprep.subr.bf16.mxu0 0
      %3329 = vmatpush1.bf16.xpose.msra.mxu0 0
      %3330 = vmatprep.subr.bf16.mxu0 0
      %3331 = vmatpush1.bf16.xpose.msra.mxu0 0
      %3332 = vmatprep.subr.bf16.mxu0 0
      %3333 = vmatpush1.bf16.xpose.msra.mxu0 0
      %3334 = vmatprep.subr.bf16.mxu0 0
      %3335 = vmatpush1.bf16.xpose.msra.mxu0 0
      %3336 = vmatprep.subr.bf16.mxu0 0
      %3337 = vmatpush1.bf16.xpose.msra.mxu0 0
      %3338 = vmatprep.subr.bf16.mxu0 0
      %3339 = vmatpush1.bf16.xpose.msra.mxu0 0
      %3340 = vmatprep.mubr.bf16.mxu0 0
      %3341 = vmatmul.mubr.bf16.gmra.mrb[0].mxu0 %v3303
      %v3342 = vpop.f32.mrb[0].mxu0
      %v3343 = vadd.f32 0.0, %v3342
      %v3344 = vpop.f32.mrb[0].mxu0
      %v3345 = vpop.f32.mrb[0].mxu0
      %v3346 = vpop.f32.mrb[0].mxu0
      %3347 = vdwg.mxu0
      %3348 = vrot.lane.b32.xlu0 %v2521, 112
      %v3349 = vpop.permute.xlu0 %3348
      %3350 = vrot.lane.b32.xlu0 %v2521, 80
      %v3351 = vpop.permute.xlu0 %3350
      %v3353 = vsel %vm538, %v3349, 0
      %v3356 = vsel %vm538, %v3351, 0
      %3358 = vmatprep.subr.bf16.mxu0 0
      %3359 = vmatpush1.bf16.xpose.msra.mxu0 %v3356
      %3360 = vmatprep.subr.bf16.mxu0 0
      %3361 = vmatpush1.bf16.xpose.msra.mxu0 0
      %3362 = vmatprep.subr.bf16.mxu0 0
      %3363 = vmatpush1.bf16.xpose.msra.mxu0 0
      %3364 = vmatprep.subr.bf16.mxu0 0
      %3365 = vmatpush1.bf16.xpose.msra.mxu0 0
      %3366 = vmatprep.subr.bf16.mxu0 0
      %3367 = vmatpush1.bf16.xpose.msra.mxu0 0
      %3368 = vmatprep.subr.bf16.mxu0 0
      %3369 = vmatpush1.bf16.xpose.msra.mxu0 0
      %3370 = vmatprep.subr.bf16.mxu0 0
      %3371 = vmatpush1.bf16.xpose.msra.mxu0 0
      %3372 = vmatprep.subr.bf16.mxu0 0
      %3373 = vmatpush1.bf16.xpose.msra.mxu0 0
      %3374 = vmatprep.subr.bf16.mxu0 0
      %3375 = vmatpush1.bf16.xpose.msra.mxu0 0
      %3376 = vmatprep.subr.bf16.mxu0 0
      %3377 = vmatpush1.bf16.xpose.msra.mxu0 0
      %3378 = vmatprep.subr.bf16.mxu0 0
      %3379 = vmatpush1.bf16.xpose.msra.mxu0 0
      %3380 = vmatprep.subr.bf16.mxu0 0
      %3381 = vmatpush1.bf16.xpose.msra.mxu0 0
      %3382 = vmatprep.subr.bf16.mxu0 0
      %3383 = vmatpush1.bf16.xpose.msra.mxu0 0
      %3384 = vmatprep.subr.bf16.mxu0 0
      %3385 = vmatpush1.bf16.xpose.msra.mxu0 0
      %3386 = vmatprep.subr.bf16.mxu0 0
      %3387 = vmatpush1.bf16.xpose.msra.mxu0 0
      %3388 = vmatprep.subr.bf16.mxu0 0
      %3389 = vmatpush1.bf16.xpose.msra.mxu0 0
      %3390 = vmatprep.mubr.bf16.mxu0 0
      %3391 = vmatmul.mubr.bf16.gmra.mrb[0].mxu0 %v3353
      %v3392 = vpop.f32.mrb[0].mxu0
      %v3393 = vadd.f32 0.0, %v3392
      %v3394 = vpop.f32.mrb[0].mxu0
      %v3395 = vpop.f32.mrb[0].mxu0
      %v3396 = vpop.f32.mrb[0].mxu0
      %3397 = vdwg.mxu0
      %3398 = vrot.lane.b32.xlu0 %v2522, 112
      %v3399 = vpop.permute.xlu0 %3398
      %3400 = vrot.lane.b32.xlu0 %v2522, 80
      %v3401 = vpop.permute.xlu0 %3400
      %v3403 = vsel %vm538, %v3399, 0
      %v3406 = vsel %vm538, %v3401, 0
      %3408 = vmatprep.subr.bf16.mxu0 0
      %3409 = vmatpush1.bf16.xpose.msra.mxu0 %v3406
      %3410 = vmatprep.subr.bf16.mxu0 0
      %3411 = vmatpush1.bf16.xpose.msra.mxu0 0
      %3412 = vmatprep.subr.bf16.mxu0 0
      %3413 = vmatpush1.bf16.xpose.msra.mxu0 0
      %3414 = vmatprep.subr.bf16.mxu0 0
      %3415 = vmatpush1.bf16.xpose.msra.mxu0 0
      %3416 = vmatprep.subr.bf16.mxu0 0
      %3417 = vmatpush1.bf16.xpose.msra.mxu0 0
      %3418 = vmatprep.subr.bf16.mxu0 0
      %3419 = vmatpush1.bf16.xpose.msra.mxu0 0
      %3420 = vmatprep.subr.bf16.mxu0 0
      %3421 = vmatpush1.bf16.xpose.msra.mxu0 0
      %3422 = vmatprep.subr.bf16.mxu0 0
      %3423 = vmatpush1.bf16.xpose.msra.mxu0 0
      %3424 = vmatprep.subr.bf16.mxu0 0
      %3425 = vmatpush1.bf16.xpose.msra.mxu0 0
      %3426 = vmatprep.subr.bf16.mxu0 0
      %3427 = vmatpush1.bf16.xpose.msra.mxu0 0
      %3428 = vmatprep.subr.bf16.mxu0 0
      %3429 = vmatpush1.bf16.xpose.msra.mxu0 0
      %3430 = vmatprep.subr.bf16.mxu0 0
      %3431 = vmatpush1.bf16.xpose.msra.mxu0 0
      %3432 = vmatprep.subr.bf16.mxu0 0
      %3433 = vmatpush1.bf16.xpose.msra.mxu0 0
      %3434 = vmatprep.subr.bf16.mxu0 0
      %3435 = vmatpush1.bf16.xpose.msra.mxu0 0
      %3436 = vmatprep.subr.bf16.mxu0 0
      %3437 = vmatpush1.bf16.xpose.msra.mxu0 0
      %3438 = vmatprep.subr.bf16.mxu0 0
      %3439 = vmatpush1.bf16.xpose.msra.mxu0 0
      %3440 = vmatprep.mubr.bf16.mxu0 0
      %3441 = vmatmul.mubr.bf16.gmra.mrb[0].mxu0 %v3403
      %v3442 = vpop.f32.mrb[0].mxu0
      %v3443 = vadd.f32 0.0, %v3442
      %v3444 = vpop.f32.mrb[0].mxu0
      %v3445 = vpop.f32.mrb[0].mxu0
      %v3446 = vpop.f32.mrb[0].mxu0
      %3447 = vdwg.mxu0
      %v3448 = vsel %vm538, %v3343, -inf
      %3449 = vmax.xlane.f32.xlu0 %v3448
      %v3450 = vpop.xlane.xlu0 %3449
      %v3451 = vsel %vm538, %v3393, -inf
      %3452 = vmax.xlane.f32.xlu0 %v3451
      %v3453 = vpop.xlane.xlu0 %3452
      %v3454 = vsel %vm538, %v3443, -inf
      %3455 = vmax.xlane.f32.xlu0 %v3454
      %v3456 = vpop.xlane.xlu0 %3455
      %v3457 = vsub.f32 %v3343, %v3450
      %v3458 = vsub.f32 %v3393, %v3453
      %v3459 = vsub.f32 %v3443, %v3456
      %v3460 = vmul.f32 %v3457, 1.442695
      %v3461 = vpow.pop %v3460
      %v3462 = vmul.f32 %v3458, 1.442695
      %v3463 = vpow.pop %v3462
      %v3464 = vmul.f32 %v3459, 1.442695
      %v3465 = vpow.pop %v3464
      %v3466 = vsel %vm538, %v3461, 0.0
      %3467 = vadd.xlane.f32.xlu0 %v3466
      %v3468 = vpop.xlane.xlu0 %3467
      %v3469 = vsel %vm538, %v3463, 0.0
      %3470 = vadd.xlane.f32.xlu0 %v3469
      %v3471 = vpop.xlane.xlu0 %3470
      %v3472 = vsel %vm538, %v3465, 0.0
      %3473 = vadd.xlane.f32.xlu0 %v3472
      %v3474 = vpop.xlane.xlu0 %3473
      %v3475 = vrcp.pop %v3468
      %v3476 = vrcp.pop %v3471
      %v3477 = vrcp.pop %v3474
      %v3478 = vmul.f32 %v3461, %v3475
      %v3479 = vmul.f32 %v3463, %v3476
      %v3480 = vmul.f32 %v3465, %v3477
      %v3481 = vpack.c.bf16 %v3478, %v3478
      %v3482 = vpack.c.bf16 %v3479, %v3479
      %v3483 = vpack.c.bf16 %v3480, %v3480
      %3484 = vrot.lane.b32.xlu0 %v2520, 48
      %v3485 = vpop.permute.xlu0 %3484
      %v3487 = vsel %vm538, %v3481, 0
      %v3490 = vsel %vm724, %v3485, 0
      %3492 = vmatprep.subr.bf16.mxu0 0
      %3493 = vmatpush1.bf16.msra.mxu0 %v3490
      %3494 = vmatprep.subr.bf16.mxu0 0
      %3495 = vmatpush1.bf16.msra.mxu0 0
      %3496 = vmatprep.subr.bf16.mxu0 0
      %3497 = vmatpush1.bf16.msra.mxu0 0
      %3498 = vmatprep.subr.bf16.mxu0 0
      %3499 = vmatpush1.bf16.msra.mxu0 0
      %3500 = vmatprep.subr.bf16.mxu0 0
      %3501 = vmatpush1.bf16.msra.mxu0 0
      %3502 = vmatprep.subr.bf16.mxu0 0
      %3503 = vmatpush1.bf16.msra.mxu0 0
      %3504 = vmatprep.subr.bf16.mxu0 0
      %3505 = vmatpush1.bf16.msra.mxu0 0
      %3506 = vmatprep.subr.bf16.mxu0 0
      %3507 = vmatpush1.bf16.msra.mxu0 0
      %3508 = vmatprep.subr.bf16.mxu0 0
      %3509 = vmatpush1.bf16.msra.mxu0 0
      %3510 = vmatprep.subr.bf16.mxu0 0
      %3511 = vmatpush1.bf16.msra.mxu0 0
      %3512 = vmatprep.subr.bf16.mxu0 0
      %3513 = vmatpush1.bf16.msra.mxu0 0
      %3514 = vmatprep.subr.bf16.mxu0 0
      %3515 = vmatpush1.bf16.msra.mxu0 0
      %3516 = vmatprep.subr.bf16.mxu0 0
      %3517 = vmatpush1.bf16.msra.mxu0 0
      %3518 = vmatprep.subr.bf16.mxu0 0
      %3519 = vmatpush1.bf16.msra.mxu0 0
      %3520 = vmatprep.subr.bf16.mxu0 0
      %3521 = vmatpush1.bf16.msra.mxu0 0
      %3522 = vmatprep.subr.bf16.mxu0 0
      %3523 = vmatpush1.bf16.msra.mxu0 0
      %3524 = vmatprep.mubr.bf16.mxu0 0
      %3525 = vmatmul.mubr.bf16.gmra.mrb[0].mxu0 %v3487
      %v3526 = vpop.f32.mrb[0].mxu0
      %v3527 = vadd.f32 0.0, %v3526
      %v3528 = vpop.f32.mrb[0].mxu0
      %v3529 = vpop.f32.mrb[0].mxu0
      %v3530 = vpop.f32.mrb[0].mxu0
      %3531 = vdwg.mxu0
      %3532 = vrot.lane.b32.xlu0 %v2521, 48
      %v3533 = vpop.permute.xlu0 %3532
      %v3535 = vsel %vm538, %v3482, 0
      %v3538 = vsel %vm724, %v3533, 0
      %3540 = vmatprep.subr.bf16.mxu0 0
      %3541 = vmatpush1.bf16.msra.mxu0 %v3538
      %3542 = vmatprep.subr.bf16.mxu0 0
      %3543 = vmatpush1.bf16.msra.mxu0 0
      %3544 = vmatprep.subr.bf16.mxu0 0
      %3545 = vmatpush1.bf16.msra.mxu0 0
      %3546 = vmatprep.subr.bf16.mxu0 0
      %3547 = vmatpush1.bf16.msra.mxu0 0
      %3548 = vmatprep.subr.bf16.mxu0 0
      %3549 = vmatpush1.bf16.msra.mxu0 0
      %3550 = vmatprep.subr.bf16.mxu0 0
      %3551 = vmatpush1.bf16.msra.mxu0 0
      %3552 = vmatprep.subr.bf16.mxu0 0
      %3553 = vmatpush1.bf16.msra.mxu0 0
      %3554 = vmatprep.subr.bf16.mxu0 0
      %3555 = vmatpush1.bf16.msra.mxu0 0
      %3556 = vmatprep.subr.bf16.mxu0 0
      %3557 = vmatpush1.bf16.msra.mxu0 0
      %3558 = vmatprep.subr.bf16.mxu0 0
      %3559 = vmatpush1.bf16.msra.mxu0 0
      %3560 = vmatprep.subr.bf16.mxu0 0
      %3561 = vmatpush1.bf16.msra.mxu0 0
      %3562 = vmatprep.subr.bf16.mxu0 0
      %3563 = vmatpush1.bf16.msra.mxu0 0
      %3564 = vmatprep.subr.bf16.mxu0 0
      %3565 = vmatpush1.bf16.msra.mxu0 0
      %3566 = vmatprep.subr.bf16.mxu0 0
      %3567 = vmatpush1.bf16.msra.mxu0 0
      %3568 = vmatprep.subr.bf16.mxu0 0
      %3569 = vmatpush1.bf16.msra.mxu0 0
      %3570 = vmatprep.subr.bf16.mxu0 0
      %3571 = vmatpush1.bf16.msra.mxu0 0
      %3572 = vmatprep.mubr.bf16.mxu0 0
      %3573 = vmatmul.mubr.bf16.gmra.mrb[0].mxu0 %v3535
      %v3574 = vpop.f32.mrb[0].mxu0
      %v3575 = vadd.f32 0.0, %v3574
      %v3576 = vpop.f32.mrb[0].mxu0
      %v3577 = vpop.f32.mrb[0].mxu0
      %v3578 = vpop.f32.mrb[0].mxu0
      %3579 = vdwg.mxu0
      %3580 = vrot.lane.b32.xlu0 %v2522, 48
      %v3581 = vpop.permute.xlu0 %3580
      %v3583 = vsel %vm538, %v3483, 0
      %v3586 = vsel %vm724, %v3581, 0
      %3588 = vmatprep.subr.bf16.mxu0 0
      %3589 = vmatpush1.bf16.msra.mxu0 %v3586
      %3590 = vmatprep.subr.bf16.mxu0 0
      %3591 = vmatpush1.bf16.msra.mxu0 0
      %3592 = vmatprep.subr.bf16.mxu0 0
      %3593 = vmatpush1.bf16.msra.mxu0 0
      %3594 = vmatprep.subr.bf16.mxu0 0
      %3595 = vmatpush1.bf16.msra.mxu0 0
      %3596 = vmatprep.subr.bf16.mxu0 0
      %3597 = vmatpush1.bf16.msra.mxu0 0
      %3598 = vmatprep.subr.bf16.mxu0 0
      %3599 = vmatpush1.bf16.msra.mxu0 0
      %3600 = vmatprep.subr.bf16.mxu0 0
      %3601 = vmatpush1.bf16.msra.mxu0 0
      %3602 = vmatprep.subr.bf16.mxu0 0
      %3603 = vmatpush1.bf16.msra.mxu0 0
      %3604 = vmatprep.subr.bf16.mxu0 0
      %3605 = vmatpush1.bf16.msra.mxu0 0
      %3606 = vmatprep.subr.bf16.mxu0 0
      %3607 = vmatpush1.bf16.msra.mxu0 0
      %3608 = vmatprep.subr.bf16.mxu0 0
      %3609 = vmatpush1.bf16.msra.mxu0 0
      %3610 = vmatprep.subr.bf16.mxu0 0
      %3611 = vmatpush1.bf16.msra.mxu0 0
      %3612 = vmatprep.subr.bf16.mxu0 0
      %3613 = vmatpush1.bf16.msra.mxu0 0
      %3614 = vmatprep.subr.bf16.mxu0 0
      %3615 = vmatpush1.bf16.msra.mxu0 0
      %3616 = vmatprep.subr.bf16.mxu0 0
      %3617 = vmatpush1.bf16.msra.mxu0 0
      %3618 = vmatprep.subr.bf16.mxu0 0
      %3619 = vmatpush1.bf16.msra.mxu0 0
      %3620 = vmatprep.mubr.bf16.mxu0 0
      %3621 = vmatmul.mubr.bf16.gmra.mrb[0].mxu0 %v3583
      %v3622 = vpop.f32.mrb[0].mxu0
      %v3623 = vadd.f32 0.0, %v3622
      %v3624 = vpop.f32.mrb[0].mxu0
      %v3625 = vpop.f32.mrb[0].mxu0
      %v3626 = vpop.f32.mrb[0].mxu0
      %3627 = vdwg.mxu0
      %v3628 = vpack.c.bf16 %v3575, %v3527
      %v3629 = vpack.c.bf16 %v3623, %v3623
      %v3631 = vsel %vm538, %v3628, 0
      %v3634 = vsel %vm538, %v3629, 0
      %v3637 = vsel %vm724, %v2518, 0
      %3639 = vmatprep.subr.bf16.mxu0 0
      %3640 = vmatpush1.bf16.msra.mxu0 %v3637
      %3641 = vmatprep.subr.bf16.mxu0 0
      %3642 = vmatpush1.bf16.msra.mxu0 0
      %3643 = vmatprep.subr.bf16.mxu0 0
      %3644 = vmatpush1.bf16.msra.mxu0 0
      %3645 = vmatprep.subr.bf16.mxu0 0
      %3646 = vmatpush1.bf16.msra.mxu0 0
      %3647 = vmatprep.subr.bf16.mxu0 0
      %3648 = vmatpush1.bf16.msra.mxu0 0
      %3649 = vmatprep.subr.bf16.mxu0 0
      %3650 = vmatpush1.bf16.msra.mxu0 0
      %3651 = vmatprep.subr.bf16.mxu0 0
      %3652 = vmatpush1.bf16.msra.mxu0 0
      %3653 = vmatprep.subr.bf16.mxu0 0
      %3654 = vmatpush1.bf16.msra.mxu0 0
      %3655 = vmatprep.subr.bf16.mxu0 0
      %3656 = vmatpush1.bf16.msra.mxu0 0
      %3657 = vmatprep.subr.bf16.mxu0 0
      %3658 = vmatpush1.bf16.msra.mxu0 0
      %3659 = vmatprep.subr.bf16.mxu0 0
      %3660 = vmatpush1.bf16.msra.mxu0 0
      %3661 = vmatprep.subr.bf16.mxu0 0
      %3662 = vmatpush1.bf16.msra.mxu0 0
      %3663 = vmatprep.subr.bf16.mxu0 0
      %3664 = vmatpush1.bf16.msra.mxu0 0
      %3665 = vmatprep.subr.bf16.mxu0 0
      %3666 = vmatpush1.bf16.msra.mxu0 0
      %3667 = vmatprep.subr.bf16.mxu0 0
      %3668 = vmatpush1.bf16.msra.mxu0 0
      %3669 = vmatprep.subr.bf16.mxu0 0
      %3670 = vmatpush1.bf16.msra.mxu0 0
      %3671 = vmatprep.mubr.bf16.mxu0 0
      %3672 = vmatmul.mubr.bf16.gmra.mrb[0].mxu0 %v3631
      %v3673 = vpop.f32.mrb[0].mxu0
      %v3674 = vadd.f32 0.0, %v3673
      %v3675 = vpop.f32.mrb[0].mxu0
      %v3676 = vpop.f32.mrb[0].mxu0
      %v3677 = vadd.f32 0.0, %v3676
      %v3678 = vpop.f32.mrb[0].mxu0
      %3679 = vmatprep.mubr.bf16.mxu0 0
      %3680 = vmatmul.mubr.bf16.gmra.mrb[0].mxu0 %v3634
      %v3681 = vpop.f32.mrb[0].mxu0
      %v3682 = vadd.f32 0.0, %v3681
      %v3683 = vpop.f32.mrb[0].mxu0
      %v3684 = vpop.f32.mrb[0].mxu0
      %v3685 = vpop.f32.mrb[0].mxu0
      %3686 = vdwg.mxu0
      %v3687 = vadd.f32 %v3285, %v3674
      %v3688 = vadd.f32 %v3288, %v3677
      %v3689 = vadd.f32 %v3293, %v3682
      %3690 = vrot.lane.b32.xlu0 %v2520, 104
      %v3691 = vpop.permute.xlu0 %3690
      %3692 = vrot.lane.b32.xlu0 %v2520, 72
      %v3693 = vpop.permute.xlu0 %3692
      %v3695 = vsel %vm538, %v3691, 0
      %v3698 = vsel %vm538, %v3693, 0
      %3700 = vmatprep.subr.bf16.mxu0 0
      %3701 = vmatpush1.bf16.xpose.msra.mxu0 %v3698
      %3702 = vmatprep.subr.bf16.mxu0 0
      %3703 = vmatpush1.bf16.xpose.msra.mxu0 0
      %3704 = vmatprep.subr.bf16.mxu0 0
      %3705 = vmatpush1.bf16.xpose.msra.mxu0 0
      %3706 = vmatprep.subr.bf16.mxu0 0
      %3707 = vmatpush1.bf16.xpose.msra.mxu0 0
      %3708 = vmatprep.subr.bf16.mxu0 0
      %3709 = vmatpush1.bf16.xpose.msra.mxu0 0
      %3710 = vmatprep.subr.bf16.mxu0 0
      %3711 = vmatpush1.bf16.xpose.msra.mxu0 0
      %3712 = vmatprep.subr.bf16.mxu0 0
      %3713 = vmatpush1.bf16.xpose.msra.mxu0 0
      %3714 = vmatprep.subr.bf16.mxu0 0
      %3715 = vmatpush1.bf16.xpose.msra.mxu0 0
      %3716 = vmatprep.subr.bf16.mxu0 0
      %3717 = vmatpush1.bf16.xpose.msra.mxu0 0
      %3718 = vmatprep.subr.bf16.mxu0 0
      %3719 = vmatpush1.bf16.xpose.msra.mxu0 0
      %3720 = vmatprep.subr.bf16.mxu0 0
      %3721 = vmatpush1.bf16.xpose.msra.mxu0 0
      %3722 = vmatprep.subr.bf16.mxu0 0
      %3723 = vmatpush1.bf16.xpose.msra.mxu0 0
      %3724 = vmatprep.subr.bf16.mxu0 0
      %3725 = vmatpush1.bf16.xpose.msra.mxu0 0
      %3726 = vmatprep.subr.bf16.mxu0 0
      %3727 = vmatpush1.bf16.xpose.msra.mxu0 0
      %3728 = vmatprep.subr.bf16.mxu0 0
      %3729 = vmatpush1.bf16.xpose.msra.mxu0 0
      %3730 = vmatprep.subr.bf16.mxu0 0
      %3731 = vmatpush1.bf16.xpose.msra.mxu0 0
      %3732 = vmatprep.mubr.bf16.mxu0 0
      %3733 = vmatmul.mubr.bf16.gmra.mrb[0].mxu0 %v3695
      %v3734 = vpop.f32.mrb[0].mxu0
      %v3735 = vadd.f32 0.0, %v3734
      %v3736 = vpop.f32.mrb[0].mxu0
      %v3737 = vpop.f32.mrb[0].mxu0
      %v3738 = vpop.f32.mrb[0].mxu0
      %3739 = vdwg.mxu0
      %3740 = vrot.lane.b32.xlu0 %v2521, 104
      %v3741 = vpop.permute.xlu0 %3740
      %3742 = vrot.lane.b32.xlu0 %v2521, 72
      %v3743 = vpop.permute.xlu0 %3742
      %v3745 = vsel %vm538, %v3741, 0
      %v3748 = vsel %vm538, %v3743, 0
      %3750 = vmatprep.subr.bf16.mxu0 0
      %3751 = vmatpush1.bf16.xpose.msra.mxu0 %v3748
      %3752 = vmatprep.subr.bf16.mxu0 0
      %3753 = vmatpush1.bf16.xpose.msra.mxu0 0
      %3754 = vmatprep.subr.bf16.mxu0 0
      %3755 = vmatpush1.bf16.xpose.msra.mxu0 0
      %3756 = vmatprep.subr.bf16.mxu0 0
      %3757 = vmatpush1.bf16.xpose.msra.mxu0 0
      %3758 = vmatprep.subr.bf16.mxu0 0
      %3759 = vmatpush1.bf16.xpose.msra.mxu0 0
      %3760 = vmatprep.subr.bf16.mxu0 0
      %3761 = vmatpush1.bf16.xpose.msra.mxu0 0
      %3762 = vmatprep.subr.bf16.mxu0 0
      %3763 = vmatpush1.bf16.xpose.msra.mxu0 0
      %3764 = vmatprep.subr.bf16.mxu0 0
      %3765 = vmatpush1.bf16.xpose.msra.mxu0 0
      %3766 = vmatprep.subr.bf16.mxu0 0
      %3767 = vmatpush1.bf16.xpose.msra.mxu0 0
      %3768 = vmatprep.subr.bf16.mxu0 0
      %3769 = vmatpush1.bf16.xpose.msra.mxu0 0
      %3770 = vmatprep.subr.bf16.mxu0 0
      %3771 = vmatpush1.bf16.xpose.msra.mxu0 0
      %3772 = vmatprep.subr.bf16.mxu0 0
      %3773 = vmatpush1.bf16.xpose.msra.mxu0 0
      %3774 = vmatprep.subr.bf16.mxu0 0
      %3775 = vmatpush1.bf16.xpose.msra.mxu0 0
      %3776 = vmatprep.subr.bf16.mxu0 0
      %3777 = vmatpush1.bf16.xpose.msra.mxu0 0
      %3778 = vmatprep.subr.bf16.mxu0 0
      %3779 = vmatpush1.bf16.xpose.msra.mxu0 0
      %3780 = vmatprep.subr.bf16.mxu0 0
      %3781 = vmatpush1.bf16.xpose.msra.mxu0 0
      %3782 = vmatprep.mubr.bf16.mxu0 0
      %3783 = vmatmul.mubr.bf16.gmra.mrb[0].mxu0 %v3745
      %v3784 = vpop.f32.mrb[0].mxu0
      %v3785 = vadd.f32 0.0, %v3784
      %v3786 = vpop.f32.mrb[0].mxu0
      %v3787 = vpop.f32.mrb[0].mxu0
      %v3788 = vpop.f32.mrb[0].mxu0
      %3789 = vdwg.mxu0
      %3790 = vrot.lane.b32.xlu0 %v2522, 104
      %v3791 = vpop.permute.xlu0 %3790
      %3792 = vrot.lane.b32.xlu0 %v2522, 72
      %v3793 = vpop.permute.xlu0 %3792
      %v3795 = vsel %vm538, %v3791, 0
      %v3798 = vsel %vm538, %v3793, 0
      %3800 = vmatprep.subr.bf16.mxu0 0
      %3801 = vmatpush1.bf16.xpose.msra.mxu0 %v3798
      %3802 = vmatprep.subr.bf16.mxu0 0
      %3803 = vmatpush1.bf16.xpose.msra.mxu0 0
      %3804 = vmatprep.subr.bf16.mxu0 0
      %3805 = vmatpush1.bf16.xpose.msra.mxu0 0
      %3806 = vmatprep.subr.bf16.mxu0 0
      %3807 = vmatpush1.bf16.xpose.msra.mxu0 0
      %3808 = vmatprep.subr.bf16.mxu0 0
      %3809 = vmatpush1.bf16.xpose.msra.mxu0 0
      %3810 = vmatprep.subr.bf16.mxu0 0
      %3811 = vmatpush1.bf16.xpose.msra.mxu0 0
      %3812 = vmatprep.subr.bf16.mxu0 0
      %3813 = vmatpush1.bf16.xpose.msra.mxu0 0
      %3814 = vmatprep.subr.bf16.mxu0 0
      %3815 = vmatpush1.bf16.xpose.msra.mxu0 0
      %3816 = vmatprep.subr.bf16.mxu0 0
      %3817 = vmatpush1.bf16.xpose.msra.mxu0 0
      %3818 = vmatprep.subr.bf16.mxu0 0
      %3819 = vmatpush1.bf16.xpose.msra.mxu0 0
      %3820 = vmatprep.subr.bf16.mxu0 0
      %3821 = vmatpush1.bf16.xpose.msra.mxu0 0
      %3822 = vmatprep.subr.bf16.mxu0 0
      %3823 = vmatpush1.bf16.xpose.msra.mxu0 0
      %3824 = vmatprep.subr.bf16.mxu0 0
      %3825 = vmatpush1.bf16.xpose.msra.mxu0 0
      %3826 = vmatprep.subr.bf16.mxu0 0
      %3827 = vmatpush1.bf16.xpose.msra.mxu0 0
      %3828 = vmatprep.subr.bf16.mxu0 0
      %3829 = vmatpush1.bf16.xpose.msra.mxu0 0
      %3830 = vmatprep.subr.bf16.mxu0 0
      %3831 = vmatpush1.bf16.xpose.msra.mxu0 0
      %3832 = vmatprep.mubr.bf16.mxu0 0
      %3833 = vmatmul.mubr.bf16.gmra.mrb[0].mxu0 %v3795
      %v3834 = vpop.f32.mrb[0].mxu0
      %v3835 = vadd.f32 0.0, %v3834
      %v3836 = vpop.f32.mrb[0].mxu0
      %v3837 = vpop.f32.mrb[0].mxu0
      %v3838 = vpop.f32.mrb[0].mxu0
      %3839 = vdwg.mxu0
      %v3840 = vsel %vm538, %v3735, -inf
      %3841 = vmax.xlane.f32.xlu0 %v3840
      %v3842 = vpop.xlane.xlu0 %3841
      %v3843 = vsel %vm538, %v3785, -inf
      %3844 = vmax.xlane.f32.xlu0 %v3843
      %v3845 = vpop.xlane.xlu0 %3844
      %v3846 = vsel %vm538, %v3835, -inf
      %3847 = vmax.xlane.f32.xlu0 %v3846
      %v3848 = vpop.xlane.xlu0 %3847
      %v3849 = vsub.f32 %v3735, %v3842
      %v3850 = vsub.f32 %v3785, %v3845
      %v3851 = vsub.f32 %v3835, %v3848
      %v3852 = vmul.f32 %v3849, 1.442695
      %v3853 = vpow.pop %v3852
      %v3854 = vmul.f32 %v3850, 1.442695
      %v3855 = vpow.pop %v3854
      %v3856 = vmul.f32 %v3851, 1.442695
      %v3857 = vpow.pop %v3856
      %v3858 = vsel %vm538, %v3853, 0.0
      %3859 = vadd.xlane.f32.xlu0 %v3858
      %v3860 = vpop.xlane.xlu0 %3859
      %v3861 = vsel %vm538, %v3855, 0.0
      %3862 = vadd.xlane.f32.xlu0 %v3861
      %v3863 = vpop.xlane.xlu0 %3862
      %v3864 = vsel %vm538, %v3857, 0.0
      %3865 = vadd.xlane.f32.xlu0 %v3864
      %v3866 = vpop.xlane.xlu0 %3865
      %v3867 = vrcp.pop %v3860
      %v3868 = vrcp.pop %v3863
      %v3869 = vrcp.pop %v3866
      %v3870 = vmul.f32 %v3853, %v3867
      %v3871 = vmul.f32 %v3855, %v3868
      %v3872 = vmul.f32 %v3857, %v3869
      %v3873 = vpack.c.bf16 %v3870, %v3870
      %v3874 = vpack.c.bf16 %v3871, %v3871
      %v3875 = vpack.c.bf16 %v3872, %v3872
      %3876 = vrot.lane.b32.xlu0 %v2520, 40
      %v3877 = vpop.permute.xlu0 %3876
      %v3879 = vsel %vm538, %v3873, 0
      %v3882 = vsel %vm724, %v3877, 0
      %3884 = vmatprep.subr.bf16.mxu0 0
      %3885 = vmatpush1.bf16.msra.mxu0 %v3882
      %3886 = vmatprep.subr.bf16.mxu0 0
      %3887 = vmatpush1.bf16.msra.mxu0 0
      %3888 = vmatprep.subr.bf16.mxu0 0
      %3889 = vmatpush1.bf16.msra.mxu0 0
      %3890 = vmatprep.subr.bf16.mxu0 0
      %3891 = vmatpush1.bf16.msra.mxu0 0
      %3892 = vmatprep.subr.bf16.mxu0 0
      %3893 = vmatpush1.bf16.msra.mxu0 0
      %3894 = vmatprep.subr.bf16.mxu0 0
      %3895 = vmatpush1.bf16.msra.mxu0 0
      %3896 = vmatprep.subr.bf16.mxu0 0
      %3897 = vmatpush1.bf16.msra.mxu0 0
      %3898 = vmatprep.subr.bf16.mxu0 0
      %3899 = vmatpush1.bf16.msra.mxu0 0
      %3900 = vmatprep.subr.bf16.mxu0 0
      %3901 = vmatpush1.bf16.msra.mxu0 0
      %3902 = vmatprep.subr.bf16.mxu0 0
      %3903 = vmatpush1.bf16.msra.mxu0 0
      %3904 = vmatprep.subr.bf16.mxu0 0
      %3905 = vmatpush1.bf16.msra.mxu0 0
      %3906 = vmatprep.subr.bf16.mxu0 0
      %3907 = vmatpush1.bf16.msra.mxu0 0
      %3908 = vmatprep.subr.bf16.mxu0 0
      %3909 = vmatpush1.bf16.msra.mxu0 0
      %3910 = vmatprep.subr.bf16.mxu0 0
      %3911 = vmatpush1.bf16.msra.mxu0 0
      %3912 = vmatprep.subr.bf16.mxu0 0
      %3913 = vmatpush1.bf16.msra.mxu0 0
      %3914 = vmatprep.subr.bf16.mxu0 0
      %3915 = vmatpush1.bf16.msra.mxu0 0
      %3916 = vmatprep.mubr.bf16.mxu0 0
      %3917 = vmatmul.mubr.bf16.gmra.mrb[0].mxu0 %v3879
      %v3918 = vpop.f32.mrb[0].mxu0
      %v3919 = vadd.f32 0.0, %v3918
      %v3920 = vpop.f32.mrb[0].mxu0
      %v3921 = vpop.f32.mrb[0].mxu0
      %v3922 = vpop.f32.mrb[0].mxu0
      %3923 = vdwg.mxu0
      %3924 = vrot.lane.b32.xlu0 %v2521, 40
      %v3925 = vpop.permute.xlu0 %3924
      %v3927 = vsel %vm538, %v3874, 0
      %v3930 = vsel %vm724, %v3925, 0
      %3932 = vmatprep.subr.bf16.mxu0 0
      %3933 = vmatpush1.bf16.msra.mxu0 %v3930
      %3934 = vmatprep.subr.bf16.mxu0 0
      %3935 = vmatpush1.bf16.msra.mxu0 0
      %3936 = vmatprep.subr.bf16.mxu0 0
      %3937 = vmatpush1.bf16.msra.mxu0 0
      %3938 = vmatprep.subr.bf16.mxu0 0
      %3939 = vmatpush1.bf16.msra.mxu0 0
      %3940 = vmatprep.subr.bf16.mxu0 0
      %3941 = vmatpush1.bf16.msra.mxu0 0
      %3942 = vmatprep.subr.bf16.mxu0 0
      %3943 = vmatpush1.bf16.msra.mxu0 0
      %3944 = vmatprep.subr.bf16.mxu0 0
      %3945 = vmatpush1.bf16.msra.mxu0 0
      %3946 = vmatprep.subr.bf16.mxu0 0
      %3947 = vmatpush1.bf16.msra.mxu0 0
      %3948 = vmatprep.subr.bf16.mxu0 0
      %3949 = vmatpush1.bf16.msra.mxu0 0
      %3950 = vmatprep.subr.bf16.mxu0 0
      %3951 = vmatpush1.bf16.msra.mxu0 0
      %3952 = vmatprep.subr.bf16.mxu0 0
      %3953 = vmatpush1.bf16.msra.mxu0 0
      %3954 = vmatprep.subr.bf16.mxu0 0
      %3955 = vmatpush1.bf16.msra.mxu0 0
      %3956 = vmatprep.subr.bf16.mxu0 0
      %3957 = vmatpush1.bf16.msra.mxu0 0
      %3958 = vmatprep.subr.bf16.mxu0 0
      %3959 = vmatpush1.bf16.msra.mxu0 0
      %3960 = vmatprep.subr.bf16.mxu0 0
      %3961 = vmatpush1.bf16.msra.mxu0 0
      %3962 = vmatprep.subr.bf16.mxu0 0
      %3963 = vmatpush1.bf16.msra.mxu0 0
      %3964 = vmatprep.mubr.bf16.mxu0 0
      %3965 = vmatmul.mubr.bf16.gmra.mrb[0].mxu0 %v3927
      %v3966 = vpop.f32.mrb[0].mxu0
      %v3967 = vadd.f32 0.0, %v3966
      %v3968 = vpop.f32.mrb[0].mxu0
      %v3969 = vpop.f32.mrb[0].mxu0
      %v3970 = vpop.f32.mrb[0].mxu0
      %3971 = vdwg.mxu0
      %3972 = vrot.lane.b32.xlu0 %v2522, 40
      %v3973 = vpop.permute.xlu0 %3972
      %v3975 = vsel %vm538, %v3875, 0
      %v3978 = vsel %vm724, %v3973, 0
      %3980 = vmatprep.subr.bf16.mxu0 0
      %3981 = vmatpush1.bf16.msra.mxu0 %v3978
      %3982 = vmatprep.subr.bf16.mxu0 0
      %3983 = vmatpush1.bf16.msra.mxu0 0
      %3984 = vmatprep.subr.bf16.mxu0 0
      %3985 = vmatpush1.bf16.msra.mxu0 0
      %3986 = vmatprep.subr.bf16.mxu0 0
      %3987 = vmatpush1.bf16.msra.mxu0 0
      %3988 = vmatprep.subr.bf16.mxu0 0
      %3989 = vmatpush1.bf16.msra.mxu0 0
      %3990 = vmatprep.subr.bf16.mxu0 0
      %3991 = vmatpush1.bf16.msra.mxu0 0
      %3992 = vmatprep.subr.bf16.mxu0 0
      %3993 = vmatpush1.bf16.msra.mxu0 0
      %3994 = vmatprep.subr.bf16.mxu0 0
      %3995 = vmatpush1.bf16.msra.mxu0 0
      %3996 = vmatprep.subr.bf16.mxu0 0
      %3997 = vmatpush1.bf16.msra.mxu0 0
      %3998 = vmatprep.subr.bf16.mxu0 0
      %3999 = vmatpush1.bf16.msra.mxu0 0
      %4000 = vmatprep.subr.bf16.mxu0 0
      %4001 = vmatpush1.bf16.msra.mxu0 0
      %4002 = vmatprep.subr.bf16.mxu0 0
      %4003 = vmatpush1.bf16.msra.mxu0 0
      %4004 = vmatprep.subr.bf16.mxu0 0
      %4005 = vmatpush1.bf16.msra.mxu0 0
      %4006 = vmatprep.subr.bf16.mxu0 0
      %4007 = vmatpush1.bf16.msra.mxu0 0
      %4008 = vmatprep.subr.bf16.mxu0 0
      %4009 = vmatpush1.bf16.msra.mxu0 0
      %4010 = vmatprep.subr.bf16.mxu0 0
      %4011 = vmatpush1.bf16.msra.mxu0 0
      %4012 = vmatprep.mubr.bf16.mxu0 0
      %4013 = vmatmul.mubr.bf16.gmra.mrb[0].mxu0 %v3975
      %v4014 = vpop.f32.mrb[0].mxu0
      %v4015 = vadd.f32 0.0, %v4014
      %v4016 = vpop.f32.mrb[0].mxu0
      %v4017 = vpop.f32.mrb[0].mxu0
      %v4018 = vpop.f32.mrb[0].mxu0
      %4019 = vdwg.mxu0
      %v4020 = vpack.c.bf16 %v3967, %v3919
      %v4021 = vpack.c.bf16 %v4015, %v4015
      %v4023 = vsel %vm538, %v4020, 0
      %v4026 = vsel %vm538, %v4021, 0
      %v4029 = vsel %vm724, %v2519, 0
      %4031 = vmatprep.subr.bf16.mxu0 0
      %4032 = vmatpush1.bf16.msra.mxu0 %v4029
      %4033 = vmatprep.subr.bf16.mxu0 0
      %4034 = vmatpush1.bf16.msra.mxu0 0
      %4035 = vmatprep.subr.bf16.mxu0 0
      %4036 = vmatpush1.bf16.msra.mxu0 0
      %4037 = vmatprep.subr.bf16.mxu0 0
      %4038 = vmatpush1.bf16.msra.mxu0 0
      %4039 = vmatprep.subr.bf16.mxu0 0
      %4040 = vmatpush1.bf16.msra.mxu0 0
      %4041 = vmatprep.subr.bf16.mxu0 0
      %4042 = vmatpush1.bf16.msra.mxu0 0
      %4043 = vmatprep.subr.bf16.mxu0 0
      %4044 = vmatpush1.bf16.msra.mxu0 0
      %4045 = vmatprep.subr.bf16.mxu0 0
      %4046 = vmatpush1.bf16.msra.mxu0 0
      %4047 = vmatprep.subr.bf16.mxu0 0
      %4048 = vmatpush1.bf16.msra.mxu0 0
      %4049 = vmatprep.subr.bf16.mxu0 0
      %4050 = vmatpush1.bf16.msra.mxu0 0
      %4051 = vmatprep.subr.bf16.mxu0 0
      %4052 = vmatpush1.bf16.msra.mxu0 0
      %4053 = vmatprep.subr.bf16.mxu0 0
      %4054 = vmatpush1.bf16.msra.mxu0 0
      %4055 = vmatprep.subr.bf16.mxu0 0
      %4056 = vmatpush1.bf16.msra.mxu0 0
      %4057 = vmatprep.subr.bf16.mxu0 0
      %4058 = vmatpush1.bf16.msra.mxu0 0
      %4059 = vmatprep.subr.bf16.mxu0 0
      %4060 = vmatpush1.bf16.msra.mxu0 0
      %4061 = vmatprep.subr.bf16.mxu0 0
      %4062 = vmatpush1.bf16.msra.mxu0 0
      %4063 = vmatprep.mubr.bf16.mxu0 0
      %4064 = vmatmul.mubr.bf16.gmra.mrb[0].mxu0 %v4023
      %v4065 = vpop.f32.mrb[0].mxu0
      %v4066 = vadd.f32 0.0, %v4065
      %v4067 = vpop.f32.mrb[0].mxu0
      %v4068 = vpop.f32.mrb[0].mxu0
      %v4069 = vadd.f32 0.0, %v4068
      %v4070 = vpop.f32.mrb[0].mxu0
      %4071 = vmatprep.mubr.bf16.mxu0 0
      %4072 = vmatmul.mubr.bf16.gmra.mrb[0].mxu0 %v4026
      %v4073 = vpop.f32.mrb[0].mxu0
      %v4074 = vadd.f32 0.0, %v4073
      %v4075 = vpop.f32.mrb[0].mxu0
      %v4076 = vpop.f32.mrb[0].mxu0
      %v4077 = vpop.f32.mrb[0].mxu0
      %4078 = vdwg.mxu0
      %v4079 = vadd.f32 %v3687, %v4066
      %v4080 = vadd.f32 %v3688, %v4069
      %v4081 = vadd.f32 %v3689, %v4074
      %s4082 = scalar_lea.vmem %s4, 1
      %v4083 = vld [vmem:[%s4082] sm:$0x1]
      %v4085 = vlaneseq
      %v4086 = vshrl.u32 %v4085, 7
      %v4087 = vsub.s32 0, %v4086
      %v4088 = vrot.slane %v4083, %v4087
      %v4090 = vadd.f32 %v4079, %v4088
      %v4091 = vadd.f32 %v4080, %v4088
      %v4092 = vadd.f32 %v4081, %v4088
      %v4093 = vadd.f32 %v2431, %v4090
      %v4094 = vadd.f32 %v2432, %v4091
      %v4095 = vadd.f32 %v2433, %v4092
      %s4096 = scalar_lea.vmem %s5, 1
      %v4097 = vld [vmem:[%s4096] sm:$0x1]
      %s4098 = scalar_lea.vmem %s6, 1
      %v4099 = vld [vmem:[%s4098] sm:$0x1]
      %v4100 = vsel %vm473, %v4093, 0.0
      %4101 = vadd.xlane.f32.xlu0 %v4100
      %v4102 = vpop.xlane.xlu0 %4101
      %v4103 = vsel %vm473, %v4094, 0.0
      %4104 = vadd.xlane.f32.xlu0 %v4103
      %v4105 = vpop.xlane.xlu0 %4104
      %v4106 = vsel %vm473, %v4095, 0.0
      %4107 = vadd.xlane.f32.xlu0 %v4106
      %v4108 = vpop.xlane.xlu0 %4107
      %v4109 = vmul.f32 %v4102, %v2120
      %v4110 = vmul.f32 %v4105, %v2120
      %v4111 = vmul.f32 %v4108, %v2120
      %v4112 = vsub.f32 %v4093, %v4109
      %v4113 = vsub.f32 %v4094, %v4110
      %v4114 = vsub.f32 %v4095, %v4111
      %v4115 = vmul.f32 %v4112, %v4112
      %v4116 = vmul.f32 %v4113, %v4113
      %v4117 = vmul.f32 %v4114, %v4114
      %v4118 = vsel %vm473, %v4115, 0.0
      %4119 = vadd.xlane.f32.xlu0 %v4118
      %v4120 = vpop.xlane.xlu0 %4119
      %v4121 = vsel %vm473, %v4116, 0.0
      %4122 = vadd.xlane.f32.xlu0 %v4121
      %v4123 = vpop.xlane.xlu0 %4122
      %v4124 = vsel %vm473, %v4117, 0.0
      %4125 = vadd.xlane.f32.xlu0 %v4124
      %v4126 = vpop.xlane.xlu0 %4125
      %v4127 = vmul.f32 %v4120, %v2120
      %v4128 = vmul.f32 %v4123, %v2120
      %v4129 = vmul.f32 %v4126, %v2120
      %v4130 = vadd.f32 %v4127, 1e-05
      %v4131 = vadd.f32 %v4128, 1e-05
      %v4132 = vadd.f32 %v4129, 1e-05
      %v4133 = vrsqrt.pop %v4130
      %v4134 = vrsqrt.pop %v4131
      %v4135 = vrsqrt.pop %v4132
      %v4136 = vmul.f32 %v4112, %v4133
      %v4137 = vmul.f32 %v4113, %v4134
      %v4138 = vmul.f32 %v4114, %v4135
      %v4140 = vlaneseq
      %v4141 = vshrl.u32 %v4140, 7
      %v4142 = vsub.s32 0, %v4141
      %v4143 = vrot.slane %v4097, %v4142
      %v4145 = vmul.f32 %v4136, %v4143
      %v4146 = vmul.f32 %v4137, %v4143
      %v4147 = vmul.f32 %v4138, %v4143
      %v4149 = vlaneseq
      %v4150 = vshrl.u32 %v4149, 7
      %v4151 = vsub.s32 0, %v4150
      %v4152 = vrot.slane %v4099, %v4151
      %v4154 = vadd.f32 %v4145, %v4152
      %v4155 = vadd.f32 %v4146, %v4152
      %v4156 = vadd.f32 %v4147, %v4152
      %v4157 = vpack.c.bf16 %v4155, %v4154
      %v4158 = vpack.c.bf16 %v4156, %v4156
      %s4159 = scalar_lea.vmem %s7, 16
      %v4160 = vld [vmem:[%s4159] sm:$0xf]
      %v4161 = vld [vmem:[%s4159 + $0x4] sm:$0xf]
      %v4162 = vld [vmem:[%s4159 + $0x8] sm:$0xf]
      %v4163 = vld [vmem:[%s4159 + $0xc] sm:$0xf]
      %s4164 = scalar_lea.vmem %s8, 1
      %v4165 = vld [vmem:[%s4164] sm:$0x1]
      %v4167 = vlaneseq
      %v4168 = vshrl.u32 %v4167, 7
      %v4169 = vsub.s32 0, %v4168
      %v4170 = vrot.slane %v4165, %v4169
      %v4176 = vunpack.c.l.b16 %v4160
      %v4177 = vunpack.c.l.b16 %v4161
      %v4178 = vunpack.c.l.b16 %v4162
      %v4179 = vunpack.c.l.b16 %v4163
      %v4180 = vpack.c.b16 %v4177, %v4176
      %v4181 = vpack.c.b16 %v4179, %v4178
      %v4185 = vsel %vm473, %v4157, 0
      %v4188 = vsel %vm473, %v4158, 0
      %4190 = vmatprep.subr.bf16.mxu0 0
      %4191 = vmatpush1.bf16.msra.mxu0 %v4180
      %4192 = vmatprep.subr.bf16.mxu0 0
      %4193 = vmatpush1.bf16.msra.mxu0 %v4181
      %4194 = vmatprep.subr.bf16.mxu0 0
      %4195 = vmatpush1.bf16.msra.mxu0 0
      %4196 = vmatprep.subr.bf16.mxu0 0
      %4197 = vmatpush1.bf16.msra.mxu0 0
      %4198 = vmatprep.subr.bf16.mxu0 0
      %4199 = vmatpush1.bf16.msra.mxu0 0
      %4200 = vmatprep.subr.bf16.mxu0 0
      %4201 = vmatpush1.bf16.msra.mxu0 0
      %4202 = vmatprep.subr.bf16.mxu0 0
      %4203 = vmatpush1.bf16.msra.mxu0 0
      %4204 = vmatprep.subr.bf16.mxu0 0
      %4205 = vmatpush1.bf16.msra.mxu0 0
      %4206 = vmatprep.subr.bf16.mxu0 0
      %4207 = vmatpush1.bf16.msra.mxu0 0
      %4208 = vmatprep.subr.bf16.mxu0 0
      %4209 = vmatpush1.bf16.msra.mxu0 0
      %4210 = vmatprep.subr.bf16.mxu0 0
      %4211 = vmatpush1.bf16.msra.mxu0 0
      %4212 = vmatprep.subr.bf16.mxu0 0
      %4213 = vmatpush1.bf16.msra.mxu0 0
      %4214 = vmatprep.subr.bf16.mxu0 0
      %4215 = vmatpush1.bf16.msra.mxu0 0
      %4216 = vmatprep.subr.bf16.mxu0 0
      %4217 = vmatpush1.bf16.msra.mxu0 0
      %4218 = vmatprep.subr.bf16.mxu0 0
      %4219 = vmatpush1.bf16.msra.mxu0 0
      %4220 = vmatprep.subr.bf16.mxu0 0
      %4221 = vmatpush1.bf16.msra.mxu0 0
      %4222 = vmatprep.mubr.bf16.mxu0 0
      %4223 = vmatmul.mubr.bf16.gmra.mrb[0].mxu0 %v4185
      %v4224 = vpop.f32.mrb[0].mxu0
      %v4225 = vadd.f32 %v4170, %v4224
      %v4226 = vpop.f32.mrb[0].mxu0
      %v4227 = vpop.f32.mrb[0].mxu0
      %v4228 = vadd.f32 %v4170, %v4227
      %v4229 = vpop.f32.mrb[0].mxu0
      %4230 = vmatprep.mubr.bf16.mxu0 0
      %4231 = vmatmul.mubr.bf16.gmra.mrb[0].mxu0 %v4188
      %v4232 = vpop.f32.mrb[0].mxu0
      %v4233 = vadd.f32 %v4170, %v4232
      %v4234 = vpop.f32.mrb[0].mxu0
      %v4235 = vpop.f32.mrb[0].mxu0
      %v4236 = vpop.f32.mrb[0].mxu0
      %4237 = vdwg.mxu0
      %v4238 = vmax.f32 %v4225, 0.0
      %v4239 = vmax.f32 %v4228, 0.0
      %v4240 = vmax.f32 %v4233, 0.0
      %v4241 = vpack.c.bf16 %v4239, %v4238
      %v4242 = vpack.c.bf16 %v4240, %v4240
      %s4243 = scalar_lea.vmem %s9, 64
      %v4244 = vld [vmem:[%s4243] sm:$0xf]
      %v4245 = vld [vmem:[%s4243 + $0x4] sm:$0xf]
      %v4246 = vld [vmem:[%s4243 + $0x8] sm:$0xf]
      %v4247 = vld [vmem:[%s4243 + $0xc] sm:$0xf]
      %v4248 = vld [vmem:[%s4243 + $0x10] sm:$0xf]
      %v4249 = vld [vmem:[%s4243 + $0x14] sm:$0xf]
      %v4250 = vld [vmem:[%s4243 + $0x18] sm:$0xf]
      %v4251 = vld [vmem:[%s4243 + $0x1c] sm:$0xf]
      %v4252 = vld [vmem:[%s4243 + $0x20] sm:$0xf]
      %v4253 = vld [vmem:[%s4243 + $0x24] sm:$0xf]
      %v4254 = vld [vmem:[%s4243 + $0x28] sm:$0xf]
      %v4255 = vld [vmem:[%s4243 + $0x2c] sm:$0xf]
      %v4256 = vld [vmem:[%s4243 + $0x30] sm:$0xf]
      %v4257 = vld [vmem:[%s4243 + $0x34] sm:$0xf]
      %v4258 = vld [vmem:[%s4243 + $0x38] sm:$0xf]
      %v4259 = vld [vmem:[%s4243 + $0x3c] sm:$0xf]
      %s4260 = scalar_lea.vmem %s10, 1
      %v4261 = vld [vmem:[%s4260] sm:$0x1]
      %v4263 = vlaneseq
      %v4264 = vshrl.u32 %v4263, 7
      %v4265 = vsub.s32 0, %v4264
      %v4266 = vrot.slane %v4261, %v4265
      %v4284 = vunpack.c.l.b16 %v4244
      %v4285 = vunpack.c.l.b16 %v4245
      %v4286 = vunpack.c.l.b16 %v4246
      %v4287 = vunpack.c.l.b16 %v4247
      %v4288 = vunpack.c.l.b16 %v4248
      %v4289 = vunpack.c.l.b16 %v4249
      %v4290 = vunpack.c.l.b16 %v4250
      %v4291 = vunpack.c.l.b16 %v4251
      %v4292 = vunpack.c.l.b16 %v4252
      %v4293 = vunpack.c.l.b16 %v4253
      %v4294 = vunpack.c.l.b16 %v4254
      %v4295 = vunpack.c.l.b16 %v4255
      %v4296 = vunpack.c.l.b16 %v4256
      %v4297 = vunpack.c.l.b16 %v4257
      %v4298 = vunpack.c.l.b16 %v4258
      %v4299 = vunpack.c.l.b16 %v4259
      %v4300 = vpack.c.b16 %v4285, %v4284
      %v4301 = vpack.c.b16 %v4287, %v4286
      %v4302 = vpack.c.b16 %v4289, %v4288
      %v4303 = vpack.c.b16 %v4291, %v4290
      %v4304 = vpack.c.b16 %v4293, %v4292
      %v4305 = vpack.c.b16 %v4295, %v4294
      %v4306 = vpack.c.b16 %v4297, %v4296
      %v4307 = vpack.c.b16 %v4299, %v4298
      %4316 = vmatprep.subr.bf16.mxu0 0
      %4317 = vmatpush1.bf16.msra.mxu0 %v4300
      %4318 = vmatprep.subr.bf16.mxu0 0
      %4319 = vmatpush1.bf16.msra.mxu0 %v4301
      %4320 = vmatprep.subr.bf16.mxu0 0
      %4321 = vmatpush1.bf16.msra.mxu0 %v4302
      %4322 = vmatprep.subr.bf16.mxu0 0
      %4323 = vmatpush1.bf16.msra.mxu0 %v4303
      %4324 = vmatprep.subr.bf16.mxu0 0
      %4325 = vmatpush1.bf16.msra.mxu0 %v4304
      %4326 = vmatprep.subr.bf16.mxu0 0
      %4327 = vmatpush1.bf16.msra.mxu0 %v4305
      %4328 = vmatprep.subr.bf16.mxu0 0
      %4329 = vmatpush1.bf16.msra.mxu0 %v4306
      %4330 = vmatprep.subr.bf16.mxu0 0
      %4331 = vmatpush1.bf16.msra.mxu0 %v4307
      %4332 = vmatprep.subr.bf16.mxu0 0
      %4333 = vmatpush1.bf16.msra.mxu0 0
      %4334 = vmatprep.subr.bf16.mxu0 0
      %4335 = vmatpush1.bf16.msra.mxu0 0
      %4336 = vmatprep.subr.bf16.mxu0 0
      %4337 = vmatpush1.bf16.msra.mxu0 0
      %4338 = vmatprep.subr.bf16.mxu0 0
      %4339 = vmatpush1.bf16.msra.mxu0 0
      %4340 = vmatprep.subr.bf16.mxu0 0
      %4341 = vmatpush1.bf16.msra.mxu0 0
      %4342 = vmatprep.subr.bf16.mxu0 0
      %4343 = vmatpush1.bf16.msra.mxu0 0
      %4344 = vmatprep.subr.bf16.mxu0 0
      %4345 = vmatpush1.bf16.msra.mxu0 0
      %4346 = vmatprep.subr.bf16.mxu0 0
      %4347 = vmatpush1.bf16.msra.mxu0 0
      %4348 = vmatprep.mubr.bf16.mxu0 0
      %4349 = vmatmul.mubr.bf16.gmra.mrb[0].mxu0 %v4241
      %v4350 = vpop.f32.mrb[0].mxu0
      %v4351 = vadd.f32 %v4266, %v4350
      %v4352 = vpop.f32.mrb[0].mxu0
      %v4353 = vpop.f32.mrb[0].mxu0
      %v4354 = vadd.f32 %v4266, %v4353
      %v4355 = vpop.f32.mrb[0].mxu0
      %4356 = vmatprep.mubr.bf16.mxu0 0
      %4357 = vmatmul.mubr.bf16.gmra.mrb[0].mxu0 %v4242
      %v4358 = vpop.f32.mrb[0].mxu0
      %v4359 = vadd.f32 %v4266, %v4358
      %v4360 = vpop.f32.mrb[0].mxu0
      %v4361 = vpop.f32.mrb[0].mxu0
      %v4362 = vpop.f32.mrb[0].mxu0
      %4363 = vdwg.mxu0
      %v4364 = vadd.f32 %v4154, %v4351
      %v4365 = vadd.f32 %v4155, %v4354
      %v4366 = vadd.f32 %v4156, %v4359
      %s4367 = scalar_lea.vmem %s11, 1
      %v4368 = vld [vmem:[%s4367] sm:$0x1]
      %s4369 = scalar_lea.vmem %s12, 1
      %v4370 = vld [vmem:[%s4369] sm:$0x1]
      %v4371 = vsel %vm473, %v4364, 0.0
      %4372 = vadd.xlane.f32.xlu0 %v4371
      %v4373 = vpop.xlane.xlu0 %4372
      %v4374 = vsel %vm473, %v4365, 0.0
      %4375 = vadd.xlane.f32.xlu0 %v4374
      %v4376 = vpop.xlane.xlu0 %4375
      %v4377 = vsel %vm473, %v4366, 0.0
      %4378 = vadd.xlane.f32.xlu0 %v4377
      %v4379 = vpop.xlane.xlu0 %4378
      %v4380 = vmul.f32 %v4373, %v2120
      %v4381 = vmul.f32 %v4376, %v2120
      %v4382 = vmul.f32 %v4379, %v2120
      %v4383 = vsub.f32 %v4364, %v4380
      %v4384 = vsub.f32 %v4365, %v4381
      %v4385 = vsub.f32 %v4366, %v4382
      %v4386 = vmul.f32 %v4383, %v4383
      %v4387 = vmul.f32 %v4384, %v4384
      %v4388 = vmul.f32 %v4385, %v4385
      %v4389 = vsel %vm473, %v4386, 0.0
      %4390 = vadd.xlane.f32.xlu0 %v4389
      %v4391 = vpop.xlane.xlu0 %4390
      %v4392 = vsel %vm473, %v4387, 0.0
      %4393 = vadd.xlane.f32.xlu0 %v4392
      %v4394 = vpop.xlane.xlu0 %4393
      %v4395 = vsel %vm473, %v4388, 0.0
      %4396 = vadd.xlane.f32.xlu0 %v4395
      %v4397 = vpop.xlane.xlu0 %4396
      %v4398 = vmul.f32 %v4391, %v2120
      %v4399 = vmul.f32 %v4394, %v2120
      %v4400 = vmul.f32 %v4397, %v2120
      %v4401 = vadd.f32 %v4398, 1e-05
      %v4402 = vadd.f32 %v4399, 1e-05
      %v4403 = vadd.f32 %v4400, 1e-05
      %v4404 = vrsqrt.pop %v4401
      %v4405 = vrsqrt.pop %v4402
      %v4406 = vrsqrt.pop %v4403
      %v4407 = vmul.f32 %v4383, %v4404
      %v4408 = vmul.f32 %v4384, %v4405
      %v4409 = vmul.f32 %v4385, %v4406
      %v4411 = vlaneseq
      %v4412 = vshrl.u32 %v4411, 7
      %v4413 = vsub.s32 0, %v4412
      %v4414 = vrot.slane %v4368, %v4413
      %v4416 = vmul.f32 %v4407, %v4414
      %v4417 = vmul.f32 %v4408, %v4414
      %v4418 = vmul.f32 %v4409, %v4414
      %v4420 = vlaneseq
      %v4421 = vshrl.u32 %v4420, 7
      %v4422 = vsub.s32 0, %v4421
      %v4423 = vrot.slane %v4370, %v4422
      %v4425 = vadd.f32 %v4416, %v4423
      %v4426 = vadd.f32 %v4417, %v4423
      %v4427 = vadd.f32 %v4418, %v4423
      %4428 = vst.msk [vmem:[%s442] sm:$0xff] %vm473, %v4425
      %4429 = vst.msk [vmem:[%s442 + $0x8] sm:$0xff] %vm473, %v4426
      %4430 = vst.msk [vmem:[%s442 + $0x10] sm:$0xff] %vm473, %v4427
      %s4431 = smul.u32 3, %s24
      %p4432 = scmp.lt.s32.totalorder %s4431, 5
      %s4433 = scalar_select %p4432, %s4431, 5
      %s4434 = smul.addr %s4433, 8
      %s4435 = scalar_lea.vmem %s13, %s4434
      // Predicated region
      $region73: #{tpu_custom_call.1} parent=71 // pred_check
        %p4436 = pneg %p320
      $region74: #{tpu_custom_call.1} parent=71 // pred_check_branch
        %4438 = sbr.rel (%p4436) target = $region76
      $region75: #{tpu_custom_call.1} parent=71 // pred_region
        %s4439 = smul.u32 3, %s24
      $region76: #{tpu_custom_call.1} parent=71 // pred_fallthru
        _
    $region72: #{tpu_custom_call.1} parent=5 // pred_fallthru
      _
    %p4440 = scmp.le.s32.totalorder 2, %s19
    // Predicated region
    $region77: #{tpu_custom_call.1} parent=5 // pred_check
      %p4441 = pneg %p4440
    $region78: #{tpu_custom_call.1} parent=5 // pred_check_branch
      %4443 = sbr.rel (%p4441) target = $region80
    $region79: #{tpu_custom_call.1} parent=5 // pred_region
      %s4444 = ssub.s32 %s19, 2
      // Predicated region
      $region81: #{tpu_custom_call.1} parent=79 // pred_check
        %p4445 = pneg %p326
      $region82: #{tpu_custom_call.1} parent=79 // pred_check_branch
        %4447 = sbr.rel (%p4445) target = $region84
      $region83: #{tpu_custom_call.1} parent=79 // pred_region
        %s4448 = smul.u32 3, %s25
        %p4449 = scmp.lt.s32.totalorder %s4448, 5
        %s4450 = scalar_select %p4449, %s4448, 5
        %s4451 = smul.addr %s4450, 8
        %s4452 = scalar_lea.vmem %s13, %s4451
      $region84: #{tpu_custom_call.1} parent=79 // pred_fallthru
        _
    $region80: #{tpu_custom_call.1} parent=5 // pred_fallthru
      _
  $region6: #{tpu_custom_call.1} parent=0 // loop_footer
    %s23 = sadd.s32 1, %s19
  $region7: #{tpu_custom_call.1} parent=0 // loop_footer_branch
    %18 = sbr.rel target = $region3
  $region8: #{tpu_custom_call.1} parent=0 // loop_exit
    _

</llo_original>
